<compile_context>
chip_gen: v7x
topology: tpu7x:2x2x1
jax: 0.10.0
libtpu: 0.0.40
codegen_flags: <defaults>
</compile_context>

<pallas_src>
import math

import jax
import jax.numpy as jnp
import numpy as np
from jax.experimental import pallas as pl
from jax.experimental.pallas import tpu as pltpu

# ----------------------------- model constants ------------------------------
IN_P = 6                      # space.dims (3) + 'raw' view dims (3)
FREQS = 16                    # FourierEncoder freqs
FOUR = 2 * FREQS              # sin + cos features
SIGMA = float(1 << 5)         # FourierEncoder sigma (nerf_atlas default)
HIDDEN = 128                  # hidden_size
OUT = 3                       # out_features
OUT_PAD = 128                 # lane-dense padded output width
NUM_LAYERS = 5
SKIP = 3
SKIP_LAYERS = tuple(i for i in range(NUM_LAYERS) if i % SKIP == 0 and i != NUM_LAYERS - 1)
LRELU_SLOPE = 0.01
THIN_EPS = 1e-2
TM_DEFAULT = 256              # row tile (sweep 256-512)


def _lrelu(x):
    return jnp.maximum(x, LRELU_SLOPE * x)


def _thin_sigmoid(x):
    # 'thin' sigmoid: 0.98*sigmoid(x) + 0.01  (manual form; guaranteed Mosaic lowering)
    return (1.0 - 2.0 * THIN_EPS) / (1.0 + jnp.exp(-x)) + THIN_EPS


# ----------------------------------------------------------------------------
# Kernel: whole Fourier-enc + 5-layer skip-MLP + output + thin sigmoid for one
# row tile.  cat([h, init]) @ W is rewritten as h@Wh + lrelu(init)@Wp, and the
# init-feature "concat" is expressed purely through weight-row partitioning,
# so no in-kernel concatenation / padding is needed.
# ----------------------------------------------------------------------------
def _basic_kernel(inp_ref, fbasis_ref, fshift_ref,
                  w_ir_ref, w_if_ref, b_i_ref,
                  w_sr_ref, w_sf_ref,
                  w_hh_ref, b_h_ref, w_o_ref, b_o_ref,
                  out_ref):
    f32, bf16 = jnp.float32, jnp.bfloat16

    raw = inp_ref[...]                                                # (TM, 6+L) f32
    # Fourier features: phases in f32 (large magnitude), [sin | cos] via +pi/2 shift.
    ph = jnp.dot(raw, fbasis_ref[...], preferred_element_type=f32) + fshift_ref[...]
    four = jnp.sin(ph)                                                # (TM, 32) f32

    raw_b, four_b = raw.astype(bf16), four.astype(bf16)
    a_raw_b, a_four_b = _lrelu(raw).astype(bf16), _lrelu(four).astype(bf16)

    # init linear (no activation before it): init_feat @ W_init + b
    h = (jnp.dot(raw_b, w_ir_ref[...], preferred_element_type=f32)
         + jnp.dot(four_b, w_if_ref[...], preferred_element_type=f32)
         + b_i_ref[...])                                              # (TM, 128) f32

    # Fused skip projections of lrelu(init_feat) for layers {0,3}: one wide matmul pair.
    skip = (jnp.dot(a_raw_b, w_sr_ref[...], preferred_element_type=f32)
            + jnp.dot(a_four_b, w_sf_ref[...], preferred_element_type=f32))  # (TM, 256)

    for i in range(NUM_LAYERS):                                       # static unroll
        z = (jnp.dot(_lrelu(h).astype(bf16), w_hh_ref[i],
                     preferred_element_type=f32)
             + b_h_ref[i])
        if i in SKIP_LAYERS:
            s = SKIP_LAYERS.index(i)
            z = z + skip[:, s * HIDDEN:(s + 1) * HIDDEN]
        h = z

    z = (jnp.dot(_lrelu(h).astype(bf16), w_o_ref[...], preferred_element_type=f32)
         + b_o_ref[...])                                              # (TM, 128) padded
    out_ref[...] = _thin_sigmoid(z)


# ----------------------------------------------------------------------------
# Canonical parameters (deterministic xavier-uniform, zero biases).
# Stored (in_features, out_features) so compute is x @ W.
# ----------------------------------------------------------------------------
def init_params(key, latent_size):
    dim_p = IN_P + FOUR + latent_size
    ks = jax.random.split(key, NUM_LAYERS + 3)

    def xavier(k, fan_in, fan_out):
        a = math.sqrt(6.0 / (fan_in + fan_out))
        return jax.random.uniform(k, (fan_in, fan_out), jnp.float32, -a, a)

    w_h, b_h = [], []
    for i in range(NUM_LAYERS):
        fan_in = HIDDEN + dim_p if i in SKIP_LAYERS else HIDDEN
        w_h.append(xavier(ks[2 + i], fan_in, HIDDEN))
        b_h.append(jnp.zeros((HIDDEN,), jnp.float32))

    return {
        "basis": jax.random.normal(ks[0], (IN_P, FREQS), jnp.float32) * SIGMA,
        "w_init": xavier(ks[1], dim_p, HIDDEN),
        "b_init": jnp.zeros((HIDDEN,), jnp.float32),
        "w_h": w_h, "b_h": b_h,
        "w_out": xavier(ks[2 + NUM_LAYERS], HIDDEN, OUT),
        "b_out": jnp.zeros((OUT,), jnp.float32),
    }


def pack_params(raw, latent_size):
    """Kernel-layout params: bf16 matmul weights, f32 biases / Fourier basis."""
    bf16 = jnp.bfloat16
    raw_dim = IN_P + latent_size

    # Duplicated (sin|cos) basis, zero rows for the latent lanes of the raw input.
    fbasis = jnp.zeros((raw_dim, FOUR), jnp.float32)
    fbasis = fbasis.at[:IN_P, :FREQS].set(raw["basis"]).at[:IN_P, FREQS:].set(raw["basis"])
    fshift = jnp.concatenate(
        [jnp.zeros((1, FREQS), jnp.float32),
         jnp.full((1, FREQS), jnp.pi / 2, jnp.float32)], axis=-1)

    def split_init_rows(w):      # canonical init layout: [p(6), fourier(32), latent(L)]
        w_raw = w[:IN_P]
        if latent_size > 0:
            w_raw = jnp.concatenate([w_raw, w[IN_P + FOUR:]], axis=0)
        return w_raw, w[IN_P:IN_P + FOUR]

    w_ir, w_if = split_init_rows(raw["w_init"])

    s_raw, s_four, w_hh, b_h = [], [], [], []
    for i in range(NUM_LAYERS):
        w = raw["w_h"][i]
        if i in SKIP_LAYERS:
            w_hh.append(w[:HIDDEN])
            wr, wf = split_init_rows(w[HIDDEN:])
            s_raw.append(wr)
            s_four.append(wf)
        else:
            w_hh.append(w)
        b_h.append(raw["b_h"][i].reshape(1, HIDDEN))

    w_o = jnp.zeros((HIDDEN, OUT_PAD), jnp.float32).at[:, :OUT].set(raw["w_out"])
    b_o = jnp.zeros((1, OUT_PAD), jnp.float32).at[:, :OUT].set(raw["b_out"])

    return {
        "fbasis": fbasis, "fshift": fshift,
        "w_ir": w_ir.astype(bf16), "w_if": w_if.astype(bf16),
        "b_i": raw["b_init"].reshape(1, HIDDEN),
        "w_sr": jnp.concatenate(s_raw, axis=1).astype(bf16),    # (6+L, 256)
        "w_sf": jnp.concatenate(s_four, axis=1).astype(bf16),   # (32, 256)
        "w_hh": jnp.stack(w_hh, axis=0).astype(bf16),           # (5, 128, 128)
        "b_h": jnp.stack(b_h, axis=0),                          # (5, 1, 128)
        "w_o": w_o.astype(bf16), "b_o": b_o,
    }


def _choose_tm(m, tm_max=TM_DEFAULT):
    """Largest row tile <= tm_max that still yields >=2 grid steps (v7x has 2 TCs)."""
    tm = tm_max
    while tm > 8 and m <= tm:
        tm //= 2
    return max(tm, 8)


# ----------------------------------------------------------------------------
# Wrapper: only a cheap concat + row pad in plain JAX; the whole MLP (including
# the Fourier encoding) is one Pallas kernel.
# ----------------------------------------------------------------------------
def basic_forward(packed, x, view, latent, *, tm=TM_DEFAULT):
    feats = jnp.concatenate([x, view, latent], axis=-1).astype(jnp.float32)
    batches = feats.shape[:-1]
    raw_dim = feats.shape[-1]
    m = int(np.prod(batches))
    flat = feats.reshape(m, raw_dim)

    tm = _choose_tm(m, tm)
    m_pad = pl.cdiv(m, tm) * tm
    if m_pad != m:
        flat = jnp.pad(flat, ((0, m_pad - m), (0, 0)))

    full = lambda i: (0, 0)
    full3 = lambda i: (0, 0, 0)
    # NOTE: constant-index weight specs could take pipeline_mode=pl.Buffered(1) to
    # save ~0.25 MB of double-buffered VMEM on v7x; negligible here, so omitted.
    out = pl.pallas_call(
        _basic_kernel,
        out_shape=jax.ShapeDtypeStruct((m_pad, OUT_PAD), jnp.float32),
        grid_spec=pltpu.PrefetchScalarGridSpec(
            num_scalar_prefetch=0,
            grid=(m_pad // tm,),
            in_specs=[
                pl.BlockSpec((tm, raw_dim), lambda i: (i, 0)),        # activations
                pl.BlockSpec(packed["fbasis"].shape, full),           # fourier basis
                pl.BlockSpec(packed["fshift"].shape, full),           # sin/cos phase shift
                pl.BlockSpec(packed["w_ir"].shape, full),             # init W (raw rows)
                pl.BlockSpec(packed["w_if"].shape, full),             # init W (fourier rows)
                pl.BlockSpec(packed["b_i"].shape, full),              # init bias
                pl.BlockSpec(packed["w_sr"].shape, full),             # fused skip W (raw)
                pl.BlockSpec(packed["w_sf"].shape, full),             # fused skip W (fourier)
                pl.BlockSpec(packed["w_hh"].shape, full3),            # hidden h-part weights
                pl.BlockSpec(packed["b_h"].shape, full3),             # hidden biases
                pl.BlockSpec(packed["w_o"].shape, full),              # out W (padded)
                pl.BlockSpec(packed["b_o"].shape, full),              # out bias (padded)
            ],
            out_specs=pl.BlockSpec((tm, OUT_PAD), lambda i: (i, 0)),
        ),
        compiler_params=pltpu.CompilerParams(dimension_semantics=("parallel",)),
    )(flat, packed["fbasis"], packed["fshift"], packed["w_ir"], packed["w_if"],
      packed["b_i"], packed["w_sr"], packed["w_sf"], packed["w_hh"], packed["b_h"],
      packed["w_o"], packed["b_o"])

    return out[:m, :OUT].reshape(batches + (OUT,))


# ----------------------------------------------------------------------------
# Pure-JAX reference (same module semantics, same bf16-operand / f32-accumulate
# matmul precision as the kernel) for correctness checking.
# ----------------------------------------------------------------------------
def reference_forward(raw_p, x, view, latent):
    def bdot(a, w):
        return jnp.dot(a.astype(jnp.bfloat16), w.astype(jnp.bfloat16),
                       preferred_element_type=jnp.float32)

    p = jnp.concatenate([x, view], axis=-1).astype(jnp.float32)
    ph = jnp.dot(p, raw_p["basis"], preferred_element_type=jnp.float32)
    init = jnp.concatenate([p, jnp.sin(ph), jnp.cos(ph),
                            latent.astype(jnp.float32)], axis=-1)
    h = bdot(init, raw_p["w_init"]) + raw_p["b_init"]
    for i in range(NUM_LAYERS):
        inp = jnp.concatenate([h, init], axis=-1) if i in SKIP_LAYERS else h
        h = bdot(_lrelu(inp), raw_p["w_h"][i]) + raw_p["b_h"][i]
    o = bdot(_lrelu(h), raw_p["w_out"]) + raw_p["b_out"]
    return _thin_sigmoid(o)


if __name__ == "__main__":
    key = jax.random.PRNGKey(0)
    kx, kv, kl, kp = jax.random.split(key, 4)

    B, N, L = 2, 256, 4                                    # batch, points, latent_size
    x = jax.random.normal(kx, (B, N, 3), jnp.float32)      # positions (IdentitySpace)
    view = jax.random.normal(kv, (B, N, 3), jnp.float32)   # view dirs ('raw' encoding)
    latent = jax.random.normal(kl, (B, N, L), jnp.float32)

    raw_params = init_params(kp, L)
    packed = pack_params(raw_params, L)

    out = jax.block_until_ready(basic_forward(packed, x, view, latent))

    assert out.shape == (B, N, OUT), out.shape
    assert out.dtype == jnp.float32, out.dtype
    assert bool(jnp.all(jnp.isfinite(out)))

    ref = jax.block_until_ready(reference_forward(raw_params, x, view, latent))
    # bf16 matmuls: small accumulation-order / rounding differences vs the reference.
    np.testing.assert_allclose(np.asarray(out), np.asarray(ref), rtol=2e-2, atol=2e-2)

    print("KERNEL_OK")
</pallas_src>

<mosaic_0001>
module attributes {stable_mosaic.version = 11 : i64} {
  func.func @_basic_kernel(%arg0: i32, %arg1: memref<256x10xf32, #tpu.memory_space<vmem>>, %arg2: memref<10x32xf32, #tpu.memory_space<vmem>>, %arg3: memref<1x32xf32, #tpu.memory_space<vmem>>, %arg4: memref<10x128xbf16, #tpu.memory_space<vmem>>, %arg5: memref<32x128xbf16, #tpu.memory_space<vmem>>, %arg6: memref<1x128xf32, #tpu.memory_space<vmem>>, %arg7: memref<10x256xbf16, #tpu.memory_space<vmem>>, %arg8: memref<32x256xbf16, #tpu.memory_space<vmem>>, %arg9: memref<5x128x128xbf16, #tpu.memory_space<vmem>>, %arg10: memref<5x1x128xf32, #tpu.memory_space<vmem>>, %arg11: memref<128x128xbf16, #tpu.memory_space<vmem>>, %arg12: memref<1x128xf32, #tpu.memory_space<vmem>>, %arg13: memref<256x128xf32, #tpu.memory_space<vmem>>) attributes {dimension_semantics = [#tpu.dimension_semantics<parallel>], iteration_bounds = array<i64: 2>, scalar_prefetch = 0 : i64, scratch_operands = 0 : i64, tpu.core_type = #tpu.core_type<tc>, window_params = [{transform_indices = @transform_0, window_bounds = array<i64: 256, 10>}, {pipeline_mode = #tpu.pipeline_mode<synchronous>, transform_indices = @transform_1, window_bounds = array<i64: 10, 32>}, {pipeline_mode = #tpu.pipeline_mode<synchronous>, transform_indices = @transform_2, window_bounds = array<i64: 1, 32>}, {pipeline_mode = #tpu.pipeline_mode<synchronous>, transform_indices = @transform_3, window_bounds = array<i64: 10, 128>}, {pipeline_mode = #tpu.pipeline_mode<synchronous>, transform_indices = @transform_4, window_bounds = array<i64: 32, 128>}, {pipeline_mode = #tpu.pipeline_mode<synchronous>, transform_indices = @transform_5, window_bounds = array<i64: 1, 128>}, {pipeline_mode = #tpu.pipeline_mode<synchronous>, transform_indices = @transform_6, window_bounds = array<i64: 10, 256>}, {pipeline_mode = #tpu.pipeline_mode<synchronous>, transform_indices = @transform_7, window_bounds = array<i64: 32, 256>}, {pipeline_mode = #tpu.pipeline_mode<synchronous>, transform_indices = @transform_8, window_bounds = array<i64: 5, 128, 128>}, {pipeline_mode = #tpu.pipeline_mode<synchronous>, transform_indices = @transform_9, window_bounds = array<i64: 5, 1, 128>}, {pipeline_mode = #tpu.pipeline_mode<synchronous>, transform_indices = @transform_10, window_bounds = array<i64: 128, 128>}, {pipeline_mode = #tpu.pipeline_mode<synchronous>, transform_indices = @transform_11, window_bounds = array<i64: 1, 128>}, {transform_indices = @transform_12, window_bounds = array<i64: 256, 128>}]} {
    %c0 = arith.constant 0 : index
    %c0_0 = arith.constant 0 : index
    %0 = vector.load %arg1[%c0, %c0_0] : memref<256x10xf32, #tpu.memory_space<vmem>>, vector<256x10xf32>
    %c0_1 = arith.constant 0 : index
    %c0_2 = arith.constant 0 : index
    %1 = vector.load %arg2[%c0_1, %c0_2] : memref<10x32xf32, #tpu.memory_space<vmem>>, vector<10x32xf32>
    %cst = arith.constant dense<0.000000e+00> : vector<256x32xf32>
    %2 = tpu.matmul %0, %1, %cst {dimension_numbers = #tpu.dot_dimension_numbers<[1], [0], [0], [1], [0, 0, 1, 1], [], []>} : vector<256x10xf32>, vector<10x32xf32>, vector<256x32xf32> -> vector<256x32xf32>
    %c0_3 = arith.constant 0 : index
    %c0_4 = arith.constant 0 : index
    %3 = vector.load %arg3[%c0_3, %c0_4] : memref<1x32xf32, #tpu.memory_space<vmem>>, vector<1x32xf32>
    %4 = vector.broadcast %3 : vector<1x32xf32> to vector<256x32xf32>
    %5 = arith.addf %2, %4 : vector<256x32xf32>
    %6 = math.sin %5 : vector<256x32xf32>
    %7 = arith.truncf %0 : vector<256x10xf32> to vector<256x10xbf16>
    %8 = arith.truncf %6 : vector<256x32xf32> to vector<256x32xbf16>
    %cst_5 = arith.constant 0.00999999977 : f32
    %9 = vector.broadcast %cst_5 : f32 to vector<256x10xf32>
    %10 = arith.mulf %9, %0 : vector<256x10xf32>
    %11 = arith.maximumf %0, %10 : vector<256x10xf32>
    %12 = arith.truncf %11 : vector<256x10xf32> to vector<256x10xbf16>
    %cst_6 = arith.constant 0.00999999977 : f32
    %13 = vector.broadcast %cst_6 : f32 to vector<256x32xf32>
    %14 = arith.mulf %13, %6 : vector<256x32xf32>
    %15 = arith.maximumf %6, %14 : vector<256x32xf32>
    %16 = arith.truncf %15 : vector<256x32xf32> to vector<256x32xbf16>
    %c0_7 = arith.constant 0 : index
    %c0_8 = arith.constant 0 : index
    %17 = vector.load %arg4[%c0_7, %c0_8] : memref<10x128xbf16, #tpu.memory_space<vmem>>, vector<10x128xbf16>
    %cst_9 = arith.constant dense<0.000000e+00> : vector<256x128xf32>
    %18 = tpu.matmul %7, %17, %cst_9 {dimension_numbers = #tpu.dot_dimension_numbers<[1], [0], [0], [1], [0, 0, 1, 1], [], []>} : vector<256x10xbf16>, vector<10x128xbf16>, vector<256x128xf32> -> vector<256x128xf32>
    %c0_10 = arith.constant 0 : index
    %c0_11 = arith.constant 0 : index
    %19 = vector.load %arg5[%c0_10, %c0_11] : memref<32x128xbf16, #tpu.memory_space<vmem>>, vector<32x128xbf16>
    %cst_12 = arith.constant dense<0.000000e+00> : vector<256x128xf32>
    %20 = tpu.matmul %8, %19, %cst_12 {dimension_numbers = #tpu.dot_dimension_numbers<[1], [0], [0], [1], [0, 0, 1, 1], [], []>} : vector<256x32xbf16>, vector<32x128xbf16>, vector<256x128xf32> -> vector<256x128xf32>
    %21 = arith.addf %18, %20 : vector<256x128xf32>
    %c0_13 = arith.constant 0 : index
    %c0_14 = arith.constant 0 : index
    %22 = vector.load %arg6[%c0_13, %c0_14] : memref<1x128xf32, #tpu.memory_space<vmem>>, vector<1x128xf32>
    %23 = vector.broadcast %22 : vector<1x128xf32> to vector<256x128xf32>
    %24 = arith.addf %21, %23 : vector<256x128xf32>
    %c0_15 = arith.constant 0 : index
    %c0_16 = arith.constant 0 : index
    %25 = vector.load %arg7[%c0_15, %c0_16] : memref<10x256xbf16, #tpu.memory_space<vmem>>, vector<10x256xbf16>
    %cst_17 = arith.constant dense<0.000000e+00> : vector<256x256xf32>
    %26 = tpu.matmul %12, %25, %cst_17 {dimension_numbers = #tpu.dot_dimension_numbers<[1], [0], [0], [1], [0, 0, 1, 1], [], []>} : vector<256x10xbf16>, vector<10x256xbf16>, vector<256x256xf32> -> vector<256x256xf32>
    %c0_18 = arith.constant 0 : index
    %c0_19 = arith.constant 0 : index
    %27 = vector.load %arg8[%c0_18, %c0_19] : memref<32x256xbf16, #tpu.memory_space<vmem>>, vector<32x256xbf16>
    %cst_20 = arith.constant dense<0.000000e+00> : vector<256x256xf32>
    %28 = tpu.matmul %16, %27, %cst_20 {dimension_numbers = #tpu.dot_dimension_numbers<[1], [0], [0], [1], [0, 0, 1, 1], [], []>} : vector<256x32xbf16>, vector<32x256xbf16>, vector<256x256xf32> -> vector<256x256xf32>
    %29 = arith.addf %26, %28 : vector<256x256xf32>
    %cst_21 = arith.constant 0.00999999977 : f32
    %30 = vector.broadcast %cst_21 : f32 to vector<256x128xf32>
    %31 = arith.mulf %30, %24 : vector<256x128xf32>
    %32 = arith.maximumf %24, %31 : vector<256x128xf32>
    %33 = arith.truncf %32 : vector<256x128xf32> to vector<256x128xbf16>
    %c0_22 = arith.constant 0 : index
    %c0_23 = arith.constant 0 : index
    %c0_24 = arith.constant 0 : index
    %34 = vector.load %arg9[%c0_22, %c0_23, %c0_24] : memref<5x128x128xbf16, #tpu.memory_space<vmem>>, vector<1x128x128xbf16>
    %35 = vector.shape_cast %34 : vector<1x128x128xbf16> to vector<128x128xbf16>
    %cst_25 = arith.constant dense<0.000000e+00> : vector<256x128xf32>
    %36 = tpu.matmul %33, %35, %cst_25 {dimension_numbers = #tpu.dot_dimension_numbers<[1], [0], [0], [1], [0, 0, 1, 1], [], []>} : vector<256x128xbf16>, vector<128x128xbf16>, vector<256x128xf32> -> vector<256x128xf32>
    %c0_26 = arith.constant 0 : index
    %c0_27 = arith.constant 0 : index
    %c0_28 = arith.constant 0 : index
    %37 = vector.load %arg10[%c0_26, %c0_27, %c0_28] : memref<5x1x128xf32, #tpu.memory_space<vmem>>, vector<1x1x128xf32>
    %38 = vector.shape_cast %37 : vector<1x1x128xf32> to vector<1x128xf32>
    %39 = vector.broadcast %38 : vector<1x128xf32> to vector<256x128xf32>
    %40 = arith.addf %36, %39 : vector<256x128xf32>
    %41 = vector.extract_strided_slice %29 {offsets = [0, 0], sizes = [256, 128], strides = [1, 1]} : vector<256x256xf32> to vector<256x128xf32>
    %42 = arith.addf %40, %41 : vector<256x128xf32>
    %cst_29 = arith.constant 0.00999999977 : f32
    %43 = vector.broadcast %cst_29 : f32 to vector<256x128xf32>
    %44 = arith.mulf %43, %42 : vector<256x128xf32>
    %45 = arith.maximumf %42, %44 : vector<256x128xf32>
    %46 = arith.truncf %45 : vector<256x128xf32> to vector<256x128xbf16>
    %c1 = arith.constant 1 : index
    %c0_30 = arith.constant 0 : index
    %c0_31 = arith.constant 0 : index
    %47 = vector.load %arg9[%c1, %c0_30, %c0_31] : memref<5x128x128xbf16, #tpu.memory_space<vmem>>, vector<1x128x128xbf16>
    %48 = vector.shape_cast %47 : vector<1x128x128xbf16> to vector<128x128xbf16>
    %cst_32 = arith.constant dense<0.000000e+00> : vector<256x128xf32>
    %49 = tpu.matmul %46, %48, %cst_32 {dimension_numbers = #tpu.dot_dimension_numbers<[1], [0], [0], [1], [0, 0, 1, 1], [], []>} : vector<256x128xbf16>, vector<128x128xbf16>, vector<256x128xf32> -> vector<256x128xf32>
    %c1_33 = arith.constant 1 : index
    %c0_34 = arith.constant 0 : index
    %c0_35 = arith.constant 0 : index
    %50 = vector.load %arg10[%c1_33, %c0_34, %c0_35] : memref<5x1x128xf32, #tpu.memory_space<vmem>>, vector<1x1x128xf32>
    %51 = vector.shape_cast %50 : vector<1x1x128xf32> to vector<1x128xf32>
    %52 = vector.broadcast %51 : vector<1x128xf32> to vector<256x128xf32>
    %53 = arith.addf %49, %52 : vector<256x128xf32>
    %cst_36 = arith.constant 0.00999999977 : f32
    %54 = vector.broadcast %cst_36 : f32 to vector<256x128xf32>
    %55 = arith.mulf %54, %53 : vector<256x128xf32>
    %56 = arith.maximumf %53, %55 : vector<256x128xf32>
    %57 = arith.truncf %56 : vector<256x128xf32> to vector<256x128xbf16>
    %c2 = arith.constant 2 : index
    %c0_37 = arith.constant 0 : index
    %c0_38 = arith.constant 0 : index
    %58 = vector.load %arg9[%c2, %c0_37, %c0_38] : memref<5x128x128xbf16, #tpu.memory_space<vmem>>, vector<1x128x128xbf16>
    %59 = vector.shape_cast %58 : vector<1x128x128xbf16> to vector<128x128xbf16>
    %cst_39 = arith.constant dense<0.000000e+00> : vector<256x128xf32>
    %60 = tpu.matmul %57, %59, %cst_39 {dimension_numbers = #tpu.dot_dimension_numbers<[1], [0], [0], [1], [0, 0, 1, 1], [], []>} : vector<256x128xbf16>, vector<128x128xbf16>, vector<256x128xf32> -> vector<256x128xf32>
    %c2_40 = arith.constant 2 : index
    %c0_41 = arith.constant 0 : index
    %c0_42 = arith.constant 0 : index
    %61 = vector.load %arg10[%c2_40, %c0_41, %c0_42] : memref<5x1x128xf32, #tpu.memory_space<vmem>>, vector<1x1x128xf32>
    %62 = vector.shape_cast %61 : vector<1x1x128xf32> to vector<1x128xf32>
    %63 = vector.broadcast %62 : vector<1x128xf32> to vector<256x128xf32>
    %64 = arith.addf %60, %63 : vector<256x128xf32>
    %cst_43 = arith.constant 0.00999999977 : f32
    %65 = vector.broadcast %cst_43 : f32 to vector<256x128xf32>
    %66 = arith.mulf %65, %64 : vector<256x128xf32>
    %67 = arith.maximumf %64, %66 : vector<256x128xf32>
    %68 = arith.truncf %67 : vector<256x128xf32> to vector<256x128xbf16>
    %c3 = arith.constant 3 : index
    %c0_44 = arith.constant 0 : index
    %c0_45 = arith.constant 0 : index
    %69 = vector.load %arg9[%c3, %c0_44, %c0_45] : memref<5x128x128xbf16, #tpu.memory_space<vmem>>, vector<1x128x128xbf16>
    %70 = vector.shape_cast %69 : vector<1x128x128xbf16> to vector<128x128xbf16>
    %cst_46 = arith.constant dense<0.000000e+00> : vector<256x128xf32>
    %71 = tpu.matmul %68, %70, %cst_46 {dimension_numbers = #tpu.dot_dimension_numbers<[1], [0], [0], [1], [0, 0, 1, 1], [], []>} : vector<256x128xbf16>, vector<128x128xbf16>, vector<256x128xf32> -> vector<256x128xf32>
    %c3_47 = arith.constant 3 : index
    %c0_48 = arith.constant 0 : index
    %c0_49 = arith.constant 0 : index
    %72 = vector.load %arg10[%c3_47, %c0_48, %c0_49] : memref<5x1x128xf32, #tpu.memory_space<vmem>>, vector<1x1x128xf32>
    %73 = vector.shape_cast %72 : vector<1x1x128xf32> to vector<1x128xf32>
    %74 = vector.broadcast %73 : vector<1x128xf32> to vector<256x128xf32>
    %75 = arith.addf %71, %74 : vector<256x128xf32>
    %76 = vector.extract_strided_slice %29 {offsets = [0, 128], sizes = [256, 128], strides = [1, 1]} : vector<256x256xf32> to vector<256x128xf32>
    %77 = arith.addf %75, %76 : vector<256x128xf32>
    %cst_50 = arith.constant 0.00999999977 : f32
    %78 = vector.broadcast %cst_50 : f32 to vector<256x128xf32>
    %79 = arith.mulf %78, %77 : vector<256x128xf32>
    %80 = arith.maximumf %77, %79 : vector<256x128xf32>
    %81 = arith.truncf %80 : vector<256x128xf32> to vector<256x128xbf16>
    %c4 = arith.constant 4 : index
    %c0_51 = arith.constant 0 : index
    %c0_52 = arith.constant 0 : index
    %82 = vector.load %arg9[%c4, %c0_51, %c0_52] : memref<5x128x128xbf16, #tpu.memory_space<vmem>>, vector<1x128x128xbf16>
    %83 = vector.shape_cast %82 : vector<1x128x128xbf16> to vector<128x128xbf16>
    %cst_53 = arith.constant dense<0.000000e+00> : vector<256x128xf32>
    %84 = tpu.matmul %81, %83, %cst_53 {dimension_numbers = #tpu.dot_dimension_numbers<[1], [0], [0], [1], [0, 0, 1, 1], [], []>} : vector<256x128xbf16>, vector<128x128xbf16>, vector<256x128xf32> -> vector<256x128xf32>
    %c4_54 = arith.constant 4 : index
    %c0_55 = arith.constant 0 : index
    %c0_56 = arith.constant 0 : index
    %85 = vector.load %arg10[%c4_54, %c0_55, %c0_56] : memref<5x1x128xf32, #tpu.memory_space<vmem>>, vector<1x1x128xf32>
    %86 = vector.shape_cast %85 : vector<1x1x128xf32> to vector<1x128xf32>
    %87 = vector.broadcast %86 : vector<1x128xf32> to vector<256x128xf32>
    %88 = arith.addf %84, %87 : vector<256x128xf32>
    %cst_57 = arith.constant 0.00999999977 : f32
    %89 = vector.broadcast %cst_57 : f32 to vector<256x128xf32>
    %90 = arith.mulf %89, %88 : vector<256x128xf32>
    %91 = arith.maximumf %88, %90 : vector<256x128xf32>
    %92 = arith.truncf %91 : vector<256x128xf32> to vector<256x128xbf16>
    %c0_58 = arith.constant 0 : index
    %c0_59 = arith.constant 0 : index
    %93 = vector.load %arg11[%c0_58, %c0_59] : memref<128x128xbf16, #tpu.memory_space<vmem>>, vector<128x128xbf16>
    %cst_60 = arith.constant dense<0.000000e+00> : vector<256x128xf32>
    %94 = tpu.matmul %92, %93, %cst_60 {dimension_numbers = #tpu.dot_dimension_numbers<[1], [0], [0], [1], [0, 0, 1, 1], [], []>} : vector<256x128xbf16>, vector<128x128xbf16>, vector<256x128xf32> -> vector<256x128xf32>
    %c0_61 = arith.constant 0 : index
    %c0_62 = arith.constant 0 : index
    %95 = vector.load %arg12[%c0_61, %c0_62] : memref<1x128xf32, #tpu.memory_space<vmem>>, vector<1x128xf32>
    %96 = vector.broadcast %95 : vector<1x128xf32> to vector<256x128xf32>
    %97 = arith.addf %94, %96 : vector<256x128xf32>
    %cst_63 = arith.constant 0.000000e+00 : f32
    %98 = vector.broadcast %cst_63 : f32 to vector<256x128xf32>
    %99 = arith.subf %98, %97 : vector<256x128xf32>
    %100 = math.exp %99 : vector<256x128xf32>
    %cst_64 = arith.constant 1.000000e+00 : f32
    %101 = vector.broadcast %cst_64 : f32 to vector<256x128xf32>
    %102 = arith.addf %101, %100 : vector<256x128xf32>
    %cst_65 = arith.constant 9.800000e-01 : f32
    %103 = vector.broadcast %cst_65 : f32 to vector<256x128xf32>
    %104 = arith.divf %103, %102 : vector<256x128xf32>
    %cst_66 = arith.constant 0.00999999977 : f32
    %105 = vector.broadcast %cst_66 : f32 to vector<256x128xf32>
    %106 = arith.addf %104, %105 : vector<256x128xf32>
    %c0_67 = arith.constant 0 : index
    %c0_68 = arith.constant 0 : index
    %107 = vector.load %arg13[%c0_67, %c0_68] : memref<256x128xf32, #tpu.memory_space<vmem>>, vector<256x128xf32>
    tpu.vector_store %arg13[%c0_67, %c0_68], %106 {strides = array<i32>} : memref<256x128xf32, #tpu.memory_space<vmem>>, vector<256x128xf32>,
    return
  }
  func.func @transform_0(%arg0: i32) -> (i32, i32) {
    %c0_i32 = arith.constant 0 : i32
    %c0_i32_0 = arith.constant 0 : i32
    return %arg0, %c0_i32 : i32, i32
  }
  func.func @transform_1(%arg0: i32) -> (i32, i32) {
    %c0_i32 = arith.constant 0 : i32
    %c0_i32_0 = arith.constant 0 : i32
    %c0_i32_1 = arith.constant 0 : i32
    return %c0_i32, %c0_i32_0 : i32, i32
  }
  func.func @transform_2(%arg0: i32) -> (i32, i32) {
    %c0_i32 = arith.constant 0 : i32
    %c0_i32_0 = arith.constant 0 : i32
    %c0_i32_1 = arith.constant 0 : i32
    return %c0_i32, %c0_i32_0 : i32, i32
  }
  func.func @transform_3(%arg0: i32) -> (i32, i32) {
    %c0_i32 = arith.constant 0 : i32
    %c0_i32_0 = arith.constant 0 : i32
    %c0_i32_1 = arith.constant 0 : i32
    return %c0_i32, %c0_i32_0 : i32, i32
  }
  func.func @transform_4(%arg0: i32) -> (i32, i32) {
    %c0_i32 = arith.constant 0 : i32
    %c0_i32_0 = arith.constant 0 : i32
    %c0_i32_1 = arith.constant 0 : i32
    return %c0_i32, %c0_i32_0 : i32, i32
  }
  func.func @transform_5(%arg0: i32) -> (i32, i32) {
    %c0_i32 = arith.constant 0 : i32
    %c0_i32_0 = arith.constant 0 : i32
    %c0_i32_1 = arith.constant 0 : i32
    return %c0_i32, %c0_i32_0 : i32, i32
  }
  func.func @transform_6(%arg0: i32) -> (i32, i32) {
    %c0_i32 = arith.constant 0 : i32
    %c0_i32_0 = arith.constant 0 : i32
    %c0_i32_1 = arith.constant 0 : i32
    return %c0_i32, %c0_i32_0 : i32, i32
  }
  func.func @transform_7(%arg0: i32) -> (i32, i32) {
    %c0_i32 = arith.constant 0 : i32
    %c0_i32_0 = arith.constant 0 : i32
    %c0_i32_1 = arith.constant 0 : i32
    return %c0_i32, %c0_i32_0 : i32, i32
  }
  func.func @transform_8(%arg0: i32) -> (i32, i32, i32) {
    %c0_i32 = arith.constant 0 : i32
    %c0_i32_0 = arith.constant 0 : i32
    %c0_i32_1 = arith.constant 0 : i32
    %c0_i32_2 = arith.constant 0 : i32
    return %c0_i32, %c0_i32_0, %c0_i32_1 : i32, i32, i32
  }
  func.func @transform_9(%arg0: i32) -> (i32, i32, i32) {
    %c0_i32 = arith.constant 0 : i32
    %c0_i32_0 = arith.constant 0 : i32
    %c0_i32_1 = arith.constant 0 : i32
    %c0_i32_2 = arith.constant 0 : i32
    return %c0_i32, %c0_i32_0, %c0_i32_1 : i32, i32, i32
  }
  func.func @transform_10(%arg0: i32) -> (i32, i32) {
    %c0_i32 = arith.constant 0 : i32
    %c0_i32_0 = arith.constant 0 : i32
    %c0_i32_1 = arith.constant 0 : i32
    return %c0_i32, %c0_i32_0 : i32, i32
  }
  func.func @transform_11(%arg0: i32) -> (i32, i32) {
    %c0_i32 = arith.constant 0 : i32
    %c0_i32_0 = arith.constant 0 : i32
    %c0_i32_1 = arith.constant 0 : i32
    return %c0_i32, %c0_i32_0 : i32, i32
  }
  func.func @transform_12(%arg0: i32) -> (i32, i32) {
    %c0_i32 = arith.constant 0 : i32
    %c0_i32_0 = arith.constant 0 : i32
    return %arg0, %c0_i32 : i32, i32
  }
}

</mosaic_0001>

<llo_original>
// kernel: tpu_custom_call.1
$region0: #{tpu_custom_call.1}
  #allocation0 [shape = 'u32[]', space=smem, size = 0x4, offset = 0x4, fixed_abs, tag = 'smem constant byte address 0x4 - core index']
  #allocation1 [shape = 'u32[144,128]{1,0:T(1,128)}', space=vmem, size = 0x12000, scoped, tag = 'internal scratch']
  %s0 = inlined_call_operand.vmem [shape: f32[512,10], index: 0, kind: input, shape index: {}]
  %s1 = inlined_call_operand.vmem [shape: f32[10,32], index: 1, kind: input, shape index: {}]
  %s2 = inlined_call_operand.vmem [shape: f32[1,32], index: 2, kind: input, shape index: {}]
  %s3 = inlined_call_operand.vmem [shape: bf16[10,128], index: 3, kind: input, shape index: {}]
  %s4 = inlined_call_operand.vmem [shape: bf16[32,128], index: 4, kind: input, shape index: {}]
  %s5 = inlined_call_operand.vmem [shape: f32[1,128], index: 5, kind: input, shape index: {}]
  %s6 = inlined_call_operand.vmem [shape: bf16[10,256], index: 6, kind: input, shape index: {}]
  %s7 = inlined_call_operand.vmem [shape: bf16[32,256], index: 7, kind: input, shape index: {}]
  %s8 = inlined_call_operand.vmem [shape: bf16[5,128,128], index: 8, kind: input, shape index: {}]
  %s9 = inlined_call_operand.vmem [shape: f32[5,1,128], index: 9, kind: input, shape index: {}]
  %s10 = inlined_call_operand.vmem [shape: bf16[128,128], index: 10, kind: input, shape index: {}]
  %s11 = inlined_call_operand.vmem [shape: f32[1,128], index: 11, kind: input, shape index: {}]
  %s12 = inlined_call_operand.hbm [shape: f32[512,128], index: 12, kind: output, shape index: {}]
  %s13 = sld [smem:[#allocation0]]
  $region81: #{tpu_custom_call.1} parent=0
    _
  %s15 = ssub.s32 1, %s13
  %s16 = scalar_select 0, %s15, %s13
  $region1: #{tpu_custom_call.1} parent=0
    #allocation2 [shape = 'u8[262144]{0}', space=vmem, size = 0x40000, scoped, tag = 'output window, operand 0']
    #allocation3 [shape = 's32[2]{0}', space=sflag, size = 0x8, scoped, tag = 'scoped memory for tpu_custom_call.1']
    %17 = vsyncpa [#allocation3], 0
    %s18 = scalar_lea.sflag [#allocation3], 1
    %19 = vsyncpa %s18, 0
    loop: start=0, step=1, limit=4
    $region2: #{tpu_custom_call.1} parent=1 // loop_pre_header
      _
    $region3: #{tpu_custom_call.1} parent=1 // loop_header
      %s21 = sphi 0, %s25
      %p22 = scmp.ge.s32.totalorder %s21, 4
      %s31 = sphi 0, %s33
      %s34 = sphi 0, %s31
      %s35 = sphi 0, %s34
      %s51 = sphi 0, %s35
      %s55 = sphi 0, %s55
      %s57 = sphi 0, %s55
      %s58 = sphi 0, %s57
      %s72 = sphi 0, %s58
      %s76 = sphi 0, %s76
      %s78 = sphi 0, %s76
      %s79 = sphi 0, %s78
      %s93 = sphi 0, %s79
      %s97 = sphi 0, %s97
      %s99 = sphi 0, %s97
      %s100 = sphi 0, %s99
      %s114 = sphi 0, %s100
      %s118 = sphi 0, %s118
      %s120 = sphi 0, %s118
      %s121 = sphi 0, %s120
      %s135 = sphi 0, %s121
      %s139 = sphi 0, %s139
      %s141 = sphi 0, %s139
      %s142 = sphi 0, %s141
      %s156 = sphi 0, %s142
      %s160 = sphi 0, %s160
      %s162 = sphi 0, %s160
      %s163 = sphi 0, %s162
      %s177 = sphi 0, %s163
      %s181 = sphi 0, %s181
      %s183 = sphi 0, %s181
      %s184 = sphi 0, %s183
      %s198 = sphi 0, %s184
      %s202 = sphi 0, %s202
      %s204 = sphi 0, %s202
      %s205 = sphi 0, %s204
      %s219 = sphi 0, %s205
      %s223 = sphi 0, %s223
      %s225 = sphi 0, %s223
      %s226 = sphi 0, %s225
      %s240 = sphi 0, %s226
      %s244 = sphi 0, %s244
      %s246 = sphi 0, %s244
      %s247 = sphi 0, %s246
      %s261 = sphi 0, %s247
      %s265 = sphi 0, %s265
      %s267 = sphi 0, %s265
      %s268 = sphi 0, %s267
      %s282 = sphi 0, %s268
      %s288 = sphi 0, %s290
      %s291 = sphi 0, %s288
      %s292 = sphi 0, %s291
      %s308 = sphi 0, %s292
    $region4: #{tpu_custom_call.1} parent=1 // loop_header_branch
      %24 = sbr.rel (%p22) target = $region8
    $region5: #{tpu_custom_call.1} parent=1 // loop_body
      %s26 = ssub.s32 %s21, 1
      %s27 = ssub.s32 %s21, 2
      %s28 = sadd.s32 %s21, 1
      %s29 = ssub.s32 %s21, %s28
      %p30 = scmp.eq.s32.totalorder %s29, 0
      %s32 = sadd.s32 %s31, 1
      %s33 = scalar_select %p30, %s31, %s32
      %p36 = pneg %p30
      %p37 = scmp.eq.s32.totalorder %s21, 1
      %p38 = por %p36, %p37
      %p39 = scmp.ne.s32.totalorder %s31, %s34
      %p40 = scmp.eq.s32.totalorder %s21, 0
      %p41 = por %p39, %p40
      %p42 = scmp.ne.s32.totalorder %s31, %s34
      %p43 = scmp.eq.s32.totalorder %s26, 1
      %p44 = por %p42, %p43
      %p45 = scmp.ne.s32.totalorder %s34, %s35
      %p46 = scmp.eq.s32.totalorder %s26, 0
      %p47 = por %p45, %p46
      %p48 = scmp.ne.s32.totalorder %s34, %s35
      %p49 = scmp.eq.s32.totalorder %s27, 1
      %p50 = por %p48, %p49
      %p52 = scmp.ne.s32.totalorder %s35, %s51
      %p53 = scmp.eq.s32.totalorder %s27, 0
      %p54 = por %p52, %p53
      %s56 = sadd.s32 %s55, 1
      %p59 = scmp.eq.s32.totalorder %s21, 1
      %p60 = scmp.ne.s32.totalorder %s55, %s57
      %p61 = scmp.eq.s32.totalorder %s21, 0
      %p62 = por %p60, %p61
      %p63 = scmp.ne.s32.totalorder %s55, %s57
      %p64 = scmp.eq.s32.totalorder %s26, 1
      %p65 = por %p63, %p64
      %p66 = scmp.ne.s32.totalorder %s57, %s58
      %p67 = scmp.eq.s32.totalorder %s26, 0
      %p68 = por %p66, %p67
      %p69 = scmp.ne.s32.totalorder %s57, %s58
      %p70 = scmp.eq.s32.totalorder %s27, 1
      %p71 = por %p69, %p70
      %p73 = scmp.ne.s32.totalorder %s58, %s72
      %p74 = scmp.eq.s32.totalorder %s27, 0
      %p75 = por %p73, %p74
      %s77 = sadd.s32 %s76, 1
      %p80 = scmp.eq.s32.totalorder %s21, 1
      %p81 = scmp.ne.s32.totalorder %s76, %s78
      %p82 = scmp.eq.s32.totalorder %s21, 0
      %p83 = por %p81, %p82
      %p84 = scmp.ne.s32.totalorder %s76, %s78
      %p85 = scmp.eq.s32.totalorder %s26, 1
      %p86 = por %p84, %p85
      %p87 = scmp.ne.s32.totalorder %s78, %s79
      %p88 = scmp.eq.s32.totalorder %s26, 0
      %p89 = por %p87, %p88
      %p90 = scmp.ne.s32.totalorder %s78, %s79
      %p91 = scmp.eq.s32.totalorder %s27, 1
      %p92 = por %p90, %p91
      %p94 = scmp.ne.s32.totalorder %s79, %s93
      %p95 = scmp.eq.s32.totalorder %s27, 0
      %p96 = por %p94, %p95
      %s98 = sadd.s32 %s97, 1
      %p101 = scmp.eq.s32.totalorder %s21, 1
      %p102 = scmp.ne.s32.totalorder %s97, %s99
      %p103 = scmp.eq.s32.totalorder %s21, 0
      %p104 = por %p102, %p103
      %p105 = scmp.ne.s32.totalorder %s97, %s99
      %p106 = scmp.eq.s32.totalorder %s26, 1
      %p107 = por %p105, %p106
      %p108 = scmp.ne.s32.totalorder %s99, %s100
      %p109 = scmp.eq.s32.totalorder %s26, 0
      %p110 = por %p108, %p109
      %p111 = scmp.ne.s32.totalorder %s99, %s100
      %p112 = scmp.eq.s32.totalorder %s27, 1
      %p113 = por %p111, %p112
      %p115 = scmp.ne.s32.totalorder %s100, %s114
      %p116 = scmp.eq.s32.totalorder %s27, 0
      %p117 = por %p115, %p116
      %s119 = sadd.s32 %s118, 1
      %p122 = scmp.eq.s32.totalorder %s21, 1
      %p123 = scmp.ne.s32.totalorder %s118, %s120
      %p124 = scmp.eq.s32.totalorder %s21, 0
      %p125 = por %p123, %p124
      %p126 = scmp.ne.s32.totalorder %s118, %s120
      %p127 = scmp.eq.s32.totalorder %s26, 1
      %p128 = por %p126, %p127
      %p129 = scmp.ne.s32.totalorder %s120, %s121
      %p130 = scmp.eq.s32.totalorder %s26, 0
      %p131 = por %p129, %p130
      %p132 = scmp.ne.s32.totalorder %s120, %s121
      %p133 = scmp.eq.s32.totalorder %s27, 1
      %p134 = por %p132, %p133
      %p136 = scmp.ne.s32.totalorder %s121, %s135
      %p137 = scmp.eq.s32.totalorder %s27, 0
      %p138 = por %p136, %p137
      %s140 = sadd.s32 %s139, 1
      %p143 = scmp.eq.s32.totalorder %s21, 1
      %p144 = scmp.ne.s32.totalorder %s139, %s141
      %p145 = scmp.eq.s32.totalorder %s21, 0
      %p146 = por %p144, %p145
      %p147 = scmp.ne.s32.totalorder %s139, %s141
      %p148 = scmp.eq.s32.totalorder %s26, 1
      %p149 = por %p147, %p148
      %p150 = scmp.ne.s32.totalorder %s141, %s142
      %p151 = scmp.eq.s32.totalorder %s26, 0
      %p152 = por %p150, %p151
      %p153 = scmp.ne.s32.totalorder %s141, %s142
      %p154 = scmp.eq.s32.totalorder %s27, 1
      %p155 = por %p153, %p154
      %p157 = scmp.ne.s32.totalorder %s142, %s156
      %p158 = scmp.eq.s32.totalorder %s27, 0
      %p159 = por %p157, %p158
      %s161 = sadd.s32 %s160, 1
      %p164 = scmp.eq.s32.totalorder %s21, 1
      %p165 = scmp.ne.s32.totalorder %s160, %s162
      %p166 = scmp.eq.s32.totalorder %s21, 0
      %p167 = por %p165, %p166
      %p168 = scmp.ne.s32.totalorder %s160, %s162
      %p169 = scmp.eq.s32.totalorder %s26, 1
      %p170 = por %p168, %p169
      %p171 = scmp.ne.s32.totalorder %s162, %s163
      %p172 = scmp.eq.s32.totalorder %s26, 0
      %p173 = por %p171, %p172
      %p174 = scmp.ne.s32.totalorder %s162, %s163
      %p175 = scmp.eq.s32.totalorder %s27, 1
      %p176 = por %p174, %p175
      %p178 = scmp.ne.s32.totalorder %s163, %s177
      %p179 = scmp.eq.s32.totalorder %s27, 0
      %p180 = por %p178, %p179
      %s182 = sadd.s32 %s181, 1
      %p185 = scmp.eq.s32.totalorder %s21, 1
      %p186 = scmp.ne.s32.totalorder %s181, %s183
      %p187 = scmp.eq.s32.totalorder %s21, 0
      %p188 = por %p186, %p187
      %p189 = scmp.ne.s32.totalorder %s181, %s183
      %p190 = scmp.eq.s32.totalorder %s26, 1
      %p191 = por %p189, %p190
      %p192 = scmp.ne.s32.totalorder %s183, %s184
      %p193 = scmp.eq.s32.totalorder %s26, 0
      %p194 = por %p192, %p193
      %p195 = scmp.ne.s32.totalorder %s183, %s184
      %p196 = scmp.eq.s32.totalorder %s27, 1
      %p197 = por %p195, %p196
      %p199 = scmp.ne.s32.totalorder %s184, %s198
      %p200 = scmp.eq.s32.totalorder %s27, 0
      %p201 = por %p199, %p200
      %s203 = sadd.s32 %s202, 1
      %p206 = scmp.eq.s32.totalorder %s21, 1
      %p207 = scmp.ne.s32.totalorder %s202, %s204
      %p208 = scmp.eq.s32.totalorder %s21, 0
      %p209 = por %p207, %p208
      %p210 = scmp.ne.s32.totalorder %s202, %s204
      %p211 = scmp.eq.s32.totalorder %s26, 1
      %p212 = por %p210, %p211
      %p213 = scmp.ne.s32.totalorder %s204, %s205
      %p214 = scmp.eq.s32.totalorder %s26, 0
      %p215 = por %p213, %p214
      %p216 = scmp.ne.s32.totalorder %s204, %s205
      %p217 = scmp.eq.s32.totalorder %s27, 1
      %p218 = por %p216, %p217
      %p220 = scmp.ne.s32.totalorder %s205, %s219
      %p221 = scmp.eq.s32.totalorder %s27, 0
      %p222 = por %p220, %p221
      %s224 = sadd.s32 %s223, 1
      %p227 = scmp.eq.s32.totalorder %s21, 1
      %p228 = scmp.ne.s32.totalorder %s223, %s225
      %p229 = scmp.eq.s32.totalorder %s21, 0
      %p230 = por %p228, %p229
      %p231 = scmp.ne.s32.totalorder %s223, %s225
      %p232 = scmp.eq.s32.totalorder %s26, 1
      %p233 = por %p231, %p232
      %p234 = scmp.ne.s32.totalorder %s225, %s226
      %p235 = scmp.eq.s32.totalorder %s26, 0
      %p236 = por %p234, %p235
      %p237 = scmp.ne.s32.totalorder %s225, %s226
      %p238 = scmp.eq.s32.totalorder %s27, 1
      %p239 = por %p237, %p238
      %p241 = scmp.ne.s32.totalorder %s226, %s240
      %p242 = scmp.eq.s32.totalorder %s27, 0
      %p243 = por %p241, %p242
      %s245 = sadd.s32 %s244, 1
      %p248 = scmp.eq.s32.totalorder %s21, 1
      %p249 = scmp.ne.s32.totalorder %s244, %s246
      %p250 = scmp.eq.s32.totalorder %s21, 0
      %p251 = por %p249, %p250
      %p252 = scmp.ne.s32.totalorder %s244, %s246
      %p253 = scmp.eq.s32.totalorder %s26, 1
      %p254 = por %p252, %p253
      %p255 = scmp.ne.s32.totalorder %s246, %s247
      %p256 = scmp.eq.s32.totalorder %s26, 0
      %p257 = por %p255, %p256
      %p258 = scmp.ne.s32.totalorder %s246, %s247
      %p259 = scmp.eq.s32.totalorder %s27, 1
      %p260 = por %p258, %p259
      %p262 = scmp.ne.s32.totalorder %s247, %s261
      %p263 = scmp.eq.s32.totalorder %s27, 0
      %p264 = por %p262, %p263
      %s266 = sadd.s32 %s265, 1
      %p269 = scmp.eq.s32.totalorder %s21, 1
      %p270 = scmp.ne.s32.totalorder %s265, %s267
      %p271 = scmp.eq.s32.totalorder %s21, 0
      %p272 = por %p270, %p271
      %p273 = scmp.ne.s32.totalorder %s265, %s267
      %p274 = scmp.eq.s32.totalorder %s26, 1
      %p275 = por %p273, %p274
      %p276 = scmp.ne.s32.totalorder %s267, %s268
      %p277 = scmp.eq.s32.totalorder %s26, 0
      %p278 = por %p276, %p277
      %p279 = scmp.ne.s32.totalorder %s267, %s268
      %p280 = scmp.eq.s32.totalorder %s27, 1
      %p281 = por %p279, %p280
      %p283 = scmp.ne.s32.totalorder %s268, %s282
      %p284 = scmp.eq.s32.totalorder %s27, 0
      %p285 = por %p283, %p284
      %s286 = ssub.s32 %s21, %s28
      %p287 = scmp.eq.s32.totalorder %s286, 0
      %s289 = sadd.s32 %s288, 1
      %s290 = scalar_select %p287, %s288, %s289
      %p293 = pneg %p287
      %p294 = scmp.eq.s32.totalorder %s21, 1
      %p295 = por %p293, %p294
      %p296 = scmp.ne.s32.totalorder %s288, %s291
      %p297 = scmp.eq.s32.totalorder %s21, 0
      %p298 = por %p296, %p297
      %p299 = scmp.ne.s32.totalorder %s288, %s291
      %p300 = scmp.eq.s32.totalorder %s26, 1
      %p301 = por %p299, %p300
      %p302 = scmp.ne.s32.totalorder %s291, %s292
      %p303 = scmp.eq.s32.totalorder %s26, 0
      %p304 = por %p302, %p303
      %p305 = scmp.ne.s32.totalorder %s291, %s292
      %p306 = scmp.eq.s32.totalorder %s27, 1
      %p307 = por %p305, %p306
      %p309 = scmp.ne.s32.totalorder %s292, %s308
      %p310 = scmp.eq.s32.totalorder %s27, 0
      %p311 = por %p309, %p310
      %p312 = scmp.le.s32.totalorder 1, %s21
      %p313 = scmp.lt.s32.totalorder %s21, 3
      %p314 = pnand %p312, %p313
      %p315 = pneg %p314
      // Predicated region
      $region9: #{tpu_custom_call.1} parent=5 // pred_check
        _
      $region10: #{tpu_custom_call.1} parent=5 // pred_check_branch
        %317 = sbr.rel (%p314) target = $region12
      $region11: #{tpu_custom_call.1} parent=5 // pred_region
        %s318 = ssub.s32 %s21, 1
        // Predicated region
        $region13: #{tpu_custom_call.1} parent=11 // pred_check
          %p319 = pneg %p68
        $region14: #{tpu_custom_call.1} parent=11 // pred_check_branch
          %321 = sbr.rel (%p319) target = $region16
        $region15: #{tpu_custom_call.1} parent=11 // pred_region
          _
        $region16: #{tpu_custom_call.1} parent=11 // pred_fallthru
          _
        // Predicated region
        $region17: #{tpu_custom_call.1} parent=11 // pred_check
          %p322 = pneg %p89
        $region18: #{tpu_custom_call.1} parent=11 // pred_check_branch
          %324 = sbr.rel (%p322) target = $region20
        $region19: #{tpu_custom_call.1} parent=11 // pred_region
          _
        $region20: #{tpu_custom_call.1} parent=11 // pred_fallthru
          _
        // Predicated region
        $region21: #{tpu_custom_call.1} parent=11 // pred_check
          %p325 = pneg %p110
        $region22: #{tpu_custom_call.1} parent=11 // pred_check_branch
          %327 = sbr.rel (%p325) target = $region24
        $region23: #{tpu_custom_call.1} parent=11 // pred_region
          _
        $region24: #{tpu_custom_call.1} parent=11 // pred_fallthru
          _
        // Predicated region
        $region25: #{tpu_custom_call.1} parent=11 // pred_check
          %p328 = pneg %p131
        $region26: #{tpu_custom_call.1} parent=11 // pred_check_branch
          %330 = sbr.rel (%p328) target = $region28
        $region27: #{tpu_custom_call.1} parent=11 // pred_region
          _
        $region28: #{tpu_custom_call.1} parent=11 // pred_fallthru
          _
        // Predicated region
        $region29: #{tpu_custom_call.1} parent=11 // pred_check
          %p331 = pneg %p152
        $region30: #{tpu_custom_call.1} parent=11 // pred_check_branch
          %333 = sbr.rel (%p331) target = $region32
        $region31: #{tpu_custom_call.1} parent=11 // pred_region
          _
        $region32: #{tpu_custom_call.1} parent=11 // pred_fallthru
          _
        // Predicated region
        $region33: #{tpu_custom_call.1} parent=11 // pred_check
          %p334 = pneg %p173
        $region34: #{tpu_custom_call.1} parent=11 // pred_check_branch
          %336 = sbr.rel (%p334) target = $region36
        $region35: #{tpu_custom_call.1} parent=11 // pred_region
          _
        $region36: #{tpu_custom_call.1} parent=11 // pred_fallthru
          _
        // Predicated region
        $region37: #{tpu_custom_call.1} parent=11 // pred_check
          %p337 = pneg %p194
        $region38: #{tpu_custom_call.1} parent=11 // pred_check_branch
          %339 = sbr.rel (%p337) target = $region40
        $region39: #{tpu_custom_call.1} parent=11 // pred_region
          _
        $region40: #{tpu_custom_call.1} parent=11 // pred_fallthru
          _
        // Predicated region
        $region41: #{tpu_custom_call.1} parent=11 // pred_check
          %p340 = pneg %p215
        $region42: #{tpu_custom_call.1} parent=11 // pred_check_branch
          %342 = sbr.rel (%p340) target = $region44
        $region43: #{tpu_custom_call.1} parent=11 // pred_region
          _
        $region44: #{tpu_custom_call.1} parent=11 // pred_fallthru
          _
        // Predicated region
        $region45: #{tpu_custom_call.1} parent=11 // pred_check
          %p343 = pneg %p236
        $region46: #{tpu_custom_call.1} parent=11 // pred_check_branch
          %345 = sbr.rel (%p343) target = $region48
        $region47: #{tpu_custom_call.1} parent=11 // pred_region
          _
        $region48: #{tpu_custom_call.1} parent=11 // pred_fallthru
          _
        // Predicated region
        $region49: #{tpu_custom_call.1} parent=11 // pred_check
          %p346 = pneg %p257
        $region50: #{tpu_custom_call.1} parent=11 // pred_check_branch
          %348 = sbr.rel (%p346) target = $region52
        $region51: #{tpu_custom_call.1} parent=11 // pred_region
          _
        $region52: #{tpu_custom_call.1} parent=11 // pred_fallthru
          _
        // Predicated region
        $region53: #{tpu_custom_call.1} parent=11 // pred_check
          %p349 = pneg %p278
        $region54: #{tpu_custom_call.1} parent=11 // pred_check_branch
          %351 = sbr.rel (%p349) target = $region56
        $region55: #{tpu_custom_call.1} parent=11 // pred_region
          _
        $region56: #{tpu_custom_call.1} parent=11 // pred_fallthru
          _
      $region12: #{tpu_custom_call.1} parent=5 // pred_fallthru
        _
      %p352 = scmp.lt.s32.totalorder %s21, 2
      // Predicated region
      $region57: #{tpu_custom_call.1} parent=5 // pred_check
        %p353 = pneg %p352
      $region58: #{tpu_custom_call.1} parent=5 // pred_check_branch
        %355 = sbr.rel (%p353) target = $region60
      $region59: #{tpu_custom_call.1} parent=5 // pred_region
        // Predicated region
        $region61: #{tpu_custom_call.1} parent=59 // pred_check
          %p356 = pneg %p41
        $region62: #{tpu_custom_call.1} parent=59 // pred_check_branch
          %358 = sbr.rel (%p356) target = $region64
        $region63: #{tpu_custom_call.1} parent=59 // pred_region
          %s359 = smul.u32 32, %s21
          %p360 = scmp.lt.s32.totalorder %s359, 63
          %s361 = scalar_select %p360, %s359, 63
          %s362 = smul.addr %s361, 8
          %s363 = scalar_lea.vmem %s0, %s362
          %s364 = smul.u32 32, %s21
        $region64: #{tpu_custom_call.1} parent=59 // pred_fallthru
          _
      $region60: #{tpu_custom_call.1} parent=5 // pred_fallthru
        _
      %p365 = scmp.le.s32.totalorder 1, %s21
      %p366 = scmp.lt.s32.totalorder %s21, 3
      %p367 = pnand %p365, %p366
      %p368 = pneg %p367
      // Predicated region
      $region65: #{tpu_custom_call.1} parent=5 // pred_check
        _
      $region66: #{tpu_custom_call.1} parent=5 // pred_check_branch
        %370 = sbr.rel (%p367) target = $region68
      $region67: #{tpu_custom_call.1} parent=5 // pred_region
        %s371 = ssub.s32 %s21, 1
        %s372 = smul.u32 32, %s26
        %p373 = scmp.lt.s32.totalorder %s372, 63
        %s374 = scalar_select %p373, %s372, 63
        %s375 = smul.addr %s374, 8
        %s376 = scalar_lea.vmem %s0, %s375
        %p377 = pneg %p47
        %p378 = pneg %p44
        %p379 = pneg %p68
        %p380 = pneg %p65
        %p381 = pneg %p89
        %p382 = pneg %p86
        %p383 = pneg %p110
        %p384 = pneg %p107
        %p385 = pneg %p131
        %p386 = pneg %p128
        %p387 = pneg %p152
        %p388 = pneg %p149
        %p389 = pneg %p173
        %p390 = pneg %p170
        %p391 = pneg %p194
        %p392 = pneg %p191
        %p393 = pneg %p215
        %p394 = pneg %p212
        %p395 = pneg %p236
        %p396 = pneg %p233
        %p397 = pneg %p257
        %p398 = pneg %p254
        %p399 = pneg %p278
        %p400 = pneg %p275
        %p401 = pneg %p304
        %p402 = pneg %p301
        %s403 = sand.u32 %s291, 1
        %s404 = scalar_lea.sflag [#allocation3], %s403
        %s405 = sand.u32 %s291, 1
        %s406 = smul.addr %s405, 256
        %s407 = scalar_lea.vmem [#allocation2], %s406
        %s408 = smul.u32 32, %s26
        %p409 = scmp.lt.s32.totalorder %s408, 63
        %s410 = scalar_select %p409, %s408, 63
        %s411 = smul.addr %s410, 8
        %s412 = scalar_lea.vmem %s0, %s411
        %s413 = smul.u32 32, %s26
        %s414 = smul.u32 32, %s26
        %v416 = vld [vmem:[%s412] sm:$0xff]
        %v417 = vld [vmem:[%s412 + $0x8] sm:$0xff]
        %v418 = vld [vmem:[%s412 + $0x10] sm:$0xff]
        %v419 = vld [vmem:[%s412 + $0x18] sm:$0xff]
        %v420 = vld [vmem:[%s412 + $0x20] sm:$0xff]
        %v421 = vld [vmem:[%s412 + $0x28] sm:$0xff]
        %v422 = vld [vmem:[%s412 + $0x30] sm:$0xff]
        %v423 = vld [vmem:[%s412 + $0x38] sm:$0xff]
        %v424 = vld [vmem:[%s412 + $0x40] sm:$0xff]
        %v425 = vld [vmem:[%s412 + $0x48] sm:$0xff]
        %v426 = vld [vmem:[%s412 + $0x50] sm:$0xff]
        %v427 = vld [vmem:[%s412 + $0x58] sm:$0xff]
        %v428 = vld [vmem:[%s412 + $0x60] sm:$0xff]
        %v429 = vld [vmem:[%s412 + $0x68] sm:$0xff]
        %v430 = vld [vmem:[%s412 + $0x70] sm:$0xff]
        %v431 = vld [vmem:[%s412 + $0x78] sm:$0xff]
        %v432 = vld [vmem:[%s412 + $0x80] sm:$0xff]
        %v433 = vld [vmem:[%s412 + $0x88] sm:$0xff]
        %v434 = vld [vmem:[%s412 + $0x90] sm:$0xff]
        %v435 = vld [vmem:[%s412 + $0x98] sm:$0xff]
        %v436 = vld [vmem:[%s412 + $0xa0] sm:$0xff]
        %v437 = vld [vmem:[%s412 + $0xa8] sm:$0xff]
        %v438 = vld [vmem:[%s412 + $0xb0] sm:$0xff]
        %v439 = vld [vmem:[%s412 + $0xb8] sm:$0xff]
        %v440 = vld [vmem:[%s412 + $0xc0] sm:$0xff]
        %v441 = vld [vmem:[%s412 + $0xc8] sm:$0xff]
        %v442 = vld [vmem:[%s412 + $0xd0] sm:$0xff]
        %v443 = vld [vmem:[%s412 + $0xd8] sm:$0xff]
        %v444 = vld [vmem:[%s412 + $0xe0] sm:$0xff]
        %v445 = vld [vmem:[%s412 + $0xe8] sm:$0xff]
        %v446 = vld [vmem:[%s412 + $0xf0] sm:$0xff]
        %v447 = vld [vmem:[%s412 + $0xf8] sm:$0xff]
        %v448 = vld [vmem:[%s1] sm:$0xff]
        %v449 = vld [vmem:[%s1 + $0x8] sm:$0x3]
        %v450 = vld [vmem:[%s2] sm:$0x1]
        %v452 = vlaneseq
        %v453 = vshrl.u32 %v452, 7
        %v454 = vsub.s32 0, %v453
        %v455 = vrot.slane %v450, %v454
        %vm457 = vcmask 80896
        %v459 = vsel %vm457, %v416, 0
        %v462 = vsel %vm457, %v417, 0
        %v465 = vsel %vm457, %v418, 0
        %v468 = vsel %vm457, %v419, 0
        %v471 = vsel %vm457, %v420, 0
        %v474 = vsel %vm457, %v421, 0
        %v477 = vsel %vm457, %v422, 0
        %v480 = vsel %vm457, %v423, 0
        %v483 = vsel %vm457, %v424, 0
        %v486 = vsel %vm457, %v425, 0
        %v489 = vsel %vm457, %v426, 0
        %v492 = vsel %vm457, %v427, 0
        %v495 = vsel %vm457, %v428, 0
        %v498 = vsel %vm457, %v429, 0
        %v501 = vsel %vm457, %v430, 0
        %v504 = vsel %vm457, %v431, 0
        %v507 = vsel %vm457, %v432, 0
        %v510 = vsel %vm457, %v433, 0
        %v513 = vsel %vm457, %v434, 0
        %v516 = vsel %vm457, %v435, 0
        %v519 = vsel %vm457, %v436, 0
        %v522 = vsel %vm457, %v437, 0
        %v525 = vsel %vm457, %v438, 0
        %v528 = vsel %vm457, %v439, 0
        %v531 = vsel %vm457, %v440, 0
        %v534 = vsel %vm457, %v441, 0
        %v537 = vsel %vm457, %v442, 0
        %v540 = vsel %vm457, %v443, 0
        %v543 = vsel %vm457, %v444, 0
        %v546 = vsel %vm457, %v445, 0
        %v549 = vsel %vm457, %v446, 0
        %v552 = vsel %vm457, %v447, 0
        %vm554 = vcmask 1041408
        %v556 = vsel %vm554, %v449, 0
        %558 = vmatprep.subr.mxu0 0.0
        %559 = vmatpush1.msra.mxu0 %v448
        %560 = vmatprep.subr.mxu0 0.0
        %561 = vmatpush1.msra.mxu0 %v556
        %562 = vmatprep.subr.mxu0 0.0
        %563 = vmatpush1.msra.mxu0 0.0
        %564 = vmatprep.subr.mxu0 0.0
        %565 = vmatpush1.msra.mxu0 0.0
        %566 = vmatprep.subr.mxu0 0.0
        %567 = vmatpush1.msra.mxu0 0.0
        %568 = vmatprep.subr.mxu0 0.0
        %569 = vmatpush1.msra.mxu0 0.0
        %570 = vmatprep.subr.mxu0 0.0
        %571 = vmatpush1.msra.mxu0 0.0
        %572 = vmatprep.subr.mxu0 0.0
        %573 = vmatpush1.msra.mxu0 0.0
        %574 = vmatprep.subr.mxu0 0.0
        %575 = vmatpush1.msra.mxu0 0.0
        %576 = vmatprep.subr.mxu0 0.0
        %577 = vmatpush1.msra.mxu0 0.0
        %578 = vmatprep.subr.mxu0 0.0
        %579 = vmatpush1.msra.mxu0 0.0
        %580 = vmatprep.subr.mxu0 0.0
        %581 = vmatpush1.msra.mxu0 0.0
        %582 = vmatprep.subr.mxu0 0.0
        %583 = vmatpush1.msra.mxu0 0.0
        %584 = vmatprep.subr.mxu0 0.0
        %585 = vmatpush1.msra.mxu0 0.0
        %586 = vmatprep.subr.mxu0 0.0
        %587 = vmatpush1.msra.mxu0 0.0
        %588 = vmatprep.subr.mxu0 0.0
        %589 = vmatpush1.msra.mxu0 0.0
        %590 = vmatprep.subr.mxu0 0.0
        %591 = vmatpush1.msra.mxu0 0.0
        %592 = vmatprep.subr.mxu0 0.0
        %593 = vmatpush1.msra.mxu0 0.0
        %594 = vmatprep.subr.mxu0 0.0
        %595 = vmatpush1.msra.mxu0 0.0
        %596 = vmatprep.subr.mxu0 0.0
        %597 = vmatpush1.msra.mxu0 0.0
        %598 = vmatprep.subr.mxu0 0.0
        %599 = vmatpush1.msra.mxu0 0.0
        %600 = vmatprep.subr.mxu0 0.0
        %601 = vmatpush1.msra.mxu0 0.0
        %602 = vmatprep.subr.mxu0 0.0
        %603 = vmatpush1.msra.mxu0 0.0
        %604 = vmatprep.subr.mxu0 0.0
        %605 = vmatpush1.msra.mxu0 0.0
        %606 = vmatprep.subr.mxu0 0.0
        %607 = vmatpush1.msra.mxu0 0.0
        %608 = vmatprep.subr.mxu0 0.0
        %609 = vmatpush1.msra.mxu0 0.0
        %610 = vmatprep.subr.mxu0 0.0
        %611 = vmatpush1.msra.mxu0 0.0
        %612 = vmatprep.subr.mxu0 0.0
        %613 = vmatpush1.msra.mxu0 0.0
        %614 = vmatprep.subr.mxu0 0.0
        %615 = vmatpush1.msra.mxu0 0.0
        %616 = vmatprep.subr.mxu0 0.0
        %617 = vmatpush1.msra.mxu0 0.0
        %618 = vmatprep.subr.mxu0 0.0
        %619 = vmatpush1.msra.mxu0 0.0
        %620 = vmatprep.subr.mxu0 0.0
        %621 = vmatpush1.msra.mxu0 0.0
        %622 = vmatprep.mubr.f32.mxu0 0.0
        %623 = vmatmul.mubr.f32.gmra.mrb[0].mxu0 %v459
        %v624 = vpop.f32.mrb[0].mxu0
        %v625 = vadd.f32 %v455, %v624
        %v626 = vpop.f32.mrb[0].mxu0
        %627 = vmatprep.mubr.f32.mxu0 0.0
        %628 = vmatmul.mubr.f32.gmra.mrb[0].mxu0 %v462
        %v629 = vpop.f32.mrb[0].mxu0
        %v630 = vadd.f32 %v455, %v629
        %v631 = vpop.f32.mrb[0].mxu0
        %632 = vmatprep.mubr.f32.mxu0 0.0
        %633 = vmatmul.mubr.f32.gmra.mrb[0].mxu0 %v465
        %v634 = vpop.f32.mrb[0].mxu0
        %v635 = vadd.f32 %v455, %v634
        %v636 = vpop.f32.mrb[0].mxu0
        %637 = vmatprep.mubr.f32.mxu0 0.0
        %638 = vmatmul.mubr.f32.gmra.mrb[0].mxu0 %v468
        %v639 = vpop.f32.mrb[0].mxu0
        %v640 = vadd.f32 %v455, %v639
        %v641 = vpop.f32.mrb[0].mxu0
        %642 = vmatprep.mubr.f32.mxu0 0.0
        %643 = vmatmul.mubr.f32.gmra.mrb[0].mxu0 %v471
        %v644 = vpop.f32.mrb[0].mxu0
        %v645 = vadd.f32 %v455, %v644
        %v646 = vpop.f32.mrb[0].mxu0
        %647 = vmatprep.mubr.f32.mxu0 0.0
        %648 = vmatmul.mubr.f32.gmra.mrb[0].mxu0 %v474
        %v649 = vpop.f32.mrb[0].mxu0
        %v650 = vadd.f32 %v455, %v649
        %v651 = vpop.f32.mrb[0].mxu0
        %652 = vmatprep.mubr.f32.mxu0 0.0
        %653 = vmatmul.mubr.f32.gmra.mrb[0].mxu0 %v477
        %v654 = vpop.f32.mrb[0].mxu0
        %v655 = vadd.f32 %v455, %v654
        %v656 = vpop.f32.mrb[0].mxu0
        %657 = vmatprep.mubr.f32.mxu0 0.0
        %658 = vmatmul.mubr.f32.gmra.mrb[0].mxu0 %v480
        %v659 = vpop.f32.mrb[0].mxu0
        %v660 = vadd.f32 %v455, %v659
        %v661 = vpop.f32.mrb[0].mxu0
        %662 = vmatprep.mubr.f32.mxu0 0.0
        %663 = vmatmul.mubr.f32.gmra.mrb[0].mxu0 %v483
        %v664 = vpop.f32.mrb[0].mxu0
        %v665 = vadd.f32 %v455, %v664
        %v666 = vpop.f32.mrb[0].mxu0
        %667 = vmatprep.mubr.f32.mxu0 0.0
        %668 = vmatmul.mubr.f32.gmra.mrb[0].mxu0 %v486
        %v669 = vpop.f32.mrb[0].mxu0
        %v670 = vadd.f32 %v455, %v669
        %v671 = vpop.f32.mrb[0].mxu0
        %672 = vmatprep.mubr.f32.mxu0 0.0
        %673 = vmatmul.mubr.f32.gmra.mrb[0].mxu0 %v489
        %v674 = vpop.f32.mrb[0].mxu0
        %v675 = vadd.f32 %v455, %v674
        %v676 = vpop.f32.mrb[0].mxu0
        %677 = vmatprep.mubr.f32.mxu0 0.0
        %678 = vmatmul.mubr.f32.gmra.mrb[0].mxu0 %v492
        %v679 = vpop.f32.mrb[0].mxu0
        %v680 = vadd.f32 %v455, %v679
        %v681 = vpop.f32.mrb[0].mxu0
        %682 = vmatprep.mubr.f32.mxu0 0.0
        %683 = vmatmul.mubr.f32.gmra.mrb[0].mxu0 %v495
        %v684 = vpop.f32.mrb[0].mxu0
        %v685 = vadd.f32 %v455, %v684
        %v686 = vpop.f32.mrb[0].mxu0
        %687 = vmatprep.mubr.f32.mxu0 0.0
        %688 = vmatmul.mubr.f32.gmra.mrb[0].mxu0 %v498
        %v689 = vpop.f32.mrb[0].mxu0
        %v690 = vadd.f32 %v455, %v689
        %v691 = vpop.f32.mrb[0].mxu0
        %692 = vmatprep.mubr.f32.mxu0 0.0
        %693 = vmatmul.mubr.f32.gmra.mrb[0].mxu0 %v501
        %v694 = vpop.f32.mrb[0].mxu0
        %v695 = vadd.f32 %v455, %v694
        %v696 = vpop.f32.mrb[0].mxu0
        %697 = vmatprep.mubr.f32.mxu0 0.0
        %698 = vmatmul.mubr.f32.gmra.mrb[0].mxu0 %v504
        %v699 = vpop.f32.mrb[0].mxu0
        %v700 = vadd.f32 %v455, %v699
        %v701 = vpop.f32.mrb[0].mxu0
        %702 = vmatprep.mubr.f32.mxu0 0.0
        %703 = vmatmul.mubr.f32.gmra.mrb[0].mxu0 %v507
        %v704 = vpop.f32.mrb[0].mxu0
        %v705 = vadd.f32 %v455, %v704
        %v706 = vpop.f32.mrb[0].mxu0
        %707 = vmatprep.mubr.f32.mxu0 0.0
        %708 = vmatmul.mubr.f32.gmra.mrb[0].mxu0 %v510
        %v709 = vpop.f32.mrb[0].mxu0
        %v710 = vadd.f32 %v455, %v709
        %v711 = vpop.f32.mrb[0].mxu0
        %712 = vmatprep.mubr.f32.mxu0 0.0
        %713 = vmatmul.mubr.f32.gmra.mrb[0].mxu0 %v513
        %v714 = vpop.f32.mrb[0].mxu0
        %v715 = vadd.f32 %v455, %v714
        %v716 = vpop.f32.mrb[0].mxu0
        %717 = vmatprep.mubr.f32.mxu0 0.0
        %718 = vmatmul.mubr.f32.gmra.mrb[0].mxu0 %v516
        %v719 = vpop.f32.mrb[0].mxu0
        %v720 = vadd.f32 %v455, %v719
        %v721 = vpop.f32.mrb[0].mxu0
        %722 = vmatprep.mubr.f32.mxu0 0.0
        %723 = vmatmul.mubr.f32.gmra.mrb[0].mxu0 %v519
        %v724 = vpop.f32.mrb[0].mxu0
        %v725 = vadd.f32 %v455, %v724
        %v726 = vpop.f32.mrb[0].mxu0
        %727 = vmatprep.mubr.f32.mxu0 0.0
        %728 = vmatmul.mubr.f32.gmra.mrb[0].mxu0 %v522
        %v729 = vpop.f32.mrb[0].mxu0
        %v730 = vadd.f32 %v455, %v729
        %v731 = vpop.f32.mrb[0].mxu0
        %732 = vmatprep.mubr.f32.mxu0 0.0
        %733 = vmatmul.mubr.f32.gmra.mrb[0].mxu0 %v525
        %v734 = vpop.f32.mrb[0].mxu0
        %v735 = vadd.f32 %v455, %v734
        %v736 = vpop.f32.mrb[0].mxu0
        %737 = vmatprep.mubr.f32.mxu0 0.0
        %738 = vmatmul.mubr.f32.gmra.mrb[0].mxu0 %v528
        %v739 = vpop.f32.mrb[0].mxu0
        %v740 = vadd.f32 %v455, %v739
        %v741 = vpop.f32.mrb[0].mxu0
        %742 = vmatprep.mubr.f32.mxu0 0.0
        %743 = vmatmul.mubr.f32.gmra.mrb[0].mxu0 %v531
        %v744 = vpop.f32.mrb[0].mxu0
        %v745 = vadd.f32 %v455, %v744
        %v746 = vpop.f32.mrb[0].mxu0
        %747 = vmatprep.mubr.f32.mxu0 0.0
        %748 = vmatmul.mubr.f32.gmra.mrb[0].mxu0 %v534
        %v749 = vpop.f32.mrb[0].mxu0
        %v750 = vadd.f32 %v455, %v749
        %v751 = vpop.f32.mrb[0].mxu0
        %752 = vmatprep.mubr.f32.mxu0 0.0
        %753 = vmatmul.mubr.f32.gmra.mrb[0].mxu0 %v537
        %v754 = vpop.f32.mrb[0].mxu0
        %v755 = vadd.f32 %v455, %v754
        %v756 = vpop.f32.mrb[0].mxu0
        %757 = vmatprep.mubr.f32.mxu0 0.0
        %758 = vmatmul.mubr.f32.gmra.mrb[0].mxu0 %v540
        %v759 = vpop.f32.mrb[0].mxu0
        %v760 = vadd.f32 %v455, %v759
        %v761 = vpop.f32.mrb[0].mxu0
        %762 = vmatprep.mubr.f32.mxu0 0.0
        %763 = vmatmul.mubr.f32.gmra.mrb[0].mxu0 %v543
        %v764 = vpop.f32.mrb[0].mxu0
        %v765 = vadd.f32 %v455, %v764
        %v766 = vpop.f32.mrb[0].mxu0
        %767 = vmatprep.mubr.f32.mxu0 0.0
        %768 = vmatmul.mubr.f32.gmra.mrb[0].mxu0 %v546
        %v769 = vpop.f32.mrb[0].mxu0
        %v770 = vadd.f32 %v455, %v769
        %v771 = vpop.f32.mrb[0].mxu0
        %772 = vmatprep.mubr.f32.mxu0 0.0
        %773 = vmatmul.mubr.f32.gmra.mrb[0].mxu0 %v549
        %v774 = vpop.f32.mrb[0].mxu0
        %v775 = vadd.f32 %v455, %v774
        %v776 = vpop.f32.mrb[0].mxu0
        %777 = vmatprep.mubr.f32.mxu0 0.0
        %778 = vmatmul.mubr.f32.gmra.mrb[0].mxu0 %v552
        %v779 = vpop.f32.mrb[0].mxu0
        %v780 = vadd.f32 %v455, %v779
        %v781 = vpop.f32.mrb[0].mxu0
        %782 = vdwg.mxu0
        %v783 = vand.u32 2147483647, %v625
        %vm784 = vcmp.le.f32.partialorder %v783, 0.7853982
        %vm785 = vcmp.lt.s32.totalorder %v625, 0
        %v786 = vand.u32 %v625, 2139095040
        %v787 = vshrl.u32 %v786, 23
        %v788 = vsub.s32 %v787, 127
        %v789 = vand.u32 2147483647, %v625
        %v790 = vand.u32 %v789, 8388607
        %v791 = vor.u32 %v790, 8388608
        %v792 = vsub.s32 0, %v791
        %v793 = vadd.s32 %v788, 1
        %vm794 = vcmp.gt.s32.totalorder %v793, 0
        %v795 = vsel %vm794, %v793, 0
        %v796 = vshrl.u32 %v795, 5
        %v797 = vand.u32 %v795, 31
        %v798 = vsub.s32 32, %v797
        %v799 = vshrl.u32 683565275, %v798
        %v800 = vshll.u32 683565275, %v797
        %v801 = vshrl.u32 2475754826, %v798
        %v802 = vor.u32 %v800, %v801
        %v803 = vshll.u32 2475754826, %v797
        %v804 = vshrl.u32 2131351028, %v798
        %v805 = vor.u32 %v803, %v804
        %v806 = vshll.u32 2131351028, %v797
        %v807 = vshrl.u32 2102212464, %v798
        %v808 = vor.u32 %v806, %v807
        %v809 = vshll.u32 2102212464, %v797
        %v810 = vshrl.u32 920167782, %v798
        %v811 = vor.u32 %v809, %v810
        %v812 = vshll.u32 920167782, %v797
        %v813 = vshrl.u32 1326507024, %v798
        %v814 = vor.u32 %v812, %v813
        %vm815 = vcmp.lt.s32.totalorder %v796, 1
        %vm816 = vcmp.lt.s32.totalorder %v796, 2
        %vm817 = vcmp.lt.s32.totalorder %v796, 3
        %vm818 = vcmp.lt.s32.totalorder %v796, 4
        %v819 = vsel %vm815, %v799, %v802
        %v820 = vsel %vm818, %v808, 2102212464
        %v821 = vsel %vm817, %v805, %v820
        %v822 = vsel %vm816, %v819, %v821
        %v823 = vsel %vm815, %v802, %v805
        %v824 = vsel %vm818, %v811, 920167782
        %v825 = vsel %vm817, %v808, %v824
        %v826 = vsel %vm816, %v823, %v825
        %v827 = vsel %vm815, %v805, %v808
        %v828 = vsel %vm818, %v814, 1326507024
        %v829 = vsel %vm817, %v811, %v828
        %v830 = vsel %vm816, %v827, %v829
        %v831 = vshll.u32 %v791, 8
        %v832 = vmul.u32.u64.compose %v831, %v830
        %v833 = vextract.low.u32 %v832
        %v834 = vextract.high.u32 %v832
        %v835 = vmul.u32.u64.compose %v831, %v826
        %v836 = vextract.low.u32 %v835
        %v837 = vextract.high.u32 %v835
        %v838 = vmul.u32 %v831, %v822
        %v839 = vadd.s32 %v834, %v836
        %vm840 = vc.u32 %v834, %v836
        %v841 = vadd.s32 %v837, 1
        %v842 = vsel %vm840, %v841, %v837
        %v843 = vadd.s32 %v838, %v842
        %v844 = vadd.s32 %v843, 536870912
        %v845 = vshrl.u32 %v844, 30
        %v846 = vshll.u32 %v845, 30
        %v847 = vsub.s32 %v843, %v846
        %vm848 = vcmp.lt.s32.totalorder %v847, 0
        %v849 = vsub.s32 0, %v847
        %v850 = vsel %vm848, %v849, %v847
        %v851 = vclz %v850
        %v852 = vsub.s32 %v851, 2
        %vm853 = vcmp.gt.s32.totalorder 0, %v852
        %v854 = vsel %vm853, 0, %v852
        %v855 = vsub.s32 32, %v854
        %v856 = vshll.u32 %v847, %v854
        %v857 = vshrl.u32 %v839, %v855
        %v858 = vor.u32 %v856, %v857
        %v859 = vsub.s32 4294967266, %v854
        %v860 = vadd.s32 %v859, 127
        %v861 = vshll.u32 %v860, 23
        %v862 = vor.u32 4788187, %v861
        %v863 = vand.u32 2147483647, %v862
        %v865 = vcvt.s32.f32 %v858
        %v866 = vmul.f32 %v865, %v863
        %v867 = vxor.u32 %v866, 2147483648
        %v868 = vsel %vm785, %v867, %v866
        %v869 = vsub.s32 4, %v845
        %v870 = vsel %vm785, %v869, %v845
        %v871 = vsel %vm784, %v625, %v868
        %v872 = vsel %vm784, 0, %v870
        %v873 = vcosq.f32.pop %v871
        %v874 = vsinq.f32.pop %v871
        %vm875 = vweird.f32 %v625
        %v876 = vadd.s32 %v872, 3
        %v877 = vand.u32 %v876, 3
        %vm878 = vcmp.lt.s32.totalorder %v877, 2
        %vm879 = vcmp.eq.s32.totalorder %v877, 0
        %v880 = vxor.u32 %v874, 2147483648
        %v881 = vsel %vm879, %v873, %v880
        %vm882 = vcmp.eq.s32.totalorder %v877, 2
        %v883 = vxor.u32 %v873, 2147483648
        %v884 = vsel %vm882, %v883, %v874
        %v885 = vsel %vm878, %v881, %v884
        %v886 = vsel %vm875, nan, %v885
        %v887 = vand.u32 2147483647, %v630
        %vm888 = vcmp.le.f32.partialorder %v887, 0.7853982
        %vm889 = vcmp.lt.s32.totalorder %v630, 0
        %v890 = vand.u32 %v630, 2139095040
        %v891 = vshrl.u32 %v890, 23
        %v892 = vsub.s32 %v891, 127
        %v893 = vand.u32 2147483647, %v630
        %v894 = vand.u32 %v893, 8388607
        %v895 = vor.u32 %v894, 8388608
        %v896 = vsub.s32 0, %v895
        %v897 = vadd.s32 %v892, 1
        %vm898 = vcmp.gt.s32.totalorder %v897, 0
        %v899 = vsel %vm898, %v897, 0
        %v900 = vshrl.u32 %v899, 5
        %v901 = vand.u32 %v899, 31
        %v902 = vsub.s32 32, %v901
        %v903 = vshrl.u32 683565275, %v902
        %v904 = vshll.u32 683565275, %v901
        %v905 = vshrl.u32 2475754826, %v902
        %v906 = vor.u32 %v904, %v905
        %v907 = vshll.u32 2475754826, %v901
        %v908 = vshrl.u32 2131351028, %v902
        %v909 = vor.u32 %v907, %v908
        %v910 = vshll.u32 2131351028, %v901
        %v911 = vshrl.u32 2102212464, %v902
        %v912 = vor.u32 %v910, %v911
        %v913 = vshll.u32 2102212464, %v901
        %v914 = vshrl.u32 920167782, %v902
        %v915 = vor.u32 %v913, %v914
        %v916 = vshll.u32 920167782, %v901
        %v917 = vshrl.u32 1326507024, %v902
        %v918 = vor.u32 %v916, %v917
        %vm919 = vcmp.lt.s32.totalorder %v900, 1
        %vm920 = vcmp.lt.s32.totalorder %v900, 2
        %vm921 = vcmp.lt.s32.totalorder %v900, 3
        %vm922 = vcmp.lt.s32.totalorder %v900, 4
        %v923 = vsel %vm919, %v903, %v906
        %v924 = vsel %vm922, %v912, 2102212464
        %v925 = vsel %vm921, %v909, %v924
        %v926 = vsel %vm920, %v923, %v925
        %v927 = vsel %vm919, %v906, %v909
        %v928 = vsel %vm922, %v915, 920167782
        %v929 = vsel %vm921, %v912, %v928
        %v930 = vsel %vm920, %v927, %v929
        %v931 = vsel %vm919, %v909, %v912
        %v932 = vsel %vm922, %v918, 1326507024
        %v933 = vsel %vm921, %v915, %v932
        %v934 = vsel %vm920, %v931, %v933
        %v935 = vshll.u32 %v895, 8
        %v936 = vmul.u32.u64.compose %v935, %v934
        %v937 = vextract.low.u32 %v936
        %v938 = vextract.high.u32 %v936
        %v939 = vmul.u32.u64.compose %v935, %v930
        %v940 = vextract.low.u32 %v939
        %v941 = vextract.high.u32 %v939
        %v942 = vmul.u32 %v935, %v926
        %v943 = vadd.s32 %v938, %v940
        %vm944 = vc.u32 %v938, %v940
        %v945 = vadd.s32 %v941, 1
        %v946 = vsel %vm944, %v945, %v941
        %v947 = vadd.s32 %v942, %v946
        %v948 = vadd.s32 %v947, 536870912
        %v949 = vshrl.u32 %v948, 30
        %v950 = vshll.u32 %v949, 30
        %v951 = vsub.s32 %v947, %v950
        %vm952 = vcmp.lt.s32.totalorder %v951, 0
        %v953 = vsub.s32 0, %v951
        %v954 = vsel %vm952, %v953, %v951
        %v955 = vclz %v954
        %v956 = vsub.s32 %v955, 2
        %vm957 = vcmp.gt.s32.totalorder 0, %v956
        %v958 = vsel %vm957, 0, %v956
        %v959 = vsub.s32 32, %v958
        %v960 = vshll.u32 %v951, %v958
        %v961 = vshrl.u32 %v943, %v959
        %v962 = vor.u32 %v960, %v961
        %v963 = vsub.s32 4294967266, %v958
        %v964 = vadd.s32 %v963, 127
        %v965 = vshll.u32 %v964, 23
        %v966 = vor.u32 4788187, %v965
        %v967 = vand.u32 2147483647, %v966
        %v969 = vcvt.s32.f32 %v962
        %v970 = vmul.f32 %v969, %v967
        %v971 = vxor.u32 %v970, 2147483648
        %v972 = vsel %vm889, %v971, %v970
        %v973 = vsub.s32 4, %v949
        %v974 = vsel %vm889, %v973, %v949
        %v975 = vsel %vm888, %v630, %v972
        %v976 = vsel %vm888, 0, %v974
        %v977 = vcosq.f32.pop %v975
        %v978 = vsinq.f32.pop %v975
        %vm979 = vweird.f32 %v630
        %v980 = vadd.s32 %v976, 3
        %v981 = vand.u32 %v980, 3
        %vm982 = vcmp.lt.s32.totalorder %v981, 2
        %vm983 = vcmp.eq.s32.totalorder %v981, 0
        %v984 = vxor.u32 %v978, 2147483648
        %v985 = vsel %vm983, %v977, %v984
        %vm986 = vcmp.eq.s32.totalorder %v981, 2
        %v987 = vxor.u32 %v977, 2147483648
        %v988 = vsel %vm986, %v987, %v978
        %v989 = vsel %vm982, %v985, %v988
        %v990 = vsel %vm979, nan, %v989
        %v991 = vand.u32 2147483647, %v635
        %vm992 = vcmp.le.f32.partialorder %v991, 0.7853982
        %vm993 = vcmp.lt.s32.totalorder %v635, 0
        %v994 = vand.u32 %v635, 2139095040
        %v995 = vshrl.u32 %v994, 23
        %v996 = vsub.s32 %v995, 127
        %v997 = vand.u32 2147483647, %v635
        %v998 = vand.u32 %v997, 8388607
        %v999 = vor.u32 %v998, 8388608
        %v1000 = vsub.s32 0, %v999
        %v1001 = vadd.s32 %v996, 1
        %vm1002 = vcmp.gt.s32.totalorder %v1001, 0
        %v1003 = vsel %vm1002, %v1001, 0
        %v1004 = vshrl.u32 %v1003, 5
        %v1005 = vand.u32 %v1003, 31
        %v1006 = vsub.s32 32, %v1005
        %v1007 = vshrl.u32 683565275, %v1006
        %v1008 = vshll.u32 683565275, %v1005
        %v1009 = vshrl.u32 2475754826, %v1006
        %v1010 = vor.u32 %v1008, %v1009
        %v1011 = vshll.u32 2475754826, %v1005
        %v1012 = vshrl.u32 2131351028, %v1006
        %v1013 = vor.u32 %v1011, %v1012
        %v1014 = vshll.u32 2131351028, %v1005
        %v1015 = vshrl.u32 2102212464, %v1006
        %v1016 = vor.u32 %v1014, %v1015
        %v1017 = vshll.u32 2102212464, %v1005
        %v1018 = vshrl.u32 920167782, %v1006
        %v1019 = vor.u32 %v1017, %v1018
        %v1020 = vshll.u32 920167782, %v1005
        %v1021 = vshrl.u32 1326507024, %v1006
        %v1022 = vor.u32 %v1020, %v1021
        %vm1023 = vcmp.lt.s32.totalorder %v1004, 1
        %vm1024 = vcmp.lt.s32.totalorder %v1004, 2
        %vm1025 = vcmp.lt.s32.totalorder %v1004, 3
        %vm1026 = vcmp.lt.s32.totalorder %v1004, 4
        %v1027 = vsel %vm1023, %v1007, %v1010
        %v1028 = vsel %vm1026, %v1016, 2102212464
        %v1029 = vsel %vm1025, %v1013, %v1028
        %v1030 = vsel %vm1024, %v1027, %v1029
        %v1031 = vsel %vm1023, %v1010, %v1013
        %v1032 = vsel %vm1026, %v1019, 920167782
        %v1033 = vsel %vm1025, %v1016, %v1032
        %v1034 = vsel %vm1024, %v1031, %v1033
        %v1035 = vsel %vm1023, %v1013, %v1016
        %v1036 = vsel %vm1026, %v1022, 1326507024
        %v1037 = vsel %vm1025, %v1019, %v1036
        %v1038 = vsel %vm1024, %v1035, %v1037
        %v1039 = vshll.u32 %v999, 8
        %v1040 = vmul.u32.u64.compose %v1039, %v1038
        %v1041 = vextract.low.u32 %v1040
        %v1042 = vextract.high.u32 %v1040
        %v1043 = vmul.u32.u64.compose %v1039, %v1034
        %v1044 = vextract.low.u32 %v1043
        %v1045 = vextract.high.u32 %v1043
        %v1046 = vmul.u32 %v1039, %v1030
        %v1047 = vadd.s32 %v1042, %v1044
        %vm1048 = vc.u32 %v1042, %v1044
        %v1049 = vadd.s32 %v1045, 1
        %v1050 = vsel %vm1048, %v1049, %v1045
        %v1051 = vadd.s32 %v1046, %v1050
        %v1052 = vadd.s32 %v1051, 536870912
        %v1053 = vshrl.u32 %v1052, 30
        %v1054 = vshll.u32 %v1053, 30
        %v1055 = vsub.s32 %v1051, %v1054
        %vm1056 = vcmp.lt.s32.totalorder %v1055, 0
        %v1057 = vsub.s32 0, %v1055
        %v1058 = vsel %vm1056, %v1057, %v1055
        %v1059 = vclz %v1058
        %v1060 = vsub.s32 %v1059, 2
        %vm1061 = vcmp.gt.s32.totalorder 0, %v1060
        %v1062 = vsel %vm1061, 0, %v1060
        %v1063 = vsub.s32 32, %v1062
        %v1064 = vshll.u32 %v1055, %v1062
        %v1065 = vshrl.u32 %v1047, %v1063
        %v1066 = vor.u32 %v1064, %v1065
        %v1067 = vsub.s32 4294967266, %v1062
        %v1068 = vadd.s32 %v1067, 127
        %v1069 = vshll.u32 %v1068, 23
        %v1070 = vor.u32 4788187, %v1069
        %v1071 = vand.u32 2147483647, %v1070
        %v1073 = vcvt.s32.f32 %v1066
        %v1074 = vmul.f32 %v1073, %v1071
        %v1075 = vxor.u32 %v1074, 2147483648
        %v1076 = vsel %vm993, %v1075, %v1074
        %v1077 = vsub.s32 4, %v1053
        %v1078 = vsel %vm993, %v1077, %v1053
        %v1079 = vsel %vm992, %v635, %v1076
        %v1080 = vsel %vm992, 0, %v1078
        %v1081 = vcosq.f32.pop %v1079
        %v1082 = vsinq.f32.pop %v1079
        %vm1083 = vweird.f32 %v635
        %v1084 = vadd.s32 %v1080, 3
        %v1085 = vand.u32 %v1084, 3
        %vm1086 = vcmp.lt.s32.totalorder %v1085, 2
        %vm1087 = vcmp.eq.s32.totalorder %v1085, 0
        %v1088 = vxor.u32 %v1082, 2147483648
        %v1089 = vsel %vm1087, %v1081, %v1088
        %vm1090 = vcmp.eq.s32.totalorder %v1085, 2
        %v1091 = vxor.u32 %v1081, 2147483648
        %v1092 = vsel %vm1090, %v1091, %v1082
        %v1093 = vsel %vm1086, %v1089, %v1092
        %v1094 = vsel %vm1083, nan, %v1093
        %v1095 = vand.u32 2147483647, %v640
        %vm1096 = vcmp.le.f32.partialorder %v1095, 0.7853982
        %vm1097 = vcmp.lt.s32.totalorder %v640, 0
        %v1098 = vand.u32 %v640, 2139095040
        %v1099 = vshrl.u32 %v1098, 23
        %v1100 = vsub.s32 %v1099, 127
        %v1101 = vand.u32 2147483647, %v640
        %v1102 = vand.u32 %v1101, 8388607
        %v1103 = vor.u32 %v1102, 8388608
        %v1104 = vsub.s32 0, %v1103
        %v1105 = vadd.s32 %v1100, 1
        %vm1106 = vcmp.gt.s32.totalorder %v1105, 0
        %v1107 = vsel %vm1106, %v1105, 0
        %v1108 = vshrl.u32 %v1107, 5
        %v1109 = vand.u32 %v1107, 31
        %v1110 = vsub.s32 32, %v1109
        %v1111 = vshrl.u32 683565275, %v1110
        %v1112 = vshll.u32 683565275, %v1109
        %v1113 = vshrl.u32 2475754826, %v1110
        %v1114 = vor.u32 %v1112, %v1113
        %v1115 = vshll.u32 2475754826, %v1109
        %v1116 = vshrl.u32 2131351028, %v1110
        %v1117 = vor.u32 %v1115, %v1116
        %v1118 = vshll.u32 2131351028, %v1109
        %v1119 = vshrl.u32 2102212464, %v1110
        %v1120 = vor.u32 %v1118, %v1119
        %v1121 = vshll.u32 2102212464, %v1109
        %v1122 = vshrl.u32 920167782, %v1110
        %v1123 = vor.u32 %v1121, %v1122
        %v1124 = vshll.u32 920167782, %v1109
        %v1125 = vshrl.u32 1326507024, %v1110
        %v1126 = vor.u32 %v1124, %v1125
        %vm1127 = vcmp.lt.s32.totalorder %v1108, 1
        %vm1128 = vcmp.lt.s32.totalorder %v1108, 2
        %vm1129 = vcmp.lt.s32.totalorder %v1108, 3
        %vm1130 = vcmp.lt.s32.totalorder %v1108, 4
        %v1131 = vsel %vm1127, %v1111, %v1114
        %v1132 = vsel %vm1130, %v1120, 2102212464
        %v1133 = vsel %vm1129, %v1117, %v1132
        %v1134 = vsel %vm1128, %v1131, %v1133
        %v1135 = vsel %vm1127, %v1114, %v1117
        %v1136 = vsel %vm1130, %v1123, 920167782
        %v1137 = vsel %vm1129, %v1120, %v1136
        %v1138 = vsel %vm1128, %v1135, %v1137
        %v1139 = vsel %vm1127, %v1117, %v1120
        %v1140 = vsel %vm1130, %v1126, 1326507024
        %v1141 = vsel %vm1129, %v1123, %v1140
        %v1142 = vsel %vm1128, %v1139, %v1141
        %v1143 = vshll.u32 %v1103, 8
        %v1144 = vmul.u32.u64.compose %v1143, %v1142
        %v1145 = vextract.low.u32 %v1144
        %v1146 = vextract.high.u32 %v1144
        %v1147 = vmul.u32.u64.compose %v1143, %v1138
        %v1148 = vextract.low.u32 %v1147
        %v1149 = vextract.high.u32 %v1147
        %v1150 = vmul.u32 %v1143, %v1134
        %v1151 = vadd.s32 %v1146, %v1148
        %vm1152 = vc.u32 %v1146, %v1148
        %v1153 = vadd.s32 %v1149, 1
        %v1154 = vsel %vm1152, %v1153, %v1149
        %v1155 = vadd.s32 %v1150, %v1154
        %v1156 = vadd.s32 %v1155, 536870912
        %v1157 = vshrl.u32 %v1156, 30
        %v1158 = vshll.u32 %v1157, 30
        %v1159 = vsub.s32 %v1155, %v1158
        %vm1160 = vcmp.lt.s32.totalorder %v1159, 0
        %v1161 = vsub.s32 0, %v1159
        %v1162 = vsel %vm1160, %v1161, %v1159
        %v1163 = vclz %v1162
        %v1164 = vsub.s32 %v1163, 2
        %vm1165 = vcmp.gt.s32.totalorder 0, %v1164
        %v1166 = vsel %vm1165, 0, %v1164
        %v1167 = vsub.s32 32, %v1166
        %v1168 = vshll.u32 %v1159, %v1166
        %v1169 = vshrl.u32 %v1151, %v1167
        %v1170 = vor.u32 %v1168, %v1169
        %v1171 = vsub.s32 4294967266, %v1166
        %v1172 = vadd.s32 %v1171, 127
        %v1173 = vshll.u32 %v1172, 23
        %v1174 = vor.u32 4788187, %v1173
        %v1175 = vand.u32 2147483647, %v1174
        %v1177 = vcvt.s32.f32 %v1170
        %v1178 = vmul.f32 %v1177, %v1175
        %v1179 = vxor.u32 %v1178, 2147483648
        %v1180 = vsel %vm1097, %v1179, %v1178
        %v1181 = vsub.s32 4, %v1157
        %v1182 = vsel %vm1097, %v1181, %v1157
        %v1183 = vsel %vm1096, %v640, %v1180
        %v1184 = vsel %vm1096, 0, %v1182
        %v1185 = vcosq.f32.pop %v1183
        %v1186 = vsinq.f32.pop %v1183
        %vm1187 = vweird.f32 %v640
        %v1188 = vadd.s32 %v1184, 3
        %v1189 = vand.u32 %v1188, 3
        %vm1190 = vcmp.lt.s32.totalorder %v1189, 2
        %vm1191 = vcmp.eq.s32.totalorder %v1189, 0
        %v1192 = vxor.u32 %v1186, 2147483648
        %v1193 = vsel %vm1191, %v1185, %v1192
        %vm1194 = vcmp.eq.s32.totalorder %v1189, 2
        %v1195 = vxor.u32 %v1185, 2147483648
        %v1196 = vsel %vm1194, %v1195, %v1186
        %v1197 = vsel %vm1190, %v1193, %v1196
        %v1198 = vsel %vm1187, nan, %v1197
        %v1199 = vand.u32 2147483647, %v645
        %vm1200 = vcmp.le.f32.partialorder %v1199, 0.7853982
        %vm1201 = vcmp.lt.s32.totalorder %v645, 0
        %v1202 = vand.u32 %v645, 2139095040
        %v1203 = vshrl.u32 %v1202, 23
        %v1204 = vsub.s32 %v1203, 127
        %v1205 = vand.u32 2147483647, %v645
        %v1206 = vand.u32 %v1205, 8388607
        %v1207 = vor.u32 %v1206, 8388608
        %v1208 = vsub.s32 0, %v1207
        %v1209 = vadd.s32 %v1204, 1
        %vm1210 = vcmp.gt.s32.totalorder %v1209, 0
        %v1211 = vsel %vm1210, %v1209, 0
        %v1212 = vshrl.u32 %v1211, 5
        %v1213 = vand.u32 %v1211, 31
        %v1214 = vsub.s32 32, %v1213
        %v1215 = vshrl.u32 683565275, %v1214
        %v1216 = vshll.u32 683565275, %v1213
        %v1217 = vshrl.u32 2475754826, %v1214
        %v1218 = vor.u32 %v1216, %v1217
        %v1219 = vshll.u32 2475754826, %v1213
        %v1220 = vshrl.u32 2131351028, %v1214
        %v1221 = vor.u32 %v1219, %v1220
        %v1222 = vshll.u32 2131351028, %v1213
        %v1223 = vshrl.u32 2102212464, %v1214
        %v1224 = vor.u32 %v1222, %v1223
        %v1225 = vshll.u32 2102212464, %v1213
        %v1226 = vshrl.u32 920167782, %v1214
        %v1227 = vor.u32 %v1225, %v1226
        %v1228 = vshll.u32 920167782, %v1213
        %v1229 = vshrl.u32 1326507024, %v1214
        %v1230 = vor.u32 %v1228, %v1229
        %vm1231 = vcmp.lt.s32.totalorder %v1212, 1
        %vm1232 = vcmp.lt.s32.totalorder %v1212, 2
        %vm1233 = vcmp.lt.s32.totalorder %v1212, 3
        %vm1234 = vcmp.lt.s32.totalorder %v1212, 4
        %v1235 = vsel %vm1231, %v1215, %v1218
        %v1236 = vsel %vm1234, %v1224, 2102212464
        %v1237 = vsel %vm1233, %v1221, %v1236
        %v1238 = vsel %vm1232, %v1235, %v1237
        %v1239 = vsel %vm1231, %v1218, %v1221
        %v1240 = vsel %vm1234, %v1227, 920167782
        %v1241 = vsel %vm1233, %v1224, %v1240
        %v1242 = vsel %vm1232, %v1239, %v1241
        %v1243 = vsel %vm1231, %v1221, %v1224
        %v1244 = vsel %vm1234, %v1230, 1326507024
        %v1245 = vsel %vm1233, %v1227, %v1244
        %v1246 = vsel %vm1232, %v1243, %v1245
        %v1247 = vshll.u32 %v1207, 8
        %v1248 = vmul.u32.u64.compose %v1247, %v1246
        %v1249 = vextract.low.u32 %v1248
        %v1250 = vextract.high.u32 %v1248
        %v1251 = vmul.u32.u64.compose %v1247, %v1242
        %v1252 = vextract.low.u32 %v1251
        %v1253 = vextract.high.u32 %v1251
        %v1254 = vmul.u32 %v1247, %v1238
        %v1255 = vadd.s32 %v1250, %v1252
        %vm1256 = vc.u32 %v1250, %v1252
        %v1257 = vadd.s32 %v1253, 1
        %v1258 = vsel %vm1256, %v1257, %v1253
        %v1259 = vadd.s32 %v1254, %v1258
        %v1260 = vadd.s32 %v1259, 536870912
        %v1261 = vshrl.u32 %v1260, 30
        %v1262 = vshll.u32 %v1261, 30
        %v1263 = vsub.s32 %v1259, %v1262
        %vm1264 = vcmp.lt.s32.totalorder %v1263, 0
        %v1265 = vsub.s32 0, %v1263
        %v1266 = vsel %vm1264, %v1265, %v1263
        %v1267 = vclz %v1266
        %v1268 = vsub.s32 %v1267, 2
        %vm1269 = vcmp.gt.s32.totalorder 0, %v1268
        %v1270 = vsel %vm1269, 0, %v1268
        %v1271 = vsub.s32 32, %v1270
        %v1272 = vshll.u32 %v1263, %v1270
        %v1273 = vshrl.u32 %v1255, %v1271
        %v1274 = vor.u32 %v1272, %v1273
        %v1275 = vsub.s32 4294967266, %v1270
        %v1276 = vadd.s32 %v1275, 127
        %v1277 = vshll.u32 %v1276, 23
        %v1278 = vor.u32 4788187, %v1277
        %v1279 = vand.u32 2147483647, %v1278
        %v1281 = vcvt.s32.f32 %v1274
        %v1282 = vmul.f32 %v1281, %v1279
        %v1283 = vxor.u32 %v1282, 2147483648
        %v1284 = vsel %vm1201, %v1283, %v1282
        %v1285 = vsub.s32 4, %v1261
        %v1286 = vsel %vm1201, %v1285, %v1261
        %v1287 = vsel %vm1200, %v645, %v1284
        %v1288 = vsel %vm1200, 0, %v1286
        %v1289 = vcosq.f32.pop %v1287
        %v1290 = vsinq.f32.pop %v1287
        %vm1291 = vweird.f32 %v645
        %v1292 = vadd.s32 %v1288, 3
        %v1293 = vand.u32 %v1292, 3
        %vm1294 = vcmp.lt.s32.totalorder %v1293, 2
        %vm1295 = vcmp.eq.s32.totalorder %v1293, 0
        %v1296 = vxor.u32 %v1290, 2147483648
        %v1297 = vsel %vm1295, %v1289, %v1296
        %vm1298 = vcmp.eq.s32.totalorder %v1293, 2
        %v1299 = vxor.u32 %v1289, 2147483648
        %v1300 = vsel %vm1298, %v1299, %v1290
        %v1301 = vsel %vm1294, %v1297, %v1300
        %v1302 = vsel %vm1291, nan, %v1301
        %v1303 = vand.u32 2147483647, %v650
        %vm1304 = vcmp.le.f32.partialorder %v1303, 0.7853982
        %vm1305 = vcmp.lt.s32.totalorder %v650, 0
        %v1306 = vand.u32 %v650, 2139095040
        %v1307 = vshrl.u32 %v1306, 23
        %v1308 = vsub.s32 %v1307, 127
        %v1309 = vand.u32 2147483647, %v650
        %v1310 = vand.u32 %v1309, 8388607
        %v1311 = vor.u32 %v1310, 8388608
        %v1312 = vsub.s32 0, %v1311
        %v1313 = vadd.s32 %v1308, 1
        %vm1314 = vcmp.gt.s32.totalorder %v1313, 0
        %v1315 = vsel %vm1314, %v1313, 0
        %v1316 = vshrl.u32 %v1315, 5
        %v1317 = vand.u32 %v1315, 31
        %v1318 = vsub.s32 32, %v1317
        %v1319 = vshrl.u32 683565275, %v1318
        %v1320 = vshll.u32 683565275, %v1317
        %v1321 = vshrl.u32 2475754826, %v1318
        %v1322 = vor.u32 %v1320, %v1321
        %v1323 = vshll.u32 2475754826, %v1317
        %v1324 = vshrl.u32 2131351028, %v1318
        %v1325 = vor.u32 %v1323, %v1324
        %v1326 = vshll.u32 2131351028, %v1317
        %v1327 = vshrl.u32 2102212464, %v1318
        %v1328 = vor.u32 %v1326, %v1327
        %v1329 = vshll.u32 2102212464, %v1317
        %v1330 = vshrl.u32 920167782, %v1318
        %v1331 = vor.u32 %v1329, %v1330
        %v1332 = vshll.u32 920167782, %v1317
        %v1333 = vshrl.u32 1326507024, %v1318
        %v1334 = vor.u32 %v1332, %v1333
        %vm1335 = vcmp.lt.s32.totalorder %v1316, 1
        %vm1336 = vcmp.lt.s32.totalorder %v1316, 2
        %vm1337 = vcmp.lt.s32.totalorder %v1316, 3
        %vm1338 = vcmp.lt.s32.totalorder %v1316, 4
        %v1339 = vsel %vm1335, %v1319, %v1322
        %v1340 = vsel %vm1338, %v1328, 2102212464
        %v1341 = vsel %vm1337, %v1325, %v1340
        %v1342 = vsel %vm1336, %v1339, %v1341
        %v1343 = vsel %vm1335, %v1322, %v1325
        %v1344 = vsel %vm1338, %v1331, 920167782
        %v1345 = vsel %vm1337, %v1328, %v1344
        %v1346 = vsel %vm1336, %v1343, %v1345
        %v1347 = vsel %vm1335, %v1325, %v1328
        %v1348 = vsel %vm1338, %v1334, 1326507024
        %v1349 = vsel %vm1337, %v1331, %v1348
        %v1350 = vsel %vm1336, %v1347, %v1349
        %v1351 = vshll.u32 %v1311, 8
        %v1352 = vmul.u32.u64.compose %v1351, %v1350
        %v1353 = vextract.low.u32 %v1352
        %v1354 = vextract.high.u32 %v1352
        %v1355 = vmul.u32.u64.compose %v1351, %v1346
        %v1356 = vextract.low.u32 %v1355
        %v1357 = vextract.high.u32 %v1355
        %v1358 = vmul.u32 %v1351, %v1342
        %v1359 = vadd.s32 %v1354, %v1356
        %vm1360 = vc.u32 %v1354, %v1356
        %v1361 = vadd.s32 %v1357, 1
        %v1362 = vsel %vm1360, %v1361, %v1357
        %v1363 = vadd.s32 %v1358, %v1362
        %v1364 = vadd.s32 %v1363, 536870912
        %v1365 = vshrl.u32 %v1364, 30
        %v1366 = vshll.u32 %v1365, 30
        %v1367 = vsub.s32 %v1363, %v1366
        %vm1368 = vcmp.lt.s32.totalorder %v1367, 0
        %v1369 = vsub.s32 0, %v1367
        %v1370 = vsel %vm1368, %v1369, %v1367
        %v1371 = vclz %v1370
        %v1372 = vsub.s32 %v1371, 2
        %vm1373 = vcmp.gt.s32.totalorder 0, %v1372
        %v1374 = vsel %vm1373, 0, %v1372
        %v1375 = vsub.s32 32, %v1374
        %v1376 = vshll.u32 %v1367, %v1374
        %v1377 = vshrl.u32 %v1359, %v1375
        %v1378 = vor.u32 %v1376, %v1377
        %v1379 = vsub.s32 4294967266, %v1374
        %v1380 = vadd.s32 %v1379, 127
        %v1381 = vshll.u32 %v1380, 23
        %v1382 = vor.u32 4788187, %v1381
        %v1383 = vand.u32 2147483647, %v1382
        %v1385 = vcvt.s32.f32 %v1378
        %v1386 = vmul.f32 %v1385, %v1383
        %v1387 = vxor.u32 %v1386, 2147483648
        %v1388 = vsel %vm1305, %v1387, %v1386
        %v1389 = vsub.s32 4, %v1365
        %v1390 = vsel %vm1305, %v1389, %v1365
        %v1391 = vsel %vm1304, %v650, %v1388
        %v1392 = vsel %vm1304, 0, %v1390
        %v1393 = vcosq.f32.pop %v1391
        %v1394 = vsinq.f32.pop %v1391
        %vm1395 = vweird.f32 %v650
        %v1396 = vadd.s32 %v1392, 3
        %v1397 = vand.u32 %v1396, 3
        %vm1398 = vcmp.lt.s32.totalorder %v1397, 2
        %vm1399 = vcmp.eq.s32.totalorder %v1397, 0
        %v1400 = vxor.u32 %v1394, 2147483648
        %v1401 = vsel %vm1399, %v1393, %v1400
        %vm1402 = vcmp.eq.s32.totalorder %v1397, 2
        %v1403 = vxor.u32 %v1393, 2147483648
        %v1404 = vsel %vm1402, %v1403, %v1394
        %v1405 = vsel %vm1398, %v1401, %v1404
        %v1406 = vsel %vm1395, nan, %v1405
        %v1407 = vand.u32 2147483647, %v655
        %vm1408 = vcmp.le.f32.partialorder %v1407, 0.7853982
        %vm1409 = vcmp.lt.s32.totalorder %v655, 0
        %v1410 = vand.u32 %v655, 2139095040
        %v1411 = vshrl.u32 %v1410, 23
        %v1412 = vsub.s32 %v1411, 127
        %v1413 = vand.u32 2147483647, %v655
        %v1414 = vand.u32 %v1413, 8388607
        %v1415 = vor.u32 %v1414, 8388608
        %v1416 = vsub.s32 0, %v1415
        %v1417 = vadd.s32 %v1412, 1
        %vm1418 = vcmp.gt.s32.totalorder %v1417, 0
        %v1419 = vsel %vm1418, %v1417, 0
        %v1420 = vshrl.u32 %v1419, 5
        %v1421 = vand.u32 %v1419, 31
        %v1422 = vsub.s32 32, %v1421
        %v1423 = vshrl.u32 683565275, %v1422
        %v1424 = vshll.u32 683565275, %v1421
        %v1425 = vshrl.u32 2475754826, %v1422
        %v1426 = vor.u32 %v1424, %v1425
        %v1427 = vshll.u32 2475754826, %v1421
        %v1428 = vshrl.u32 2131351028, %v1422
        %v1429 = vor.u32 %v1427, %v1428
        %v1430 = vshll.u32 2131351028, %v1421
        %v1431 = vshrl.u32 2102212464, %v1422
        %v1432 = vor.u32 %v1430, %v1431
        %v1433 = vshll.u32 2102212464, %v1421
        %v1434 = vshrl.u32 920167782, %v1422
        %v1435 = vor.u32 %v1433, %v1434
        %v1436 = vshll.u32 920167782, %v1421
        %v1437 = vshrl.u32 1326507024, %v1422
        %v1438 = vor.u32 %v1436, %v1437
        %vm1439 = vcmp.lt.s32.totalorder %v1420, 1
        %vm1440 = vcmp.lt.s32.totalorder %v1420, 2
        %vm1441 = vcmp.lt.s32.totalorder %v1420, 3
        %vm1442 = vcmp.lt.s32.totalorder %v1420, 4
        %v1443 = vsel %vm1439, %v1423, %v1426
        %v1444 = vsel %vm1442, %v1432, 2102212464
        %v1445 = vsel %vm1441, %v1429, %v1444
        %v1446 = vsel %vm1440, %v1443, %v1445
        %v1447 = vsel %vm1439, %v1426, %v1429
        %v1448 = vsel %vm1442, %v1435, 920167782
        %v1449 = vsel %vm1441, %v1432, %v1448
        %v1450 = vsel %vm1440, %v1447, %v1449
        %v1451 = vsel %vm1439, %v1429, %v1432
        %v1452 = vsel %vm1442, %v1438, 1326507024
        %v1453 = vsel %vm1441, %v1435, %v1452
        %v1454 = vsel %vm1440, %v1451, %v1453
        %v1455 = vshll.u32 %v1415, 8
        %v1456 = vmul.u32.u64.compose %v1455, %v1454
        %v1457 = vextract.low.u32 %v1456
        %v1458 = vextract.high.u32 %v1456
        %v1459 = vmul.u32.u64.compose %v1455, %v1450
        %v1460 = vextract.low.u32 %v1459
        %v1461 = vextract.high.u32 %v1459
        %v1462 = vmul.u32 %v1455, %v1446
        %v1463 = vadd.s32 %v1458, %v1460
        %vm1464 = vc.u32 %v1458, %v1460
        %v1465 = vadd.s32 %v1461, 1
        %v1466 = vsel %vm1464, %v1465, %v1461
        %v1467 = vadd.s32 %v1462, %v1466
        %v1468 = vadd.s32 %v1467, 536870912
        %v1469 = vshrl.u32 %v1468, 30
        %v1470 = vshll.u32 %v1469, 30
        %v1471 = vsub.s32 %v1467, %v1470
        %vm1472 = vcmp.lt.s32.totalorder %v1471, 0
        %v1473 = vsub.s32 0, %v1471
        %v1474 = vsel %vm1472, %v1473, %v1471
        %v1475 = vclz %v1474
        %v1476 = vsub.s32 %v1475, 2
        %vm1477 = vcmp.gt.s32.totalorder 0, %v1476
        %v1478 = vsel %vm1477, 0, %v1476
        %v1479 = vsub.s32 32, %v1478
        %v1480 = vshll.u32 %v1471, %v1478
        %v1481 = vshrl.u32 %v1463, %v1479
        %v1482 = vor.u32 %v1480, %v1481
        %v1483 = vsub.s32 4294967266, %v1478
        %v1484 = vadd.s32 %v1483, 127
        %v1485 = vshll.u32 %v1484, 23
        %v1486 = vor.u32 4788187, %v1485
        %v1487 = vand.u32 2147483647, %v1486
        %v1489 = vcvt.s32.f32 %v1482
        %v1490 = vmul.f32 %v1489, %v1487
        %v1491 = vxor.u32 %v1490, 2147483648
        %v1492 = vsel %vm1409, %v1491, %v1490
        %v1493 = vsub.s32 4, %v1469
        %v1494 = vsel %vm1409, %v1493, %v1469
        %v1495 = vsel %vm1408, %v655, %v1492
        %v1496 = vsel %vm1408, 0, %v1494
        %v1497 = vcosq.f32.pop %v1495
        %v1498 = vsinq.f32.pop %v1495
        %vm1499 = vweird.f32 %v655
        %v1500 = vadd.s32 %v1496, 3
        %v1501 = vand.u32 %v1500, 3
        %vm1502 = vcmp.lt.s32.totalorder %v1501, 2
        %vm1503 = vcmp.eq.s32.totalorder %v1501, 0
        %v1504 = vxor.u32 %v1498, 2147483648
        %v1505 = vsel %vm1503, %v1497, %v1504
        %vm1506 = vcmp.eq.s32.totalorder %v1501, 2
        %v1507 = vxor.u32 %v1497, 2147483648
        %v1508 = vsel %vm1506, %v1507, %v1498
        %v1509 = vsel %vm1502, %v1505, %v1508
        %v1510 = vsel %vm1499, nan, %v1509
        %v1511 = vand.u32 2147483647, %v660
        %vm1512 = vcmp.le.f32.partialorder %v1511, 0.7853982
        %vm1513 = vcmp.lt.s32.totalorder %v660, 0
        %v1514 = vand.u32 %v660, 2139095040
        %v1515 = vshrl.u32 %v1514, 23
        %v1516 = vsub.s32 %v1515, 127
        %v1517 = vand.u32 2147483647, %v660
        %v1518 = vand.u32 %v1517, 8388607
        %v1519 = vor.u32 %v1518, 8388608
        %v1520 = vsub.s32 0, %v1519
        %v1521 = vadd.s32 %v1516, 1
        %vm1522 = vcmp.gt.s32.totalorder %v1521, 0
        %v1523 = vsel %vm1522, %v1521, 0
        %v1524 = vshrl.u32 %v1523, 5
        %v1525 = vand.u32 %v1523, 31
        %v1526 = vsub.s32 32, %v1525
        %v1527 = vshrl.u32 683565275, %v1526
        %v1528 = vshll.u32 683565275, %v1525
        %v1529 = vshrl.u32 2475754826, %v1526
        %v1530 = vor.u32 %v1528, %v1529
        %v1531 = vshll.u32 2475754826, %v1525
        %v1532 = vshrl.u32 2131351028, %v1526
        %v1533 = vor.u32 %v1531, %v1532
        %v1534 = vshll.u32 2131351028, %v1525
        %v1535 = vshrl.u32 2102212464, %v1526
        %v1536 = vor.u32 %v1534, %v1535
        %v1537 = vshll.u32 2102212464, %v1525
        %v1538 = vshrl.u32 920167782, %v1526
        %v1539 = vor.u32 %v1537, %v1538
        %v1540 = vshll.u32 920167782, %v1525
        %v1541 = vshrl.u32 1326507024, %v1526
        %v1542 = vor.u32 %v1540, %v1541
        %vm1543 = vcmp.lt.s32.totalorder %v1524, 1
        %vm1544 = vcmp.lt.s32.totalorder %v1524, 2
        %vm1545 = vcmp.lt.s32.totalorder %v1524, 3
        %vm1546 = vcmp.lt.s32.totalorder %v1524, 4
        %v1547 = vsel %vm1543, %v1527, %v1530
        %v1548 = vsel %vm1546, %v1536, 2102212464
        %v1549 = vsel %vm1545, %v1533, %v1548
        %v1550 = vsel %vm1544, %v1547, %v1549
        %v1551 = vsel %vm1543, %v1530, %v1533
        %v1552 = vsel %vm1546, %v1539, 920167782
        %v1553 = vsel %vm1545, %v1536, %v1552
        %v1554 = vsel %vm1544, %v1551, %v1553
        %v1555 = vsel %vm1543, %v1533, %v1536
        %v1556 = vsel %vm1546, %v1542, 1326507024
        %v1557 = vsel %vm1545, %v1539, %v1556
        %v1558 = vsel %vm1544, %v1555, %v1557
        %v1559 = vshll.u32 %v1519, 8
        %v1560 = vmul.u32.u64.compose %v1559, %v1558
        %v1561 = vextract.low.u32 %v1560
        %v1562 = vextract.high.u32 %v1560
        %v1563 = vmul.u32.u64.compose %v1559, %v1554
        %v1564 = vextract.low.u32 %v1563
        %v1565 = vextract.high.u32 %v1563
        %v1566 = vmul.u32 %v1559, %v1550
        %v1567 = vadd.s32 %v1562, %v1564
        %vm1568 = vc.u32 %v1562, %v1564
        %v1569 = vadd.s32 %v1565, 1
        %v1570 = vsel %vm1568, %v1569, %v1565
        %v1571 = vadd.s32 %v1566, %v1570
        %v1572 = vadd.s32 %v1571, 536870912
        %v1573 = vshrl.u32 %v1572, 30
        %v1574 = vshll.u32 %v1573, 30
        %v1575 = vsub.s32 %v1571, %v1574
        %vm1576 = vcmp.lt.s32.totalorder %v1575, 0
        %v1577 = vsub.s32 0, %v1575
        %v1578 = vsel %vm1576, %v1577, %v1575
        %v1579 = vclz %v1578
        %v1580 = vsub.s32 %v1579, 2
        %vm1581 = vcmp.gt.s32.totalorder 0, %v1580
        %v1582 = vsel %vm1581, 0, %v1580
        %v1583 = vsub.s32 32, %v1582
        %v1584 = vshll.u32 %v1575, %v1582
        %v1585 = vshrl.u32 %v1567, %v1583
        %v1586 = vor.u32 %v1584, %v1585
        %v1587 = vsub.s32 4294967266, %v1582
        %v1588 = vadd.s32 %v1587, 127
        %v1589 = vshll.u32 %v1588, 23
        %v1590 = vor.u32 4788187, %v1589
        %v1591 = vand.u32 2147483647, %v1590
        %v1593 = vcvt.s32.f32 %v1586
        %v1594 = vmul.f32 %v1593, %v1591
        %v1595 = vxor.u32 %v1594, 2147483648
        %v1596 = vsel %vm1513, %v1595, %v1594
        %v1597 = vsub.s32 4, %v1573
        %v1598 = vsel %vm1513, %v1597, %v1573
        %v1599 = vsel %vm1512, %v660, %v1596
        %v1600 = vsel %vm1512, 0, %v1598
        %v1601 = vcosq.f32.pop %v1599
        %v1602 = vsinq.f32.pop %v1599
        %vm1603 = vweird.f32 %v660
        %v1604 = vadd.s32 %v1600, 3
        %v1605 = vand.u32 %v1604, 3
        %vm1606 = vcmp.lt.s32.totalorder %v1605, 2
        %vm1607 = vcmp.eq.s32.totalorder %v1605, 0
        %v1608 = vxor.u32 %v1602, 2147483648
        %v1609 = vsel %vm1607, %v1601, %v1608
        %vm1610 = vcmp.eq.s32.totalorder %v1605, 2
        %v1611 = vxor.u32 %v1601, 2147483648
        %v1612 = vsel %vm1610, %v1611, %v1602
        %v1613 = vsel %vm1606, %v1609, %v1612
        %v1614 = vsel %vm1603, nan, %v1613
        %v1615 = vand.u32 2147483647, %v665
        %vm1616 = vcmp.le.f32.partialorder %v1615, 0.7853982
        %vm1617 = vcmp.lt.s32.totalorder %v665, 0
        %v1618 = vand.u32 %v665, 2139095040
        %v1619 = vshrl.u32 %v1618, 23
        %v1620 = vsub.s32 %v1619, 127
        %v1621 = vand.u32 2147483647, %v665
        %v1622 = vand.u32 %v1621, 8388607
        %v1623 = vor.u32 %v1622, 8388608
        %v1624 = vsub.s32 0, %v1623
        %v1625 = vadd.s32 %v1620, 1
        %vm1626 = vcmp.gt.s32.totalorder %v1625, 0
        %v1627 = vsel %vm1626, %v1625, 0
        %v1628 = vshrl.u32 %v1627, 5
        %v1629 = vand.u32 %v1627, 31
        %v1630 = vsub.s32 32, %v1629
        %v1631 = vshrl.u32 683565275, %v1630
        %v1632 = vshll.u32 683565275, %v1629
        %v1633 = vshrl.u32 2475754826, %v1630
        %v1634 = vor.u32 %v1632, %v1633
        %v1635 = vshll.u32 2475754826, %v1629
        %v1636 = vshrl.u32 2131351028, %v1630
        %v1637 = vor.u32 %v1635, %v1636
        %v1638 = vshll.u32 2131351028, %v1629
        %v1639 = vshrl.u32 2102212464, %v1630
        %v1640 = vor.u32 %v1638, %v1639
        %v1641 = vshll.u32 2102212464, %v1629
        %v1642 = vshrl.u32 920167782, %v1630
        %v1643 = vor.u32 %v1641, %v1642
        %v1644 = vshll.u32 920167782, %v1629
        %v1645 = vshrl.u32 1326507024, %v1630
        %v1646 = vor.u32 %v1644, %v1645
        %vm1647 = vcmp.lt.s32.totalorder %v1628, 1
        %vm1648 = vcmp.lt.s32.totalorder %v1628, 2
        %vm1649 = vcmp.lt.s32.totalorder %v1628, 3
        %vm1650 = vcmp.lt.s32.totalorder %v1628, 4
        %v1651 = vsel %vm1647, %v1631, %v1634
        %v1652 = vsel %vm1650, %v1640, 2102212464
        %v1653 = vsel %vm1649, %v1637, %v1652
        %v1654 = vsel %vm1648, %v1651, %v1653
        %v1655 = vsel %vm1647, %v1634, %v1637
        %v1656 = vsel %vm1650, %v1643, 920167782
        %v1657 = vsel %vm1649, %v1640, %v1656
        %v1658 = vsel %vm1648, %v1655, %v1657
        %v1659 = vsel %vm1647, %v1637, %v1640
        %v1660 = vsel %vm1650, %v1646, 1326507024
        %v1661 = vsel %vm1649, %v1643, %v1660
        %v1662 = vsel %vm1648, %v1659, %v1661
        %v1663 = vshll.u32 %v1623, 8
        %v1664 = vmul.u32.u64.compose %v1663, %v1662
        %v1665 = vextract.low.u32 %v1664
        %v1666 = vextract.high.u32 %v1664
        %v1667 = vmul.u32.u64.compose %v1663, %v1658
        %v1668 = vextract.low.u32 %v1667
        %v1669 = vextract.high.u32 %v1667
        %v1670 = vmul.u32 %v1663, %v1654
        %v1671 = vadd.s32 %v1666, %v1668
        %vm1672 = vc.u32 %v1666, %v1668
        %v1673 = vadd.s32 %v1669, 1
        %v1674 = vsel %vm1672, %v1673, %v1669
        %v1675 = vadd.s32 %v1670, %v1674
        %v1676 = vadd.s32 %v1675, 536870912
        %v1677 = vshrl.u32 %v1676, 30
        %v1678 = vshll.u32 %v1677, 30
        %v1679 = vsub.s32 %v1675, %v1678
        %vm1680 = vcmp.lt.s32.totalorder %v1679, 0
        %v1681 = vsub.s32 0, %v1679
        %v1682 = vsel %vm1680, %v1681, %v1679
        %v1683 = vclz %v1682
        %v1684 = vsub.s32 %v1683, 2
        %vm1685 = vcmp.gt.s32.totalorder 0, %v1684
        %v1686 = vsel %vm1685, 0, %v1684
        %v1687 = vsub.s32 32, %v1686
        %v1688 = vshll.u32 %v1679, %v1686
        %v1689 = vshrl.u32 %v1671, %v1687
        %v1690 = vor.u32 %v1688, %v1689
        %v1691 = vsub.s32 4294967266, %v1686
        %v1692 = vadd.s32 %v1691, 127
        %v1693 = vshll.u32 %v1692, 23
        %v1694 = vor.u32 4788187, %v1693
        %v1695 = vand.u32 2147483647, %v1694
        %v1697 = vcvt.s32.f32 %v1690
        %v1698 = vmul.f32 %v1697, %v1695
        %v1699 = vxor.u32 %v1698, 2147483648
        %v1700 = vsel %vm1617, %v1699, %v1698
        %v1701 = vsub.s32 4, %v1677
        %v1702 = vsel %vm1617, %v1701, %v1677
        %v1703 = vsel %vm1616, %v665, %v1700
        %v1704 = vsel %vm1616, 0, %v1702
        %v1705 = vcosq.f32.pop %v1703
        %v1706 = vsinq.f32.pop %v1703
        %vm1707 = vweird.f32 %v665
        %v1708 = vadd.s32 %v1704, 3
        %v1709 = vand.u32 %v1708, 3
        %vm1710 = vcmp.lt.s32.totalorder %v1709, 2
        %vm1711 = vcmp.eq.s32.totalorder %v1709, 0
        %v1712 = vxor.u32 %v1706, 2147483648
        %v1713 = vsel %vm1711, %v1705, %v1712
        %vm1714 = vcmp.eq.s32.totalorder %v1709, 2
        %v1715 = vxor.u32 %v1705, 2147483648
        %v1716 = vsel %vm1714, %v1715, %v1706
        %v1717 = vsel %vm1710, %v1713, %v1716
        %v1718 = vsel %vm1707, nan, %v1717
        %v1719 = vand.u32 2147483647, %v670
        %vm1720 = vcmp.le.f32.partialorder %v1719, 0.7853982
        %vm1721 = vcmp.lt.s32.totalorder %v670, 0
        %v1722 = vand.u32 %v670, 2139095040
        %v1723 = vshrl.u32 %v1722, 23
        %v1724 = vsub.s32 %v1723, 127
        %v1725 = vand.u32 2147483647, %v670
        %v1726 = vand.u32 %v1725, 8388607
        %v1727 = vor.u32 %v1726, 8388608
        %v1728 = vsub.s32 0, %v1727
        %v1729 = vadd.s32 %v1724, 1
        %vm1730 = vcmp.gt.s32.totalorder %v1729, 0
        %v1731 = vsel %vm1730, %v1729, 0
        %v1732 = vshrl.u32 %v1731, 5
        %v1733 = vand.u32 %v1731, 31
        %v1734 = vsub.s32 32, %v1733
        %v1735 = vshrl.u32 683565275, %v1734
        %v1736 = vshll.u32 683565275, %v1733
        %v1737 = vshrl.u32 2475754826, %v1734
        %v1738 = vor.u32 %v1736, %v1737
        %v1739 = vshll.u32 2475754826, %v1733
        %v1740 = vshrl.u32 2131351028, %v1734
        %v1741 = vor.u32 %v1739, %v1740
        %v1742 = vshll.u32 2131351028, %v1733
        %v1743 = vshrl.u32 2102212464, %v1734
        %v1744 = vor.u32 %v1742, %v1743
        %v1745 = vshll.u32 2102212464, %v1733
        %v1746 = vshrl.u32 920167782, %v1734
        %v1747 = vor.u32 %v1745, %v1746
        %v1748 = vshll.u32 920167782, %v1733
        %v1749 = vshrl.u32 1326507024, %v1734
        %v1750 = vor.u32 %v1748, %v1749
        %vm1751 = vcmp.lt.s32.totalorder %v1732, 1
        %vm1752 = vcmp.lt.s32.totalorder %v1732, 2
        %vm1753 = vcmp.lt.s32.totalorder %v1732, 3
        %vm1754 = vcmp.lt.s32.totalorder %v1732, 4
        %v1755 = vsel %vm1751, %v1735, %v1738
        %v1756 = vsel %vm1754, %v1744, 2102212464
        %v1757 = vsel %vm1753, %v1741, %v1756
        %v1758 = vsel %vm1752, %v1755, %v1757
        %v1759 = vsel %vm1751, %v1738, %v1741
        %v1760 = vsel %vm1754, %v1747, 920167782
        %v1761 = vsel %vm1753, %v1744, %v1760
        %v1762 = vsel %vm1752, %v1759, %v1761
        %v1763 = vsel %vm1751, %v1741, %v1744
        %v1764 = vsel %vm1754, %v1750, 1326507024
        %v1765 = vsel %vm1753, %v1747, %v1764
        %v1766 = vsel %vm1752, %v1763, %v1765
        %v1767 = vshll.u32 %v1727, 8
        %v1768 = vmul.u32.u64.compose %v1767, %v1766
        %v1769 = vextract.low.u32 %v1768
        %v1770 = vextract.high.u32 %v1768
        %v1771 = vmul.u32.u64.compose %v1767, %v1762
        %v1772 = vextract.low.u32 %v1771
        %v1773 = vextract.high.u32 %v1771
        %v1774 = vmul.u32 %v1767, %v1758
        %v1775 = vadd.s32 %v1770, %v1772
        %vm1776 = vc.u32 %v1770, %v1772
        %v1777 = vadd.s32 %v1773, 1
        %v1778 = vsel %vm1776, %v1777, %v1773
        %v1779 = vadd.s32 %v1774, %v1778
        %v1780 = vadd.s32 %v1779, 536870912
        %v1781 = vshrl.u32 %v1780, 30
        %v1782 = vshll.u32 %v1781, 30
        %v1783 = vsub.s32 %v1779, %v1782
        %vm1784 = vcmp.lt.s32.totalorder %v1783, 0
        %v1785 = vsub.s32 0, %v1783
        %v1786 = vsel %vm1784, %v1785, %v1783
        %v1787 = vclz %v1786
        %v1788 = vsub.s32 %v1787, 2
        %vm1789 = vcmp.gt.s32.totalorder 0, %v1788
        %v1790 = vsel %vm1789, 0, %v1788
        %v1791 = vsub.s32 32, %v1790
        %v1792 = vshll.u32 %v1783, %v1790
        %v1793 = vshrl.u32 %v1775, %v1791
        %v1794 = vor.u32 %v1792, %v1793
        %v1795 = vsub.s32 4294967266, %v1790
        %v1796 = vadd.s32 %v1795, 127
        %v1797 = vshll.u32 %v1796, 23
        %v1798 = vor.u32 4788187, %v1797
        %v1799 = vand.u32 2147483647, %v1798
        %v1801 = vcvt.s32.f32 %v1794
        %v1802 = vmul.f32 %v1801, %v1799
        %v1803 = vxor.u32 %v1802, 2147483648
        %v1804 = vsel %vm1721, %v1803, %v1802
        %v1805 = vsub.s32 4, %v1781
        %v1806 = vsel %vm1721, %v1805, %v1781
        %v1807 = vsel %vm1720, %v670, %v1804
        %v1808 = vsel %vm1720, 0, %v1806
        %v1809 = vcosq.f32.pop %v1807
        %v1810 = vsinq.f32.pop %v1807
        %vm1811 = vweird.f32 %v670
        %v1812 = vadd.s32 %v1808, 3
        %v1813 = vand.u32 %v1812, 3
        %vm1814 = vcmp.lt.s32.totalorder %v1813, 2
        %vm1815 = vcmp.eq.s32.totalorder %v1813, 0
        %v1816 = vxor.u32 %v1810, 2147483648
        %v1817 = vsel %vm1815, %v1809, %v1816
        %vm1818 = vcmp.eq.s32.totalorder %v1813, 2
        %v1819 = vxor.u32 %v1809, 2147483648
        %v1820 = vsel %vm1818, %v1819, %v1810
        %v1821 = vsel %vm1814, %v1817, %v1820
        %v1822 = vsel %vm1811, nan, %v1821
        %v1823 = vand.u32 2147483647, %v675
        %vm1824 = vcmp.le.f32.partialorder %v1823, 0.7853982
        %vm1825 = vcmp.lt.s32.totalorder %v675, 0
        %v1826 = vand.u32 %v675, 2139095040
        %v1827 = vshrl.u32 %v1826, 23
        %v1828 = vsub.s32 %v1827, 127
        %v1829 = vand.u32 2147483647, %v675
        %v1830 = vand.u32 %v1829, 8388607
        %v1831 = vor.u32 %v1830, 8388608
        %v1832 = vsub.s32 0, %v1831
        %v1833 = vadd.s32 %v1828, 1
        %vm1834 = vcmp.gt.s32.totalorder %v1833, 0
        %v1835 = vsel %vm1834, %v1833, 0
        %v1836 = vshrl.u32 %v1835, 5
        %v1837 = vand.u32 %v1835, 31
        %v1838 = vsub.s32 32, %v1837
        %v1839 = vshrl.u32 683565275, %v1838
        %v1840 = vshll.u32 683565275, %v1837
        %v1841 = vshrl.u32 2475754826, %v1838
        %v1842 = vor.u32 %v1840, %v1841
        %v1843 = vshll.u32 2475754826, %v1837
        %v1844 = vshrl.u32 2131351028, %v1838
        %v1845 = vor.u32 %v1843, %v1844
        %v1846 = vshll.u32 2131351028, %v1837
        %v1847 = vshrl.u32 2102212464, %v1838
        %v1848 = vor.u32 %v1846, %v1847
        %v1849 = vshll.u32 2102212464, %v1837
        %v1850 = vshrl.u32 920167782, %v1838
        %v1851 = vor.u32 %v1849, %v1850
        %v1852 = vshll.u32 920167782, %v1837
        %v1853 = vshrl.u32 1326507024, %v1838
        %v1854 = vor.u32 %v1852, %v1853
        %vm1855 = vcmp.lt.s32.totalorder %v1836, 1
        %vm1856 = vcmp.lt.s32.totalorder %v1836, 2
        %vm1857 = vcmp.lt.s32.totalorder %v1836, 3
        %vm1858 = vcmp.lt.s32.totalorder %v1836, 4
        %v1859 = vsel %vm1855, %v1839, %v1842
        %v1860 = vsel %vm1858, %v1848, 2102212464
        %v1861 = vsel %vm1857, %v1845, %v1860
        %v1862 = vsel %vm1856, %v1859, %v1861
        %v1863 = vsel %vm1855, %v1842, %v1845
        %v1864 = vsel %vm1858, %v1851, 920167782
        %v1865 = vsel %vm1857, %v1848, %v1864
        %v1866 = vsel %vm1856, %v1863, %v1865
        %v1867 = vsel %vm1855, %v1845, %v1848
        %v1868 = vsel %vm1858, %v1854, 1326507024
        %v1869 = vsel %vm1857, %v1851, %v1868
        %v1870 = vsel %vm1856, %v1867, %v1869
        %v1871 = vshll.u32 %v1831, 8
        %v1872 = vmul.u32.u64.compose %v1871, %v1870
        %v1873 = vextract.low.u32 %v1872
        %v1874 = vextract.high.u32 %v1872
        %v1875 = vmul.u32.u64.compose %v1871, %v1866
        %v1876 = vextract.low.u32 %v1875
        %v1877 = vextract.high.u32 %v1875
        %v1878 = vmul.u32 %v1871, %v1862
        %v1879 = vadd.s32 %v1874, %v1876
        %vm1880 = vc.u32 %v1874, %v1876
        %v1881 = vadd.s32 %v1877, 1
        %v1882 = vsel %vm1880, %v1881, %v1877
        %v1883 = vadd.s32 %v1878, %v1882
        %v1884 = vadd.s32 %v1883, 536870912
        %v1885 = vshrl.u32 %v1884, 30
        %v1886 = vshll.u32 %v1885, 30
        %v1887 = vsub.s32 %v1883, %v1886
        %vm1888 = vcmp.lt.s32.totalorder %v1887, 0
        %v1889 = vsub.s32 0, %v1887
        %v1890 = vsel %vm1888, %v1889, %v1887
        %v1891 = vclz %v1890
        %v1892 = vsub.s32 %v1891, 2
        %vm1893 = vcmp.gt.s32.totalorder 0, %v1892
        %v1894 = vsel %vm1893, 0, %v1892
        %v1895 = vsub.s32 32, %v1894
        %v1896 = vshll.u32 %v1887, %v1894
        %v1897 = vshrl.u32 %v1879, %v1895
        %v1898 = vor.u32 %v1896, %v1897
        %v1899 = vsub.s32 4294967266, %v1894
        %v1900 = vadd.s32 %v1899, 127
        %v1901 = vshll.u32 %v1900, 23
        %v1902 = vor.u32 4788187, %v1901
        %v1903 = vand.u32 2147483647, %v1902
        %v1905 = vcvt.s32.f32 %v1898
        %v1906 = vmul.f32 %v1905, %v1903
        %v1907 = vxor.u32 %v1906, 2147483648
        %v1908 = vsel %vm1825, %v1907, %v1906
        %v1909 = vsub.s32 4, %v1885
        %v1910 = vsel %vm1825, %v1909, %v1885
        %v1911 = vsel %vm1824, %v675, %v1908
        %v1912 = vsel %vm1824, 0, %v1910
        %v1913 = vcosq.f32.pop %v1911
        %v1914 = vsinq.f32.pop %v1911
        %vm1915 = vweird.f32 %v675
        %v1916 = vadd.s32 %v1912, 3
        %v1917 = vand.u32 %v1916, 3
        %vm1918 = vcmp.lt.s32.totalorder %v1917, 2
        %vm1919 = vcmp.eq.s32.totalorder %v1917, 0
        %v1920 = vxor.u32 %v1914, 2147483648
        %v1921 = vsel %vm1919, %v1913, %v1920
        %vm1922 = vcmp.eq.s32.totalorder %v1917, 2
        %v1923 = vxor.u32 %v1913, 2147483648
        %v1924 = vsel %vm1922, %v1923, %v1914
        %v1925 = vsel %vm1918, %v1921, %v1924
        %v1926 = vsel %vm1915, nan, %v1925
        %v1927 = vand.u32 2147483647, %v680
        %vm1928 = vcmp.le.f32.partialorder %v1927, 0.7853982
        %vm1929 = vcmp.lt.s32.totalorder %v680, 0
        %v1930 = vand.u32 %v680, 2139095040
        %v1931 = vshrl.u32 %v1930, 23
        %v1932 = vsub.s32 %v1931, 127
        %v1933 = vand.u32 2147483647, %v680
        %v1934 = vand.u32 %v1933, 8388607
        %v1935 = vor.u32 %v1934, 8388608
        %v1936 = vsub.s32 0, %v1935
        %v1937 = vadd.s32 %v1932, 1
        %vm1938 = vcmp.gt.s32.totalorder %v1937, 0
        %v1939 = vsel %vm1938, %v1937, 0
        %v1940 = vshrl.u32 %v1939, 5
        %v1941 = vand.u32 %v1939, 31
        %v1942 = vsub.s32 32, %v1941
        %v1943 = vshrl.u32 683565275, %v1942
        %v1944 = vshll.u32 683565275, %v1941
        %v1945 = vshrl.u32 2475754826, %v1942
        %v1946 = vor.u32 %v1944, %v1945
        %v1947 = vshll.u32 2475754826, %v1941
        %v1948 = vshrl.u32 2131351028, %v1942
        %v1949 = vor.u32 %v1947, %v1948
        %v1950 = vshll.u32 2131351028, %v1941
        %v1951 = vshrl.u32 2102212464, %v1942
        %v1952 = vor.u32 %v1950, %v1951
        %v1953 = vshll.u32 2102212464, %v1941
        %v1954 = vshrl.u32 920167782, %v1942
        %v1955 = vor.u32 %v1953, %v1954
        %v1956 = vshll.u32 920167782, %v1941
        %v1957 = vshrl.u32 1326507024, %v1942
        %v1958 = vor.u32 %v1956, %v1957
        %vm1959 = vcmp.lt.s32.totalorder %v1940, 1
        %vm1960 = vcmp.lt.s32.totalorder %v1940, 2
        %vm1961 = vcmp.lt.s32.totalorder %v1940, 3
        %vm1962 = vcmp.lt.s32.totalorder %v1940, 4
        %v1963 = vsel %vm1959, %v1943, %v1946
        %v1964 = vsel %vm1962, %v1952, 2102212464
        %v1965 = vsel %vm1961, %v1949, %v1964
        %v1966 = vsel %vm1960, %v1963, %v1965
        %v1967 = vsel %vm1959, %v1946, %v1949
        %v1968 = vsel %vm1962, %v1955, 920167782
        %v1969 = vsel %vm1961, %v1952, %v1968
        %v1970 = vsel %vm1960, %v1967, %v1969
        %v1971 = vsel %vm1959, %v1949, %v1952
        %v1972 = vsel %vm1962, %v1958, 1326507024
        %v1973 = vsel %vm1961, %v1955, %v1972
        %v1974 = vsel %vm1960, %v1971, %v1973
        %v1975 = vshll.u32 %v1935, 8
        %v1976 = vmul.u32.u64.compose %v1975, %v1974
        %v1977 = vextract.low.u32 %v1976
        %v1978 = vextract.high.u32 %v1976
        %v1979 = vmul.u32.u64.compose %v1975, %v1970
        %v1980 = vextract.low.u32 %v1979
        %v1981 = vextract.high.u32 %v1979
        %v1982 = vmul.u32 %v1975, %v1966
        %v1983 = vadd.s32 %v1978, %v1980
        %vm1984 = vc.u32 %v1978, %v1980
        %v1985 = vadd.s32 %v1981, 1
        %v1986 = vsel %vm1984, %v1985, %v1981
        %v1987 = vadd.s32 %v1982, %v1986
        %v1988 = vadd.s32 %v1987, 536870912
        %v1989 = vshrl.u32 %v1988, 30
        %v1990 = vshll.u32 %v1989, 30
        %v1991 = vsub.s32 %v1987, %v1990
        %vm1992 = vcmp.lt.s32.totalorder %v1991, 0
        %v1993 = vsub.s32 0, %v1991
        %v1994 = vsel %vm1992, %v1993, %v1991
        %v1995 = vclz %v1994
        %v1996 = vsub.s32 %v1995, 2
        %vm1997 = vcmp.gt.s32.totalorder 0, %v1996
        %v1998 = vsel %vm1997, 0, %v1996
        %v1999 = vsub.s32 32, %v1998
        %v2000 = vshll.u32 %v1991, %v1998
        %v2001 = vshrl.u32 %v1983, %v1999
        %v2002 = vor.u32 %v2000, %v2001
        %v2003 = vsub.s32 4294967266, %v1998
        %v2004 = vadd.s32 %v2003, 127
        %v2005 = vshll.u32 %v2004, 23
        %v2006 = vor.u32 4788187, %v2005
        %v2007 = vand.u32 2147483647, %v2006
        %v2009 = vcvt.s32.f32 %v2002
        %v2010 = vmul.f32 %v2009, %v2007
        %v2011 = vxor.u32 %v2010, 2147483648
        %v2012 = vsel %vm1929, %v2011, %v2010
        %v2013 = vsub.s32 4, %v1989
        %v2014 = vsel %vm1929, %v2013, %v1989
        %v2015 = vsel %vm1928, %v680, %v2012
        %v2016 = vsel %vm1928, 0, %v2014
        %v2017 = vcosq.f32.pop %v2015
        %v2018 = vsinq.f32.pop %v2015
        %vm2019 = vweird.f32 %v680
        %v2020 = vadd.s32 %v2016, 3
        %v2021 = vand.u32 %v2020, 3
        %vm2022 = vcmp.lt.s32.totalorder %v2021, 2
        %vm2023 = vcmp.eq.s32.totalorder %v2021, 0
        %v2024 = vxor.u32 %v2018, 2147483648
        %v2025 = vsel %vm2023, %v2017, %v2024
        %vm2026 = vcmp.eq.s32.totalorder %v2021, 2
        %v2027 = vxor.u32 %v2017, 2147483648
        %v2028 = vsel %vm2026, %v2027, %v2018
        %v2029 = vsel %vm2022, %v2025, %v2028
        %v2030 = vsel %vm2019, nan, %v2029
        %v2031 = vand.u32 2147483647, %v685
        %vm2032 = vcmp.le.f32.partialorder %v2031, 0.7853982
        %vm2033 = vcmp.lt.s32.totalorder %v685, 0
        %v2034 = vand.u32 %v685, 2139095040
        %v2035 = vshrl.u32 %v2034, 23
        %v2036 = vsub.s32 %v2035, 127
        %v2037 = vand.u32 2147483647, %v685
        %v2038 = vand.u32 %v2037, 8388607
        %v2039 = vor.u32 %v2038, 8388608
        %v2040 = vsub.s32 0, %v2039
        %v2041 = vadd.s32 %v2036, 1
        %vm2042 = vcmp.gt.s32.totalorder %v2041, 0
        %v2043 = vsel %vm2042, %v2041, 0
        %v2044 = vshrl.u32 %v2043, 5
        %v2045 = vand.u32 %v2043, 31
        %v2046 = vsub.s32 32, %v2045
        %v2047 = vshrl.u32 683565275, %v2046
        %v2048 = vshll.u32 683565275, %v2045
        %v2049 = vshrl.u32 2475754826, %v2046
        %v2050 = vor.u32 %v2048, %v2049
        %v2051 = vshll.u32 2475754826, %v2045
        %v2052 = vshrl.u32 2131351028, %v2046
        %v2053 = vor.u32 %v2051, %v2052
        %v2054 = vshll.u32 2131351028, %v2045
        %v2055 = vshrl.u32 2102212464, %v2046
        %v2056 = vor.u32 %v2054, %v2055
        %v2057 = vshll.u32 2102212464, %v2045
        %v2058 = vshrl.u32 920167782, %v2046
        %v2059 = vor.u32 %v2057, %v2058
        %v2060 = vshll.u32 920167782, %v2045
        %v2061 = vshrl.u32 1326507024, %v2046
        %v2062 = vor.u32 %v2060, %v2061
        %vm2063 = vcmp.lt.s32.totalorder %v2044, 1
        %vm2064 = vcmp.lt.s32.totalorder %v2044, 2
        %vm2065 = vcmp.lt.s32.totalorder %v2044, 3
        %vm2066 = vcmp.lt.s32.totalorder %v2044, 4
        %v2067 = vsel %vm2063, %v2047, %v2050
        %v2068 = vsel %vm2066, %v2056, 2102212464
        %v2069 = vsel %vm2065, %v2053, %v2068
        %v2070 = vsel %vm2064, %v2067, %v2069
        %v2071 = vsel %vm2063, %v2050, %v2053
        %v2072 = vsel %vm2066, %v2059, 920167782
        %v2073 = vsel %vm2065, %v2056, %v2072
        %v2074 = vsel %vm2064, %v2071, %v2073
        %v2075 = vsel %vm2063, %v2053, %v2056
        %v2076 = vsel %vm2066, %v2062, 1326507024
        %v2077 = vsel %vm2065, %v2059, %v2076
        %v2078 = vsel %vm2064, %v2075, %v2077
        %v2079 = vshll.u32 %v2039, 8
        %v2080 = vmul.u32.u64.compose %v2079, %v2078
        %v2081 = vextract.low.u32 %v2080
        %v2082 = vextract.high.u32 %v2080
        %v2083 = vmul.u32.u64.compose %v2079, %v2074
        %v2084 = vextract.low.u32 %v2083
        %v2085 = vextract.high.u32 %v2083
        %v2086 = vmul.u32 %v2079, %v2070
        %v2087 = vadd.s32 %v2082, %v2084
        %vm2088 = vc.u32 %v2082, %v2084
        %v2089 = vadd.s32 %v2085, 1
        %v2090 = vsel %vm2088, %v2089, %v2085
        %v2091 = vadd.s32 %v2086, %v2090
        %v2092 = vadd.s32 %v2091, 536870912
        %v2093 = vshrl.u32 %v2092, 30
        %v2094 = vshll.u32 %v2093, 30
        %v2095 = vsub.s32 %v2091, %v2094
        %vm2096 = vcmp.lt.s32.totalorder %v2095, 0
        %v2097 = vsub.s32 0, %v2095
        %v2098 = vsel %vm2096, %v2097, %v2095
        %v2099 = vclz %v2098
        %v2100 = vsub.s32 %v2099, 2
        %vm2101 = vcmp.gt.s32.totalorder 0, %v2100
        %v2102 = vsel %vm2101, 0, %v2100
        %v2103 = vsub.s32 32, %v2102
        %v2104 = vshll.u32 %v2095, %v2102
        %v2105 = vshrl.u32 %v2087, %v2103
        %v2106 = vor.u32 %v2104, %v2105
        %v2107 = vsub.s32 4294967266, %v2102
        %v2108 = vadd.s32 %v2107, 127
        %v2109 = vshll.u32 %v2108, 23
        %v2110 = vor.u32 4788187, %v2109
        %v2111 = vand.u32 2147483647, %v2110
        %v2113 = vcvt.s32.f32 %v2106
        %v2114 = vmul.f32 %v2113, %v2111
        %v2115 = vxor.u32 %v2114, 2147483648
        %v2116 = vsel %vm2033, %v2115, %v2114
        %v2117 = vsub.s32 4, %v2093
        %v2118 = vsel %vm2033, %v2117, %v2093
        %v2119 = vsel %vm2032, %v685, %v2116
        %v2120 = vsel %vm2032, 0, %v2118
        %v2121 = vcosq.f32.pop %v2119
        %v2122 = vsinq.f32.pop %v2119
        %vm2123 = vweird.f32 %v685
        %v2124 = vadd.s32 %v2120, 3
        %v2125 = vand.u32 %v2124, 3
        %vm2126 = vcmp.lt.s32.totalorder %v2125, 2
        %vm2127 = vcmp.eq.s32.totalorder %v2125, 0
        %v2128 = vxor.u32 %v2122, 2147483648
        %v2129 = vsel %vm2127, %v2121, %v2128
        %vm2130 = vcmp.eq.s32.totalorder %v2125, 2
        %v2131 = vxor.u32 %v2121, 2147483648
        %v2132 = vsel %vm2130, %v2131, %v2122
        %v2133 = vsel %vm2126, %v2129, %v2132
        %v2134 = vsel %vm2123, nan, %v2133
        %v2135 = vand.u32 2147483647, %v690
        %vm2136 = vcmp.le.f32.partialorder %v2135, 0.7853982
        %vm2137 = vcmp.lt.s32.totalorder %v690, 0
        %v2138 = vand.u32 %v690, 2139095040
        %v2139 = vshrl.u32 %v2138, 23
        %v2140 = vsub.s32 %v2139, 127
        %v2141 = vand.u32 2147483647, %v690
        %v2142 = vand.u32 %v2141, 8388607
        %v2143 = vor.u32 %v2142, 8388608
        %v2144 = vsub.s32 0, %v2143
        %v2145 = vadd.s32 %v2140, 1
        %vm2146 = vcmp.gt.s32.totalorder %v2145, 0
        %v2147 = vsel %vm2146, %v2145, 0
        %v2148 = vshrl.u32 %v2147, 5
        %v2149 = vand.u32 %v2147, 31
        %v2150 = vsub.s32 32, %v2149
        %v2151 = vshrl.u32 683565275, %v2150
        %v2152 = vshll.u32 683565275, %v2149
        %v2153 = vshrl.u32 2475754826, %v2150
        %v2154 = vor.u32 %v2152, %v2153
        %v2155 = vshll.u32 2475754826, %v2149
        %v2156 = vshrl.u32 2131351028, %v2150
        %v2157 = vor.u32 %v2155, %v2156
        %v2158 = vshll.u32 2131351028, %v2149
        %v2159 = vshrl.u32 2102212464, %v2150
        %v2160 = vor.u32 %v2158, %v2159
        %v2161 = vshll.u32 2102212464, %v2149
        %v2162 = vshrl.u32 920167782, %v2150
        %v2163 = vor.u32 %v2161, %v2162
        %v2164 = vshll.u32 920167782, %v2149
        %v2165 = vshrl.u32 1326507024, %v2150
        %v2166 = vor.u32 %v2164, %v2165
        %vm2167 = vcmp.lt.s32.totalorder %v2148, 1
        %vm2168 = vcmp.lt.s32.totalorder %v2148, 2
        %vm2169 = vcmp.lt.s32.totalorder %v2148, 3
        %vm2170 = vcmp.lt.s32.totalorder %v2148, 4
        %v2171 = vsel %vm2167, %v2151, %v2154
        %v2172 = vsel %vm2170, %v2160, 2102212464
        %v2173 = vsel %vm2169, %v2157, %v2172
        %v2174 = vsel %vm2168, %v2171, %v2173
        %v2175 = vsel %vm2167, %v2154, %v2157
        %v2176 = vsel %vm2170, %v2163, 920167782
        %v2177 = vsel %vm2169, %v2160, %v2176
        %v2178 = vsel %vm2168, %v2175, %v2177
        %v2179 = vsel %vm2167, %v2157, %v2160
        %v2180 = vsel %vm2170, %v2166, 1326507024
        %v2181 = vsel %vm2169, %v2163, %v2180
        %v2182 = vsel %vm2168, %v2179, %v2181
        %v2183 = vshll.u32 %v2143, 8
        %v2184 = vmul.u32.u64.compose %v2183, %v2182
        %v2185 = vextract.low.u32 %v2184
        %v2186 = vextract.high.u32 %v2184
        %v2187 = vmul.u32.u64.compose %v2183, %v2178
        %v2188 = vextract.low.u32 %v2187
        %v2189 = vextract.high.u32 %v2187
        %v2190 = vmul.u32 %v2183, %v2174
        %v2191 = vadd.s32 %v2186, %v2188
        %vm2192 = vc.u32 %v2186, %v2188
        %v2193 = vadd.s32 %v2189, 1
        %v2194 = vsel %vm2192, %v2193, %v2189
        %v2195 = vadd.s32 %v2190, %v2194
        %v2196 = vadd.s32 %v2195, 536870912
        %v2197 = vshrl.u32 %v2196, 30
        %v2198 = vshll.u32 %v2197, 30
        %v2199 = vsub.s32 %v2195, %v2198
        %vm2200 = vcmp.lt.s32.totalorder %v2199, 0
        %v2201 = vsub.s32 0, %v2199
        %v2202 = vsel %vm2200, %v2201, %v2199
        %v2203 = vclz %v2202
        %v2204 = vsub.s32 %v2203, 2
        %vm2205 = vcmp.gt.s32.totalorder 0, %v2204
        %v2206 = vsel %vm2205, 0, %v2204
        %v2207 = vsub.s32 32, %v2206
        %v2208 = vshll.u32 %v2199, %v2206
        %v2209 = vshrl.u32 %v2191, %v2207
        %v2210 = vor.u32 %v2208, %v2209
        %v2211 = vsub.s32 4294967266, %v2206
        %v2212 = vadd.s32 %v2211, 127
        %v2213 = vshll.u32 %v2212, 23
        %v2214 = vor.u32 4788187, %v2213
        %v2215 = vand.u32 2147483647, %v2214
        %v2217 = vcvt.s32.f32 %v2210
        %v2218 = vmul.f32 %v2217, %v2215
        %v2219 = vxor.u32 %v2218, 2147483648
        %v2220 = vsel %vm2137, %v2219, %v2218
        %v2221 = vsub.s32 4, %v2197
        %v2222 = vsel %vm2137, %v2221, %v2197
        %v2223 = vsel %vm2136, %v690, %v2220
        %v2224 = vsel %vm2136, 0, %v2222
        %v2225 = vcosq.f32.pop %v2223
        %v2226 = vsinq.f32.pop %v2223
        %vm2227 = vweird.f32 %v690
        %v2228 = vadd.s32 %v2224, 3
        %v2229 = vand.u32 %v2228, 3
        %vm2230 = vcmp.lt.s32.totalorder %v2229, 2
        %vm2231 = vcmp.eq.s32.totalorder %v2229, 0
        %v2232 = vxor.u32 %v2226, 2147483648
        %v2233 = vsel %vm2231, %v2225, %v2232
        %vm2234 = vcmp.eq.s32.totalorder %v2229, 2
        %v2235 = vxor.u32 %v2225, 2147483648
        %v2236 = vsel %vm2234, %v2235, %v2226
        %v2237 = vsel %vm2230, %v2233, %v2236
        %v2238 = vsel %vm2227, nan, %v2237
        %v2239 = vand.u32 2147483647, %v695
        %vm2240 = vcmp.le.f32.partialorder %v2239, 0.7853982
        %vm2241 = vcmp.lt.s32.totalorder %v695, 0
        %v2242 = vand.u32 %v695, 2139095040
        %v2243 = vshrl.u32 %v2242, 23
        %v2244 = vsub.s32 %v2243, 127
        %v2245 = vand.u32 2147483647, %v695
        %v2246 = vand.u32 %v2245, 8388607
        %v2247 = vor.u32 %v2246, 8388608
        %v2248 = vsub.s32 0, %v2247
        %v2249 = vadd.s32 %v2244, 1
        %vm2250 = vcmp.gt.s32.totalorder %v2249, 0
        %v2251 = vsel %vm2250, %v2249, 0
        %v2252 = vshrl.u32 %v2251, 5
        %v2253 = vand.u32 %v2251, 31
        %v2254 = vsub.s32 32, %v2253
        %v2255 = vshrl.u32 683565275, %v2254
        %v2256 = vshll.u32 683565275, %v2253
        %v2257 = vshrl.u32 2475754826, %v2254
        %v2258 = vor.u32 %v2256, %v2257
        %v2259 = vshll.u32 2475754826, %v2253
        %v2260 = vshrl.u32 2131351028, %v2254
        %v2261 = vor.u32 %v2259, %v2260
        %v2262 = vshll.u32 2131351028, %v2253
        %v2263 = vshrl.u32 2102212464, %v2254
        %v2264 = vor.u32 %v2262, %v2263
        %v2265 = vshll.u32 2102212464, %v2253
        %v2266 = vshrl.u32 920167782, %v2254
        %v2267 = vor.u32 %v2265, %v2266
        %v2268 = vshll.u32 920167782, %v2253
        %v2269 = vshrl.u32 1326507024, %v2254
        %v2270 = vor.u32 %v2268, %v2269
        %vm2271 = vcmp.lt.s32.totalorder %v2252, 1
        %vm2272 = vcmp.lt.s32.totalorder %v2252, 2
        %vm2273 = vcmp.lt.s32.totalorder %v2252, 3
        %vm2274 = vcmp.lt.s32.totalorder %v2252, 4
        %v2275 = vsel %vm2271, %v2255, %v2258
        %v2276 = vsel %vm2274, %v2264, 2102212464
        %v2277 = vsel %vm2273, %v2261, %v2276
        %v2278 = vsel %vm2272, %v2275, %v2277
        %v2279 = vsel %vm2271, %v2258, %v2261
        %v2280 = vsel %vm2274, %v2267, 920167782
        %v2281 = vsel %vm2273, %v2264, %v2280
        %v2282 = vsel %vm2272, %v2279, %v2281
        %v2283 = vsel %vm2271, %v2261, %v2264
        %v2284 = vsel %vm2274, %v2270, 1326507024
        %v2285 = vsel %vm2273, %v2267, %v2284
        %v2286 = vsel %vm2272, %v2283, %v2285
        %v2287 = vshll.u32 %v2247, 8
        %v2288 = vmul.u32.u64.compose %v2287, %v2286
        %v2289 = vextract.low.u32 %v2288
        %v2290 = vextract.high.u32 %v2288
        %v2291 = vmul.u32.u64.compose %v2287, %v2282
        %v2292 = vextract.low.u32 %v2291
        %v2293 = vextract.high.u32 %v2291
        %v2294 = vmul.u32 %v2287, %v2278
        %v2295 = vadd.s32 %v2290, %v2292
        %vm2296 = vc.u32 %v2290, %v2292
        %v2297 = vadd.s32 %v2293, 1
        %v2298 = vsel %vm2296, %v2297, %v2293
        %v2299 = vadd.s32 %v2294, %v2298
        %v2300 = vadd.s32 %v2299, 536870912
        %v2301 = vshrl.u32 %v2300, 30
        %v2302 = vshll.u32 %v2301, 30
        %v2303 = vsub.s32 %v2299, %v2302
        %vm2304 = vcmp.lt.s32.totalorder %v2303, 0
        %v2305 = vsub.s32 0, %v2303
        %v2306 = vsel %vm2304, %v2305, %v2303
        %v2307 = vclz %v2306
        %v2308 = vsub.s32 %v2307, 2
        %vm2309 = vcmp.gt.s32.totalorder 0, %v2308
        %v2310 = vsel %vm2309, 0, %v2308
        %v2311 = vsub.s32 32, %v2310
        %v2312 = vshll.u32 %v2303, %v2310
        %v2313 = vshrl.u32 %v2295, %v2311
        %v2314 = vor.u32 %v2312, %v2313
        %v2315 = vsub.s32 4294967266, %v2310
        %v2316 = vadd.s32 %v2315, 127
        %v2317 = vshll.u32 %v2316, 23
        %v2318 = vor.u32 4788187, %v2317
        %v2319 = vand.u32 2147483647, %v2318
        %v2321 = vcvt.s32.f32 %v2314
        %v2322 = vmul.f32 %v2321, %v2319
        %v2323 = vxor.u32 %v2322, 2147483648
        %v2324 = vsel %vm2241, %v2323, %v2322
        %v2325 = vsub.s32 4, %v2301
        %v2326 = vsel %vm2241, %v2325, %v2301
        %v2327 = vsel %vm2240, %v695, %v2324
        %v2328 = vsel %vm2240, 0, %v2326
        %v2329 = vcosq.f32.pop %v2327
        %v2330 = vsinq.f32.pop %v2327
        %vm2331 = vweird.f32 %v695
        %v2332 = vadd.s32 %v2328, 3
        %v2333 = vand.u32 %v2332, 3
        %vm2334 = vcmp.lt.s32.totalorder %v2333, 2
        %vm2335 = vcmp.eq.s32.totalorder %v2333, 0
        %v2336 = vxor.u32 %v2330, 2147483648
        %v2337 = vsel %vm2335, %v2329, %v2336
        %vm2338 = vcmp.eq.s32.totalorder %v2333, 2
        %v2339 = vxor.u32 %v2329, 2147483648
        %v2340 = vsel %vm2338, %v2339, %v2330
        %v2341 = vsel %vm2334, %v2337, %v2340
        %v2342 = vsel %vm2331, nan, %v2341
        %v2343 = vand.u32 2147483647, %v700
        %vm2344 = vcmp.le.f32.partialorder %v2343, 0.7853982
        %vm2345 = vcmp.lt.s32.totalorder %v700, 0
        %v2346 = vand.u32 %v700, 2139095040
        %v2347 = vshrl.u32 %v2346, 23
        %v2348 = vsub.s32 %v2347, 127
        %v2349 = vand.u32 2147483647, %v700
        %v2350 = vand.u32 %v2349, 8388607
        %v2351 = vor.u32 %v2350, 8388608
        %v2352 = vsub.s32 0, %v2351
        %v2353 = vadd.s32 %v2348, 1
        %vm2354 = vcmp.gt.s32.totalorder %v2353, 0
        %v2355 = vsel %vm2354, %v2353, 0
        %v2356 = vshrl.u32 %v2355, 5
        %v2357 = vand.u32 %v2355, 31
        %v2358 = vsub.s32 32, %v2357
        %v2359 = vshrl.u32 683565275, %v2358
        %v2360 = vshll.u32 683565275, %v2357
        %v2361 = vshrl.u32 2475754826, %v2358
        %v2362 = vor.u32 %v2360, %v2361
        %v2363 = vshll.u32 2475754826, %v2357
        %v2364 = vshrl.u32 2131351028, %v2358
        %v2365 = vor.u32 %v2363, %v2364
        %v2366 = vshll.u32 2131351028, %v2357
        %v2367 = vshrl.u32 2102212464, %v2358
        %v2368 = vor.u32 %v2366, %v2367
        %v2369 = vshll.u32 2102212464, %v2357
        %v2370 = vshrl.u32 920167782, %v2358
        %v2371 = vor.u32 %v2369, %v2370
        %v2372 = vshll.u32 920167782, %v2357
        %v2373 = vshrl.u32 1326507024, %v2358
        %v2374 = vor.u32 %v2372, %v2373
        %vm2375 = vcmp.lt.s32.totalorder %v2356, 1
        %vm2376 = vcmp.lt.s32.totalorder %v2356, 2
        %vm2377 = vcmp.lt.s32.totalorder %v2356, 3
        %vm2378 = vcmp.lt.s32.totalorder %v2356, 4
        %v2379 = vsel %vm2375, %v2359, %v2362
        %v2380 = vsel %vm2378, %v2368, 2102212464
        %v2381 = vsel %vm2377, %v2365, %v2380
        %v2382 = vsel %vm2376, %v2379, %v2381
        %v2383 = vsel %vm2375, %v2362, %v2365
        %v2384 = vsel %vm2378, %v2371, 920167782
        %v2385 = vsel %vm2377, %v2368, %v2384
        %v2386 = vsel %vm2376, %v2383, %v2385
        %v2387 = vsel %vm2375, %v2365, %v2368
        %v2388 = vsel %vm2378, %v2374, 1326507024
        %v2389 = vsel %vm2377, %v2371, %v2388
        %v2390 = vsel %vm2376, %v2387, %v2389
        %v2391 = vshll.u32 %v2351, 8
        %v2392 = vmul.u32.u64.compose %v2391, %v2390
        %v2393 = vextract.low.u32 %v2392
        %v2394 = vextract.high.u32 %v2392
        %v2395 = vmul.u32.u64.compose %v2391, %v2386
        %v2396 = vextract.low.u32 %v2395
        %v2397 = vextract.high.u32 %v2395
        %v2398 = vmul.u32 %v2391, %v2382
        %v2399 = vadd.s32 %v2394, %v2396
        %vm2400 = vc.u32 %v2394, %v2396
        %v2401 = vadd.s32 %v2397, 1
        %v2402 = vsel %vm2400, %v2401, %v2397
        %v2403 = vadd.s32 %v2398, %v2402
        %v2404 = vadd.s32 %v2403, 536870912
        %v2405 = vshrl.u32 %v2404, 30
        %v2406 = vshll.u32 %v2405, 30
        %v2407 = vsub.s32 %v2403, %v2406
        %vm2408 = vcmp.lt.s32.totalorder %v2407, 0
        %v2409 = vsub.s32 0, %v2407
        %v2410 = vsel %vm2408, %v2409, %v2407
        %v2411 = vclz %v2410
        %v2412 = vsub.s32 %v2411, 2
        %vm2413 = vcmp.gt.s32.totalorder 0, %v2412
        %v2414 = vsel %vm2413, 0, %v2412
        %v2415 = vsub.s32 32, %v2414
        %v2416 = vshll.u32 %v2407, %v2414
        %v2417 = vshrl.u32 %v2399, %v2415
        %v2418 = vor.u32 %v2416, %v2417
        %v2419 = vsub.s32 4294967266, %v2414
        %v2420 = vadd.s32 %v2419, 127
        %v2421 = vshll.u32 %v2420, 23
        %v2422 = vor.u32 4788187, %v2421
        %v2423 = vand.u32 2147483647, %v2422
        %v2425 = vcvt.s32.f32 %v2418
        %v2426 = vmul.f32 %v2425, %v2423
        %v2427 = vxor.u32 %v2426, 2147483648
        %v2428 = vsel %vm2345, %v2427, %v2426
        %v2429 = vsub.s32 4, %v2405
        %v2430 = vsel %vm2345, %v2429, %v2405
        %v2431 = vsel %vm2344, %v700, %v2428
        %v2432 = vsel %vm2344, 0, %v2430
        %v2433 = vcosq.f32.pop %v2431
        %v2434 = vsinq.f32.pop %v2431
        %vm2435 = vweird.f32 %v700
        %v2436 = vadd.s32 %v2432, 3
        %v2437 = vand.u32 %v2436, 3
        %vm2438 = vcmp.lt.s32.totalorder %v2437, 2
        %vm2439 = vcmp.eq.s32.totalorder %v2437, 0
        %v2440 = vxor.u32 %v2434, 2147483648
        %v2441 = vsel %vm2439, %v2433, %v2440
        %vm2442 = vcmp.eq.s32.totalorder %v2437, 2
        %v2443 = vxor.u32 %v2433, 2147483648
        %v2444 = vsel %vm2442, %v2443, %v2434
        %v2445 = vsel %vm2438, %v2441, %v2444
        %v2446 = vsel %vm2435, nan, %v2445
        %v2447 = vand.u32 2147483647, %v705
        %vm2448 = vcmp.le.f32.partialorder %v2447, 0.7853982
        %vm2449 = vcmp.lt.s32.totalorder %v705, 0
        %v2450 = vand.u32 %v705, 2139095040
        %v2451 = vshrl.u32 %v2450, 23
        %v2452 = vsub.s32 %v2451, 127
        %v2453 = vand.u32 2147483647, %v705
        %v2454 = vand.u32 %v2453, 8388607
        %v2455 = vor.u32 %v2454, 8388608
        %v2456 = vsub.s32 0, %v2455
        %v2457 = vadd.s32 %v2452, 1
        %vm2458 = vcmp.gt.s32.totalorder %v2457, 0
        %v2459 = vsel %vm2458, %v2457, 0
        %v2460 = vshrl.u32 %v2459, 5
        %v2461 = vand.u32 %v2459, 31
        %v2462 = vsub.s32 32, %v2461
        %v2463 = vshrl.u32 683565275, %v2462
        %v2464 = vshll.u32 683565275, %v2461
        %v2465 = vshrl.u32 2475754826, %v2462
        %v2466 = vor.u32 %v2464, %v2465
        %v2467 = vshll.u32 2475754826, %v2461
        %v2468 = vshrl.u32 2131351028, %v2462
        %v2469 = vor.u32 %v2467, %v2468
        %v2470 = vshll.u32 2131351028, %v2461
        %v2471 = vshrl.u32 2102212464, %v2462
        %v2472 = vor.u32 %v2470, %v2471
        %v2473 = vshll.u32 2102212464, %v2461
        %v2474 = vshrl.u32 920167782, %v2462
        %v2475 = vor.u32 %v2473, %v2474
        %v2476 = vshll.u32 920167782, %v2461
        %v2477 = vshrl.u32 1326507024, %v2462
        %v2478 = vor.u32 %v2476, %v2477
        %vm2479 = vcmp.lt.s32.totalorder %v2460, 1
        %vm2480 = vcmp.lt.s32.totalorder %v2460, 2
        %vm2481 = vcmp.lt.s32.totalorder %v2460, 3
        %vm2482 = vcmp.lt.s32.totalorder %v2460, 4
        %v2483 = vsel %vm2479, %v2463, %v2466
        %v2484 = vsel %vm2482, %v2472, 2102212464
        %v2485 = vsel %vm2481, %v2469, %v2484
        %v2486 = vsel %vm2480, %v2483, %v2485
        %v2487 = vsel %vm2479, %v2466, %v2469
        %v2488 = vsel %vm2482, %v2475, 920167782
        %v2489 = vsel %vm2481, %v2472, %v2488
        %v2490 = vsel %vm2480, %v2487, %v2489
        %v2491 = vsel %vm2479, %v2469, %v2472
        %v2492 = vsel %vm2482, %v2478, 1326507024
        %v2493 = vsel %vm2481, %v2475, %v2492
        %v2494 = vsel %vm2480, %v2491, %v2493
        %v2495 = vshll.u32 %v2455, 8
        %v2496 = vmul.u32.u64.compose %v2495, %v2494
        %v2497 = vextract.low.u32 %v2496
        %v2498 = vextract.high.u32 %v2496
        %v2499 = vmul.u32.u64.compose %v2495, %v2490
        %v2500 = vextract.low.u32 %v2499
        %v2501 = vextract.high.u32 %v2499
        %v2502 = vmul.u32 %v2495, %v2486
        %v2503 = vadd.s32 %v2498, %v2500
        %vm2504 = vc.u32 %v2498, %v2500
        %v2505 = vadd.s32 %v2501, 1
        %v2506 = vsel %vm2504, %v2505, %v2501
        %v2507 = vadd.s32 %v2502, %v2506
        %v2508 = vadd.s32 %v2507, 536870912
        %v2509 = vshrl.u32 %v2508, 30
        %v2510 = vshll.u32 %v2509, 30
        %v2511 = vsub.s32 %v2507, %v2510
        %vm2512 = vcmp.lt.s32.totalorder %v2511, 0
        %v2513 = vsub.s32 0, %v2511
        %v2514 = vsel %vm2512, %v2513, %v2511
        %v2515 = vclz %v2514
        %v2516 = vsub.s32 %v2515, 2
        %vm2517 = vcmp.gt.s32.totalorder 0, %v2516
        %v2518 = vsel %vm2517, 0, %v2516
        %v2519 = vsub.s32 32, %v2518
        %v2520 = vshll.u32 %v2511, %v2518
        %v2521 = vshrl.u32 %v2503, %v2519
        %v2522 = vor.u32 %v2520, %v2521
        %v2523 = vsub.s32 4294967266, %v2518
        %v2524 = vadd.s32 %v2523, 127
        %v2525 = vshll.u32 %v2524, 23
        %v2526 = vor.u32 4788187, %v2525
        %v2527 = vand.u32 2147483647, %v2526
        %v2529 = vcvt.s32.f32 %v2522
        %v2530 = vmul.f32 %v2529, %v2527
        %v2531 = vxor.u32 %v2530, 2147483648
        %v2532 = vsel %vm2449, %v2531, %v2530
        %v2533 = vsub.s32 4, %v2509
        %v2534 = vsel %vm2449, %v2533, %v2509
        %v2535 = vsel %vm2448, %v705, %v2532
        %v2536 = vsel %vm2448, 0, %v2534
        %v2537 = vcosq.f32.pop %v2535
        %v2538 = vsinq.f32.pop %v2535
        %vm2539 = vweird.f32 %v705
        %v2540 = vadd.s32 %v2536, 3
        %v2541 = vand.u32 %v2540, 3
        %vm2542 = vcmp.lt.s32.totalorder %v2541, 2
        %vm2543 = vcmp.eq.s32.totalorder %v2541, 0
        %v2544 = vxor.u32 %v2538, 2147483648
        %v2545 = vsel %vm2543, %v2537, %v2544
        %vm2546 = vcmp.eq.s32.totalorder %v2541, 2
        %v2547 = vxor.u32 %v2537, 2147483648
        %v2548 = vsel %vm2546, %v2547, %v2538
        %v2549 = vsel %vm2542, %v2545, %v2548
        %v2550 = vsel %vm2539, nan, %v2549
        %v2551 = vand.u32 2147483647, %v710
        %vm2552 = vcmp.le.f32.partialorder %v2551, 0.7853982
        %vm2553 = vcmp.lt.s32.totalorder %v710, 0
        %v2554 = vand.u32 %v710, 2139095040
        %v2555 = vshrl.u32 %v2554, 23
        %v2556 = vsub.s32 %v2555, 127
        %v2557 = vand.u32 2147483647, %v710
        %v2558 = vand.u32 %v2557, 8388607
        %v2559 = vor.u32 %v2558, 8388608
        %v2560 = vsub.s32 0, %v2559
        %v2561 = vadd.s32 %v2556, 1
        %vm2562 = vcmp.gt.s32.totalorder %v2561, 0
        %v2563 = vsel %vm2562, %v2561, 0
        %v2564 = vshrl.u32 %v2563, 5
        %v2565 = vand.u32 %v2563, 31
        %v2566 = vsub.s32 32, %v2565
        %v2567 = vshrl.u32 683565275, %v2566
        %v2568 = vshll.u32 683565275, %v2565
        %v2569 = vshrl.u32 2475754826, %v2566
        %v2570 = vor.u32 %v2568, %v2569
        %v2571 = vshll.u32 2475754826, %v2565
        %v2572 = vshrl.u32 2131351028, %v2566
        %v2573 = vor.u32 %v2571, %v2572
        %v2574 = vshll.u32 2131351028, %v2565
        %v2575 = vshrl.u32 2102212464, %v2566
        %v2576 = vor.u32 %v2574, %v2575
        %v2577 = vshll.u32 2102212464, %v2565
        %v2578 = vshrl.u32 920167782, %v2566
        %v2579 = vor.u32 %v2577, %v2578
        %v2580 = vshll.u32 920167782, %v2565
        %v2581 = vshrl.u32 1326507024, %v2566
        %v2582 = vor.u32 %v2580, %v2581
        %vm2583 = vcmp.lt.s32.totalorder %v2564, 1
        %vm2584 = vcmp.lt.s32.totalorder %v2564, 2
        %vm2585 = vcmp.lt.s32.totalorder %v2564, 3
        %vm2586 = vcmp.lt.s32.totalorder %v2564, 4
        %v2587 = vsel %vm2583, %v2567, %v2570
        %v2588 = vsel %vm2586, %v2576, 2102212464
        %v2589 = vsel %vm2585, %v2573, %v2588
        %v2590 = vsel %vm2584, %v2587, %v2589
        %v2591 = vsel %vm2583, %v2570, %v2573
        %v2592 = vsel %vm2586, %v2579, 920167782
        %v2593 = vsel %vm2585, %v2576, %v2592
        %v2594 = vsel %vm2584, %v2591, %v2593
        %v2595 = vsel %vm2583, %v2573, %v2576
        %v2596 = vsel %vm2586, %v2582, 1326507024
        %v2597 = vsel %vm2585, %v2579, %v2596
        %v2598 = vsel %vm2584, %v2595, %v2597
        %v2599 = vshll.u32 %v2559, 8
        %v2600 = vmul.u32.u64.compose %v2599, %v2598
        %v2601 = vextract.low.u32 %v2600
        %v2602 = vextract.high.u32 %v2600
        %v2603 = vmul.u32.u64.compose %v2599, %v2594
        %v2604 = vextract.low.u32 %v2603
        %v2605 = vextract.high.u32 %v2603
        %v2606 = vmul.u32 %v2599, %v2590
        %v2607 = vadd.s32 %v2602, %v2604
        %vm2608 = vc.u32 %v2602, %v2604
        %v2609 = vadd.s32 %v2605, 1
        %v2610 = vsel %vm2608, %v2609, %v2605
        %v2611 = vadd.s32 %v2606, %v2610
        %v2612 = vadd.s32 %v2611, 536870912
        %v2613 = vshrl.u32 %v2612, 30
        %v2614 = vshll.u32 %v2613, 30
        %v2615 = vsub.s32 %v2611, %v2614
        %vm2616 = vcmp.lt.s32.totalorder %v2615, 0
        %v2617 = vsub.s32 0, %v2615
        %v2618 = vsel %vm2616, %v2617, %v2615
        %v2619 = vclz %v2618
        %v2620 = vsub.s32 %v2619, 2
        %vm2621 = vcmp.gt.s32.totalorder 0, %v2620
        %v2622 = vsel %vm2621, 0, %v2620
        %v2623 = vsub.s32 32, %v2622
        %v2624 = vshll.u32 %v2615, %v2622
        %v2625 = vshrl.u32 %v2607, %v2623
        %v2626 = vor.u32 %v2624, %v2625
        %v2627 = vsub.s32 4294967266, %v2622
        %v2628 = vadd.s32 %v2627, 127
        %v2629 = vshll.u32 %v2628, 23
        %v2630 = vor.u32 4788187, %v2629
        %v2631 = vand.u32 2147483647, %v2630
        %v2633 = vcvt.s32.f32 %v2626
        %v2634 = vmul.f32 %v2633, %v2631
        %v2635 = vxor.u32 %v2634, 2147483648
        %v2636 = vsel %vm2553, %v2635, %v2634
        %v2637 = vsub.s32 4, %v2613
        %v2638 = vsel %vm2553, %v2637, %v2613
        %v2639 = vsel %vm2552, %v710, %v2636
        %v2640 = vsel %vm2552, 0, %v2638
        %v2641 = vcosq.f32.pop %v2639
        %v2642 = vsinq.f32.pop %v2639
        %vm2643 = vweird.f32 %v710
        %v2644 = vadd.s32 %v2640, 3
        %v2645 = vand.u32 %v2644, 3
        %vm2646 = vcmp.lt.s32.totalorder %v2645, 2
        %vm2647 = vcmp.eq.s32.totalorder %v2645, 0
        %v2648 = vxor.u32 %v2642, 2147483648
        %v2649 = vsel %vm2647, %v2641, %v2648
        %vm2650 = vcmp.eq.s32.totalorder %v2645, 2
        %v2651 = vxor.u32 %v2641, 2147483648
        %v2652 = vsel %vm2650, %v2651, %v2642
        %v2653 = vsel %vm2646, %v2649, %v2652
        %v2654 = vsel %vm2643, nan, %v2653
        %v2655 = vand.u32 2147483647, %v715
        %vm2656 = vcmp.le.f32.partialorder %v2655, 0.7853982
        %vm2657 = vcmp.lt.s32.totalorder %v715, 0
        %v2658 = vand.u32 %v715, 2139095040
        %v2659 = vshrl.u32 %v2658, 23
        %v2660 = vsub.s32 %v2659, 127
        %v2661 = vand.u32 2147483647, %v715
        %v2662 = vand.u32 %v2661, 8388607
        %v2663 = vor.u32 %v2662, 8388608
        %v2664 = vsub.s32 0, %v2663
        %v2665 = vadd.s32 %v2660, 1
        %vm2666 = vcmp.gt.s32.totalorder %v2665, 0
        %v2667 = vsel %vm2666, %v2665, 0
        %v2668 = vshrl.u32 %v2667, 5
        %v2669 = vand.u32 %v2667, 31
        %v2670 = vsub.s32 32, %v2669
        %v2671 = vshrl.u32 683565275, %v2670
        %v2672 = vshll.u32 683565275, %v2669
        %v2673 = vshrl.u32 2475754826, %v2670
        %v2674 = vor.u32 %v2672, %v2673
        %v2675 = vshll.u32 2475754826, %v2669
        %v2676 = vshrl.u32 2131351028, %v2670
        %v2677 = vor.u32 %v2675, %v2676
        %v2678 = vshll.u32 2131351028, %v2669
        %v2679 = vshrl.u32 2102212464, %v2670
        %v2680 = vor.u32 %v2678, %v2679
        %v2681 = vshll.u32 2102212464, %v2669
        %v2682 = vshrl.u32 920167782, %v2670
        %v2683 = vor.u32 %v2681, %v2682
        %v2684 = vshll.u32 920167782, %v2669
        %v2685 = vshrl.u32 1326507024, %v2670
        %v2686 = vor.u32 %v2684, %v2685
        %vm2687 = vcmp.lt.s32.totalorder %v2668, 1
        %vm2688 = vcmp.lt.s32.totalorder %v2668, 2
        %vm2689 = vcmp.lt.s32.totalorder %v2668, 3
        %vm2690 = vcmp.lt.s32.totalorder %v2668, 4
        %v2691 = vsel %vm2687, %v2671, %v2674
        %v2692 = vsel %vm2690, %v2680, 2102212464
        %v2693 = vsel %vm2689, %v2677, %v2692
        %v2694 = vsel %vm2688, %v2691, %v2693
        %v2695 = vsel %vm2687, %v2674, %v2677
        %v2696 = vsel %vm2690, %v2683, 920167782
        %v2697 = vsel %vm2689, %v2680, %v2696
        %v2698 = vsel %vm2688, %v2695, %v2697
        %v2699 = vsel %vm2687, %v2677, %v2680
        %v2700 = vsel %vm2690, %v2686, 1326507024
        %v2701 = vsel %vm2689, %v2683, %v2700
        %v2702 = vsel %vm2688, %v2699, %v2701
        %v2703 = vshll.u32 %v2663, 8
        %v2704 = vmul.u32.u64.compose %v2703, %v2702
        %v2705 = vextract.low.u32 %v2704
        %v2706 = vextract.high.u32 %v2704
        %v2707 = vmul.u32.u64.compose %v2703, %v2698
        %v2708 = vextract.low.u32 %v2707
        %v2709 = vextract.high.u32 %v2707
        %v2710 = vmul.u32 %v2703, %v2694
        %v2711 = vadd.s32 %v2706, %v2708
        %vm2712 = vc.u32 %v2706, %v2708
        %v2713 = vadd.s32 %v2709, 1
        %v2714 = vsel %vm2712, %v2713, %v2709
        %v2715 = vadd.s32 %v2710, %v2714
        %v2716 = vadd.s32 %v2715, 536870912
        %v2717 = vshrl.u32 %v2716, 30
        %v2718 = vshll.u32 %v2717, 30
        %v2719 = vsub.s32 %v2715, %v2718
        %vm2720 = vcmp.lt.s32.totalorder %v2719, 0
        %v2721 = vsub.s32 0, %v2719
        %v2722 = vsel %vm2720, %v2721, %v2719
        %v2723 = vclz %v2722
        %v2724 = vsub.s32 %v2723, 2
        %vm2725 = vcmp.gt.s32.totalorder 0, %v2724
        %v2726 = vsel %vm2725, 0, %v2724
        %v2727 = vsub.s32 32, %v2726
        %v2728 = vshll.u32 %v2719, %v2726
        %v2729 = vshrl.u32 %v2711, %v2727
        %v2730 = vor.u32 %v2728, %v2729
        %v2731 = vsub.s32 4294967266, %v2726
        %v2732 = vadd.s32 %v2731, 127
        %v2733 = vshll.u32 %v2732, 23
        %v2734 = vor.u32 4788187, %v2733
        %v2735 = vand.u32 2147483647, %v2734
        %v2737 = vcvt.s32.f32 %v2730
        %v2738 = vmul.f32 %v2737, %v2735
        %v2739 = vxor.u32 %v2738, 2147483648
        %v2740 = vsel %vm2657, %v2739, %v2738
        %v2741 = vsub.s32 4, %v2717
        %v2742 = vsel %vm2657, %v2741, %v2717
        %v2743 = vsel %vm2656, %v715, %v2740
        %v2744 = vsel %vm2656, 0, %v2742
        %v2745 = vcosq.f32.pop %v2743
        %v2746 = vsinq.f32.pop %v2743
        %vm2747 = vweird.f32 %v715
        %v2748 = vadd.s32 %v2744, 3
        %v2749 = vand.u32 %v2748, 3
        %vm2750 = vcmp.lt.s32.totalorder %v2749, 2
        %vm2751 = vcmp.eq.s32.totalorder %v2749, 0
        %v2752 = vxor.u32 %v2746, 2147483648
        %v2753 = vsel %vm2751, %v2745, %v2752
        %vm2754 = vcmp.eq.s32.totalorder %v2749, 2
        %v2755 = vxor.u32 %v2745, 2147483648
        %v2756 = vsel %vm2754, %v2755, %v2746
        %v2757 = vsel %vm2750, %v2753, %v2756
        %v2758 = vsel %vm2747, nan, %v2757
        %v2759 = vand.u32 2147483647, %v720
        %vm2760 = vcmp.le.f32.partialorder %v2759, 0.7853982
        %vm2761 = vcmp.lt.s32.totalorder %v720, 0
        %v2762 = vand.u32 %v720, 2139095040
        %v2763 = vshrl.u32 %v2762, 23
        %v2764 = vsub.s32 %v2763, 127
        %v2765 = vand.u32 2147483647, %v720
        %v2766 = vand.u32 %v2765, 8388607
        %v2767 = vor.u32 %v2766, 8388608
        %v2768 = vsub.s32 0, %v2767
        %v2769 = vadd.s32 %v2764, 1
        %vm2770 = vcmp.gt.s32.totalorder %v2769, 0
        %v2771 = vsel %vm2770, %v2769, 0
        %v2772 = vshrl.u32 %v2771, 5
        %v2773 = vand.u32 %v2771, 31
        %v2774 = vsub.s32 32, %v2773
        %v2775 = vshrl.u32 683565275, %v2774
        %v2776 = vshll.u32 683565275, %v2773
        %v2777 = vshrl.u32 2475754826, %v2774
        %v2778 = vor.u32 %v2776, %v2777
        %v2779 = vshll.u32 2475754826, %v2773
        %v2780 = vshrl.u32 2131351028, %v2774
        %v2781 = vor.u32 %v2779, %v2780
        %v2782 = vshll.u32 2131351028, %v2773
        %v2783 = vshrl.u32 2102212464, %v2774
        %v2784 = vor.u32 %v2782, %v2783
        %v2785 = vshll.u32 2102212464, %v2773
        %v2786 = vshrl.u32 920167782, %v2774
        %v2787 = vor.u32 %v2785, %v2786
        %v2788 = vshll.u32 920167782, %v2773
        %v2789 = vshrl.u32 1326507024, %v2774
        %v2790 = vor.u32 %v2788, %v2789
        %vm2791 = vcmp.lt.s32.totalorder %v2772, 1
        %vm2792 = vcmp.lt.s32.totalorder %v2772, 2
        %vm2793 = vcmp.lt.s32.totalorder %v2772, 3
        %vm2794 = vcmp.lt.s32.totalorder %v2772, 4
        %v2795 = vsel %vm2791, %v2775, %v2778
        %v2796 = vsel %vm2794, %v2784, 2102212464
        %v2797 = vsel %vm2793, %v2781, %v2796
        %v2798 = vsel %vm2792, %v2795, %v2797
        %v2799 = vsel %vm2791, %v2778, %v2781
        %v2800 = vsel %vm2794, %v2787, 920167782
        %v2801 = vsel %vm2793, %v2784, %v2800
        %v2802 = vsel %vm2792, %v2799, %v2801
        %v2803 = vsel %vm2791, %v2781, %v2784
        %v2804 = vsel %vm2794, %v2790, 1326507024
        %v2805 = vsel %vm2793, %v2787, %v2804
        %v2806 = vsel %vm2792, %v2803, %v2805
        %v2807 = vshll.u32 %v2767, 8
        %v2808 = vmul.u32.u64.compose %v2807, %v2806
        %v2809 = vextract.low.u32 %v2808
        %v2810 = vextract.high.u32 %v2808
        %v2811 = vmul.u32.u64.compose %v2807, %v2802
        %v2812 = vextract.low.u32 %v2811
        %v2813 = vextract.high.u32 %v2811
        %v2814 = vmul.u32 %v2807, %v2798
        %v2815 = vadd.s32 %v2810, %v2812
        %vm2816 = vc.u32 %v2810, %v2812
        %v2817 = vadd.s32 %v2813, 1
        %v2818 = vsel %vm2816, %v2817, %v2813
        %v2819 = vadd.s32 %v2814, %v2818
        %v2820 = vadd.s32 %v2819, 536870912
        %v2821 = vshrl.u32 %v2820, 30
        %v2822 = vshll.u32 %v2821, 30
        %v2823 = vsub.s32 %v2819, %v2822
        %vm2824 = vcmp.lt.s32.totalorder %v2823, 0
        %v2825 = vsub.s32 0, %v2823
        %v2826 = vsel %vm2824, %v2825, %v2823
        %v2827 = vclz %v2826
        %v2828 = vsub.s32 %v2827, 2
        %vm2829 = vcmp.gt.s32.totalorder 0, %v2828
        %v2830 = vsel %vm2829, 0, %v2828
        %v2831 = vsub.s32 32, %v2830
        %v2832 = vshll.u32 %v2823, %v2830
        %v2833 = vshrl.u32 %v2815, %v2831
        %v2834 = vor.u32 %v2832, %v2833
        %v2835 = vsub.s32 4294967266, %v2830
        %v2836 = vadd.s32 %v2835, 127
        %v2837 = vshll.u32 %v2836, 23
        %v2838 = vor.u32 4788187, %v2837
        %v2839 = vand.u32 2147483647, %v2838
        %v2841 = vcvt.s32.f32 %v2834
        %v2842 = vmul.f32 %v2841, %v2839
        %v2843 = vxor.u32 %v2842, 2147483648
        %v2844 = vsel %vm2761, %v2843, %v2842
        %v2845 = vsub.s32 4, %v2821
        %v2846 = vsel %vm2761, %v2845, %v2821
        %v2847 = vsel %vm2760, %v720, %v2844
        %v2848 = vsel %vm2760, 0, %v2846
        %v2849 = vcosq.f32.pop %v2847
        %v2850 = vsinq.f32.pop %v2847
        %vm2851 = vweird.f32 %v720
        %v2852 = vadd.s32 %v2848, 3
        %v2853 = vand.u32 %v2852, 3
        %vm2854 = vcmp.lt.s32.totalorder %v2853, 2
        %vm2855 = vcmp.eq.s32.totalorder %v2853, 0
        %v2856 = vxor.u32 %v2850, 2147483648
        %v2857 = vsel %vm2855, %v2849, %v2856
        %vm2858 = vcmp.eq.s32.totalorder %v2853, 2
        %v2859 = vxor.u32 %v2849, 2147483648
        %v2860 = vsel %vm2858, %v2859, %v2850
        %v2861 = vsel %vm2854, %v2857, %v2860
        %v2862 = vsel %vm2851, nan, %v2861
        %v2863 = vand.u32 2147483647, %v725
        %vm2864 = vcmp.le.f32.partialorder %v2863, 0.7853982
        %vm2865 = vcmp.lt.s32.totalorder %v725, 0
        %v2866 = vand.u32 %v725, 2139095040
        %v2867 = vshrl.u32 %v2866, 23
        %v2868 = vsub.s32 %v2867, 127
        %v2869 = vand.u32 2147483647, %v725
        %v2870 = vand.u32 %v2869, 8388607
        %v2871 = vor.u32 %v2870, 8388608
        %v2872 = vsub.s32 0, %v2871
        %v2873 = vadd.s32 %v2868, 1
        %vm2874 = vcmp.gt.s32.totalorder %v2873, 0
        %v2875 = vsel %vm2874, %v2873, 0
        %v2876 = vshrl.u32 %v2875, 5
        %v2877 = vand.u32 %v2875, 31
        %v2878 = vsub.s32 32, %v2877
        %v2879 = vshrl.u32 683565275, %v2878
        %v2880 = vshll.u32 683565275, %v2877
        %v2881 = vshrl.u32 2475754826, %v2878
        %v2882 = vor.u32 %v2880, %v2881
        %v2883 = vshll.u32 2475754826, %v2877
        %v2884 = vshrl.u32 2131351028, %v2878
        %v2885 = vor.u32 %v2883, %v2884
        %v2886 = vshll.u32 2131351028, %v2877
        %v2887 = vshrl.u32 2102212464, %v2878
        %v2888 = vor.u32 %v2886, %v2887
        %v2889 = vshll.u32 2102212464, %v2877
        %v2890 = vshrl.u32 920167782, %v2878
        %v2891 = vor.u32 %v2889, %v2890
        %v2892 = vshll.u32 920167782, %v2877
        %v2893 = vshrl.u32 1326507024, %v2878
        %v2894 = vor.u32 %v2892, %v2893
        %vm2895 = vcmp.lt.s32.totalorder %v2876, 1
        %vm2896 = vcmp.lt.s32.totalorder %v2876, 2
        %vm2897 = vcmp.lt.s32.totalorder %v2876, 3
        %vm2898 = vcmp.lt.s32.totalorder %v2876, 4
        %v2899 = vsel %vm2895, %v2879, %v2882
        %v2900 = vsel %vm2898, %v2888, 2102212464
        %v2901 = vsel %vm2897, %v2885, %v2900
        %v2902 = vsel %vm2896, %v2899, %v2901
        %v2903 = vsel %vm2895, %v2882, %v2885
        %v2904 = vsel %vm2898, %v2891, 920167782
        %v2905 = vsel %vm2897, %v2888, %v2904
        %v2906 = vsel %vm2896, %v2903, %v2905
        %v2907 = vsel %vm2895, %v2885, %v2888
        %v2908 = vsel %vm2898, %v2894, 1326507024
        %v2909 = vsel %vm2897, %v2891, %v2908
        %v2910 = vsel %vm2896, %v2907, %v2909
        %v2911 = vshll.u32 %v2871, 8
        %v2912 = vmul.u32.u64.compose %v2911, %v2910
        %v2913 = vextract.low.u32 %v2912
        %v2914 = vextract.high.u32 %v2912
        %v2915 = vmul.u32.u64.compose %v2911, %v2906
        %v2916 = vextract.low.u32 %v2915
        %v2917 = vextract.high.u32 %v2915
        %v2918 = vmul.u32 %v2911, %v2902
        %v2919 = vadd.s32 %v2914, %v2916
        %vm2920 = vc.u32 %v2914, %v2916
        %v2921 = vadd.s32 %v2917, 1
        %v2922 = vsel %vm2920, %v2921, %v2917
        %v2923 = vadd.s32 %v2918, %v2922
        %v2924 = vadd.s32 %v2923, 536870912
        %v2925 = vshrl.u32 %v2924, 30
        %v2926 = vshll.u32 %v2925, 30
        %v2927 = vsub.s32 %v2923, %v2926
        %vm2928 = vcmp.lt.s32.totalorder %v2927, 0
        %v2929 = vsub.s32 0, %v2927
        %v2930 = vsel %vm2928, %v2929, %v2927
        %v2931 = vclz %v2930
        %v2932 = vsub.s32 %v2931, 2
        %vm2933 = vcmp.gt.s32.totalorder 0, %v2932
        %v2934 = vsel %vm2933, 0, %v2932
        %v2935 = vsub.s32 32, %v2934
        %v2936 = vshll.u32 %v2927, %v2934
        %v2937 = vshrl.u32 %v2919, %v2935
        %v2938 = vor.u32 %v2936, %v2937
        %v2939 = vsub.s32 4294967266, %v2934
        %v2940 = vadd.s32 %v2939, 127
        %v2941 = vshll.u32 %v2940, 23
        %v2942 = vor.u32 4788187, %v2941
        %v2943 = vand.u32 2147483647, %v2942
        %v2945 = vcvt.s32.f32 %v2938
        %v2946 = vmul.f32 %v2945, %v2943
        %v2947 = vxor.u32 %v2946, 2147483648
        %v2948 = vsel %vm2865, %v2947, %v2946
        %v2949 = vsub.s32 4, %v2925
        %v2950 = vsel %vm2865, %v2949, %v2925
        %v2951 = vsel %vm2864, %v725, %v2948
        %v2952 = vsel %vm2864, 0, %v2950
        %v2953 = vcosq.f32.pop %v2951
        %v2954 = vsinq.f32.pop %v2951
        %vm2955 = vweird.f32 %v725
        %v2956 = vadd.s32 %v2952, 3
        %v2957 = vand.u32 %v2956, 3
        %vm2958 = vcmp.lt.s32.totalorder %v2957, 2
        %vm2959 = vcmp.eq.s32.totalorder %v2957, 0
        %v2960 = vxor.u32 %v2954, 2147483648
        %v2961 = vsel %vm2959, %v2953, %v2960
        %vm2962 = vcmp.eq.s32.totalorder %v2957, 2
        %v2963 = vxor.u32 %v2953, 2147483648
        %v2964 = vsel %vm2962, %v2963, %v2954
        %v2965 = vsel %vm2958, %v2961, %v2964
        %v2966 = vsel %vm2955, nan, %v2965
        %v2967 = vand.u32 2147483647, %v730
        %vm2968 = vcmp.le.f32.partialorder %v2967, 0.7853982
        %vm2969 = vcmp.lt.s32.totalorder %v730, 0
        %v2970 = vand.u32 %v730, 2139095040
        %v2971 = vshrl.u32 %v2970, 23
        %v2972 = vsub.s32 %v2971, 127
        %v2973 = vand.u32 2147483647, %v730
        %v2974 = vand.u32 %v2973, 8388607
        %v2975 = vor.u32 %v2974, 8388608
        %v2976 = vsub.s32 0, %v2975
        %v2977 = vadd.s32 %v2972, 1
        %vm2978 = vcmp.gt.s32.totalorder %v2977, 0
        %v2979 = vsel %vm2978, %v2977, 0
        %v2980 = vshrl.u32 %v2979, 5
        %v2981 = vand.u32 %v2979, 31
        %v2982 = vsub.s32 32, %v2981
        %v2983 = vshrl.u32 683565275, %v2982
        %v2984 = vshll.u32 683565275, %v2981
        %v2985 = vshrl.u32 2475754826, %v2982
        %v2986 = vor.u32 %v2984, %v2985
        %v2987 = vshll.u32 2475754826, %v2981
        %v2988 = vshrl.u32 2131351028, %v2982
        %v2989 = vor.u32 %v2987, %v2988
        %v2990 = vshll.u32 2131351028, %v2981
        %v2991 = vshrl.u32 2102212464, %v2982
        %v2992 = vor.u32 %v2990, %v2991
        %v2993 = vshll.u32 2102212464, %v2981
        %v2994 = vshrl.u32 920167782, %v2982
        %v2995 = vor.u32 %v2993, %v2994
        %v2996 = vshll.u32 920167782, %v2981
        %v2997 = vshrl.u32 1326507024, %v2982
        %v2998 = vor.u32 %v2996, %v2997
        %vm2999 = vcmp.lt.s32.totalorder %v2980, 1
        %vm3000 = vcmp.lt.s32.totalorder %v2980, 2
        %vm3001 = vcmp.lt.s32.totalorder %v2980, 3
        %vm3002 = vcmp.lt.s32.totalorder %v2980, 4
        %v3003 = vsel %vm2999, %v2983, %v2986
        %v3004 = vsel %vm3002, %v2992, 2102212464
        %v3005 = vsel %vm3001, %v2989, %v3004
        %v3006 = vsel %vm3000, %v3003, %v3005
        %v3007 = vsel %vm2999, %v2986, %v2989
        %v3008 = vsel %vm3002, %v2995, 920167782
        %v3009 = vsel %vm3001, %v2992, %v3008
        %v3010 = vsel %vm3000, %v3007, %v3009
        %v3011 = vsel %vm2999, %v2989, %v2992
        %v3012 = vsel %vm3002, %v2998, 1326507024
        %v3013 = vsel %vm3001, %v2995, %v3012
        %v3014 = vsel %vm3000, %v3011, %v3013
        %v3015 = vshll.u32 %v2975, 8
        %v3016 = vmul.u32.u64.compose %v3015, %v3014
        %v3017 = vextract.low.u32 %v3016
        %v3018 = vextract.high.u32 %v3016
        %v3019 = vmul.u32.u64.compose %v3015, %v3010
        %v3020 = vextract.low.u32 %v3019
        %v3021 = vextract.high.u32 %v3019
        %v3022 = vmul.u32 %v3015, %v3006
        %v3023 = vadd.s32 %v3018, %v3020
        %vm3024 = vc.u32 %v3018, %v3020
        %v3025 = vadd.s32 %v3021, 1
        %v3026 = vsel %vm3024, %v3025, %v3021
        %v3027 = vadd.s32 %v3022, %v3026
        %v3028 = vadd.s32 %v3027, 536870912
        %v3029 = vshrl.u32 %v3028, 30
        %v3030 = vshll.u32 %v3029, 30
        %v3031 = vsub.s32 %v3027, %v3030
        %vm3032 = vcmp.lt.s32.totalorder %v3031, 0
        %v3033 = vsub.s32 0, %v3031
        %v3034 = vsel %vm3032, %v3033, %v3031
        %v3035 = vclz %v3034
        %v3036 = vsub.s32 %v3035, 2
        %vm3037 = vcmp.gt.s32.totalorder 0, %v3036
        %v3038 = vsel %vm3037, 0, %v3036
        %v3039 = vsub.s32 32, %v3038
        %v3040 = vshll.u32 %v3031, %v3038
        %v3041 = vshrl.u32 %v3023, %v3039
        %v3042 = vor.u32 %v3040, %v3041
        %v3043 = vsub.s32 4294967266, %v3038
        %v3044 = vadd.s32 %v3043, 127
        %v3045 = vshll.u32 %v3044, 23
        %v3046 = vor.u32 4788187, %v3045
        %v3047 = vand.u32 2147483647, %v3046
        %v3049 = vcvt.s32.f32 %v3042
        %v3050 = vmul.f32 %v3049, %v3047
        %v3051 = vxor.u32 %v3050, 2147483648
        %v3052 = vsel %vm2969, %v3051, %v3050
        %v3053 = vsub.s32 4, %v3029
        %v3054 = vsel %vm2969, %v3053, %v3029
        %v3055 = vsel %vm2968, %v730, %v3052
        %v3056 = vsel %vm2968, 0, %v3054
        %v3057 = vcosq.f32.pop %v3055
        %v3058 = vsinq.f32.pop %v3055
        %vm3059 = vweird.f32 %v730
        %v3060 = vadd.s32 %v3056, 3
        %v3061 = vand.u32 %v3060, 3
        %vm3062 = vcmp.lt.s32.totalorder %v3061, 2
        %vm3063 = vcmp.eq.s32.totalorder %v3061, 0
        %v3064 = vxor.u32 %v3058, 2147483648
        %v3065 = vsel %vm3063, %v3057, %v3064
        %vm3066 = vcmp.eq.s32.totalorder %v3061, 2
        %v3067 = vxor.u32 %v3057, 2147483648
        %v3068 = vsel %vm3066, %v3067, %v3058
        %v3069 = vsel %vm3062, %v3065, %v3068
        %v3070 = vsel %vm3059, nan, %v3069
        %v3071 = vand.u32 2147483647, %v735
        %vm3072 = vcmp.le.f32.partialorder %v3071, 0.7853982
        %vm3073 = vcmp.lt.s32.totalorder %v735, 0
        %v3074 = vand.u32 %v735, 2139095040
        %v3075 = vshrl.u32 %v3074, 23
        %v3076 = vsub.s32 %v3075, 127
        %v3077 = vand.u32 2147483647, %v735
        %v3078 = vand.u32 %v3077, 8388607
        %v3079 = vor.u32 %v3078, 8388608
        %v3080 = vsub.s32 0, %v3079
        %v3081 = vadd.s32 %v3076, 1
        %vm3082 = vcmp.gt.s32.totalorder %v3081, 0
        %v3083 = vsel %vm3082, %v3081, 0
        %v3084 = vshrl.u32 %v3083, 5
        %v3085 = vand.u32 %v3083, 31
        %v3086 = vsub.s32 32, %v3085
        %v3087 = vshrl.u32 683565275, %v3086
        %v3088 = vshll.u32 683565275, %v3085
        %v3089 = vshrl.u32 2475754826, %v3086
        %v3090 = vor.u32 %v3088, %v3089
        %v3091 = vshll.u32 2475754826, %v3085
        %v3092 = vshrl.u32 2131351028, %v3086
        %v3093 = vor.u32 %v3091, %v3092
        %v3094 = vshll.u32 2131351028, %v3085
        %v3095 = vshrl.u32 2102212464, %v3086
        %v3096 = vor.u32 %v3094, %v3095
        %v3097 = vshll.u32 2102212464, %v3085
        %v3098 = vshrl.u32 920167782, %v3086
        %v3099 = vor.u32 %v3097, %v3098
        %v3100 = vshll.u32 920167782, %v3085
        %v3101 = vshrl.u32 1326507024, %v3086
        %v3102 = vor.u32 %v3100, %v3101
        %vm3103 = vcmp.lt.s32.totalorder %v3084, 1
        %vm3104 = vcmp.lt.s32.totalorder %v3084, 2
        %vm3105 = vcmp.lt.s32.totalorder %v3084, 3
        %vm3106 = vcmp.lt.s32.totalorder %v3084, 4
        %v3107 = vsel %vm3103, %v3087, %v3090
        %v3108 = vsel %vm3106, %v3096, 2102212464
        %v3109 = vsel %vm3105, %v3093, %v3108
        %v3110 = vsel %vm3104, %v3107, %v3109
        %v3111 = vsel %vm3103, %v3090, %v3093
        %v3112 = vsel %vm3106, %v3099, 920167782
        %v3113 = vsel %vm3105, %v3096, %v3112
        %v3114 = vsel %vm3104, %v3111, %v3113
        %v3115 = vsel %vm3103, %v3093, %v3096
        %v3116 = vsel %vm3106, %v3102, 1326507024
        %v3117 = vsel %vm3105, %v3099, %v3116
        %v3118 = vsel %vm3104, %v3115, %v3117
        %v3119 = vshll.u32 %v3079, 8
        %v3120 = vmul.u32.u64.compose %v3119, %v3118
        %v3121 = vextract.low.u32 %v3120
        %v3122 = vextract.high.u32 %v3120
        %v3123 = vmul.u32.u64.compose %v3119, %v3114
        %v3124 = vextract.low.u32 %v3123
        %v3125 = vextract.high.u32 %v3123
        %v3126 = vmul.u32 %v3119, %v3110
        %v3127 = vadd.s32 %v3122, %v3124
        %vm3128 = vc.u32 %v3122, %v3124
        %v3129 = vadd.s32 %v3125, 1
        %v3130 = vsel %vm3128, %v3129, %v3125
        %v3131 = vadd.s32 %v3126, %v3130
        %v3132 = vadd.s32 %v3131, 536870912
        %v3133 = vshrl.u32 %v3132, 30
        %v3134 = vshll.u32 %v3133, 30
        %v3135 = vsub.s32 %v3131, %v3134
        %vm3136 = vcmp.lt.s32.totalorder %v3135, 0
        %v3137 = vsub.s32 0, %v3135
        %v3138 = vsel %vm3136, %v3137, %v3135
        %v3139 = vclz %v3138
        %v3140 = vsub.s32 %v3139, 2
        %vm3141 = vcmp.gt.s32.totalorder 0, %v3140
        %v3142 = vsel %vm3141, 0, %v3140
        %v3143 = vsub.s32 32, %v3142
        %v3144 = vshll.u32 %v3135, %v3142
        %v3145 = vshrl.u32 %v3127, %v3143
        %v3146 = vor.u32 %v3144, %v3145
        %v3147 = vsub.s32 4294967266, %v3142
        %v3148 = vadd.s32 %v3147, 127
        %v3149 = vshll.u32 %v3148, 23
        %v3150 = vor.u32 4788187, %v3149
        %v3151 = vand.u32 2147483647, %v3150
        %v3153 = vcvt.s32.f32 %v3146
        %v3154 = vmul.f32 %v3153, %v3151
        %v3155 = vxor.u32 %v3154, 2147483648
        %v3156 = vsel %vm3073, %v3155, %v3154
        %v3157 = vsub.s32 4, %v3133
        %v3158 = vsel %vm3073, %v3157, %v3133
        %v3159 = vsel %vm3072, %v735, %v3156
        %v3160 = vsel %vm3072, 0, %v3158
        %v3161 = vcosq.f32.pop %v3159
        %v3162 = vsinq.f32.pop %v3159
        %vm3163 = vweird.f32 %v735
        %v3164 = vadd.s32 %v3160, 3
        %v3165 = vand.u32 %v3164, 3
        %vm3166 = vcmp.lt.s32.totalorder %v3165, 2
        %vm3167 = vcmp.eq.s32.totalorder %v3165, 0
        %v3168 = vxor.u32 %v3162, 2147483648
        %v3169 = vsel %vm3167, %v3161, %v3168
        %vm3170 = vcmp.eq.s32.totalorder %v3165, 2
        %v3171 = vxor.u32 %v3161, 2147483648
        %v3172 = vsel %vm3170, %v3171, %v3162
        %v3173 = vsel %vm3166, %v3169, %v3172
        %v3174 = vsel %vm3163, nan, %v3173
        %v3175 = vand.u32 2147483647, %v740
        %vm3176 = vcmp.le.f32.partialorder %v3175, 0.7853982
        %vm3177 = vcmp.lt.s32.totalorder %v740, 0
        %v3178 = vand.u32 %v740, 2139095040
        %v3179 = vshrl.u32 %v3178, 23
        %v3180 = vsub.s32 %v3179, 127
        %v3181 = vand.u32 2147483647, %v740
        %v3182 = vand.u32 %v3181, 8388607
        %v3183 = vor.u32 %v3182, 8388608
        %v3184 = vsub.s32 0, %v3183
        %v3185 = vadd.s32 %v3180, 1
        %vm3186 = vcmp.gt.s32.totalorder %v3185, 0
        %v3187 = vsel %vm3186, %v3185, 0
        %v3188 = vshrl.u32 %v3187, 5
        %v3189 = vand.u32 %v3187, 31
        %v3190 = vsub.s32 32, %v3189
        %v3191 = vshrl.u32 683565275, %v3190
        %v3192 = vshll.u32 683565275, %v3189
        %v3193 = vshrl.u32 2475754826, %v3190
        %v3194 = vor.u32 %v3192, %v3193
        %v3195 = vshll.u32 2475754826, %v3189
        %v3196 = vshrl.u32 2131351028, %v3190
        %v3197 = vor.u32 %v3195, %v3196
        %v3198 = vshll.u32 2131351028, %v3189
        %v3199 = vshrl.u32 2102212464, %v3190
        %v3200 = vor.u32 %v3198, %v3199
        %v3201 = vshll.u32 2102212464, %v3189
        %v3202 = vshrl.u32 920167782, %v3190
        %v3203 = vor.u32 %v3201, %v3202
        %v3204 = vshll.u32 920167782, %v3189
        %v3205 = vshrl.u32 1326507024, %v3190
        %v3206 = vor.u32 %v3204, %v3205
        %vm3207 = vcmp.lt.s32.totalorder %v3188, 1
        %vm3208 = vcmp.lt.s32.totalorder %v3188, 2
        %vm3209 = vcmp.lt.s32.totalorder %v3188, 3
        %vm3210 = vcmp.lt.s32.totalorder %v3188, 4
        %v3211 = vsel %vm3207, %v3191, %v3194
        %v3212 = vsel %vm3210, %v3200, 2102212464
        %v3213 = vsel %vm3209, %v3197, %v3212
        %v3214 = vsel %vm3208, %v3211, %v3213
        %v3215 = vsel %vm3207, %v3194, %v3197
        %v3216 = vsel %vm3210, %v3203, 920167782
        %v3217 = vsel %vm3209, %v3200, %v3216
        %v3218 = vsel %vm3208, %v3215, %v3217
        %v3219 = vsel %vm3207, %v3197, %v3200
        %v3220 = vsel %vm3210, %v3206, 1326507024
        %v3221 = vsel %vm3209, %v3203, %v3220
        %v3222 = vsel %vm3208, %v3219, %v3221
        %v3223 = vshll.u32 %v3183, 8
        %v3224 = vmul.u32.u64.compose %v3223, %v3222
        %v3225 = vextract.low.u32 %v3224
        %v3226 = vextract.high.u32 %v3224
        %v3227 = vmul.u32.u64.compose %v3223, %v3218
        %v3228 = vextract.low.u32 %v3227
        %v3229 = vextract.high.u32 %v3227
        %v3230 = vmul.u32 %v3223, %v3214
        %v3231 = vadd.s32 %v3226, %v3228
        %vm3232 = vc.u32 %v3226, %v3228
        %v3233 = vadd.s32 %v3229, 1
        %v3234 = vsel %vm3232, %v3233, %v3229
        %v3235 = vadd.s32 %v3230, %v3234
        %v3236 = vadd.s32 %v3235, 536870912
        %v3237 = vshrl.u32 %v3236, 30
        %v3238 = vshll.u32 %v3237, 30
        %v3239 = vsub.s32 %v3235, %v3238
        %vm3240 = vcmp.lt.s32.totalorder %v3239, 0
        %v3241 = vsub.s32 0, %v3239
        %v3242 = vsel %vm3240, %v3241, %v3239
        %v3243 = vclz %v3242
        %v3244 = vsub.s32 %v3243, 2
        %vm3245 = vcmp.gt.s32.totalorder 0, %v3244
        %v3246 = vsel %vm3245, 0, %v3244
        %v3247 = vsub.s32 32, %v3246
        %v3248 = vshll.u32 %v3239, %v3246
        %v3249 = vshrl.u32 %v3231, %v3247
        %v3250 = vor.u32 %v3248, %v3249
        %v3251 = vsub.s32 4294967266, %v3246
        %v3252 = vadd.s32 %v3251, 127
        %v3253 = vshll.u32 %v3252, 23
        %v3254 = vor.u32 4788187, %v3253
        %v3255 = vand.u32 2147483647, %v3254
        %v3257 = vcvt.s32.f32 %v3250
        %v3258 = vmul.f32 %v3257, %v3255
        %v3259 = vxor.u32 %v3258, 2147483648
        %v3260 = vsel %vm3177, %v3259, %v3258
        %v3261 = vsub.s32 4, %v3237
        %v3262 = vsel %vm3177, %v3261, %v3237
        %v3263 = vsel %vm3176, %v740, %v3260
        %v3264 = vsel %vm3176, 0, %v3262
        %v3265 = vcosq.f32.pop %v3263
        %v3266 = vsinq.f32.pop %v3263
        %vm3267 = vweird.f32 %v740
        %v3268 = vadd.s32 %v3264, 3
        %v3269 = vand.u32 %v3268, 3
        %vm3270 = vcmp.lt.s32.totalorder %v3269, 2
        %vm3271 = vcmp.eq.s32.totalorder %v3269, 0
        %v3272 = vxor.u32 %v3266, 2147483648
        %v3273 = vsel %vm3271, %v3265, %v3272
        %vm3274 = vcmp.eq.s32.totalorder %v3269, 2
        %v3275 = vxor.u32 %v3265, 2147483648
        %v3276 = vsel %vm3274, %v3275, %v3266
        %v3277 = vsel %vm3270, %v3273, %v3276
        %v3278 = vsel %vm3267, nan, %v3277
        %v3279 = vand.u32 2147483647, %v745
        %vm3280 = vcmp.le.f32.partialorder %v3279, 0.7853982
        %vm3281 = vcmp.lt.s32.totalorder %v745, 0
        %v3282 = vand.u32 %v745, 2139095040
        %v3283 = vshrl.u32 %v3282, 23
        %v3284 = vsub.s32 %v3283, 127
        %v3285 = vand.u32 2147483647, %v745
        %v3286 = vand.u32 %v3285, 8388607
        %v3287 = vor.u32 %v3286, 8388608
        %v3288 = vsub.s32 0, %v3287
        %v3289 = vadd.s32 %v3284, 1
        %vm3290 = vcmp.gt.s32.totalorder %v3289, 0
        %v3291 = vsel %vm3290, %v3289, 0
        %v3292 = vshrl.u32 %v3291, 5
        %v3293 = vand.u32 %v3291, 31
        %v3294 = vsub.s32 32, %v3293
        %v3295 = vshrl.u32 683565275, %v3294
        %v3296 = vshll.u32 683565275, %v3293
        %v3297 = vshrl.u32 2475754826, %v3294
        %v3298 = vor.u32 %v3296, %v3297
        %v3299 = vshll.u32 2475754826, %v3293
        %v3300 = vshrl.u32 2131351028, %v3294
        %v3301 = vor.u32 %v3299, %v3300
        %v3302 = vshll.u32 2131351028, %v3293
        %v3303 = vshrl.u32 2102212464, %v3294
        %v3304 = vor.u32 %v3302, %v3303
        %v3305 = vshll.u32 2102212464, %v3293
        %v3306 = vshrl.u32 920167782, %v3294
        %v3307 = vor.u32 %v3305, %v3306
        %v3308 = vshll.u32 920167782, %v3293
        %v3309 = vshrl.u32 1326507024, %v3294
        %v3310 = vor.u32 %v3308, %v3309
        %vm3311 = vcmp.lt.s32.totalorder %v3292, 1
        %vm3312 = vcmp.lt.s32.totalorder %v3292, 2
        %vm3313 = vcmp.lt.s32.totalorder %v3292, 3
        %vm3314 = vcmp.lt.s32.totalorder %v3292, 4
        %v3315 = vsel %vm3311, %v3295, %v3298
        %v3316 = vsel %vm3314, %v3304, 2102212464
        %v3317 = vsel %vm3313, %v3301, %v3316
        %v3318 = vsel %vm3312, %v3315, %v3317
        %v3319 = vsel %vm3311, %v3298, %v3301
        %v3320 = vsel %vm3314, %v3307, 920167782
        %v3321 = vsel %vm3313, %v3304, %v3320
        %v3322 = vsel %vm3312, %v3319, %v3321
        %v3323 = vsel %vm3311, %v3301, %v3304
        %v3324 = vsel %vm3314, %v3310, 1326507024
        %v3325 = vsel %vm3313, %v3307, %v3324
        %v3326 = vsel %vm3312, %v3323, %v3325
        %v3327 = vshll.u32 %v3287, 8
        %v3328 = vmul.u32.u64.compose %v3327, %v3326
        %v3329 = vextract.low.u32 %v3328
        %v3330 = vextract.high.u32 %v3328
        %v3331 = vmul.u32.u64.compose %v3327, %v3322
        %v3332 = vextract.low.u32 %v3331
        %v3333 = vextract.high.u32 %v3331
        %v3334 = vmul.u32 %v3327, %v3318
        %v3335 = vadd.s32 %v3330, %v3332
        %vm3336 = vc.u32 %v3330, %v3332
        %v3337 = vadd.s32 %v3333, 1
        %v3338 = vsel %vm3336, %v3337, %v3333
        %v3339 = vadd.s32 %v3334, %v3338
        %v3340 = vadd.s32 %v3339, 536870912
        %v3341 = vshrl.u32 %v3340, 30
        %v3342 = vshll.u32 %v3341, 30
        %v3343 = vsub.s32 %v3339, %v3342
        %vm3344 = vcmp.lt.s32.totalorder %v3343, 0
        %v3345 = vsub.s32 0, %v3343
        %v3346 = vsel %vm3344, %v3345, %v3343
        %v3347 = vclz %v3346
        %v3348 = vsub.s32 %v3347, 2
        %vm3349 = vcmp.gt.s32.totalorder 0, %v3348
        %v3350 = vsel %vm3349, 0, %v3348
        %v3351 = vsub.s32 32, %v3350
        %v3352 = vshll.u32 %v3343, %v3350
        %v3353 = vshrl.u32 %v3335, %v3351
        %v3354 = vor.u32 %v3352, %v3353
        %v3355 = vsub.s32 4294967266, %v3350
        %v3356 = vadd.s32 %v3355, 127
        %v3357 = vshll.u32 %v3356, 23
        %v3358 = vor.u32 4788187, %v3357
        %v3359 = vand.u32 2147483647, %v3358
        %v3361 = vcvt.s32.f32 %v3354
        %v3362 = vmul.f32 %v3361, %v3359
        %v3363 = vxor.u32 %v3362, 2147483648
        %v3364 = vsel %vm3281, %v3363, %v3362
        %v3365 = vsub.s32 4, %v3341
        %v3366 = vsel %vm3281, %v3365, %v3341
        %v3367 = vsel %vm3280, %v745, %v3364
        %v3368 = vsel %vm3280, 0, %v3366
        %v3369 = vcosq.f32.pop %v3367
        %v3370 = vsinq.f32.pop %v3367
        %vm3371 = vweird.f32 %v745
        %v3372 = vadd.s32 %v3368, 3
        %v3373 = vand.u32 %v3372, 3
        %vm3374 = vcmp.lt.s32.totalorder %v3373, 2
        %vm3375 = vcmp.eq.s32.totalorder %v3373, 0
        %v3376 = vxor.u32 %v3370, 2147483648
        %v3377 = vsel %vm3375, %v3369, %v3376
        %vm3378 = vcmp.eq.s32.totalorder %v3373, 2
        %v3379 = vxor.u32 %v3369, 2147483648
        %v3380 = vsel %vm3378, %v3379, %v3370
        %v3381 = vsel %vm3374, %v3377, %v3380
        %v3382 = vsel %vm3371, nan, %v3381
        %v3383 = vand.u32 2147483647, %v750
        %vm3384 = vcmp.le.f32.partialorder %v3383, 0.7853982
        %vm3385 = vcmp.lt.s32.totalorder %v750, 0
        %v3386 = vand.u32 %v750, 2139095040
        %v3387 = vshrl.u32 %v3386, 23
        %v3388 = vsub.s32 %v3387, 127
        %v3389 = vand.u32 2147483647, %v750
        %v3390 = vand.u32 %v3389, 8388607
        %v3391 = vor.u32 %v3390, 8388608
        %v3392 = vsub.s32 0, %v3391
        %v3393 = vadd.s32 %v3388, 1
        %vm3394 = vcmp.gt.s32.totalorder %v3393, 0
        %v3395 = vsel %vm3394, %v3393, 0
        %v3396 = vshrl.u32 %v3395, 5
        %v3397 = vand.u32 %v3395, 31
        %v3398 = vsub.s32 32, %v3397
        %v3399 = vshrl.u32 683565275, %v3398
        %v3400 = vshll.u32 683565275, %v3397
        %v3401 = vshrl.u32 2475754826, %v3398
        %v3402 = vor.u32 %v3400, %v3401
        %v3403 = vshll.u32 2475754826, %v3397
        %v3404 = vshrl.u32 2131351028, %v3398
        %v3405 = vor.u32 %v3403, %v3404
        %v3406 = vshll.u32 2131351028, %v3397
        %v3407 = vshrl.u32 2102212464, %v3398
        %v3408 = vor.u32 %v3406, %v3407
        %v3409 = vshll.u32 2102212464, %v3397
        %v3410 = vshrl.u32 920167782, %v3398
        %v3411 = vor.u32 %v3409, %v3410
        %v3412 = vshll.u32 920167782, %v3397
        %v3413 = vshrl.u32 1326507024, %v3398
        %v3414 = vor.u32 %v3412, %v3413
        %vm3415 = vcmp.lt.s32.totalorder %v3396, 1
        %vm3416 = vcmp.lt.s32.totalorder %v3396, 2
        %vm3417 = vcmp.lt.s32.totalorder %v3396, 3
        %vm3418 = vcmp.lt.s32.totalorder %v3396, 4
        %v3419 = vsel %vm3415, %v3399, %v3402
        %v3420 = vsel %vm3418, %v3408, 2102212464
        %v3421 = vsel %vm3417, %v3405, %v3420
        %v3422 = vsel %vm3416, %v3419, %v3421
        %v3423 = vsel %vm3415, %v3402, %v3405
        %v3424 = vsel %vm3418, %v3411, 920167782
        %v3425 = vsel %vm3417, %v3408, %v3424
        %v3426 = vsel %vm3416, %v3423, %v3425
        %v3427 = vsel %vm3415, %v3405, %v3408
        %v3428 = vsel %vm3418, %v3414, 1326507024
        %v3429 = vsel %vm3417, %v3411, %v3428
        %v3430 = vsel %vm3416, %v3427, %v3429
        %v3431 = vshll.u32 %v3391, 8
        %v3432 = vmul.u32.u64.compose %v3431, %v3430
        %v3433 = vextract.low.u32 %v3432
        %v3434 = vextract.high.u32 %v3432
        %v3435 = vmul.u32.u64.compose %v3431, %v3426
        %v3436 = vextract.low.u32 %v3435
        %v3437 = vextract.high.u32 %v3435
        %v3438 = vmul.u32 %v3431, %v3422
        %v3439 = vadd.s32 %v3434, %v3436
        %vm3440 = vc.u32 %v3434, %v3436
        %v3441 = vadd.s32 %v3437, 1
        %v3442 = vsel %vm3440, %v3441, %v3437
        %v3443 = vadd.s32 %v3438, %v3442
        %v3444 = vadd.s32 %v3443, 536870912
        %v3445 = vshrl.u32 %v3444, 30
        %v3446 = vshll.u32 %v3445, 30
        %v3447 = vsub.s32 %v3443, %v3446
        %vm3448 = vcmp.lt.s32.totalorder %v3447, 0
        %v3449 = vsub.s32 0, %v3447
        %v3450 = vsel %vm3448, %v3449, %v3447
        %v3451 = vclz %v3450
        %v3452 = vsub.s32 %v3451, 2
        %vm3453 = vcmp.gt.s32.totalorder 0, %v3452
        %v3454 = vsel %vm3453, 0, %v3452
        %v3455 = vsub.s32 32, %v3454
        %v3456 = vshll.u32 %v3447, %v3454
        %v3457 = vshrl.u32 %v3439, %v3455
        %v3458 = vor.u32 %v3456, %v3457
        %v3459 = vsub.s32 4294967266, %v3454
        %v3460 = vadd.s32 %v3459, 127
        %v3461 = vshll.u32 %v3460, 23
        %v3462 = vor.u32 4788187, %v3461
        %v3463 = vand.u32 2147483647, %v3462
        %v3465 = vcvt.s32.f32 %v3458
        %v3466 = vmul.f32 %v3465, %v3463
        %v3467 = vxor.u32 %v3466, 2147483648
        %v3468 = vsel %vm3385, %v3467, %v3466
        %v3469 = vsub.s32 4, %v3445
        %v3470 = vsel %vm3385, %v3469, %v3445
        %v3471 = vsel %vm3384, %v750, %v3468
        %v3472 = vsel %vm3384, 0, %v3470
        %v3473 = vcosq.f32.pop %v3471
        %v3474 = vsinq.f32.pop %v3471
        %vm3475 = vweird.f32 %v750
        %v3476 = vadd.s32 %v3472, 3
        %v3477 = vand.u32 %v3476, 3
        %vm3478 = vcmp.lt.s32.totalorder %v3477, 2
        %vm3479 = vcmp.eq.s32.totalorder %v3477, 0
        %v3480 = vxor.u32 %v3474, 2147483648
        %v3481 = vsel %vm3479, %v3473, %v3480
        %vm3482 = vcmp.eq.s32.totalorder %v3477, 2
        %v3483 = vxor.u32 %v3473, 2147483648
        %v3484 = vsel %vm3482, %v3483, %v3474
        %v3485 = vsel %vm3478, %v3481, %v3484
        %v3486 = vsel %vm3475, nan, %v3485
        %v3487 = vand.u32 2147483647, %v755
        %vm3488 = vcmp.le.f32.partialorder %v3487, 0.7853982
        %vm3489 = vcmp.lt.s32.totalorder %v755, 0
        %v3490 = vand.u32 %v755, 2139095040
        %v3491 = vshrl.u32 %v3490, 23
        %v3492 = vsub.s32 %v3491, 127
        %v3493 = vand.u32 2147483647, %v755
        %v3494 = vand.u32 %v3493, 8388607
        %v3495 = vor.u32 %v3494, 8388608
        %v3496 = vsub.s32 0, %v3495
        %v3497 = vadd.s32 %v3492, 1
        %vm3498 = vcmp.gt.s32.totalorder %v3497, 0
        %v3499 = vsel %vm3498, %v3497, 0
        %v3500 = vshrl.u32 %v3499, 5
        %v3501 = vand.u32 %v3499, 31
        %v3502 = vsub.s32 32, %v3501
        %v3503 = vshrl.u32 683565275, %v3502
        %v3504 = vshll.u32 683565275, %v3501
        %v3505 = vshrl.u32 2475754826, %v3502
        %v3506 = vor.u32 %v3504, %v3505
        %v3507 = vshll.u32 2475754826, %v3501
        %v3508 = vshrl.u32 2131351028, %v3502
        %v3509 = vor.u32 %v3507, %v3508
        %v3510 = vshll.u32 2131351028, %v3501
        %v3511 = vshrl.u32 2102212464, %v3502
        %v3512 = vor.u32 %v3510, %v3511
        %v3513 = vshll.u32 2102212464, %v3501
        %v3514 = vshrl.u32 920167782, %v3502
        %v3515 = vor.u32 %v3513, %v3514
        %v3516 = vshll.u32 920167782, %v3501
        %v3517 = vshrl.u32 1326507024, %v3502
        %v3518 = vor.u32 %v3516, %v3517
        %vm3519 = vcmp.lt.s32.totalorder %v3500, 1
        %vm3520 = vcmp.lt.s32.totalorder %v3500, 2
        %vm3521 = vcmp.lt.s32.totalorder %v3500, 3
        %vm3522 = vcmp.lt.s32.totalorder %v3500, 4
        %v3523 = vsel %vm3519, %v3503, %v3506
        %v3524 = vsel %vm3522, %v3512, 2102212464
        %v3525 = vsel %vm3521, %v3509, %v3524
        %v3526 = vsel %vm3520, %v3523, %v3525
        %v3527 = vsel %vm3519, %v3506, %v3509
        %v3528 = vsel %vm3522, %v3515, 920167782
        %v3529 = vsel %vm3521, %v3512, %v3528
        %v3530 = vsel %vm3520, %v3527, %v3529
        %v3531 = vsel %vm3519, %v3509, %v3512
        %v3532 = vsel %vm3522, %v3518, 1326507024
        %v3533 = vsel %vm3521, %v3515, %v3532
        %v3534 = vsel %vm3520, %v3531, %v3533
        %v3535 = vshll.u32 %v3495, 8
        %v3536 = vmul.u32.u64.compose %v3535, %v3534
        %v3537 = vextract.low.u32 %v3536
        %v3538 = vextract.high.u32 %v3536
        %v3539 = vmul.u32.u64.compose %v3535, %v3530
        %v3540 = vextract.low.u32 %v3539
        %v3541 = vextract.high.u32 %v3539
        %v3542 = vmul.u32 %v3535, %v3526
        %v3543 = vadd.s32 %v3538, %v3540
        %vm3544 = vc.u32 %v3538, %v3540
        %v3545 = vadd.s32 %v3541, 1
        %v3546 = vsel %vm3544, %v3545, %v3541
        %v3547 = vadd.s32 %v3542, %v3546
        %v3548 = vadd.s32 %v3547, 536870912
        %v3549 = vshrl.u32 %v3548, 30
        %v3550 = vshll.u32 %v3549, 30
        %v3551 = vsub.s32 %v3547, %v3550
        %vm3552 = vcmp.lt.s32.totalorder %v3551, 0
        %v3553 = vsub.s32 0, %v3551
        %v3554 = vsel %vm3552, %v3553, %v3551
        %v3555 = vclz %v3554
        %v3556 = vsub.s32 %v3555, 2
        %vm3557 = vcmp.gt.s32.totalorder 0, %v3556
        %v3558 = vsel %vm3557, 0, %v3556
        %v3559 = vsub.s32 32, %v3558
        %v3560 = vshll.u32 %v3551, %v3558
        %v3561 = vshrl.u32 %v3543, %v3559
        %v3562 = vor.u32 %v3560, %v3561
        %v3563 = vsub.s32 4294967266, %v3558
        %v3564 = vadd.s32 %v3563, 127
        %v3565 = vshll.u32 %v3564, 23
        %v3566 = vor.u32 4788187, %v3565
        %v3567 = vand.u32 2147483647, %v3566
        %v3569 = vcvt.s32.f32 %v3562
        %v3570 = vmul.f32 %v3569, %v3567
        %v3571 = vxor.u32 %v3570, 2147483648
        %v3572 = vsel %vm3489, %v3571, %v3570
        %v3573 = vsub.s32 4, %v3549
        %v3574 = vsel %vm3489, %v3573, %v3549
        %v3575 = vsel %vm3488, %v755, %v3572
        %v3576 = vsel %vm3488, 0, %v3574
        %v3577 = vcosq.f32.pop %v3575
        %v3578 = vsinq.f32.pop %v3575
        %vm3579 = vweird.f32 %v755
        %v3580 = vadd.s32 %v3576, 3
        %v3581 = vand.u32 %v3580, 3
        %vm3582 = vcmp.lt.s32.totalorder %v3581, 2
        %vm3583 = vcmp.eq.s32.totalorder %v3581, 0
        %v3584 = vxor.u32 %v3578, 2147483648
        %v3585 = vsel %vm3583, %v3577, %v3584
        %vm3586 = vcmp.eq.s32.totalorder %v3581, 2
        %v3587 = vxor.u32 %v3577, 2147483648
        %v3588 = vsel %vm3586, %v3587, %v3578
        %v3589 = vsel %vm3582, %v3585, %v3588
        %v3590 = vsel %vm3579, nan, %v3589
        %v3591 = vand.u32 2147483647, %v760
        %vm3592 = vcmp.le.f32.partialorder %v3591, 0.7853982
        %vm3593 = vcmp.lt.s32.totalorder %v760, 0
        %v3594 = vand.u32 %v760, 2139095040
        %v3595 = vshrl.u32 %v3594, 23
        %v3596 = vsub.s32 %v3595, 127
        %v3597 = vand.u32 2147483647, %v760
        %v3598 = vand.u32 %v3597, 8388607
        %v3599 = vor.u32 %v3598, 8388608
        %v3600 = vsub.s32 0, %v3599
        %v3601 = vadd.s32 %v3596, 1
        %vm3602 = vcmp.gt.s32.totalorder %v3601, 0
        %v3603 = vsel %vm3602, %v3601, 0
        %v3604 = vshrl.u32 %v3603, 5
        %v3605 = vand.u32 %v3603, 31
        %v3606 = vsub.s32 32, %v3605
        %v3607 = vshrl.u32 683565275, %v3606
        %v3608 = vshll.u32 683565275, %v3605
        %v3609 = vshrl.u32 2475754826, %v3606
        %v3610 = vor.u32 %v3608, %v3609
        %v3611 = vshll.u32 2475754826, %v3605
        %v3612 = vshrl.u32 2131351028, %v3606
        %v3613 = vor.u32 %v3611, %v3612
        %v3614 = vshll.u32 2131351028, %v3605
        %v3615 = vshrl.u32 2102212464, %v3606
        %v3616 = vor.u32 %v3614, %v3615
        %v3617 = vshll.u32 2102212464, %v3605
        %v3618 = vshrl.u32 920167782, %v3606
        %v3619 = vor.u32 %v3617, %v3618
        %v3620 = vshll.u32 920167782, %v3605
        %v3621 = vshrl.u32 1326507024, %v3606
        %v3622 = vor.u32 %v3620, %v3621
        %vm3623 = vcmp.lt.s32.totalorder %v3604, 1
        %vm3624 = vcmp.lt.s32.totalorder %v3604, 2
        %vm3625 = vcmp.lt.s32.totalorder %v3604, 3
        %vm3626 = vcmp.lt.s32.totalorder %v3604, 4
        %v3627 = vsel %vm3623, %v3607, %v3610
        %v3628 = vsel %vm3626, %v3616, 2102212464
        %v3629 = vsel %vm3625, %v3613, %v3628
        %v3630 = vsel %vm3624, %v3627, %v3629
        %v3631 = vsel %vm3623, %v3610, %v3613
        %v3632 = vsel %vm3626, %v3619, 920167782
        %v3633 = vsel %vm3625, %v3616, %v3632
        %v3634 = vsel %vm3624, %v3631, %v3633
        %v3635 = vsel %vm3623, %v3613, %v3616
        %v3636 = vsel %vm3626, %v3622, 1326507024
        %v3637 = vsel %vm3625, %v3619, %v3636
        %v3638 = vsel %vm3624, %v3635, %v3637
        %v3639 = vshll.u32 %v3599, 8
        %v3640 = vmul.u32.u64.compose %v3639, %v3638
        %v3641 = vextract.low.u32 %v3640
        %v3642 = vextract.high.u32 %v3640
        %v3643 = vmul.u32.u64.compose %v3639, %v3634
        %v3644 = vextract.low.u32 %v3643
        %v3645 = vextract.high.u32 %v3643
        %v3646 = vmul.u32 %v3639, %v3630
        %v3647 = vadd.s32 %v3642, %v3644
        %vm3648 = vc.u32 %v3642, %v3644
        %v3649 = vadd.s32 %v3645, 1
        %v3650 = vsel %vm3648, %v3649, %v3645
        %v3651 = vadd.s32 %v3646, %v3650
        %v3652 = vadd.s32 %v3651, 536870912
        %v3653 = vshrl.u32 %v3652, 30
        %v3654 = vshll.u32 %v3653, 30
        %v3655 = vsub.s32 %v3651, %v3654
        %vm3656 = vcmp.lt.s32.totalorder %v3655, 0
        %v3657 = vsub.s32 0, %v3655
        %v3658 = vsel %vm3656, %v3657, %v3655
        %v3659 = vclz %v3658
        %v3660 = vsub.s32 %v3659, 2
        %vm3661 = vcmp.gt.s32.totalorder 0, %v3660
        %v3662 = vsel %vm3661, 0, %v3660
        %v3663 = vsub.s32 32, %v3662
        %v3664 = vshll.u32 %v3655, %v3662
        %v3665 = vshrl.u32 %v3647, %v3663
        %v3666 = vor.u32 %v3664, %v3665
        %v3667 = vsub.s32 4294967266, %v3662
        %v3668 = vadd.s32 %v3667, 127
        %v3669 = vshll.u32 %v3668, 23
        %v3670 = vor.u32 4788187, %v3669
        %v3671 = vand.u32 2147483647, %v3670
        %v3673 = vcvt.s32.f32 %v3666
        %v3674 = vmul.f32 %v3673, %v3671
        %v3675 = vxor.u32 %v3674, 2147483648
        %v3676 = vsel %vm3593, %v3675, %v3674
        %v3677 = vsub.s32 4, %v3653
        %v3678 = vsel %vm3593, %v3677, %v3653
        %v3679 = vsel %vm3592, %v760, %v3676
        %v3680 = vsel %vm3592, 0, %v3678
        %v3681 = vcosq.f32.pop %v3679
        %v3682 = vsinq.f32.pop %v3679
        %vm3683 = vweird.f32 %v760
        %v3684 = vadd.s32 %v3680, 3
        %v3685 = vand.u32 %v3684, 3
        %vm3686 = vcmp.lt.s32.totalorder %v3685, 2
        %vm3687 = vcmp.eq.s32.totalorder %v3685, 0
        %v3688 = vxor.u32 %v3682, 2147483648
        %v3689 = vsel %vm3687, %v3681, %v3688
        %vm3690 = vcmp.eq.s32.totalorder %v3685, 2
        %v3691 = vxor.u32 %v3681, 2147483648
        %v3692 = vsel %vm3690, %v3691, %v3682
        %v3693 = vsel %vm3686, %v3689, %v3692
        %v3694 = vsel %vm3683, nan, %v3693
        %v3695 = vand.u32 2147483647, %v765
        %vm3696 = vcmp.le.f32.partialorder %v3695, 0.7853982
        %vm3697 = vcmp.lt.s32.totalorder %v765, 0
        %v3698 = vand.u32 %v765, 2139095040
        %v3699 = vshrl.u32 %v3698, 23
        %v3700 = vsub.s32 %v3699, 127
        %v3701 = vand.u32 2147483647, %v765
        %v3702 = vand.u32 %v3701, 8388607
        %v3703 = vor.u32 %v3702, 8388608
        %v3704 = vsub.s32 0, %v3703
        %v3705 = vadd.s32 %v3700, 1
        %vm3706 = vcmp.gt.s32.totalorder %v3705, 0
        %v3707 = vsel %vm3706, %v3705, 0
        %v3708 = vshrl.u32 %v3707, 5
        %v3709 = vand.u32 %v3707, 31
        %v3710 = vsub.s32 32, %v3709
        %v3711 = vshrl.u32 683565275, %v3710
        %v3712 = vshll.u32 683565275, %v3709
        %v3713 = vshrl.u32 2475754826, %v3710
        %v3714 = vor.u32 %v3712, %v3713
        %v3715 = vshll.u32 2475754826, %v3709
        %v3716 = vshrl.u32 2131351028, %v3710
        %v3717 = vor.u32 %v3715, %v3716
        %v3718 = vshll.u32 2131351028, %v3709
        %v3719 = vshrl.u32 2102212464, %v3710
        %v3720 = vor.u32 %v3718, %v3719
        %v3721 = vshll.u32 2102212464, %v3709
        %v3722 = vshrl.u32 920167782, %v3710
        %v3723 = vor.u32 %v3721, %v3722
        %v3724 = vshll.u32 920167782, %v3709
        %v3725 = vshrl.u32 1326507024, %v3710
        %v3726 = vor.u32 %v3724, %v3725
        %vm3727 = vcmp.lt.s32.totalorder %v3708, 1
        %vm3728 = vcmp.lt.s32.totalorder %v3708, 2
        %vm3729 = vcmp.lt.s32.totalorder %v3708, 3
        %vm3730 = vcmp.lt.s32.totalorder %v3708, 4
        %v3731 = vsel %vm3727, %v3711, %v3714
        %v3732 = vsel %vm3730, %v3720, 2102212464
        %v3733 = vsel %vm3729, %v3717, %v3732
        %v3734 = vsel %vm3728, %v3731, %v3733
        %v3735 = vsel %vm3727, %v3714, %v3717
        %v3736 = vsel %vm3730, %v3723, 920167782
        %v3737 = vsel %vm3729, %v3720, %v3736
        %v3738 = vsel %vm3728, %v3735, %v3737
        %v3739 = vsel %vm3727, %v3717, %v3720
        %v3740 = vsel %vm3730, %v3726, 1326507024
        %v3741 = vsel %vm3729, %v3723, %v3740
        %v3742 = vsel %vm3728, %v3739, %v3741
        %v3743 = vshll.u32 %v3703, 8
        %v3744 = vmul.u32.u64.compose %v3743, %v3742
        %v3745 = vextract.low.u32 %v3744
        %v3746 = vextract.high.u32 %v3744
        %v3747 = vmul.u32.u64.compose %v3743, %v3738
        %v3748 = vextract.low.u32 %v3747
        %v3749 = vextract.high.u32 %v3747
        %v3750 = vmul.u32 %v3743, %v3734
        %v3751 = vadd.s32 %v3746, %v3748
        %vm3752 = vc.u32 %v3746, %v3748
        %v3753 = vadd.s32 %v3749, 1
        %v3754 = vsel %vm3752, %v3753, %v3749
        %v3755 = vadd.s32 %v3750, %v3754
        %v3756 = vadd.s32 %v3755, 536870912
        %v3757 = vshrl.u32 %v3756, 30
        %v3758 = vshll.u32 %v3757, 30
        %v3759 = vsub.s32 %v3755, %v3758
        %vm3760 = vcmp.lt.s32.totalorder %v3759, 0
        %v3761 = vsub.s32 0, %v3759
        %v3762 = vsel %vm3760, %v3761, %v3759
        %v3763 = vclz %v3762
        %v3764 = vsub.s32 %v3763, 2
        %vm3765 = vcmp.gt.s32.totalorder 0, %v3764
        %v3766 = vsel %vm3765, 0, %v3764
        %v3767 = vsub.s32 32, %v3766
        %v3768 = vshll.u32 %v3759, %v3766
        %v3769 = vshrl.u32 %v3751, %v3767
        %v3770 = vor.u32 %v3768, %v3769
        %v3771 = vsub.s32 4294967266, %v3766
        %v3772 = vadd.s32 %v3771, 127
        %v3773 = vshll.u32 %v3772, 23
        %v3774 = vor.u32 4788187, %v3773
        %v3775 = vand.u32 2147483647, %v3774
        %v3777 = vcvt.s32.f32 %v3770
        %v3778 = vmul.f32 %v3777, %v3775
        %v3779 = vxor.u32 %v3778, 2147483648
        %v3780 = vsel %vm3697, %v3779, %v3778
        %v3781 = vsub.s32 4, %v3757
        %v3782 = vsel %vm3697, %v3781, %v3757
        %v3783 = vsel %vm3696, %v765, %v3780
        %v3784 = vsel %vm3696, 0, %v3782
        %v3785 = vcosq.f32.pop %v3783
        %v3786 = vsinq.f32.pop %v3783
        %vm3787 = vweird.f32 %v765
        %v3788 = vadd.s32 %v3784, 3
        %v3789 = vand.u32 %v3788, 3
        %vm3790 = vcmp.lt.s32.totalorder %v3789, 2
        %vm3791 = vcmp.eq.s32.totalorder %v3789, 0
        %v3792 = vxor.u32 %v3786, 2147483648
        %v3793 = vsel %vm3791, %v3785, %v3792
        %vm3794 = vcmp.eq.s32.totalorder %v3789, 2
        %v3795 = vxor.u32 %v3785, 2147483648
        %v3796 = vsel %vm3794, %v3795, %v3786
        %v3797 = vsel %vm3790, %v3793, %v3796
        %v3798 = vsel %vm3787, nan, %v3797
        %v3799 = vand.u32 2147483647, %v770
        %vm3800 = vcmp.le.f32.partialorder %v3799, 0.7853982
        %vm3801 = vcmp.lt.s32.totalorder %v770, 0
        %v3802 = vand.u32 %v770, 2139095040
        %v3803 = vshrl.u32 %v3802, 23
        %v3804 = vsub.s32 %v3803, 127
        %v3805 = vand.u32 2147483647, %v770
        %v3806 = vand.u32 %v3805, 8388607
        %v3807 = vor.u32 %v3806, 8388608
        %v3808 = vsub.s32 0, %v3807
        %v3809 = vadd.s32 %v3804, 1
        %vm3810 = vcmp.gt.s32.totalorder %v3809, 0
        %v3811 = vsel %vm3810, %v3809, 0
        %v3812 = vshrl.u32 %v3811, 5
        %v3813 = vand.u32 %v3811, 31
        %v3814 = vsub.s32 32, %v3813
        %v3815 = vshrl.u32 683565275, %v3814
        %v3816 = vshll.u32 683565275, %v3813
        %v3817 = vshrl.u32 2475754826, %v3814
        %v3818 = vor.u32 %v3816, %v3817
        %v3819 = vshll.u32 2475754826, %v3813
        %v3820 = vshrl.u32 2131351028, %v3814
        %v3821 = vor.u32 %v3819, %v3820
        %v3822 = vshll.u32 2131351028, %v3813
        %v3823 = vshrl.u32 2102212464, %v3814
        %v3824 = vor.u32 %v3822, %v3823
        %v3825 = vshll.u32 2102212464, %v3813
        %v3826 = vshrl.u32 920167782, %v3814
        %v3827 = vor.u32 %v3825, %v3826
        %v3828 = vshll.u32 920167782, %v3813
        %v3829 = vshrl.u32 1326507024, %v3814
        %v3830 = vor.u32 %v3828, %v3829
        %vm3831 = vcmp.lt.s32.totalorder %v3812, 1
        %vm3832 = vcmp.lt.s32.totalorder %v3812, 2
        %vm3833 = vcmp.lt.s32.totalorder %v3812, 3
        %vm3834 = vcmp.lt.s32.totalorder %v3812, 4
        %v3835 = vsel %vm3831, %v3815, %v3818
        %v3836 = vsel %vm3834, %v3824, 2102212464
        %v3837 = vsel %vm3833, %v3821, %v3836
        %v3838 = vsel %vm3832, %v3835, %v3837
        %v3839 = vsel %vm3831, %v3818, %v3821
        %v3840 = vsel %vm3834, %v3827, 920167782
        %v3841 = vsel %vm3833, %v3824, %v3840
        %v3842 = vsel %vm3832, %v3839, %v3841
        %v3843 = vsel %vm3831, %v3821, %v3824
        %v3844 = vsel %vm3834, %v3830, 1326507024
        %v3845 = vsel %vm3833, %v3827, %v3844
        %v3846 = vsel %vm3832, %v3843, %v3845
        %v3847 = vshll.u32 %v3807, 8
        %v3848 = vmul.u32.u64.compose %v3847, %v3846
        %v3849 = vextract.low.u32 %v3848
        %v3850 = vextract.high.u32 %v3848
        %v3851 = vmul.u32.u64.compose %v3847, %v3842
        %v3852 = vextract.low.u32 %v3851
        %v3853 = vextract.high.u32 %v3851
        %v3854 = vmul.u32 %v3847, %v3838
        %v3855 = vadd.s32 %v3850, %v3852
        %vm3856 = vc.u32 %v3850, %v3852
        %v3857 = vadd.s32 %v3853, 1
        %v3858 = vsel %vm3856, %v3857, %v3853
        %v3859 = vadd.s32 %v3854, %v3858
        %v3860 = vadd.s32 %v3859, 536870912
        %v3861 = vshrl.u32 %v3860, 30
        %v3862 = vshll.u32 %v3861, 30
        %v3863 = vsub.s32 %v3859, %v3862
        %vm3864 = vcmp.lt.s32.totalorder %v3863, 0
        %v3865 = vsub.s32 0, %v3863
        %v3866 = vsel %vm3864, %v3865, %v3863
        %v3867 = vclz %v3866
        %v3868 = vsub.s32 %v3867, 2
        %vm3869 = vcmp.gt.s32.totalorder 0, %v3868
        %v3870 = vsel %vm3869, 0, %v3868
        %v3871 = vsub.s32 32, %v3870
        %v3872 = vshll.u32 %v3863, %v3870
        %v3873 = vshrl.u32 %v3855, %v3871
        %v3874 = vor.u32 %v3872, %v3873
        %v3875 = vsub.s32 4294967266, %v3870
        %v3876 = vadd.s32 %v3875, 127
        %v3877 = vshll.u32 %v3876, 23
        %v3878 = vor.u32 4788187, %v3877
        %v3879 = vand.u32 2147483647, %v3878
        %v3881 = vcvt.s32.f32 %v3874
        %v3882 = vmul.f32 %v3881, %v3879
        %v3883 = vxor.u32 %v3882, 2147483648
        %v3884 = vsel %vm3801, %v3883, %v3882
        %v3885 = vsub.s32 4, %v3861
        %v3886 = vsel %vm3801, %v3885, %v3861
        %v3887 = vsel %vm3800, %v770, %v3884
        %v3888 = vsel %vm3800, 0, %v3886
        %v3889 = vcosq.f32.pop %v3887
        %v3890 = vsinq.f32.pop %v3887
        %vm3891 = vweird.f32 %v770
        %v3892 = vadd.s32 %v3888, 3
        %v3893 = vand.u32 %v3892, 3
        %vm3894 = vcmp.lt.s32.totalorder %v3893, 2
        %vm3895 = vcmp.eq.s32.totalorder %v3893, 0
        %v3896 = vxor.u32 %v3890, 2147483648
        %v3897 = vsel %vm3895, %v3889, %v3896
        %vm3898 = vcmp.eq.s32.totalorder %v3893, 2
        %v3899 = vxor.u32 %v3889, 2147483648
        %v3900 = vsel %vm3898, %v3899, %v3890
        %v3901 = vsel %vm3894, %v3897, %v3900
        %v3902 = vsel %vm3891, nan, %v3901
        %v3903 = vand.u32 2147483647, %v775
        %vm3904 = vcmp.le.f32.partialorder %v3903, 0.7853982
        %vm3905 = vcmp.lt.s32.totalorder %v775, 0
        %v3906 = vand.u32 %v775, 2139095040
        %v3907 = vshrl.u32 %v3906, 23
        %v3908 = vsub.s32 %v3907, 127
        %v3909 = vand.u32 2147483647, %v775
        %v3910 = vand.u32 %v3909, 8388607
        %v3911 = vor.u32 %v3910, 8388608
        %v3912 = vsub.s32 0, %v3911
        %v3913 = vadd.s32 %v3908, 1
        %vm3914 = vcmp.gt.s32.totalorder %v3913, 0
        %v3915 = vsel %vm3914, %v3913, 0
        %v3916 = vshrl.u32 %v3915, 5
        %v3917 = vand.u32 %v3915, 31
        %v3918 = vsub.s32 32, %v3917
        %v3919 = vshrl.u32 683565275, %v3918
        %v3920 = vshll.u32 683565275, %v3917
        %v3921 = vshrl.u32 2475754826, %v3918
        %v3922 = vor.u32 %v3920, %v3921
        %v3923 = vshll.u32 2475754826, %v3917
        %v3924 = vshrl.u32 2131351028, %v3918
        %v3925 = vor.u32 %v3923, %v3924
        %v3926 = vshll.u32 2131351028, %v3917
        %v3927 = vshrl.u32 2102212464, %v3918
        %v3928 = vor.u32 %v3926, %v3927
        %v3929 = vshll.u32 2102212464, %v3917
        %v3930 = vshrl.u32 920167782, %v3918
        %v3931 = vor.u32 %v3929, %v3930
        %v3932 = vshll.u32 920167782, %v3917
        %v3933 = vshrl.u32 1326507024, %v3918
        %v3934 = vor.u32 %v3932, %v3933
        %vm3935 = vcmp.lt.s32.totalorder %v3916, 1
        %vm3936 = vcmp.lt.s32.totalorder %v3916, 2
        %vm3937 = vcmp.lt.s32.totalorder %v3916, 3
        %vm3938 = vcmp.lt.s32.totalorder %v3916, 4
        %v3939 = vsel %vm3935, %v3919, %v3922
        %v3940 = vsel %vm3938, %v3928, 2102212464
        %v3941 = vsel %vm3937, %v3925, %v3940
        %v3942 = vsel %vm3936, %v3939, %v3941
        %v3943 = vsel %vm3935, %v3922, %v3925
        %v3944 = vsel %vm3938, %v3931, 920167782
        %v3945 = vsel %vm3937, %v3928, %v3944
        %v3946 = vsel %vm3936, %v3943, %v3945
        %v3947 = vsel %vm3935, %v3925, %v3928
        %v3948 = vsel %vm3938, %v3934, 1326507024
        %v3949 = vsel %vm3937, %v3931, %v3948
        %v3950 = vsel %vm3936, %v3947, %v3949
        %v3951 = vshll.u32 %v3911, 8
        %v3952 = vmul.u32.u64.compose %v3951, %v3950
        %v3953 = vextract.low.u32 %v3952
        %v3954 = vextract.high.u32 %v3952
        %v3955 = vmul.u32.u64.compose %v3951, %v3946
        %v3956 = vextract.low.u32 %v3955
        %v3957 = vextract.high.u32 %v3955
        %v3958 = vmul.u32 %v3951, %v3942
        %v3959 = vadd.s32 %v3954, %v3956
        %vm3960 = vc.u32 %v3954, %v3956
        %v3961 = vadd.s32 %v3957, 1
        %v3962 = vsel %vm3960, %v3961, %v3957
        %v3963 = vadd.s32 %v3958, %v3962
        %v3964 = vadd.s32 %v3963, 536870912
        %v3965 = vshrl.u32 %v3964, 30
        %v3966 = vshll.u32 %v3965, 30
        %v3967 = vsub.s32 %v3963, %v3966
        %vm3968 = vcmp.lt.s32.totalorder %v3967, 0
        %v3969 = vsub.s32 0, %v3967
        %v3970 = vsel %vm3968, %v3969, %v3967
        %v3971 = vclz %v3970
        %v3972 = vsub.s32 %v3971, 2
        %vm3973 = vcmp.gt.s32.totalorder 0, %v3972
        %v3974 = vsel %vm3973, 0, %v3972
        %v3975 = vsub.s32 32, %v3974
        %v3976 = vshll.u32 %v3967, %v3974
        %v3977 = vshrl.u32 %v3959, %v3975
        %v3978 = vor.u32 %v3976, %v3977
        %v3979 = vsub.s32 4294967266, %v3974
        %v3980 = vadd.s32 %v3979, 127
        %v3981 = vshll.u32 %v3980, 23
        %v3982 = vor.u32 4788187, %v3981
        %v3983 = vand.u32 2147483647, %v3982
        %v3985 = vcvt.s32.f32 %v3978
        %v3986 = vmul.f32 %v3985, %v3983
        %v3987 = vxor.u32 %v3986, 2147483648
        %v3988 = vsel %vm3905, %v3987, %v3986
        %v3989 = vsub.s32 4, %v3965
        %v3990 = vsel %vm3905, %v3989, %v3965
        %v3991 = vsel %vm3904, %v775, %v3988
        %v3992 = vsel %vm3904, 0, %v3990
        %v3993 = vcosq.f32.pop %v3991
        %v3994 = vsinq.f32.pop %v3991
        %vm3995 = vweird.f32 %v775
        %v3996 = vadd.s32 %v3992, 3
        %v3997 = vand.u32 %v3996, 3
        %vm3998 = vcmp.lt.s32.totalorder %v3997, 2
        %vm3999 = vcmp.eq.s32.totalorder %v3997, 0
        %v4000 = vxor.u32 %v3994, 2147483648
        %v4001 = vsel %vm3999, %v3993, %v4000
        %vm4002 = vcmp.eq.s32.totalorder %v3997, 2
        %v4003 = vxor.u32 %v3993, 2147483648
        %v4004 = vsel %vm4002, %v4003, %v3994
        %v4005 = vsel %vm3998, %v4001, %v4004
        %v4006 = vsel %vm3995, nan, %v4005
        %v4007 = vand.u32 2147483647, %v780
        %vm4008 = vcmp.le.f32.partialorder %v4007, 0.7853982
        %vm4009 = vcmp.lt.s32.totalorder %v780, 0
        %v4010 = vand.u32 %v780, 2139095040
        %v4011 = vshrl.u32 %v4010, 23
        %v4012 = vsub.s32 %v4011, 127
        %v4013 = vand.u32 2147483647, %v780
        %v4014 = vand.u32 %v4013, 8388607
        %v4015 = vor.u32 %v4014, 8388608
        %v4016 = vsub.s32 0, %v4015
        %v4017 = vadd.s32 %v4012, 1
        %vm4018 = vcmp.gt.s32.totalorder %v4017, 0
        %v4019 = vsel %vm4018, %v4017, 0
        %v4020 = vshrl.u32 %v4019, 5
        %v4021 = vand.u32 %v4019, 31
        %v4022 = vsub.s32 32, %v4021
        %v4023 = vshrl.u32 683565275, %v4022
        %v4024 = vshll.u32 683565275, %v4021
        %v4025 = vshrl.u32 2475754826, %v4022
        %v4026 = vor.u32 %v4024, %v4025
        %v4027 = vshll.u32 2475754826, %v4021
        %v4028 = vshrl.u32 2131351028, %v4022
        %v4029 = vor.u32 %v4027, %v4028
        %v4030 = vshll.u32 2131351028, %v4021
        %v4031 = vshrl.u32 2102212464, %v4022
        %v4032 = vor.u32 %v4030, %v4031
        %v4033 = vshll.u32 2102212464, %v4021
        %v4034 = vshrl.u32 920167782, %v4022
        %v4035 = vor.u32 %v4033, %v4034
        %v4036 = vshll.u32 920167782, %v4021
        %v4037 = vshrl.u32 1326507024, %v4022
        %v4038 = vor.u32 %v4036, %v4037
        %vm4039 = vcmp.lt.s32.totalorder %v4020, 1
        %vm4040 = vcmp.lt.s32.totalorder %v4020, 2
        %vm4041 = vcmp.lt.s32.totalorder %v4020, 3
        %vm4042 = vcmp.lt.s32.totalorder %v4020, 4
        %v4043 = vsel %vm4039, %v4023, %v4026
        %v4044 = vsel %vm4042, %v4032, 2102212464
        %v4045 = vsel %vm4041, %v4029, %v4044
        %v4046 = vsel %vm4040, %v4043, %v4045
        %v4047 = vsel %vm4039, %v4026, %v4029
        %v4048 = vsel %vm4042, %v4035, 920167782
        %v4049 = vsel %vm4041, %v4032, %v4048
        %v4050 = vsel %vm4040, %v4047, %v4049
        %v4051 = vsel %vm4039, %v4029, %v4032
        %v4052 = vsel %vm4042, %v4038, 1326507024
        %v4053 = vsel %vm4041, %v4035, %v4052
        %v4054 = vsel %vm4040, %v4051, %v4053
        %v4055 = vshll.u32 %v4015, 8
        %v4056 = vmul.u32.u64.compose %v4055, %v4054
        %v4057 = vextract.low.u32 %v4056
        %v4058 = vextract.high.u32 %v4056
        %v4059 = vmul.u32.u64.compose %v4055, %v4050
        %v4060 = vextract.low.u32 %v4059
        %v4061 = vextract.high.u32 %v4059
        %v4062 = vmul.u32 %v4055, %v4046
        %v4063 = vadd.s32 %v4058, %v4060
        %vm4064 = vc.u32 %v4058, %v4060
        %v4065 = vadd.s32 %v4061, 1
        %v4066 = vsel %vm4064, %v4065, %v4061
        %v4067 = vadd.s32 %v4062, %v4066
        %v4068 = vadd.s32 %v4067, 536870912
        %v4069 = vshrl.u32 %v4068, 30
        %v4070 = vshll.u32 %v4069, 30
        %v4071 = vsub.s32 %v4067, %v4070
        %vm4072 = vcmp.lt.s32.totalorder %v4071, 0
        %v4073 = vsub.s32 0, %v4071
        %v4074 = vsel %vm4072, %v4073, %v4071
        %v4075 = vclz %v4074
        %v4076 = vsub.s32 %v4075, 2
        %vm4077 = vcmp.gt.s32.totalorder 0, %v4076
        %v4078 = vsel %vm4077, 0, %v4076
        %v4079 = vsub.s32 32, %v4078
        %v4080 = vshll.u32 %v4071, %v4078
        %v4081 = vshrl.u32 %v4063, %v4079
        %v4082 = vor.u32 %v4080, %v4081
        %v4083 = vsub.s32 4294967266, %v4078
        %v4084 = vadd.s32 %v4083, 127
        %v4085 = vshll.u32 %v4084, 23
        %v4086 = vor.u32 4788187, %v4085
        %v4087 = vand.u32 2147483647, %v4086
        %v4089 = vcvt.s32.f32 %v4082
        %v4090 = vmul.f32 %v4089, %v4087
        %v4091 = vxor.u32 %v4090, 2147483648
        %v4092 = vsel %vm4009, %v4091, %v4090
        %v4093 = vsub.s32 4, %v4069
        %v4094 = vsel %vm4009, %v4093, %v4069
        %v4095 = vsel %vm4008, %v780, %v4092
        %v4096 = vsel %vm4008, 0, %v4094
        %v4097 = vcosq.f32.pop %v4095
        %v4098 = vsinq.f32.pop %v4095
        %vm4099 = vweird.f32 %v780
        %v4100 = vadd.s32 %v4096, 3
        %v4101 = vand.u32 %v4100, 3
        %vm4102 = vcmp.lt.s32.totalorder %v4101, 2
        %vm4103 = vcmp.eq.s32.totalorder %v4101, 0
        %v4104 = vxor.u32 %v4098, 2147483648
        %v4105 = vsel %vm4103, %v4097, %v4104
        %vm4106 = vcmp.eq.s32.totalorder %v4101, 2
        %v4107 = vxor.u32 %v4097, 2147483648
        %v4108 = vsel %vm4106, %v4107, %v4098
        %v4109 = vsel %vm4102, %v4105, %v4108
        %v4110 = vsel %vm4099, nan, %v4109
        %v4111 = vpack.c.bf16 %v417, %v416
        %v4112 = vpack.c.bf16 %v419, %v418
        %v4113 = vpack.c.bf16 %v421, %v420
        %v4114 = vpack.c.bf16 %v423, %v422
        %v4115 = vpack.c.bf16 %v425, %v424
        %v4116 = vpack.c.bf16 %v427, %v426
        %v4117 = vpack.c.bf16 %v429, %v428
        %v4118 = vpack.c.bf16 %v431, %v430
        %v4119 = vpack.c.bf16 %v433, %v432
        %v4120 = vpack.c.bf16 %v435, %v434
        %v4121 = vpack.c.bf16 %v437, %v436
        %v4122 = vpack.c.bf16 %v439, %v438
        %v4123 = vpack.c.bf16 %v441, %v440
        %v4124 = vpack.c.bf16 %v443, %v442
        %v4125 = vpack.c.bf16 %v445, %v444
        %v4126 = vpack.c.bf16 %v447, %v446
        %v4127 = vpack.c.bf16 %v990, %v886
        %v4128 = vpack.c.bf16 %v1198, %v1094
        %v4129 = vpack.c.bf16 %v1406, %v1302
        %v4130 = vpack.c.bf16 %v1614, %v1510
        %v4131 = vpack.c.bf16 %v1822, %v1718
        %v4132 = vpack.c.bf16 %v2030, %v1926
        %v4133 = vpack.c.bf16 %v2238, %v2134
        %v4134 = vpack.c.bf16 %v2446, %v2342
        %v4135 = vpack.c.bf16 %v2654, %v2550
        %v4136 = vpack.c.bf16 %v2862, %v2758
        %v4137 = vpack.c.bf16 %v3070, %v2966
        %v4138 = vpack.c.bf16 %v3278, %v3174
        %v4139 = vpack.c.bf16 %v3486, %v3382
        %v4140 = vpack.c.bf16 %v3694, %v3590
        %v4141 = vpack.c.bf16 %v3902, %v3798
        %v4142 = vpack.c.bf16 %v4110, %v4006
        %v4143 = vmul.f32 %v416, 0.01
        %v4144 = vmul.f32 %v417, 0.01
        %v4145 = vmul.f32 %v418, 0.01
        %v4146 = vmul.f32 %v419, 0.01
        %v4147 = vmul.f32 %v420, 0.01
        %v4148 = vmul.f32 %v421, 0.01
        %v4149 = vmul.f32 %v422, 0.01
        %v4150 = vmul.f32 %v423, 0.01
        %v4151 = vmul.f32 %v424, 0.01
        %v4152 = vmul.f32 %v425, 0.01
        %v4153 = vmul.f32 %v426, 0.01
        %v4154 = vmul.f32 %v427, 0.01
        %v4155 = vmul.f32 %v428, 0.01
        %v4156 = vmul.f32 %v429, 0.01
        %v4157 = vmul.f32 %v430, 0.01
        %v4158 = vmul.f32 %v431, 0.01
        %v4159 = vmul.f32 %v432, 0.01
        %v4160 = vmul.f32 %v433, 0.01
        %v4161 = vmul.f32 %v434, 0.01
        %v4162 = vmul.f32 %v435, 0.01
        %v4163 = vmul.f32 %v436, 0.01
        %v4164 = vmul.f32 %v437, 0.01
        %v4165 = vmul.f32 %v438, 0.01
        %v4166 = vmul.f32 %v439, 0.01
        %v4167 = vmul.f32 %v440, 0.01
        %v4168 = vmul.f32 %v441, 0.01
        %v4169 = vmul.f32 %v442, 0.01
        %v4170 = vmul.f32 %v443, 0.01
        %v4171 = vmul.f32 %v444, 0.01
        %v4172 = vmul.f32 %v445, 0.01
        %v4173 = vmul.f32 %v446, 0.01
        %v4174 = vmul.f32 %v447, 0.01
        %v4175 = vmax.f32 %v416, %v4143
        %v4176 = vmax.f32 %v417, %v4144
        %v4177 = vmax.f32 %v418, %v4145
        %v4178 = vmax.f32 %v419, %v4146
        %v4179 = vmax.f32 %v420, %v4147
        %v4180 = vmax.f32 %v421, %v4148
        %v4181 = vmax.f32 %v422, %v4149
        %v4182 = vmax.f32 %v423, %v4150
        %v4183 = vmax.f32 %v424, %v4151
        %v4184 = vmax.f32 %v425, %v4152
        %v4185 = vmax.f32 %v426, %v4153
        %v4186 = vmax.f32 %v427, %v4154
        %v4187 = vmax.f32 %v428, %v4155
        %v4188 = vmax.f32 %v429, %v4156
        %v4189 = vmax.f32 %v430, %v4157
        %v4190 = vmax.f32 %v431, %v4158
        %v4191 = vmax.f32 %v432, %v4159
        %v4192 = vmax.f32 %v433, %v4160
        %v4193 = vmax.f32 %v434, %v4161
        %v4194 = vmax.f32 %v435, %v4162
        %v4195 = vmax.f32 %v436, %v4163
        %v4196 = vmax.f32 %v437, %v4164
        %v4197 = vmax.f32 %v438, %v4165
        %v4198 = vmax.f32 %v439, %v4166
        %v4199 = vmax.f32 %v440, %v4167
        %v4200 = vmax.f32 %v441, %v4168
        %v4201 = vmax.f32 %v442, %v4169
        %v4202 = vmax.f32 %v443, %v4170
        %v4203 = vmax.f32 %v444, %v4171
        %v4204 = vmax.f32 %v445, %v4172
        %v4205 = vmax.f32 %v446, %v4173
        %v4206 = vmax.f32 %v447, %v4174
        %v4207 = vpack.c.bf16 %v4176, %v4175
        %v4208 = vpack.c.bf16 %v4178, %v4177
        %v4209 = vpack.c.bf16 %v4180, %v4179
        %v4210 = vpack.c.bf16 %v4182, %v4181
        %v4211 = vpack.c.bf16 %v4184, %v4183
        %v4212 = vpack.c.bf16 %v4186, %v4185
        %v4213 = vpack.c.bf16 %v4188, %v4187
        %v4214 = vpack.c.bf16 %v4190, %v4189
        %v4215 = vpack.c.bf16 %v4192, %v4191
        %v4216 = vpack.c.bf16 %v4194, %v4193
        %v4217 = vpack.c.bf16 %v4196, %v4195
        %v4218 = vpack.c.bf16 %v4198, %v4197
        %v4219 = vpack.c.bf16 %v4200, %v4199
        %v4220 = vpack.c.bf16 %v4202, %v4201
        %v4221 = vpack.c.bf16 %v4204, %v4203
        %v4222 = vpack.c.bf16 %v4206, %v4205
        %v4223 = vmul.f32 %v886, 0.01
        %v4224 = vmul.f32 %v990, 0.01
        %v4225 = vmul.f32 %v1094, 0.01
        %v4226 = vmul.f32 %v1198, 0.01
        %v4227 = vmul.f32 %v1302, 0.01
        %v4228 = vmul.f32 %v1406, 0.01
        %v4229 = vmul.f32 %v1510, 0.01
        %v4230 = vmul.f32 %v1614, 0.01
        %v4231 = vmul.f32 %v1718, 0.01
        %v4232 = vmul.f32 %v1822, 0.01
        %v4233 = vmul.f32 %v1926, 0.01
        %v4234 = vmul.f32 %v2030, 0.01
        %v4235 = vmul.f32 %v2134, 0.01
        %v4236 = vmul.f32 %v2238, 0.01
        %v4237 = vmul.f32 %v2342, 0.01
        %v4238 = vmul.f32 %v2446, 0.01
        %v4239 = vmul.f32 %v2550, 0.01
        %v4240 = vmul.f32 %v2654, 0.01
        %v4241 = vmul.f32 %v2758, 0.01
        %v4242 = vmul.f32 %v2862, 0.01
        %v4243 = vmul.f32 %v2966, 0.01
        %v4244 = vmul.f32 %v3070, 0.01
        %v4245 = vmul.f32 %v3174, 0.01
        %v4246 = vmul.f32 %v3278, 0.01
        %v4247 = vmul.f32 %v3382, 0.01
        %v4248 = vmul.f32 %v3486, 0.01
        %v4249 = vmul.f32 %v3590, 0.01
        %v4250 = vmul.f32 %v3694, 0.01
        %v4251 = vmul.f32 %v3798, 0.01
        %v4252 = vmul.f32 %v3902, 0.01
        %v4253 = vmul.f32 %v4006, 0.01
        %v4254 = vmul.f32 %v4110, 0.01
        %v4255 = vmax.f32 %v886, %v4223
        %v4256 = vmax.f32 %v990, %v4224
        %v4257 = vmax.f32 %v1094, %v4225
        %v4258 = vmax.f32 %v1198, %v4226
        %v4259 = vmax.f32 %v1302, %v4227
        %v4260 = vmax.f32 %v1406, %v4228
        %v4261 = vmax.f32 %v1510, %v4229
        %v4262 = vmax.f32 %v1614, %v4230
        %v4263 = vmax.f32 %v1718, %v4231
        %v4264 = vmax.f32 %v1822, %v4232
        %v4265 = vmax.f32 %v1926, %v4233
        %v4266 = vmax.f32 %v2030, %v4234
        %v4267 = vmax.f32 %v2134, %v4235
        %v4268 = vmax.f32 %v2238, %v4236
        %v4269 = vmax.f32 %v2342, %v4237
        %v4270 = vmax.f32 %v2446, %v4238
        %v4271 = vmax.f32 %v2550, %v4239
        %v4272 = vmax.f32 %v2654, %v4240
        %v4273 = vmax.f32 %v2758, %v4241
        %v4274 = vmax.f32 %v2862, %v4242
        %v4275 = vmax.f32 %v2966, %v4243
        %v4276 = vmax.f32 %v3070, %v4244
        %v4277 = vmax.f32 %v3174, %v4245
        %v4278 = vmax.f32 %v3278, %v4246
        %v4279 = vmax.f32 %v3382, %v4247
        %v4280 = vmax.f32 %v3486, %v4248
        %v4281 = vmax.f32 %v3590, %v4249
        %v4282 = vmax.f32 %v3694, %v4250
        %v4283 = vmax.f32 %v3798, %v4251
        %v4284 = vmax.f32 %v3902, %v4252
        %v4285 = vmax.f32 %v4006, %v4253
        %v4286 = vmax.f32 %v4110, %v4254
        %v4287 = vpack.c.bf16 %v4256, %v4255
        %v4288 = vpack.c.bf16 %v4258, %v4257
        %v4289 = vpack.c.bf16 %v4260, %v4259
        %v4290 = vpack.c.bf16 %v4262, %v4261
        %v4291 = vpack.c.bf16 %v4264, %v4263
        %v4292 = vpack.c.bf16 %v4266, %v4265
        %v4293 = vpack.c.bf16 %v4268, %v4267
        %v4294 = vpack.c.bf16 %v4270, %v4269
        %v4295 = vpack.c.bf16 %v4272, %v4271
        %v4296 = vpack.c.bf16 %v4274, %v4273
        %v4297 = vpack.c.bf16 %v4276, %v4275
        %v4298 = vpack.c.bf16 %v4278, %v4277
        %v4299 = vpack.c.bf16 %v4280, %v4279
        %v4300 = vpack.c.bf16 %v4282, %v4281
        %v4301 = vpack.c.bf16 %v4284, %v4283
        %v4302 = vpack.c.bf16 %v4286, %v4285
        %v4303 = vld [vmem:[%s3] sm:$0xf]
        %v4304 = vld [vmem:[%s3 + $0x4] sm:$0x1]
        %v4305 = vld [vmem:[%s4] sm:$0xf]
        %v4306 = vld [vmem:[%s4 + $0x4] sm:$0xf]
        %v4307 = vld [vmem:[%s4 + $0x8] sm:$0xf]
        %v4308 = vld [vmem:[%s4 + $0xc] sm:$0xf]
        %v4313 = vunpack.c.l.b16 %v4305
        %v4314 = vunpack.c.l.b16 %v4306
        %v4315 = vunpack.c.l.b16 %v4307
        %v4316 = vunpack.c.l.b16 %v4308
        %v4317 = vpack.c.b16 %v4314, %v4313
        %v4318 = vpack.c.b16 %v4316, %v4315
        %vm4321 = vcmask 261120
        %v4323 = vsel %vm4321, %v4127, 0
        %v4326 = vsel %vm4321, %v4128, 0
        %v4329 = vsel %vm4321, %v4129, 0
        %v4332 = vsel %vm4321, %v4130, 0
        %v4335 = vsel %vm4321, %v4131, 0
        %v4338 = vsel %vm4321, %v4132, 0
        %v4341 = vsel %vm4321, %v4133, 0
        %v4344 = vsel %vm4321, %v4134, 0
        %v4347 = vsel %vm4321, %v4135, 0
        %v4350 = vsel %vm4321, %v4136, 0
        %v4353 = vsel %vm4321, %v4137, 0
        %v4356 = vsel %vm4321, %v4138, 0
        %v4359 = vsel %vm4321, %v4139, 0
        %v4362 = vsel %vm4321, %v4140, 0
        %v4365 = vsel %vm4321, %v4141, 0
        %v4368 = vsel %vm4321, %v4142, 0
        %4370 = vmatprep.subr.bf16.mxu0 0
        %4371 = vmatpush1.bf16.msra.mxu0 %v4317
        %4372 = vmatprep.subr.bf16.mxu0 0
        %4373 = vmatpush1.bf16.msra.mxu0 %v4318
        %4374 = vmatprep.subr.bf16.mxu0 0
        %4375 = vmatpush1.bf16.msra.mxu0 0
        %4376 = vmatprep.subr.bf16.mxu0 0
        %4377 = vmatpush1.bf16.msra.mxu0 0
        %4378 = vmatprep.subr.bf16.mxu0 0
        %4379 = vmatpush1.bf16.msra.mxu0 0
        %4380 = vmatprep.subr.bf16.mxu0 0
        %4381 = vmatpush1.bf16.msra.mxu0 0
        %4382 = vmatprep.subr.bf16.mxu0 0
        %4383 = vmatpush1.bf16.msra.mxu0 0
        %4384 = vmatprep.subr.bf16.mxu0 0
        %4385 = vmatpush1.bf16.msra.mxu0 0
        %4386 = vmatprep.subr.bf16.mxu0 0
        %4387 = vmatpush1.bf16.msra.mxu0 0
        %4388 = vmatprep.subr.bf16.mxu0 0
        %4389 = vmatpush1.bf16.msra.mxu0 0
        %4390 = vmatprep.subr.bf16.mxu0 0
        %4391 = vmatpush1.bf16.msra.mxu0 0
        %4392 = vmatprep.subr.bf16.mxu0 0
        %4393 = vmatpush1.bf16.msra.mxu0 0
        %4394 = vmatprep.subr.bf16.mxu0 0
        %4395 = vmatpush1.bf16.msra.mxu0 0
        %4396 = vmatprep.subr.bf16.mxu0 0
        %4397 = vmatpush1.bf16.msra.mxu0 0
        %4398 = vmatprep.subr.bf16.mxu0 0
        %4399 = vmatpush1.bf16.msra.mxu0 0
        %4400 = vmatprep.subr.bf16.mxu0 0
        %4401 = vmatpush1.bf16.msra.mxu0 0
        %4402 = vmatprep.mubr.bf16.mxu0 0
        %4403 = vmatmul.mubr.bf16.gmra.mrb[0].mxu0 %v4323
        %v4404 = vpop.f32.mrb[0].mxu0
        %v4405 = vadd.f32 0.0, %v4404
        %v4406 = vpop.f32.mrb[0].mxu0
        %v4407 = vpop.f32.mrb[0].mxu0
        %v4408 = vadd.f32 0.0, %v4407
        %v4409 = vpop.f32.mrb[0].mxu0
        %4410 = vmatprep.mubr.bf16.mxu0 0
        %4411 = vmatmul.mubr.bf16.gmra.mrb[0].mxu0 %v4326
        %v4412 = vpop.f32.mrb[0].mxu0
        %v4413 = vadd.f32 0.0, %v4412
        %v4414 = vpop.f32.mrb[0].mxu0
        %v4415 = vpop.f32.mrb[0].mxu0
        %v4416 = vadd.f32 0.0, %v4415
        %v4417 = vpop.f32.mrb[0].mxu0
        %4418 = vmatprep.mubr.bf16.mxu0 0
        %4419 = vmatmul.mubr.bf16.gmra.mrb[0].mxu0 %v4329
        %v4420 = vpop.f32.mrb[0].mxu0
        %v4421 = vadd.f32 0.0, %v4420
        %v4422 = vpop.f32.mrb[0].mxu0
        %v4423 = vpop.f32.mrb[0].mxu0
        %v4424 = vadd.f32 0.0, %v4423
        %v4425 = vpop.f32.mrb[0].mxu0
        %4426 = vmatprep.mubr.bf16.mxu0 0
        %4427 = vmatmul.mubr.bf16.gmra.mrb[0].mxu0 %v4332
        %v4428 = vpop.f32.mrb[0].mxu0
        %v4429 = vadd.f32 0.0, %v4428
        %v4430 = vpop.f32.mrb[0].mxu0
        %v4431 = vpop.f32.mrb[0].mxu0
        %v4432 = vadd.f32 0.0, %v4431
        %v4433 = vpop.f32.mrb[0].mxu0
        %4434 = vmatprep.mubr.bf16.mxu0 0
        %4435 = vmatmul.mubr.bf16.gmra.mrb[0].mxu0 %v4335
        %v4436 = vpop.f32.mrb[0].mxu0
        %v4437 = vadd.f32 0.0, %v4436
        %v4438 = vpop.f32.mrb[0].mxu0
        %v4439 = vpop.f32.mrb[0].mxu0
        %v4440 = vadd.f32 0.0, %v4439
        %v4441 = vpop.f32.mrb[0].mxu0
        %4442 = vmatprep.mubr.bf16.mxu0 0
        %4443 = vmatmul.mubr.bf16.gmra.mrb[0].mxu0 %v4338
        %v4444 = vpop.f32.mrb[0].mxu0
        %v4445 = vadd.f32 0.0, %v4444
        %v4446 = vpop.f32.mrb[0].mxu0
        %v4447 = vpop.f32.mrb[0].mxu0
        %v4448 = vadd.f32 0.0, %v4447
        %v4449 = vpop.f32.mrb[0].mxu0
        %4450 = vmatprep.mubr.bf16.mxu0 0
        %4451 = vmatmul.mubr.bf16.gmra.mrb[0].mxu0 %v4341
        %v4452 = vpop.f32.mrb[0].mxu0
        %v4453 = vadd.f32 0.0, %v4452
        %v4454 = vpop.f32.mrb[0].mxu0
        %v4455 = vpop.f32.mrb[0].mxu0
        %v4456 = vadd.f32 0.0, %v4455
        %v4457 = vpop.f32.mrb[0].mxu0
        %4458 = vmatprep.mubr.bf16.mxu0 0
        %4459 = vmatmul.mubr.bf16.gmra.mrb[0].mxu0 %v4344
        %v4460 = vpop.f32.mrb[0].mxu0
        %v4461 = vadd.f32 0.0, %v4460
        %v4462 = vpop.f32.mrb[0].mxu0
        %v4463 = vpop.f32.mrb[0].mxu0
        %v4464 = vadd.f32 0.0, %v4463
        %v4465 = vpop.f32.mrb[0].mxu0
        %4466 = vmatprep.mubr.bf16.mxu0 0
        %4467 = vmatmul.mubr.bf16.gmra.mrb[0].mxu0 %v4347
        %v4468 = vpop.f32.mrb[0].mxu0
        %v4469 = vadd.f32 0.0, %v4468
        %v4470 = vpop.f32.mrb[0].mxu0
        %v4471 = vpop.f32.mrb[0].mxu0
        %v4472 = vadd.f32 0.0, %v4471
        %v4473 = vpop.f32.mrb[0].mxu0
        %4474 = vmatprep.mubr.bf16.mxu0 0
        %4475 = vmatmul.mubr.bf16.gmra.mrb[0].mxu0 %v4350
        %v4476 = vpop.f32.mrb[0].mxu0
        %v4477 = vadd.f32 0.0, %v4476
        %v4478 = vpop.f32.mrb[0].mxu0
        %v4479 = vpop.f32.mrb[0].mxu0
        %v4480 = vadd.f32 0.0, %v4479
        %v4481 = vpop.f32.mrb[0].mxu0
        %4482 = vmatprep.mubr.bf16.mxu0 0
        %4483 = vmatmul.mubr.bf16.gmra.mrb[0].mxu0 %v4353
        %v4484 = vpop.f32.mrb[0].mxu0
        %v4485 = vadd.f32 0.0, %v4484
        %v4486 = vpop.f32.mrb[0].mxu0
        %v4487 = vpop.f32.mrb[0].mxu0
        %v4488 = vadd.f32 0.0, %v4487
        %v4489 = vpop.f32.mrb[0].mxu0
        %4490 = vmatprep.mubr.bf16.mxu0 0
        %4491 = vmatmul.mubr.bf16.gmra.mrb[0].mxu0 %v4356
        %v4492 = vpop.f32.mrb[0].mxu0
        %v4493 = vadd.f32 0.0, %v4492
        %v4494 = vpop.f32.mrb[0].mxu0
        %v4495 = vpop.f32.mrb[0].mxu0
        %v4496 = vadd.f32 0.0, %v4495
        %v4497 = vpop.f32.mrb[0].mxu0
        %4498 = vmatprep.mubr.bf16.mxu0 0
        %4499 = vmatmul.mubr.bf16.gmra.mrb[0].mxu0 %v4359
        %v4500 = vpop.f32.mrb[0].mxu0
        %v4501 = vadd.f32 0.0, %v4500
        %v4502 = vpop.f32.mrb[0].mxu0
        %v4503 = vpop.f32.mrb[0].mxu0
        %v4504 = vadd.f32 0.0, %v4503
        %v4505 = vpop.f32.mrb[0].mxu0
        %4506 = vmatprep.mubr.bf16.mxu0 0
        %4507 = vmatmul.mubr.bf16.gmra.mrb[0].mxu0 %v4362
        %v4508 = vpop.f32.mrb[0].mxu0
        %v4509 = vadd.f32 0.0, %v4508
        %v4510 = vpop.f32.mrb[0].mxu0
        %v4511 = vpop.f32.mrb[0].mxu0
        %v4512 = vadd.f32 0.0, %v4511
        %v4513 = vpop.f32.mrb[0].mxu0
        %4514 = vmatprep.mubr.bf16.mxu0 0
        %4515 = vmatmul.mubr.bf16.gmra.mrb[0].mxu0 %v4365
        %v4516 = vpop.f32.mrb[0].mxu0
        %v4517 = vadd.f32 0.0, %v4516
        %v4518 = vpop.f32.mrb[0].mxu0
        %v4519 = vpop.f32.mrb[0].mxu0
        %v4520 = vadd.f32 0.0, %v4519
        %v4521 = vpop.f32.mrb[0].mxu0
        %4522 = vmatprep.mubr.bf16.mxu0 0
        %4523 = vmatmul.mubr.bf16.gmra.mrb[0].mxu0 %v4368
        %v4524 = vpop.f32.mrb[0].mxu0
        %v4525 = vadd.f32 0.0, %v4524
        %v4526 = vpop.f32.mrb[0].mxu0
        %v4527 = vpop.f32.mrb[0].mxu0
        %v4528 = vadd.f32 0.0, %v4527
        %v4529 = vpop.f32.mrb[0].mxu0
        %4530 = vdwg.mxu0
        %v4533 = vunpack.c.l.b16 %v4303
        %v4534 = vunpack.c.l.b16 %v4304
        %v4535 = vpack.c.b16 %v4534, %v4533
        %v4537 = vsel %vm457, %v4111, 0
        %v4540 = vsel %vm457, %v4112, 0
        %v4543 = vsel %vm457, %v4113, 0
        %v4546 = vsel %vm457, %v4114, 0
        %v4549 = vsel %vm457, %v4115, 0
        %v4552 = vsel %vm457, %v4116, 0
        %v4555 = vsel %vm457, %v4117, 0
        %v4558 = vsel %vm457, %v4118, 0
        %v4561 = vsel %vm457, %v4119, 0
        %v4564 = vsel %vm457, %v4120, 0
        %v4567 = vsel %vm457, %v4121, 0
        %v4570 = vsel %vm457, %v4122, 0
        %v4573 = vsel %vm457, %v4123, 0
        %v4576 = vsel %vm457, %v4124, 0
        %v4579 = vsel %vm457, %v4125, 0
        %v4582 = vsel %vm457, %v4126, 0
        %vm4584 = vcmask 1044480
        %v4586 = vsel %vm4584, %v4535, 0
        %4588 = vmatprep.subr.bf16.mxu0 0
        %4589 = vmatpush1.bf16.msra.mxu0 %v4586
        %4590 = vmatprep.subr.bf16.mxu0 0
        %4591 = vmatpush1.bf16.msra.mxu0 0
        %4592 = vmatprep.subr.bf16.mxu0 0
        %4593 = vmatpush1.bf16.msra.mxu0 0
        %4594 = vmatprep.subr.bf16.mxu0 0
        %4595 = vmatpush1.bf16.msra.mxu0 0
        %4596 = vmatprep.subr.bf16.mxu0 0
        %4597 = vmatpush1.bf16.msra.mxu0 0
        %4598 = vmatprep.subr.bf16.mxu0 0
        %4599 = vmatpush1.bf16.msra.mxu0 0
        %4600 = vmatprep.subr.bf16.mxu0 0
        %4601 = vmatpush1.bf16.msra.mxu0 0
        %4602 = vmatprep.subr.bf16.mxu0 0
        %4603 = vmatpush1.bf16.msra.mxu0 0
        %4604 = vmatprep.subr.bf16.mxu0 0
        %4605 = vmatpush1.bf16.msra.mxu0 0
        %4606 = vmatprep.subr.bf16.mxu0 0
        %4607 = vmatpush1.bf16.msra.mxu0 0
        %4608 = vmatprep.subr.bf16.mxu0 0
        %4609 = vmatpush1.bf16.msra.mxu0 0
        %4610 = vmatprep.subr.bf16.mxu0 0
        %4611 = vmatpush1.bf16.msra.mxu0 0
        %4612 = vmatprep.subr.bf16.mxu0 0
        %4613 = vmatpush1.bf16.msra.mxu0 0
        %4614 = vmatprep.subr.bf16.mxu0 0
        %4615 = vmatpush1.bf16.msra.mxu0 0
        %4616 = vmatprep.subr.bf16.mxu0 0
        %4617 = vmatpush1.bf16.msra.mxu0 0
        %4618 = vmatprep.subr.bf16.mxu0 0
        %4619 = vmatpush1.bf16.msra.mxu0 0
        %4620 = vmatprep.mubr.bf16.mxu0 0
        %4621 = vmatmul.mubr.bf16.gmra.mrb[0].mxu0 %v4537
        %v4622 = vpop.f32.mrb[0].mxu0
        %v4623 = vadd.f32 %v4405, %v4622
        %v4624 = vpop.f32.mrb[0].mxu0
        %v4625 = vpop.f32.mrb[0].mxu0
        %v4626 = vadd.f32 %v4408, %v4625
        %v4627 = vpop.f32.mrb[0].mxu0
        %4628 = vmatprep.mubr.bf16.mxu0 0
        %4629 = vmatmul.mubr.bf16.gmra.mrb[0].mxu0 %v4540
        %v4630 = vpop.f32.mrb[0].mxu0
        %v4631 = vadd.f32 %v4413, %v4630
        %v4632 = vpop.f32.mrb[0].mxu0
        %v4633 = vpop.f32.mrb[0].mxu0
        %v4634 = vadd.f32 %v4416, %v4633
        %v4635 = vpop.f32.mrb[0].mxu0
        %4636 = vmatprep.mubr.bf16.mxu0 0
        %4637 = vmatmul.mubr.bf16.gmra.mrb[0].mxu0 %v4543
        %v4638 = vpop.f32.mrb[0].mxu0
        %v4639 = vadd.f32 %v4421, %v4638
        %v4640 = vpop.f32.mrb[0].mxu0
        %v4641 = vpop.f32.mrb[0].mxu0
        %v4642 = vadd.f32 %v4424, %v4641
        %v4643 = vpop.f32.mrb[0].mxu0
        %4644 = vmatprep.mubr.bf16.mxu0 0
        %4645 = vmatmul.mubr.bf16.gmra.mrb[0].mxu0 %v4546
        %v4646 = vpop.f32.mrb[0].mxu0
        %v4647 = vadd.f32 %v4429, %v4646
        %v4648 = vpop.f32.mrb[0].mxu0
        %v4649 = vpop.f32.mrb[0].mxu0
        %v4650 = vadd.f32 %v4432, %v4649
        %v4651 = vpop.f32.mrb[0].mxu0
        %4652 = vmatprep.mubr.bf16.mxu0 0
        %4653 = vmatmul.mubr.bf16.gmra.mrb[0].mxu0 %v4549
        %v4654 = vpop.f32.mrb[0].mxu0
        %v4655 = vadd.f32 %v4437, %v4654
        %v4656 = vpop.f32.mrb[0].mxu0
        %v4657 = vpop.f32.mrb[0].mxu0
        %v4658 = vadd.f32 %v4440, %v4657
        %v4659 = vpop.f32.mrb[0].mxu0
        %4660 = vmatprep.mubr.bf16.mxu0 0
        %4661 = vmatmul.mubr.bf16.gmra.mrb[0].mxu0 %v4552
        %v4662 = vpop.f32.mrb[0].mxu0
        %v4663 = vadd.f32 %v4445, %v4662
        %v4664 = vpop.f32.mrb[0].mxu0
        %v4665 = vpop.f32.mrb[0].mxu0
        %v4666 = vadd.f32 %v4448, %v4665
        %v4667 = vpop.f32.mrb[0].mxu0
        %4668 = vmatprep.mubr.bf16.mxu0 0
        %4669 = vmatmul.mubr.bf16.gmra.mrb[0].mxu0 %v4555
        %v4670 = vpop.f32.mrb[0].mxu0
        %v4671 = vadd.f32 %v4453, %v4670
        %v4672 = vpop.f32.mrb[0].mxu0
        %v4673 = vpop.f32.mrb[0].mxu0
        %v4674 = vadd.f32 %v4456, %v4673
        %v4675 = vpop.f32.mrb[0].mxu0
        %4676 = vmatprep.mubr.bf16.mxu0 0
        %4677 = vmatmul.mubr.bf16.gmra.mrb[0].mxu0 %v4558
        %v4678 = vpop.f32.mrb[0].mxu0
        %v4679 = vadd.f32 %v4461, %v4678
        %v4680 = vpop.f32.mrb[0].mxu0
        %v4681 = vpop.f32.mrb[0].mxu0
        %v4682 = vadd.f32 %v4464, %v4681
        %v4683 = vpop.f32.mrb[0].mxu0
        %4684 = vmatprep.mubr.bf16.mxu0 0
        %4685 = vmatmul.mubr.bf16.gmra.mrb[0].mxu0 %v4561
        %v4686 = vpop.f32.mrb[0].mxu0
        %v4687 = vadd.f32 %v4469, %v4686
        %v4688 = vpop.f32.mrb[0].mxu0
        %v4689 = vpop.f32.mrb[0].mxu0
        %v4690 = vadd.f32 %v4472, %v4689
        %v4691 = vpop.f32.mrb[0].mxu0
        %4692 = vmatprep.mubr.bf16.mxu0 0
        %4693 = vmatmul.mubr.bf16.gmra.mrb[0].mxu0 %v4564
        %v4694 = vpop.f32.mrb[0].mxu0
        %v4695 = vadd.f32 %v4477, %v4694
        %v4696 = vpop.f32.mrb[0].mxu0
        %v4697 = vpop.f32.mrb[0].mxu0
        %v4698 = vadd.f32 %v4480, %v4697
        %v4699 = vpop.f32.mrb[0].mxu0
        %4700 = vmatprep.mubr.bf16.mxu0 0
        %4701 = vmatmul.mubr.bf16.gmra.mrb[0].mxu0 %v4567
        %v4702 = vpop.f32.mrb[0].mxu0
        %v4703 = vadd.f32 %v4485, %v4702
        %v4704 = vpop.f32.mrb[0].mxu0
        %v4705 = vpop.f32.mrb[0].mxu0
        %v4706 = vadd.f32 %v4488, %v4705
        %v4707 = vpop.f32.mrb[0].mxu0
        %4708 = vmatprep.mubr.bf16.mxu0 0
        %4709 = vmatmul.mubr.bf16.gmra.mrb[0].mxu0 %v4570
        %v4710 = vpop.f32.mrb[0].mxu0
        %v4711 = vadd.f32 %v4493, %v4710
        %v4712 = vpop.f32.mrb[0].mxu0
        %v4713 = vpop.f32.mrb[0].mxu0
        %v4714 = vadd.f32 %v4496, %v4713
        %v4715 = vpop.f32.mrb[0].mxu0
        %4716 = vmatprep.mubr.bf16.mxu0 0
        %4717 = vmatmul.mubr.bf16.gmra.mrb[0].mxu0 %v4573
        %v4718 = vpop.f32.mrb[0].mxu0
        %v4719 = vadd.f32 %v4501, %v4718
        %v4720 = vpop.f32.mrb[0].mxu0
        %v4721 = vpop.f32.mrb[0].mxu0
        %v4722 = vadd.f32 %v4504, %v4721
        %v4723 = vpop.f32.mrb[0].mxu0
        %4724 = vmatprep.mubr.bf16.mxu0 0
        %4725 = vmatmul.mubr.bf16.gmra.mrb[0].mxu0 %v4576
        %v4726 = vpop.f32.mrb[0].mxu0
        %v4727 = vadd.f32 %v4509, %v4726
        %v4728 = vpop.f32.mrb[0].mxu0
        %v4729 = vpop.f32.mrb[0].mxu0
        %v4730 = vadd.f32 %v4512, %v4729
        %v4731 = vpop.f32.mrb[0].mxu0
        %4732 = vmatprep.mubr.bf16.mxu0 0
        %4733 = vmatmul.mubr.bf16.gmra.mrb[0].mxu0 %v4579
        %v4734 = vpop.f32.mrb[0].mxu0
        %v4735 = vadd.f32 %v4517, %v4734
        %v4736 = vpop.f32.mrb[0].mxu0
        %v4737 = vpop.f32.mrb[0].mxu0
        %v4738 = vadd.f32 %v4520, %v4737
        %v4739 = vpop.f32.mrb[0].mxu0
        %4740 = vmatprep.mubr.bf16.mxu0 0
        %4741 = vmatmul.mubr.bf16.gmra.mrb[0].mxu0 %v4582
        %v4742 = vpop.f32.mrb[0].mxu0
        %v4743 = vadd.f32 %v4525, %v4742
        %v4744 = vpop.f32.mrb[0].mxu0
        %v4745 = vpop.f32.mrb[0].mxu0
        %v4746 = vadd.f32 %v4528, %v4745
        %v4747 = vpop.f32.mrb[0].mxu0
        %4748 = vdwg.mxu0
        %v4749 = vld [vmem:[%s5] sm:$0x1]
        %v4751 = vlaneseq
        %v4752 = vshrl.u32 %v4751, 7
        %v4753 = vsub.s32 0, %v4752
        %v4754 = vrot.slane %v4749, %v4753
        %v4756 = vadd.f32 %v4623, %v4754
        %v4757 = vadd.f32 %v4626, %v4754
        %v4758 = vadd.f32 %v4631, %v4754
        %v4759 = vadd.f32 %v4634, %v4754
        %v4760 = vadd.f32 %v4639, %v4754
        %v4761 = vadd.f32 %v4642, %v4754
        %v4762 = vadd.f32 %v4647, %v4754
        %v4763 = vadd.f32 %v4650, %v4754
        %v4764 = vadd.f32 %v4655, %v4754
        %v4765 = vadd.f32 %v4658, %v4754
        %v4766 = vadd.f32 %v4663, %v4754
        %v4767 = vadd.f32 %v4666, %v4754
        %v4768 = vadd.f32 %v4671, %v4754
        %v4769 = vadd.f32 %v4674, %v4754
        %v4770 = vadd.f32 %v4679, %v4754
        %v4771 = vadd.f32 %v4682, %v4754
        %v4772 = vadd.f32 %v4687, %v4754
        %v4773 = vadd.f32 %v4690, %v4754
        %v4774 = vadd.f32 %v4695, %v4754
        %v4775 = vadd.f32 %v4698, %v4754
        %v4776 = vadd.f32 %v4703, %v4754
        %v4777 = vadd.f32 %v4706, %v4754
        %v4778 = vadd.f32 %v4711, %v4754
        %v4779 = vadd.f32 %v4714, %v4754
        %v4780 = vadd.f32 %v4719, %v4754
        %v4781 = vadd.f32 %v4722, %v4754
        %v4782 = vadd.f32 %v4727, %v4754
        %v4783 = vadd.f32 %v4730, %v4754
        %v4784 = vadd.f32 %v4735, %v4754
        %v4785 = vadd.f32 %v4738, %v4754
        %v4786 = vadd.f32 %v4743, %v4754
        %v4787 = vadd.f32 %v4746, %v4754
        %v4788 = vld [vmem:[%s6] sm:$0xff]
        %v4789 = vld [vmem:[%s6 + $0x8] sm:$0x11]
        %v4790 = vld [vmem:[%s7] sm:$0xff]
        %v4791 = vld [vmem:[%s7 + $0x8] sm:$0xff]
        %v4792 = vld [vmem:[%s7 + $0x10] sm:$0xff]
        %v4793 = vld [vmem:[%s7 + $0x18] sm:$0xff]
        %v4798 = vunpack.c.l.b16 %v4790
        %v4799 = vunpack.c.h.b16 %v4790
        %v4800 = vunpack.c.l.b16 %v4791
        %v4801 = vunpack.c.h.b16 %v4791
        %v4802 = vunpack.c.l.b16 %v4792
        %v4803 = vunpack.c.h.b16 %v4792
        %v4804 = vunpack.c.l.b16 %v4793
        %v4805 = vunpack.c.h.b16 %v4793
        %v4806 = vpack.c.b16 %v4800, %v4798
        %v4807 = vpack.c.b16 %v4801, %v4799
        %v4808 = vpack.c.b16 %v4804, %v4802
        %v4809 = vpack.c.b16 %v4805, %v4803
        %v4815 = vsel %vm4321, %v4287, 0
        %v4818 = vsel %vm4321, %v4288, 0
        %v4821 = vsel %vm4321, %v4289, 0
        %v4824 = vsel %vm4321, %v4290, 0
        %v4827 = vsel %vm4321, %v4291, 0
        %v4830 = vsel %vm4321, %v4292, 0
        %v4833 = vsel %vm4321, %v4293, 0
        %v4836 = vsel %vm4321, %v4294, 0
        %v4839 = vsel %vm4321, %v4295, 0
        %v4842 = vsel %vm4321, %v4296, 0
        %v4845 = vsel %vm4321, %v4297, 0
        %v4848 = vsel %vm4321, %v4298, 0
        %v4851 = vsel %vm4321, %v4299, 0
        %v4854 = vsel %vm4321, %v4300, 0
        %v4857 = vsel %vm4321, %v4301, 0
        %v4860 = vsel %vm4321, %v4302, 0
        %4862 = vmatprep.subr.bf16.mxu0 %v4807
        %4863 = vmatpush1.bf16.msra.mxu0 %v4806
        %4864 = vmatprep.subr.bf16.mxu0 %v4809
        %4865 = vmatpush1.bf16.msra.mxu0 %v4808
        %4866 = vmatprep.subr.bf16.mxu0 0
        %4867 = vmatpush1.bf16.msra.mxu0 0
        %4868 = vmatprep.subr.bf16.mxu0 0
        %4869 = vmatpush1.bf16.msra.mxu0 0
        %4870 = vmatprep.subr.bf16.mxu0 0
        %4871 = vmatpush1.bf16.msra.mxu0 0
        %4872 = vmatprep.subr.bf16.mxu0 0
        %4873 = vmatpush1.bf16.msra.mxu0 0
        %4874 = vmatprep.subr.bf16.mxu0 0
        %4875 = vmatpush1.bf16.msra.mxu0 0
        %4876 = vmatprep.subr.bf16.mxu0 0
        %4877 = vmatpush1.bf16.msra.mxu0 0
        %4878 = vmatprep.subr.bf16.mxu0 0
        %4879 = vmatpush1.bf16.msra.mxu0 0
        %4880 = vmatprep.subr.bf16.mxu0 0
        %4881 = vmatpush1.bf16.msra.mxu0 0
        %4882 = vmatprep.subr.bf16.mxu0 0
        %4883 = vmatpush1.bf16.msra.mxu0 0
        %4884 = vmatprep.subr.bf16.mxu0 0
        %4885 = vmatpush1.bf16.msra.mxu0 0
        %4886 = vmatprep.subr.bf16.mxu0 0
        %4887 = vmatpush1.bf16.msra.mxu0 0
        %4888 = vmatprep.subr.bf16.mxu0 0
        %4889 = vmatpush1.bf16.msra.mxu0 0
        %4890 = vmatprep.subr.bf16.mxu0 0
        %4891 = vmatpush1.bf16.msra.mxu0 0
        %4892 = vmatprep.subr.bf16.mxu0 0
        %4893 = vmatpush1.bf16.msra.mxu0 0
        %4894 = vmatprep.mubr.bf16.mxu0 0
        %4895 = vmatmul.mubr.bf16.gmra.mrb[0].mxu0 %v4815
        %v4896 = vpop.f32.mrb[0].mxu0
        %v4897 = vadd.f32 0.0, %v4896
        %v4898 = vpop.f32.mrb[0].mxu0
        %v4899 = vadd.f32 0.0, %v4898
        %v4900 = vpop.f32.mrb[0].mxu0
        %v4901 = vadd.f32 0.0, %v4900
        %v4902 = vpop.f32.mrb[0].mxu0
        %v4903 = vadd.f32 0.0, %v4902
        %4904 = vmatprep.mubr.bf16.mxu0 0
        %4905 = vmatmul.mubr.bf16.gmra.mrb[0].mxu0 %v4818
        %v4906 = vpop.f32.mrb[0].mxu0
        %v4907 = vadd.f32 0.0, %v4906
        %v4908 = vpop.f32.mrb[0].mxu0
        %v4909 = vadd.f32 0.0, %v4908
        %v4910 = vpop.f32.mrb[0].mxu0
        %v4911 = vadd.f32 0.0, %v4910
        %v4912 = vpop.f32.mrb[0].mxu0
        %v4913 = vadd.f32 0.0, %v4912
        %4914 = vmatprep.mubr.bf16.mxu0 0
        %4915 = vmatmul.mubr.bf16.gmra.mrb[0].mxu0 %v4821
        %v4916 = vpop.f32.mrb[0].mxu0
        %v4917 = vadd.f32 0.0, %v4916
        %v4918 = vpop.f32.mrb[0].mxu0
        %v4919 = vadd.f32 0.0, %v4918
        %v4920 = vpop.f32.mrb[0].mxu0
        %v4921 = vadd.f32 0.0, %v4920
        %v4922 = vpop.f32.mrb[0].mxu0
        %v4923 = vadd.f32 0.0, %v4922
        %4924 = vmatprep.mubr.bf16.mxu0 0
        %4925 = vmatmul.mubr.bf16.gmra.mrb[0].mxu0 %v4824
        %v4926 = vpop.f32.mrb[0].mxu0
        %v4927 = vadd.f32 0.0, %v4926
        %v4928 = vpop.f32.mrb[0].mxu0
        %v4929 = vadd.f32 0.0, %v4928
        %v4930 = vpop.f32.mrb[0].mxu0
        %v4931 = vadd.f32 0.0, %v4930
        %v4932 = vpop.f32.mrb[0].mxu0
        %v4933 = vadd.f32 0.0, %v4932
        %4934 = vmatprep.mubr.bf16.mxu0 0
        %4935 = vmatmul.mubr.bf16.gmra.mrb[0].mxu0 %v4827
        %v4936 = vpop.f32.mrb[0].mxu0
        %v4937 = vadd.f32 0.0, %v4936
        %v4938 = vpop.f32.mrb[0].mxu0
        %v4939 = vadd.f32 0.0, %v4938
        %v4940 = vpop.f32.mrb[0].mxu0
        %v4941 = vadd.f32 0.0, %v4940
        %v4942 = vpop.f32.mrb[0].mxu0
        %v4943 = vadd.f32 0.0, %v4942
        %4944 = vmatprep.mubr.bf16.mxu0 0
        %4945 = vmatmul.mubr.bf16.gmra.mrb[0].mxu0 %v4830
        %v4946 = vpop.f32.mrb[0].mxu0
        %v4947 = vadd.f32 0.0, %v4946
        %v4948 = vpop.f32.mrb[0].mxu0
        %v4949 = vadd.f32 0.0, %v4948
        %v4950 = vpop.f32.mrb[0].mxu0
        %v4951 = vadd.f32 0.0, %v4950
        %v4952 = vpop.f32.mrb[0].mxu0
        %v4953 = vadd.f32 0.0, %v4952
        %4954 = vmatprep.mubr.bf16.mxu0 0
        %4955 = vmatmul.mubr.bf16.gmra.mrb[0].mxu0 %v4833
        %v4956 = vpop.f32.mrb[0].mxu0
        %v4957 = vadd.f32 0.0, %v4956
        %v4958 = vpop.f32.mrb[0].mxu0
        %v4959 = vadd.f32 0.0, %v4958
        %v4960 = vpop.f32.mrb[0].mxu0
        %v4961 = vadd.f32 0.0, %v4960
        %v4962 = vpop.f32.mrb[0].mxu0
        %v4963 = vadd.f32 0.0, %v4962
        %4964 = vmatprep.mubr.bf16.mxu0 0
        %4965 = vmatmul.mubr.bf16.gmra.mrb[0].mxu0 %v4836
        %v4966 = vpop.f32.mrb[0].mxu0
        %v4967 = vadd.f32 0.0, %v4966
        %v4968 = vpop.f32.mrb[0].mxu0
        %v4969 = vadd.f32 0.0, %v4968
        %v4970 = vpop.f32.mrb[0].mxu0
        %v4971 = vadd.f32 0.0, %v4970
        %v4972 = vpop.f32.mrb[0].mxu0
        %v4973 = vadd.f32 0.0, %v4972
        %4974 = vmatprep.mubr.bf16.mxu0 0
        %4975 = vmatmul.mubr.bf16.gmra.mrb[0].mxu0 %v4839
        %v4976 = vpop.f32.mrb[0].mxu0
        %v4977 = vadd.f32 0.0, %v4976
        %v4978 = vpop.f32.mrb[0].mxu0
        %v4979 = vadd.f32 0.0, %v4978
        %v4980 = vpop.f32.mrb[0].mxu0
        %v4981 = vadd.f32 0.0, %v4980
        %v4982 = vpop.f32.mrb[0].mxu0
        %v4983 = vadd.f32 0.0, %v4982
        %4984 = vmatprep.mubr.bf16.mxu0 0
        %4985 = vmatmul.mubr.bf16.gmra.mrb[0].mxu0 %v4842
        %v4986 = vpop.f32.mrb[0].mxu0
        %v4987 = vadd.f32 0.0, %v4986
        %v4988 = vpop.f32.mrb[0].mxu0
        %v4989 = vadd.f32 0.0, %v4988
        %v4990 = vpop.f32.mrb[0].mxu0
        %v4991 = vadd.f32 0.0, %v4990
        %v4992 = vpop.f32.mrb[0].mxu0
        %v4993 = vadd.f32 0.0, %v4992
        %4994 = vmatprep.mubr.bf16.mxu0 0
        %4995 = vmatmul.mubr.bf16.gmra.mrb[0].mxu0 %v4845
        %v4996 = vpop.f32.mrb[0].mxu0
        %v4997 = vadd.f32 0.0, %v4996
        %v4998 = vpop.f32.mrb[0].mxu0
        %v4999 = vadd.f32 0.0, %v4998
        %v5000 = vpop.f32.mrb[0].mxu0
        %v5001 = vadd.f32 0.0, %v5000
        %v5002 = vpop.f32.mrb[0].mxu0
        %v5003 = vadd.f32 0.0, %v5002
        %5004 = vmatprep.mubr.bf16.mxu0 0
        %5005 = vmatmul.mubr.bf16.gmra.mrb[0].mxu0 %v4848
        %v5006 = vpop.f32.mrb[0].mxu0
        %v5007 = vadd.f32 0.0, %v5006
        %v5008 = vpop.f32.mrb[0].mxu0
        %v5009 = vadd.f32 0.0, %v5008
        %v5010 = vpop.f32.mrb[0].mxu0
        %v5011 = vadd.f32 0.0, %v5010
        %v5012 = vpop.f32.mrb[0].mxu0
        %v5013 = vadd.f32 0.0, %v5012
        %5014 = vmatprep.mubr.bf16.mxu0 0
        %5015 = vmatmul.mubr.bf16.gmra.mrb[0].mxu0 %v4851
        %v5016 = vpop.f32.mrb[0].mxu0
        %v5017 = vadd.f32 0.0, %v5016
        %v5018 = vpop.f32.mrb[0].mxu0
        %v5019 = vadd.f32 0.0, %v5018
        %v5020 = vpop.f32.mrb[0].mxu0
        %v5021 = vadd.f32 0.0, %v5020
        %v5022 = vpop.f32.mrb[0].mxu0
        %v5023 = vadd.f32 0.0, %v5022
        %5024 = vmatprep.mubr.bf16.mxu0 0
        %5025 = vmatmul.mubr.bf16.gmra.mrb[0].mxu0 %v4854
        %v5026 = vpop.f32.mrb[0].mxu0
        %v5027 = vadd.f32 0.0, %v5026
        %v5028 = vpop.f32.mrb[0].mxu0
        %v5029 = vadd.f32 0.0, %v5028
        %v5030 = vpop.f32.mrb[0].mxu0
        %v5031 = vadd.f32 0.0, %v5030
        %v5032 = vpop.f32.mrb[0].mxu0
        %v5033 = vadd.f32 0.0, %v5032
        %5034 = vmatprep.mubr.bf16.mxu0 0
        %5035 = vmatmul.mubr.bf16.gmra.mrb[0].mxu0 %v4857
        %v5036 = vpop.f32.mrb[0].mxu0
        %v5037 = vadd.f32 0.0, %v5036
        %v5038 = vpop.f32.mrb[0].mxu0
        %v5039 = vadd.f32 0.0, %v5038
        %v5040 = vpop.f32.mrb[0].mxu0
        %v5041 = vadd.f32 0.0, %v5040
        %v5042 = vpop.f32.mrb[0].mxu0
        %v5043 = vadd.f32 0.0, %v5042
        %5044 = vmatprep.mubr.bf16.mxu0 0
        %5045 = vmatmul.mubr.bf16.gmra.mrb[0].mxu0 %v4860
        %v5046 = vpop.f32.mrb[0].mxu0
        %v5047 = vadd.f32 0.0, %v5046
        %v5048 = vpop.f32.mrb[0].mxu0
        %v5049 = vadd.f32 0.0, %v5048
        %v5050 = vpop.f32.mrb[0].mxu0
        %v5051 = vadd.f32 0.0, %v5050
        %v5052 = vpop.f32.mrb[0].mxu0
        %v5053 = vadd.f32 0.0, %v5052
        %5054 = vdwg.mxu0
        %v5057 = vunpack.c.l.b16 %v4788
        %v5058 = vunpack.c.h.b16 %v4788
        %v5059 = vunpack.c.l.b16 %v4789
        %v5060 = vunpack.c.h.b16 %v4789
        %v5061 = vpack.c.b16 %v5059, %v5057
        %v5062 = vpack.c.b16 %v5060, %v5058
        %v5064 = vsel %vm457, %v4207, 0
        %v5067 = vsel %vm457, %v4208, 0
        %v5070 = vsel %vm457, %v4209, 0
        %v5073 = vsel %vm457, %v4210, 0
        %v5076 = vsel %vm457, %v4211, 0
        %v5079 = vsel %vm457, %v4212, 0
        %v5082 = vsel %vm457, %v4213, 0
        %v5085 = vsel %vm457, %v4214, 0
        %v5088 = vsel %vm457, %v4215, 0
        %v5091 = vsel %vm457, %v4216, 0
        %v5094 = vsel %vm457, %v4217, 0
        %v5097 = vsel %vm457, %v4218, 0
        %v5100 = vsel %vm457, %v4219, 0
        %v5103 = vsel %vm457, %v4220, 0
        %v5106 = vsel %vm457, %v4221, 0
        %v5109 = vsel %vm457, %v4222, 0
        %v5112 = vsel %vm4584, %v5061, 0
        %v5115 = vsel %vm4584, %v5062, 0
        %5117 = vmatprep.subr.bf16.mxu0 %v5115
        %5118 = vmatpush1.bf16.msra.mxu0 %v5112
        %5119 = vmatprep.subr.bf16.mxu0 0
        %5120 = vmatpush1.bf16.msra.mxu0 0
        %5121 = vmatprep.subr.bf16.mxu0 0
        %5122 = vmatpush1.bf16.msra.mxu0 0
        %5123 = vmatprep.subr.bf16.mxu0 0
        %5124 = vmatpush1.bf16.msra.mxu0 0
        %5125 = vmatprep.subr.bf16.mxu0 0
        %5126 = vmatpush1.bf16.msra.mxu0 0
        %5127 = vmatprep.subr.bf16.mxu0 0
        %5128 = vmatpush1.bf16.msra.mxu0 0
        %5129 = vmatprep.subr.bf16.mxu0 0
        %5130 = vmatpush1.bf16.msra.mxu0 0
        %5131 = vmatprep.subr.bf16.mxu0 0
        %5132 = vmatpush1.bf16.msra.mxu0 0
        %5133 = vmatprep.subr.bf16.mxu0 0
        %5134 = vmatpush1.bf16.msra.mxu0 0
        %5135 = vmatprep.subr.bf16.mxu0 0
        %5136 = vmatpush1.bf16.msra.mxu0 0
        %5137 = vmatprep.subr.bf16.mxu0 0
        %5138 = vmatpush1.bf16.msra.mxu0 0
        %5139 = vmatprep.subr.bf16.mxu0 0
        %5140 = vmatpush1.bf16.msra.mxu0 0
        %5141 = vmatprep.subr.bf16.mxu0 0
        %5142 = vmatpush1.bf16.msra.mxu0 0
        %5143 = vmatprep.subr.bf16.mxu0 0
        %5144 = vmatpush1.bf16.msra.mxu0 0
        %5145 = vmatprep.subr.bf16.mxu0 0
        %5146 = vmatpush1.bf16.msra.mxu0 0
        %5147 = vmatprep.subr.bf16.mxu0 0
        %5148 = vmatpush1.bf16.msra.mxu0 0
        %5149 = vmatprep.mubr.bf16.mxu0 0
        %5150 = vmatmul.mubr.bf16.gmra.mrb[0].mxu0 %v5064
        %v5151 = vpop.f32.mrb[0].mxu0
        %v5152 = vadd.f32 %v4897, %v5151
        %v5153 = vpop.f32.mrb[0].mxu0
        %v5154 = vadd.f32 %v4899, %v5153
        %v5155 = vpop.f32.mrb[0].mxu0
        %v5156 = vadd.f32 %v4901, %v5155
        %v5157 = vpop.f32.mrb[0].mxu0
        %v5158 = vadd.f32 %v4903, %v5157
        %5159 = vmatprep.mubr.bf16.mxu0 0
        %5160 = vmatmul.mubr.bf16.gmra.mrb[0].mxu0 %v5067
        %v5161 = vpop.f32.mrb[0].mxu0
        %v5162 = vadd.f32 %v4907, %v5161
        %v5163 = vpop.f32.mrb[0].mxu0
        %v5164 = vadd.f32 %v4909, %v5163
        %v5165 = vpop.f32.mrb[0].mxu0
        %v5166 = vadd.f32 %v4911, %v5165
        %v5167 = vpop.f32.mrb[0].mxu0
        %v5168 = vadd.f32 %v4913, %v5167
        %5169 = vmatprep.mubr.bf16.mxu0 0
        %5170 = vmatmul.mubr.bf16.gmra.mrb[0].mxu0 %v5070
        %v5171 = vpop.f32.mrb[0].mxu0
        %v5172 = vadd.f32 %v4917, %v5171
        %v5173 = vpop.f32.mrb[0].mxu0
        %v5174 = vadd.f32 %v4919, %v5173
        %v5175 = vpop.f32.mrb[0].mxu0
        %v5176 = vadd.f32 %v4921, %v5175
        %v5177 = vpop.f32.mrb[0].mxu0
        %v5178 = vadd.f32 %v4923, %v5177
        %5179 = vmatprep.mubr.bf16.mxu0 0
        %5180 = vmatmul.mubr.bf16.gmra.mrb[0].mxu0 %v5073
        %v5181 = vpop.f32.mrb[0].mxu0
        %v5182 = vadd.f32 %v4927, %v5181
        %v5183 = vpop.f32.mrb[0].mxu0
        %v5184 = vadd.f32 %v4929, %v5183
        %v5185 = vpop.f32.mrb[0].mxu0
        %v5186 = vadd.f32 %v4931, %v5185
        %v5187 = vpop.f32.mrb[0].mxu0
        %v5188 = vadd.f32 %v4933, %v5187
        %5189 = vmatprep.mubr.bf16.mxu0 0
        %5190 = vmatmul.mubr.bf16.gmra.mrb[0].mxu0 %v5076
        %v5191 = vpop.f32.mrb[0].mxu0
        %v5192 = vadd.f32 %v4937, %v5191
        %v5193 = vpop.f32.mrb[0].mxu0
        %v5194 = vadd.f32 %v4939, %v5193
        %v5195 = vpop.f32.mrb[0].mxu0
        %v5196 = vadd.f32 %v4941, %v5195
        %v5197 = vpop.f32.mrb[0].mxu0
        %v5198 = vadd.f32 %v4943, %v5197
        %5199 = vmatprep.mubr.bf16.mxu0 0
        %5200 = vmatmul.mubr.bf16.gmra.mrb[0].mxu0 %v5079
        %v5201 = vpop.f32.mrb[0].mxu0
        %v5202 = vadd.f32 %v4947, %v5201
        %v5203 = vpop.f32.mrb[0].mxu0
        %v5204 = vadd.f32 %v4949, %v5203
        %v5205 = vpop.f32.mrb[0].mxu0
        %v5206 = vadd.f32 %v4951, %v5205
        %v5207 = vpop.f32.mrb[0].mxu0
        %v5208 = vadd.f32 %v4953, %v5207
        %5209 = vmatprep.mubr.bf16.mxu0 0
        %5210 = vmatmul.mubr.bf16.gmra.mrb[0].mxu0 %v5082
        %v5211 = vpop.f32.mrb[0].mxu0
        %v5212 = vadd.f32 %v4957, %v5211
        %v5213 = vpop.f32.mrb[0].mxu0
        %v5214 = vadd.f32 %v4959, %v5213
        %v5215 = vpop.f32.mrb[0].mxu0
        %v5216 = vadd.f32 %v4961, %v5215
        %v5217 = vpop.f32.mrb[0].mxu0
        %v5218 = vadd.f32 %v4963, %v5217
        %5219 = vmatprep.mubr.bf16.mxu0 0
        %5220 = vmatmul.mubr.bf16.gmra.mrb[0].mxu0 %v5085
        %v5221 = vpop.f32.mrb[0].mxu0
        %v5222 = vadd.f32 %v4967, %v5221
        %v5223 = vpop.f32.mrb[0].mxu0
        %v5224 = vadd.f32 %v4969, %v5223
        %v5225 = vpop.f32.mrb[0].mxu0
        %v5226 = vadd.f32 %v4971, %v5225
        %v5227 = vpop.f32.mrb[0].mxu0
        %v5228 = vadd.f32 %v4973, %v5227
        %5229 = vmatprep.mubr.bf16.mxu0 0
        %5230 = vmatmul.mubr.bf16.gmra.mrb[0].mxu0 %v5088
        %v5231 = vpop.f32.mrb[0].mxu0
        %v5232 = vadd.f32 %v4977, %v5231
        %v5233 = vpop.f32.mrb[0].mxu0
        %v5234 = vadd.f32 %v4979, %v5233
        %v5235 = vpop.f32.mrb[0].mxu0
        %v5236 = vadd.f32 %v4981, %v5235
        %v5237 = vpop.f32.mrb[0].mxu0
        %v5238 = vadd.f32 %v4983, %v5237
        %5239 = vmatprep.mubr.bf16.mxu0 0
        %5240 = vmatmul.mubr.bf16.gmra.mrb[0].mxu0 %v5091
        %v5241 = vpop.f32.mrb[0].mxu0
        %v5242 = vadd.f32 %v4987, %v5241
        %v5243 = vpop.f32.mrb[0].mxu0
        %v5244 = vadd.f32 %v4989, %v5243
        %v5245 = vpop.f32.mrb[0].mxu0
        %v5246 = vadd.f32 %v4991, %v5245
        %v5247 = vpop.f32.mrb[0].mxu0
        %v5248 = vadd.f32 %v4993, %v5247
        %5249 = vmatprep.mubr.bf16.mxu0 0
        %5250 = vmatmul.mubr.bf16.gmra.mrb[0].mxu0 %v5094
        %v5251 = vpop.f32.mrb[0].mxu0
        %v5252 = vadd.f32 %v4997, %v5251
        %v5253 = vpop.f32.mrb[0].mxu0
        %v5254 = vadd.f32 %v4999, %v5253
        %v5255 = vpop.f32.mrb[0].mxu0
        %v5256 = vadd.f32 %v5001, %v5255
        %v5257 = vpop.f32.mrb[0].mxu0
        %v5258 = vadd.f32 %v5003, %v5257
        %5259 = vmatprep.mubr.bf16.mxu0 0
        %5260 = vmatmul.mubr.bf16.gmra.mrb[0].mxu0 %v5097
        %v5261 = vpop.f32.mrb[0].mxu0
        %v5262 = vadd.f32 %v5007, %v5261
        %v5263 = vpop.f32.mrb[0].mxu0
        %v5264 = vadd.f32 %v5009, %v5263
        %v5265 = vpop.f32.mrb[0].mxu0
        %v5266 = vadd.f32 %v5011, %v5265
        %v5267 = vpop.f32.mrb[0].mxu0
        %v5268 = vadd.f32 %v5013, %v5267
        %5269 = vmatprep.mubr.bf16.mxu0 0
        %5270 = vmatmul.mubr.bf16.gmra.mrb[0].mxu0 %v5100
        %v5271 = vpop.f32.mrb[0].mxu0
        %v5272 = vadd.f32 %v5017, %v5271
        %v5273 = vpop.f32.mrb[0].mxu0
        %v5274 = vadd.f32 %v5019, %v5273
        %v5275 = vpop.f32.mrb[0].mxu0
        %v5276 = vadd.f32 %v5021, %v5275
        %v5277 = vpop.f32.mrb[0].mxu0
        %v5278 = vadd.f32 %v5023, %v5277
        %5279 = vmatprep.mubr.bf16.mxu0 0
        %5280 = vmatmul.mubr.bf16.gmra.mrb[0].mxu0 %v5103
        %v5281 = vpop.f32.mrb[0].mxu0
        %v5282 = vadd.f32 %v5027, %v5281
        %v5283 = vpop.f32.mrb[0].mxu0
        %v5284 = vadd.f32 %v5029, %v5283
        %v5285 = vpop.f32.mrb[0].mxu0
        %v5286 = vadd.f32 %v5031, %v5285
        %v5287 = vpop.f32.mrb[0].mxu0
        %v5288 = vadd.f32 %v5033, %v5287
        %5289 = vmatprep.mubr.bf16.mxu0 0
        %5290 = vmatmul.mubr.bf16.gmra.mrb[0].mxu0 %v5106
        %v5291 = vpop.f32.mrb[0].mxu0
        %v5292 = vadd.f32 %v5037, %v5291
        %v5293 = vpop.f32.mrb[0].mxu0
        %v5294 = vadd.f32 %v5039, %v5293
        %v5295 = vpop.f32.mrb[0].mxu0
        %v5296 = vadd.f32 %v5041, %v5295
        %v5297 = vpop.f32.mrb[0].mxu0
        %v5298 = vadd.f32 %v5043, %v5297
        %5299 = vmatprep.mubr.bf16.mxu0 0
        %5300 = vmatmul.mubr.bf16.gmra.mrb[0].mxu0 %v5109
        %v5301 = vpop.f32.mrb[0].mxu0
        %v5302 = vadd.f32 %v5047, %v5301
        %v5303 = vpop.f32.mrb[0].mxu0
        %v5304 = vadd.f32 %v5049, %v5303
        %v5305 = vpop.f32.mrb[0].mxu0
        %v5306 = vadd.f32 %v5051, %v5305
        %v5307 = vpop.f32.mrb[0].mxu0
        %v5308 = vadd.f32 %v5053, %v5307
        %5309 = vdwg.mxu0
        %v5310 = vmul.f32 %v4756, 0.01
        %v5311 = vmul.f32 %v4757, 0.01
        %v5312 = vmul.f32 %v4758, 0.01
        %v5313 = vmul.f32 %v4759, 0.01
        %v5314 = vmul.f32 %v4760, 0.01
        %v5315 = vmul.f32 %v4761, 0.01
        %v5316 = vmul.f32 %v4762, 0.01
        %v5317 = vmul.f32 %v4763, 0.01
        %v5318 = vmul.f32 %v4764, 0.01
        %v5319 = vmul.f32 %v4765, 0.01
        %v5320 = vmul.f32 %v4766, 0.01
        %v5321 = vmul.f32 %v4767, 0.01
        %v5322 = vmul.f32 %v4768, 0.01
        %v5323 = vmul.f32 %v4769, 0.01
        %v5324 = vmul.f32 %v4770, 0.01
        %v5325 = vmul.f32 %v4771, 0.01
        %v5326 = vmul.f32 %v4772, 0.01
        %v5327 = vmul.f32 %v4773, 0.01
        %v5328 = vmul.f32 %v4774, 0.01
        %v5329 = vmul.f32 %v4775, 0.01
        %v5330 = vmul.f32 %v4776, 0.01
        %v5331 = vmul.f32 %v4777, 0.01
        %v5332 = vmul.f32 %v4778, 0.01
        %v5333 = vmul.f32 %v4779, 0.01
        %v5334 = vmul.f32 %v4780, 0.01
        %v5335 = vmul.f32 %v4781, 0.01
        %v5336 = vmul.f32 %v4782, 0.01
        %v5337 = vmul.f32 %v4783, 0.01
        %v5338 = vmul.f32 %v4784, 0.01
        %v5339 = vmul.f32 %v4785, 0.01
        %v5340 = vmul.f32 %v4786, 0.01
        %v5341 = vmul.f32 %v4787, 0.01
        %v5342 = vmax.f32 %v4756, %v5310
        %v5343 = vmax.f32 %v4757, %v5311
        %v5344 = vmax.f32 %v4758, %v5312
        %v5345 = vmax.f32 %v4759, %v5313
        %v5346 = vmax.f32 %v4760, %v5314
        %v5347 = vmax.f32 %v4761, %v5315
        %v5348 = vmax.f32 %v4762, %v5316
        %v5349 = vmax.f32 %v4763, %v5317
        %v5350 = vmax.f32 %v4764, %v5318
        %v5351 = vmax.f32 %v4765, %v5319
        %v5352 = vmax.f32 %v4766, %v5320
        %v5353 = vmax.f32 %v4767, %v5321
        %v5354 = vmax.f32 %v4768, %v5322
        %v5355 = vmax.f32 %v4769, %v5323
        %v5356 = vmax.f32 %v4770, %v5324
        %v5357 = vmax.f32 %v4771, %v5325
        %v5358 = vmax.f32 %v4772, %v5326
        %v5359 = vmax.f32 %v4773, %v5327
        %v5360 = vmax.f32 %v4774, %v5328
        %v5361 = vmax.f32 %v4775, %v5329
        %v5362 = vmax.f32 %v4776, %v5330
        %v5363 = vmax.f32 %v4777, %v5331
        %v5364 = vmax.f32 %v4778, %v5332
        %v5365 = vmax.f32 %v4779, %v5333
        %v5366 = vmax.f32 %v4780, %v5334
        %v5367 = vmax.f32 %v4781, %v5335
        %v5368 = vmax.f32 %v4782, %v5336
        %v5369 = vmax.f32 %v4783, %v5337
        %v5370 = vmax.f32 %v4784, %v5338
        %v5371 = vmax.f32 %v4785, %v5339
        %v5372 = vmax.f32 %v4786, %v5340
        %v5373 = vmax.f32 %v4787, %v5341
        %v5374 = vpack.c.bf16 %v5343, %v5342
        %v5375 = vpack.c.bf16 %v5345, %v5344
        %v5376 = vpack.c.bf16 %v5347, %v5346
        %v5377 = vpack.c.bf16 %v5349, %v5348
        %v5378 = vpack.c.bf16 %v5351, %v5350
        %v5379 = vpack.c.bf16 %v5353, %v5352
        %v5380 = vpack.c.bf16 %v5355, %v5354
        %v5381 = vpack.c.bf16 %v5357, %v5356
        %v5382 = vpack.c.bf16 %v5359, %v5358
        %v5383 = vpack.c.bf16 %v5361, %v5360
        %v5384 = vpack.c.bf16 %v5363, %v5362
        %v5385 = vpack.c.bf16 %v5365, %v5364
        %v5386 = vpack.c.bf16 %v5367, %v5366
        %v5387 = vpack.c.bf16 %v5369, %v5368
        %v5388 = vpack.c.bf16 %v5371, %v5370
        %v5389 = vpack.c.bf16 %v5373, %v5372
        %v5390 = vld [vmem:[%s8] sm:$0xf]
        %v5391 = vld [vmem:[%s8 + $0x4] sm:$0xf]
        %v5392 = vld [vmem:[%s8 + $0x8] sm:$0xf]
        %v5393 = vld [vmem:[%s8 + $0xc] sm:$0xf]
        %v5394 = vld [vmem:[%s8 + $0x10] sm:$0xf]
        %v5395 = vld [vmem:[%s8 + $0x14] sm:$0xf]
        %v5396 = vld [vmem:[%s8 + $0x18] sm:$0xf]
        %v5397 = vld [vmem:[%s8 + $0x1c] sm:$0xf]
        %v5398 = vld [vmem:[%s8 + $0x20] sm:$0xf]
        %v5399 = vld [vmem:[%s8 + $0x24] sm:$0xf]
        %v5400 = vld [vmem:[%s8 + $0x28] sm:$0xf]
        %v5401 = vld [vmem:[%s8 + $0x2c] sm:$0xf]
        %v5402 = vld [vmem:[%s8 + $0x30] sm:$0xf]
        %v5403 = vld [vmem:[%s8 + $0x34] sm:$0xf]
        %v5404 = vld [vmem:[%s8 + $0x38] sm:$0xf]
        %v5405 = vld [vmem:[%s8 + $0x3c] sm:$0xf]
        %v5406 = vld [vmem:[%s9] sm:$0x1]
        %v5408 = vlaneseq
        %v5409 = vshrl.u32 %v5408, 7
        %v5410 = vsub.s32 0, %v5409
        %v5411 = vrot.slane %v5406, %v5410
        %v5429 = vunpack.c.l.b16 %v5390
        %v5430 = vunpack.c.l.b16 %v5391
        %v5431 = vunpack.c.l.b16 %v5392
        %v5432 = vunpack.c.l.b16 %v5393
        %v5433 = vunpack.c.l.b16 %v5394
        %v5434 = vunpack.c.l.b16 %v5395
        %v5435 = vunpack.c.l.b16 %v5396
        %v5436 = vunpack.c.l.b16 %v5397
        %v5437 = vunpack.c.l.b16 %v5398
        %v5438 = vunpack.c.l.b16 %v5399
        %v5439 = vunpack.c.l.b16 %v5400
        %v5440 = vunpack.c.l.b16 %v5401
        %v5441 = vunpack.c.l.b16 %v5402
        %v5442 = vunpack.c.l.b16 %v5403
        %v5443 = vunpack.c.l.b16 %v5404
        %v5444 = vunpack.c.l.b16 %v5405
        %v5445 = vpack.c.b16 %v5430, %v5429
        %v5446 = vpack.c.b16 %v5432, %v5431
        %v5447 = vpack.c.b16 %v5434, %v5433
        %v5448 = vpack.c.b16 %v5436, %v5435
        %v5449 = vpack.c.b16 %v5438, %v5437
        %v5450 = vpack.c.b16 %v5440, %v5439
        %v5451 = vpack.c.b16 %v5442, %v5441
        %v5452 = vpack.c.b16 %v5444, %v5443
        %5461 = vmatprep.subr.bf16.mxu0 0
        %5462 = vmatpush1.bf16.msra.mxu0 %v5445
        %5463 = vmatprep.subr.bf16.mxu0 0
        %5464 = vmatpush1.bf16.msra.mxu0 %v5446
        %5465 = vmatprep.subr.bf16.mxu0 0
        %5466 = vmatpush1.bf16.msra.mxu0 %v5447
        %5467 = vmatprep.subr.bf16.mxu0 0
        %5468 = vmatpush1.bf16.msra.mxu0 %v5448
        %5469 = vmatprep.subr.bf16.mxu0 0
        %5470 = vmatpush1.bf16.msra.mxu0 %v5449
        %5471 = vmatprep.subr.bf16.mxu0 0
        %5472 = vmatpush1.bf16.msra.mxu0 %v5450
        %5473 = vmatprep.subr.bf16.mxu0 0
        %5474 = vmatpush1.bf16.msra.mxu0 %v5451
        %5475 = vmatprep.subr.bf16.mxu0 0
        %5476 = vmatpush1.bf16.msra.mxu0 %v5452
        %5477 = vmatprep.subr.bf16.mxu0 0
        %5478 = vmatpush1.bf16.msra.mxu0 0
        %5479 = vmatprep.subr.bf16.mxu0 0
        %5480 = vmatpush1.bf16.msra.mxu0 0
        %5481 = vmatprep.subr.bf16.mxu0 0
        %5482 = vmatpush1.bf16.msra.mxu0 0
        %5483 = vmatprep.subr.bf16.mxu0 0
        %5484 = vmatpush1.bf16.msra.mxu0 0
        %5485 = vmatprep.subr.bf16.mxu0 0
        %5486 = vmatpush1.bf16.msra.mxu0 0
        %5487 = vmatprep.subr.bf16.mxu0 0
        %5488 = vmatpush1.bf16.msra.mxu0 0
        %5489 = vmatprep.subr.bf16.mxu0 0
        %5490 = vmatpush1.bf16.msra.mxu0 0
        %5491 = vmatprep.subr.bf16.mxu0 0
        %5492 = vmatpush1.bf16.msra.mxu0 0
        %5493 = vmatprep.mubr.bf16.mxu0 0
        %5494 = vmatmul.mubr.bf16.gmra.mrb[0].mxu0 %v5374
        %v5495 = vpop.f32.mrb[0].mxu0
        %v5496 = vadd.f32 %v5411, %v5495
        %v5497 = vpop.f32.mrb[0].mxu0
        %v5498 = vpop.f32.mrb[0].mxu0
        %v5499 = vadd.f32 %v5411, %v5498
        %v5500 = vpop.f32.mrb[0].mxu0
        %5501 = vmatprep.mubr.bf16.mxu0 0
        %5502 = vmatmul.mubr.bf16.gmra.mrb[0].mxu0 %v5375
        %v5503 = vpop.f32.mrb[0].mxu0
        %v5504 = vadd.f32 %v5411, %v5503
        %v5505 = vpop.f32.mrb[0].mxu0
        %v5506 = vpop.f32.mrb[0].mxu0
        %v5507 = vadd.f32 %v5411, %v5506
        %v5508 = vpop.f32.mrb[0].mxu0
        %5509 = vmatprep.mubr.bf16.mxu0 0
        %5510 = vmatmul.mubr.bf16.gmra.mrb[0].mxu0 %v5376
        %v5511 = vpop.f32.mrb[0].mxu0
        %v5512 = vadd.f32 %v5411, %v5511
        %v5513 = vpop.f32.mrb[0].mxu0
        %v5514 = vpop.f32.mrb[0].mxu0
        %v5515 = vadd.f32 %v5411, %v5514
        %v5516 = vpop.f32.mrb[0].mxu0
        %5517 = vmatprep.mubr.bf16.mxu0 0
        %5518 = vmatmul.mubr.bf16.gmra.mrb[0].mxu0 %v5377
        %v5519 = vpop.f32.mrb[0].mxu0
        %v5520 = vadd.f32 %v5411, %v5519
        %v5521 = vpop.f32.mrb[0].mxu0
        %v5522 = vpop.f32.mrb[0].mxu0
        %v5523 = vadd.f32 %v5411, %v5522
        %v5524 = vpop.f32.mrb[0].mxu0
        %5525 = vmatprep.mubr.bf16.mxu0 0
        %5526 = vmatmul.mubr.bf16.gmra.mrb[0].mxu0 %v5378
        %v5527 = vpop.f32.mrb[0].mxu0
        %v5528 = vadd.f32 %v5411, %v5527
        %v5529 = vpop.f32.mrb[0].mxu0
        %v5530 = vpop.f32.mrb[0].mxu0
        %v5531 = vadd.f32 %v5411, %v5530
        %v5532 = vpop.f32.mrb[0].mxu0
        %5533 = vmatprep.mubr.bf16.mxu0 0
        %5534 = vmatmul.mubr.bf16.gmra.mrb[0].mxu0 %v5379
        %v5535 = vpop.f32.mrb[0].mxu0
        %v5536 = vadd.f32 %v5411, %v5535
        %v5537 = vpop.f32.mrb[0].mxu0
        %v5538 = vpop.f32.mrb[0].mxu0
        %v5539 = vadd.f32 %v5411, %v5538
        %v5540 = vpop.f32.mrb[0].mxu0
        %5541 = vmatprep.mubr.bf16.mxu0 0
        %5542 = vmatmul.mubr.bf16.gmra.mrb[0].mxu0 %v5380
        %v5543 = vpop.f32.mrb[0].mxu0
        %v5544 = vadd.f32 %v5411, %v5543
        %v5545 = vpop.f32.mrb[0].mxu0
        %v5546 = vpop.f32.mrb[0].mxu0
        %v5547 = vadd.f32 %v5411, %v5546
        %v5548 = vpop.f32.mrb[0].mxu0
        %5549 = vmatprep.mubr.bf16.mxu0 0
        %5550 = vmatmul.mubr.bf16.gmra.mrb[0].mxu0 %v5381
        %v5551 = vpop.f32.mrb[0].mxu0
        %v5552 = vadd.f32 %v5411, %v5551
        %v5553 = vpop.f32.mrb[0].mxu0
        %v5554 = vpop.f32.mrb[0].mxu0
        %v5555 = vadd.f32 %v5411, %v5554
        %v5556 = vpop.f32.mrb[0].mxu0
        %5557 = vmatprep.mubr.bf16.mxu0 0
        %5558 = vmatmul.mubr.bf16.gmra.mrb[0].mxu0 %v5382
        %v5559 = vpop.f32.mrb[0].mxu0
        %v5560 = vadd.f32 %v5411, %v5559
        %v5561 = vpop.f32.mrb[0].mxu0
        %v5562 = vpop.f32.mrb[0].mxu0
        %v5563 = vadd.f32 %v5411, %v5562
        %v5564 = vpop.f32.mrb[0].mxu0
        %5565 = vmatprep.mubr.bf16.mxu0 0
        %5566 = vmatmul.mubr.bf16.gmra.mrb[0].mxu0 %v5383
        %v5567 = vpop.f32.mrb[0].mxu0
        %v5568 = vadd.f32 %v5411, %v5567
        %v5569 = vpop.f32.mrb[0].mxu0
        %v5570 = vpop.f32.mrb[0].mxu0
        %v5571 = vadd.f32 %v5411, %v5570
        %v5572 = vpop.f32.mrb[0].mxu0
        %5573 = vmatprep.mubr.bf16.mxu0 0
        %5574 = vmatmul.mubr.bf16.gmra.mrb[0].mxu0 %v5384
        %v5575 = vpop.f32.mrb[0].mxu0
        %v5576 = vadd.f32 %v5411, %v5575
        %v5577 = vpop.f32.mrb[0].mxu0
        %v5578 = vpop.f32.mrb[0].mxu0
        %v5579 = vadd.f32 %v5411, %v5578
        %v5580 = vpop.f32.mrb[0].mxu0
        %5581 = vmatprep.mubr.bf16.mxu0 0
        %5582 = vmatmul.mubr.bf16.gmra.mrb[0].mxu0 %v5385
        %v5583 = vpop.f32.mrb[0].mxu0
        %v5584 = vadd.f32 %v5411, %v5583
        %v5585 = vpop.f32.mrb[0].mxu0
        %v5586 = vpop.f32.mrb[0].mxu0
        %v5587 = vadd.f32 %v5411, %v5586
        %v5588 = vpop.f32.mrb[0].mxu0
        %5589 = vmatprep.mubr.bf16.mxu0 0
        %5590 = vmatmul.mubr.bf16.gmra.mrb[0].mxu0 %v5386
        %v5591 = vpop.f32.mrb[0].mxu0
        %v5592 = vadd.f32 %v5411, %v5591
        %v5593 = vpop.f32.mrb[0].mxu0
        %v5594 = vpop.f32.mrb[0].mxu0
        %v5595 = vadd.f32 %v5411, %v5594
        %v5596 = vpop.f32.mrb[0].mxu0
        %5597 = vmatprep.mubr.bf16.mxu0 0
        %5598 = vmatmul.mubr.bf16.gmra.mrb[0].mxu0 %v5387
        %v5599 = vpop.f32.mrb[0].mxu0
        %v5600 = vadd.f32 %v5411, %v5599
        %v5601 = vpop.f32.mrb[0].mxu0
        %v5602 = vpop.f32.mrb[0].mxu0
        %v5603 = vadd.f32 %v5411, %v5602
        %v5604 = vpop.f32.mrb[0].mxu0
        %5605 = vmatprep.mubr.bf16.mxu0 0
        %5606 = vmatmul.mubr.bf16.gmra.mrb[0].mxu0 %v5388
        %v5607 = vpop.f32.mrb[0].mxu0
        %v5608 = vadd.f32 %v5411, %v5607
        %v5609 = vpop.f32.mrb[0].mxu0
        %v5610 = vpop.f32.mrb[0].mxu0
        %v5611 = vadd.f32 %v5411, %v5610
        %v5612 = vpop.f32.mrb[0].mxu0
        %5613 = vmatprep.mubr.bf16.mxu0 0
        %5614 = vmatmul.mubr.bf16.gmra.mrb[0].mxu0 %v5389
        %v5615 = vpop.f32.mrb[0].mxu0
        %v5616 = vadd.f32 %v5411, %v5615
        %v5617 = vpop.f32.mrb[0].mxu0
        %v5618 = vpop.f32.mrb[0].mxu0
        %v5619 = vadd.f32 %v5411, %v5618
        %v5620 = vpop.f32.mrb[0].mxu0
        %5621 = vdwg.mxu0
        %v5622 = vadd.f32 %v5496, %v5152
        %v5623 = vadd.f32 %v5499, %v5156
        %v5624 = vadd.f32 %v5504, %v5162
        %v5625 = vadd.f32 %v5507, %v5166
        %v5626 = vadd.f32 %v5512, %v5172
        %v5627 = vadd.f32 %v5515, %v5176
        %v5628 = vadd.f32 %v5520, %v5182
        %v5629 = vadd.f32 %v5523, %v5186
        %v5630 = vadd.f32 %v5528, %v5192
        %v5631 = vadd.f32 %v5531, %v5196
        %v5632 = vadd.f32 %v5536, %v5202
        %v5633 = vadd.f32 %v5539, %v5206
        %v5634 = vadd.f32 %v5544, %v5212
        %v5635 = vadd.f32 %v5547, %v5216
        %v5636 = vadd.f32 %v5552, %v5222
        %v5637 = vadd.f32 %v5555, %v5226
        %v5638 = vadd.f32 %v5560, %v5232
        %v5639 = vadd.f32 %v5563, %v5236
        %v5640 = vadd.f32 %v5568, %v5242
        %v5641 = vadd.f32 %v5571, %v5246
        %v5642 = vadd.f32 %v5576, %v5252
        %v5643 = vadd.f32 %v5579, %v5256
        %v5644 = vadd.f32 %v5584, %v5262
        %v5645 = vadd.f32 %v5587, %v5266
        %v5646 = vadd.f32 %v5592, %v5272
        %v5647 = vadd.f32 %v5595, %v5276
        %v5648 = vadd.f32 %v5600, %v5282
        %v5649 = vadd.f32 %v5603, %v5286
        %v5650 = vadd.f32 %v5608, %v5292
        %v5651 = vadd.f32 %v5611, %v5296
        %v5652 = vadd.f32 %v5616, %v5302
        %v5653 = vadd.f32 %v5619, %v5306
        %v5654 = vmul.f32 %v5622, 0.01
        %v5655 = vmul.f32 %v5623, 0.01
        %v5656 = vmul.f32 %v5624, 0.01
        %v5657 = vmul.f32 %v5625, 0.01
        %v5658 = vmul.f32 %v5626, 0.01
        %v5659 = vmul.f32 %v5627, 0.01
        %v5660 = vmul.f32 %v5628, 0.01
        %v5661 = vmul.f32 %v5629, 0.01
        %v5662 = vmul.f32 %v5630, 0.01
        %v5663 = vmul.f32 %v5631, 0.01
        %v5664 = vmul.f32 %v5632, 0.01
        %v5665 = vmul.f32 %v5633, 0.01
        %v5666 = vmul.f32 %v5634, 0.01
        %v5667 = vmul.f32 %v5635, 0.01
        %v5668 = vmul.f32 %v5636, 0.01
        %v5669 = vmul.f32 %v5637, 0.01
        %v5670 = vmul.f32 %v5638, 0.01
        %v5671 = vmul.f32 %v5639, 0.01
        %v5672 = vmul.f32 %v5640, 0.01
        %v5673 = vmul.f32 %v5641, 0.01
        %v5674 = vmul.f32 %v5642, 0.01
        %v5675 = vmul.f32 %v5643, 0.01
        %v5676 = vmul.f32 %v5644, 0.01
        %v5677 = vmul.f32 %v5645, 0.01
        %v5678 = vmul.f32 %v5646, 0.01
        %v5679 = vmul.f32 %v5647, 0.01
        %v5680 = vmul.f32 %v5648, 0.01
        %v5681 = vmul.f32 %v5649, 0.01
        %v5682 = vmul.f32 %v5650, 0.01
        %v5683 = vmul.f32 %v5651, 0.01
        %v5684 = vmul.f32 %v5652, 0.01
        %v5685 = vmul.f32 %v5653, 0.01
        %v5686 = vmax.f32 %v5622, %v5654
        %v5687 = vmax.f32 %v5623, %v5655
        %v5688 = vmax.f32 %v5624, %v5656
        %v5689 = vmax.f32 %v5625, %v5657
        %v5690 = vmax.f32 %v5626, %v5658
        %v5691 = vmax.f32 %v5627, %v5659
        %v5692 = vmax.f32 %v5628, %v5660
        %v5693 = vmax.f32 %v5629, %v5661
        %v5694 = vmax.f32 %v5630, %v5662
        %v5695 = vmax.f32 %v5631, %v5663
        %v5696 = vmax.f32 %v5632, %v5664
        %v5697 = vmax.f32 %v5633, %v5665
        %v5698 = vmax.f32 %v5634, %v5666
        %v5699 = vmax.f32 %v5635, %v5667
        %v5700 = vmax.f32 %v5636, %v5668
        %v5701 = vmax.f32 %v5637, %v5669
        %v5702 = vmax.f32 %v5638, %v5670
        %v5703 = vmax.f32 %v5639, %v5671
        %v5704 = vmax.f32 %v5640, %v5672
        %v5705 = vmax.f32 %v5641, %v5673
        %v5706 = vmax.f32 %v5642, %v5674
        %v5707 = vmax.f32 %v5643, %v5675
        %v5708 = vmax.f32 %v5644, %v5676
        %v5709 = vmax.f32 %v5645, %v5677
        %v5710 = vmax.f32 %v5646, %v5678
        %v5711 = vmax.f32 %v5647, %v5679
        %v5712 = vmax.f32 %v5648, %v5680
        %v5713 = vmax.f32 %v5649, %v5681
        %v5714 = vmax.f32 %v5650, %v5682
        %v5715 = vmax.f32 %v5651, %v5683
        %v5716 = vmax.f32 %v5652, %v5684
        %v5717 = vmax.f32 %v5653, %v5685
        %v5718 = vpack.c.bf16 %v5687, %v5686
        %v5719 = vpack.c.bf16 %v5689, %v5688
        %v5720 = vpack.c.bf16 %v5691, %v5690
        %v5721 = vpack.c.bf16 %v5693, %v5692
        %v5722 = vpack.c.bf16 %v5695, %v5694
        %v5723 = vpack.c.bf16 %v5697, %v5696
        %v5724 = vpack.c.bf16 %v5699, %v5698
        %v5725 = vpack.c.bf16 %v5701, %v5700
        %v5726 = vpack.c.bf16 %v5703, %v5702
        %v5727 = vpack.c.bf16 %v5705, %v5704
        %v5728 = vpack.c.bf16 %v5707, %v5706
        %v5729 = vpack.c.bf16 %v5709, %v5708
        %v5730 = vpack.c.bf16 %v5711, %v5710
        %v5731 = vpack.c.bf16 %v5713, %v5712
        %v5732 = vpack.c.bf16 %v5715, %v5714
        %v5733 = vpack.c.bf16 %v5717, %v5716
        %s5734 = scalar_lea.vmem %s8, 64
        %v5735 = vld [vmem:[%s5734] sm:$0xf]
        %v5736 = vld [vmem:[%s5734 + $0x4] sm:$0xf]
        %v5737 = vld [vmem:[%s5734 + $0x8] sm:$0xf]
        %v5738 = vld [vmem:[%s5734 + $0xc] sm:$0xf]
        %v5739 = vld [vmem:[%s5734 + $0x10] sm:$0xf]
        %v5740 = vld [vmem:[%s5734 + $0x14] sm:$0xf]
        %v5741 = vld [vmem:[%s5734 + $0x18] sm:$0xf]
        %v5742 = vld [vmem:[%s5734 + $0x1c] sm:$0xf]
        %v5743 = vld [vmem:[%s5734 + $0x20] sm:$0xf]
        %v5744 = vld [vmem:[%s5734 + $0x24] sm:$0xf]
        %v5745 = vld [vmem:[%s5734 + $0x28] sm:$0xf]
        %v5746 = vld [vmem:[%s5734 + $0x2c] sm:$0xf]
        %v5747 = vld [vmem:[%s5734 + $0x30] sm:$0xf]
        %v5748 = vld [vmem:[%s5734 + $0x34] sm:$0xf]
        %v5749 = vld [vmem:[%s5734 + $0x38] sm:$0xf]
        %v5750 = vld [vmem:[%s5734 + $0x3c] sm:$0xf]
        %s5751 = scalar_lea.vmem %s9, 1
        %v5752 = vld [vmem:[%s5751] sm:$0x1]
        %v5754 = vlaneseq
        %v5755 = vshrl.u32 %v5754, 7
        %v5756 = vsub.s32 0, %v5755
        %v5757 = vrot.slane %v5752, %v5756
        %v5775 = vunpack.c.l.b16 %v5735
        %v5776 = vunpack.c.l.b16 %v5736
        %v5777 = vunpack.c.l.b16 %v5737
        %v5778 = vunpack.c.l.b16 %v5738
        %v5779 = vunpack.c.l.b16 %v5739
        %v5780 = vunpack.c.l.b16 %v5740
        %v5781 = vunpack.c.l.b16 %v5741
        %v5782 = vunpack.c.l.b16 %v5742
        %v5783 = vunpack.c.l.b16 %v5743
        %v5784 = vunpack.c.l.b16 %v5744
        %v5785 = vunpack.c.l.b16 %v5745
        %v5786 = vunpack.c.l.b16 %v5746
        %v5787 = vunpack.c.l.b16 %v5747
        %v5788 = vunpack.c.l.b16 %v5748
        %v5789 = vunpack.c.l.b16 %v5749
        %v5790 = vunpack.c.l.b16 %v5750
        %v5791 = vpack.c.b16 %v5776, %v5775
        %v5792 = vpack.c.b16 %v5778, %v5777
        %v5793 = vpack.c.b16 %v5780, %v5779
        %v5794 = vpack.c.b16 %v5782, %v5781
        %v5795 = vpack.c.b16 %v5784, %v5783
        %v5796 = vpack.c.b16 %v5786, %v5785
        %v5797 = vpack.c.b16 %v5788, %v5787
        %v5798 = vpack.c.b16 %v5790, %v5789
        %5807 = vmatprep.subr.bf16.mxu0 0
        %5808 = vmatpush1.bf16.msra.mxu0 %v5791
        %5809 = vmatprep.subr.bf16.mxu0 0
        %5810 = vmatpush1.bf16.msra.mxu0 %v5792
        %5811 = vmatprep.subr.bf16.mxu0 0
        %5812 = vmatpush1.bf16.msra.mxu0 %v5793
        %5813 = vmatprep.subr.bf16.mxu0 0
        %5814 = vmatpush1.bf16.msra.mxu0 %v5794
        %5815 = vmatprep.subr.bf16.mxu0 0
        %5816 = vmatpush1.bf16.msra.mxu0 %v5795
        %5817 = vmatprep.subr.bf16.mxu0 0
        %5818 = vmatpush1.bf16.msra.mxu0 %v5796
        %5819 = vmatprep.subr.bf16.mxu0 0
        %5820 = vmatpush1.bf16.msra.mxu0 %v5797
        %5821 = vmatprep.subr.bf16.mxu0 0
        %5822 = vmatpush1.bf16.msra.mxu0 %v5798
        %5823 = vmatprep.subr.bf16.mxu0 0
        %5824 = vmatpush1.bf16.msra.mxu0 0
        %5825 = vmatprep.subr.bf16.mxu0 0
        %5826 = vmatpush1.bf16.msra.mxu0 0
        %5827 = vmatprep.subr.bf16.mxu0 0
        %5828 = vmatpush1.bf16.msra.mxu0 0
        %5829 = vmatprep.subr.bf16.mxu0 0
        %5830 = vmatpush1.bf16.msra.mxu0 0
        %5831 = vmatprep.subr.bf16.mxu0 0
        %5832 = vmatpush1.bf16.msra.mxu0 0
        %5833 = vmatprep.subr.bf16.mxu0 0
        %5834 = vmatpush1.bf16.msra.mxu0 0
        %5835 = vmatprep.subr.bf16.mxu0 0
        %5836 = vmatpush1.bf16.msra.mxu0 0
        %5837 = vmatprep.subr.bf16.mxu0 0
        %5838 = vmatpush1.bf16.msra.mxu0 0
        %5839 = vmatprep.mubr.bf16.mxu0 0
        %5840 = vmatmul.mubr.bf16.gmra.mrb[0].mxu0 %v5718
        %v5841 = vpop.f32.mrb[0].mxu0
        %v5842 = vadd.f32 %v5757, %v5841
        %v5843 = vpop.f32.mrb[0].mxu0
        %v5844 = vpop.f32.mrb[0].mxu0
        %v5845 = vadd.f32 %v5757, %v5844
        %v5846 = vpop.f32.mrb[0].mxu0
        %5847 = vmatprep.mubr.bf16.mxu0 0
        %5848 = vmatmul.mubr.bf16.gmra.mrb[0].mxu0 %v5719
        %v5849 = vpop.f32.mrb[0].mxu0
        %v5850 = vadd.f32 %v5757, %v5849
        %v5851 = vpop.f32.mrb[0].mxu0
        %v5852 = vpop.f32.mrb[0].mxu0
        %v5853 = vadd.f32 %v5757, %v5852
        %v5854 = vpop.f32.mrb[0].mxu0
        %5855 = vmatprep.mubr.bf16.mxu0 0
        %5856 = vmatmul.mubr.bf16.gmra.mrb[0].mxu0 %v5720
        %v5857 = vpop.f32.mrb[0].mxu0
        %v5858 = vadd.f32 %v5757, %v5857
        %v5859 = vpop.f32.mrb[0].mxu0
        %v5860 = vpop.f32.mrb[0].mxu0
        %v5861 = vadd.f32 %v5757, %v5860
        %v5862 = vpop.f32.mrb[0].mxu0
        %5863 = vmatprep.mubr.bf16.mxu0 0
        %5864 = vmatmul.mubr.bf16.gmra.mrb[0].mxu0 %v5721
        %v5865 = vpop.f32.mrb[0].mxu0
        %v5866 = vadd.f32 %v5757, %v5865
        %v5867 = vpop.f32.mrb[0].mxu0
        %v5868 = vpop.f32.mrb[0].mxu0
        %v5869 = vadd.f32 %v5757, %v5868
        %v5870 = vpop.f32.mrb[0].mxu0
        %5871 = vmatprep.mubr.bf16.mxu0 0
        %5872 = vmatmul.mubr.bf16.gmra.mrb[0].mxu0 %v5722
        %v5873 = vpop.f32.mrb[0].mxu0
        %v5874 = vadd.f32 %v5757, %v5873
        %v5875 = vpop.f32.mrb[0].mxu0
        %v5876 = vpop.f32.mrb[0].mxu0
        %v5877 = vadd.f32 %v5757, %v5876
        %v5878 = vpop.f32.mrb[0].mxu0
        %5879 = vmatprep.mubr.bf16.mxu0 0
        %5880 = vmatmul.mubr.bf16.gmra.mrb[0].mxu0 %v5723
        %v5881 = vpop.f32.mrb[0].mxu0
        %v5882 = vadd.f32 %v5757, %v5881
        %v5883 = vpop.f32.mrb[0].mxu0
        %v5884 = vpop.f32.mrb[0].mxu0
        %v5885 = vadd.f32 %v5757, %v5884
        %v5886 = vpop.f32.mrb[0].mxu0
        %5887 = vmatprep.mubr.bf16.mxu0 0
        %5888 = vmatmul.mubr.bf16.gmra.mrb[0].mxu0 %v5724
        %v5889 = vpop.f32.mrb[0].mxu0
        %v5890 = vadd.f32 %v5757, %v5889
        %v5891 = vpop.f32.mrb[0].mxu0
        %v5892 = vpop.f32.mrb[0].mxu0
        %v5893 = vadd.f32 %v5757, %v5892
        %v5894 = vpop.f32.mrb[0].mxu0
        %5895 = vmatprep.mubr.bf16.mxu0 0
        %5896 = vmatmul.mubr.bf16.gmra.mrb[0].mxu0 %v5725
        %v5897 = vpop.f32.mrb[0].mxu0
        %v5898 = vadd.f32 %v5757, %v5897
        %v5899 = vpop.f32.mrb[0].mxu0
        %v5900 = vpop.f32.mrb[0].mxu0
        %v5901 = vadd.f32 %v5757, %v5900
        %v5902 = vpop.f32.mrb[0].mxu0
        %5903 = vmatprep.mubr.bf16.mxu0 0
        %5904 = vmatmul.mubr.bf16.gmra.mrb[0].mxu0 %v5726
        %v5905 = vpop.f32.mrb[0].mxu0
        %v5906 = vadd.f32 %v5757, %v5905
        %v5907 = vpop.f32.mrb[0].mxu0
        %v5908 = vpop.f32.mrb[0].mxu0
        %v5909 = vadd.f32 %v5757, %v5908
        %v5910 = vpop.f32.mrb[0].mxu0
        %5911 = vmatprep.mubr.bf16.mxu0 0
        %5912 = vmatmul.mubr.bf16.gmra.mrb[0].mxu0 %v5727
        %v5913 = vpop.f32.mrb[0].mxu0
        %v5914 = vadd.f32 %v5757, %v5913
        %v5915 = vpop.f32.mrb[0].mxu0
        %v5916 = vpop.f32.mrb[0].mxu0
        %v5917 = vadd.f32 %v5757, %v5916
        %v5918 = vpop.f32.mrb[0].mxu0
        %5919 = vmatprep.mubr.bf16.mxu0 0
        %5920 = vmatmul.mubr.bf16.gmra.mrb[0].mxu0 %v5728
        %v5921 = vpop.f32.mrb[0].mxu0
        %v5922 = vadd.f32 %v5757, %v5921
        %v5923 = vpop.f32.mrb[0].mxu0
        %v5924 = vpop.f32.mrb[0].mxu0
        %v5925 = vadd.f32 %v5757, %v5924
        %v5926 = vpop.f32.mrb[0].mxu0
        %5927 = vmatprep.mubr.bf16.mxu0 0
        %5928 = vmatmul.mubr.bf16.gmra.mrb[0].mxu0 %v5729
        %v5929 = vpop.f32.mrb[0].mxu0
        %v5930 = vadd.f32 %v5757, %v5929
        %v5931 = vpop.f32.mrb[0].mxu0
        %v5932 = vpop.f32.mrb[0].mxu0
        %v5933 = vadd.f32 %v5757, %v5932
        %v5934 = vpop.f32.mrb[0].mxu0
        %5935 = vmatprep.mubr.bf16.mxu0 0
        %5936 = vmatmul.mubr.bf16.gmra.mrb[0].mxu0 %v5730
        %v5937 = vpop.f32.mrb[0].mxu0
        %v5938 = vadd.f32 %v5757, %v5937
        %v5939 = vpop.f32.mrb[0].mxu0
        %v5940 = vpop.f32.mrb[0].mxu0
        %v5941 = vadd.f32 %v5757, %v5940
        %v5942 = vpop.f32.mrb[0].mxu0
        %5943 = vmatprep.mubr.bf16.mxu0 0
        %5944 = vmatmul.mubr.bf16.gmra.mrb[0].mxu0 %v5731
        %v5945 = vpop.f32.mrb[0].mxu0
        %v5946 = vadd.f32 %v5757, %v5945
        %v5947 = vpop.f32.mrb[0].mxu0
        %v5948 = vpop.f32.mrb[0].mxu0
        %v5949 = vadd.f32 %v5757, %v5948
        %v5950 = vpop.f32.mrb[0].mxu0
        %5951 = vmatprep.mubr.bf16.mxu0 0
        %5952 = vmatmul.mubr.bf16.gmra.mrb[0].mxu0 %v5732
        %v5953 = vpop.f32.mrb[0].mxu0
        %v5954 = vadd.f32 %v5757, %v5953
        %v5955 = vpop.f32.mrb[0].mxu0
        %v5956 = vpop.f32.mrb[0].mxu0
        %v5957 = vadd.f32 %v5757, %v5956
        %v5958 = vpop.f32.mrb[0].mxu0
        %5959 = vmatprep.mubr.bf16.mxu0 0
        %5960 = vmatmul.mubr.bf16.gmra.mrb[0].mxu0 %v5733
        %v5961 = vpop.f32.mrb[0].mxu0
        %v5962 = vadd.f32 %v5757, %v5961
        %v5963 = vpop.f32.mrb[0].mxu0
        %v5964 = vpop.f32.mrb[0].mxu0
        %v5965 = vadd.f32 %v5757, %v5964
        %v5966 = vpop.f32.mrb[0].mxu0
        %5967 = vdwg.mxu0
        %v5968 = vmul.f32 %v5842, 0.01
        %v5969 = vmul.f32 %v5845, 0.01
        %v5970 = vmul.f32 %v5850, 0.01
        %v5971 = vmul.f32 %v5853, 0.01
        %v5972 = vmul.f32 %v5858, 0.01
        %v5973 = vmul.f32 %v5861, 0.01
        %v5974 = vmul.f32 %v5866, 0.01
        %v5975 = vmul.f32 %v5869, 0.01
        %v5976 = vmul.f32 %v5874, 0.01
        %v5977 = vmul.f32 %v5877, 0.01
        %v5978 = vmul.f32 %v5882, 0.01
        %v5979 = vmul.f32 %v5885, 0.01
        %v5980 = vmul.f32 %v5890, 0.01
        %v5981 = vmul.f32 %v5893, 0.01
        %v5982 = vmul.f32 %v5898, 0.01
        %v5983 = vmul.f32 %v5901, 0.01
        %v5984 = vmul.f32 %v5906, 0.01
        %v5985 = vmul.f32 %v5909, 0.01
        %v5986 = vmul.f32 %v5914, 0.01
        %v5987 = vmul.f32 %v5917, 0.01
        %v5988 = vmul.f32 %v5922, 0.01
        %v5989 = vmul.f32 %v5925, 0.01
        %v5990 = vmul.f32 %v5930, 0.01
        %v5991 = vmul.f32 %v5933, 0.01
        %v5992 = vmul.f32 %v5938, 0.01
        %v5993 = vmul.f32 %v5941, 0.01
        %v5994 = vmul.f32 %v5946, 0.01
        %v5995 = vmul.f32 %v5949, 0.01
        %v5996 = vmul.f32 %v5954, 0.01
        %v5997 = vmul.f32 %v5957, 0.01
        %v5998 = vmul.f32 %v5962, 0.01
        %v5999 = vmul.f32 %v5965, 0.01
        %v6000 = vmax.f32 %v5842, %v5968
        %v6001 = vmax.f32 %v5845, %v5969
        %v6002 = vmax.f32 %v5850, %v5970
        %v6003 = vmax.f32 %v5853, %v5971
        %v6004 = vmax.f32 %v5858, %v5972
        %v6005 = vmax.f32 %v5861, %v5973
        %v6006 = vmax.f32 %v5866, %v5974
        %v6007 = vmax.f32 %v5869, %v5975
        %v6008 = vmax.f32 %v5874, %v5976
        %v6009 = vmax.f32 %v5877, %v5977
        %v6010 = vmax.f32 %v5882, %v5978
        %v6011 = vmax.f32 %v5885, %v5979
        %v6012 = vmax.f32 %v5890, %v5980
        %v6013 = vmax.f32 %v5893, %v5981
        %v6014 = vmax.f32 %v5898, %v5982
        %v6015 = vmax.f32 %v5901, %v5983
        %v6016 = vmax.f32 %v5906, %v5984
        %v6017 = vmax.f32 %v5909, %v5985
        %v6018 = vmax.f32 %v5914, %v5986
        %v6019 = vmax.f32 %v5917, %v5987
        %v6020 = vmax.f32 %v5922, %v5988
        %v6021 = vmax.f32 %v5925, %v5989
        %v6022 = vmax.f32 %v5930, %v5990
        %v6023 = vmax.f32 %v5933, %v5991
        %v6024 = vmax.f32 %v5938, %v5992
        %v6025 = vmax.f32 %v5941, %v5993
        %v6026 = vmax.f32 %v5946, %v5994
        %v6027 = vmax.f32 %v5949, %v5995
        %v6028 = vmax.f32 %v5954, %v5996
        %v6029 = vmax.f32 %v5957, %v5997
        %v6030 = vmax.f32 %v5962, %v5998
        %v6031 = vmax.f32 %v5965, %v5999
        %v6032 = vpack.c.bf16 %v6001, %v6000
        %v6033 = vpack.c.bf16 %v6003, %v6002
        %v6034 = vpack.c.bf16 %v6005, %v6004
        %v6035 = vpack.c.bf16 %v6007, %v6006
        %v6036 = vpack.c.bf16 %v6009, %v6008
        %v6037 = vpack.c.bf16 %v6011, %v6010
        %v6038 = vpack.c.bf16 %v6013, %v6012
        %v6039 = vpack.c.bf16 %v6015, %v6014
        %v6040 = vpack.c.bf16 %v6017, %v6016
        %v6041 = vpack.c.bf16 %v6019, %v6018
        %v6042 = vpack.c.bf16 %v6021, %v6020
        %v6043 = vpack.c.bf16 %v6023, %v6022
        %v6044 = vpack.c.bf16 %v6025, %v6024
        %v6045 = vpack.c.bf16 %v6027, %v6026
        %v6046 = vpack.c.bf16 %v6029, %v6028
        %v6047 = vpack.c.bf16 %v6031, %v6030
        %s6048 = scalar_lea.vmem %s8, 128
        %v6049 = vld [vmem:[%s6048] sm:$0xf]
        %v6050 = vld [vmem:[%s6048 + $0x4] sm:$0xf]
        %v6051 = vld [vmem:[%s6048 + $0x8] sm:$0xf]
        %v6052 = vld [vmem:[%s6048 + $0xc] sm:$0xf]
        %v6053 = vld [vmem:[%s6048 + $0x10] sm:$0xf]
        %v6054 = vld [vmem:[%s6048 + $0x14] sm:$0xf]
        %v6055 = vld [vmem:[%s6048 + $0x18] sm:$0xf]
        %v6056 = vld [vmem:[%s6048 + $0x1c] sm:$0xf]
        %v6057 = vld [vmem:[%s6048 + $0x20] sm:$0xf]
        %v6058 = vld [vmem:[%s6048 + $0x24] sm:$0xf]
        %v6059 = vld [vmem:[%s6048 + $0x28] sm:$0xf]
        %v6060 = vld [vmem:[%s6048 + $0x2c] sm:$0xf]
        %v6061 = vld [vmem:[%s6048 + $0x30] sm:$0xf]
        %v6062 = vld [vmem:[%s6048 + $0x34] sm:$0xf]
        %v6063 = vld [vmem:[%s6048 + $0x38] sm:$0xf]
        %v6064 = vld [vmem:[%s6048 + $0x3c] sm:$0xf]
        %s6065 = scalar_lea.vmem %s9, 2
        %v6066 = vld [vmem:[%s6065] sm:$0x1]
        %v6068 = vlaneseq
        %v6069 = vshrl.u32 %v6068, 7
        %v6070 = vsub.s32 0, %v6069
        %v6071 = vrot.slane %v6066, %v6070
        %v6089 = vunpack.c.l.b16 %v6049
        %v6090 = vunpack.c.l.b16 %v6050
        %v6091 = vunpack.c.l.b16 %v6051
        %v6092 = vunpack.c.l.b16 %v6052
        %v6093 = vunpack.c.l.b16 %v6053
        %v6094 = vunpack.c.l.b16 %v6054
        %v6095 = vunpack.c.l.b16 %v6055
        %v6096 = vunpack.c.l.b16 %v6056
        %v6097 = vunpack.c.l.b16 %v6057
        %v6098 = vunpack.c.l.b16 %v6058
        %v6099 = vunpack.c.l.b16 %v6059
        %v6100 = vunpack.c.l.b16 %v6060
        %v6101 = vunpack.c.l.b16 %v6061
        %v6102 = vunpack.c.l.b16 %v6062
        %v6103 = vunpack.c.l.b16 %v6063
        %v6104 = vunpack.c.l.b16 %v6064
        %v6105 = vpack.c.b16 %v6090, %v6089
        %v6106 = vpack.c.b16 %v6092, %v6091
        %v6107 = vpack.c.b16 %v6094, %v6093
        %v6108 = vpack.c.b16 %v6096, %v6095
        %v6109 = vpack.c.b16 %v6098, %v6097
        %v6110 = vpack.c.b16 %v6100, %v6099
        %v6111 = vpack.c.b16 %v6102, %v6101
        %v6112 = vpack.c.b16 %v6104, %v6103
        %6121 = vmatprep.subr.bf16.mxu0 0
        %6122 = vmatpush1.bf16.msra.mxu0 %v6105
        %6123 = vmatprep.subr.bf16.mxu0 0
        %6124 = vmatpush1.bf16.msra.mxu0 %v6106
        %6125 = vmatprep.subr.bf16.mxu0 0
        %6126 = vmatpush1.bf16.msra.mxu0 %v6107
        %6127 = vmatprep.subr.bf16.mxu0 0
        %6128 = vmatpush1.bf16.msra.mxu0 %v6108
        %6129 = vmatprep.subr.bf16.mxu0 0
        %6130 = vmatpush1.bf16.msra.mxu0 %v6109
        %6131 = vmatprep.subr.bf16.mxu0 0
        %6132 = vmatpush1.bf16.msra.mxu0 %v6110
        %6133 = vmatprep.subr.bf16.mxu0 0
        %6134 = vmatpush1.bf16.msra.mxu0 %v6111
        %6135 = vmatprep.subr.bf16.mxu0 0
        %6136 = vmatpush1.bf16.msra.mxu0 %v6112
        %6137 = vmatprep.subr.bf16.mxu0 0
        %6138 = vmatpush1.bf16.msra.mxu0 0
        %6139 = vmatprep.subr.bf16.mxu0 0
        %6140 = vmatpush1.bf16.msra.mxu0 0
        %6141 = vmatprep.subr.bf16.mxu0 0
        %6142 = vmatpush1.bf16.msra.mxu0 0
        %6143 = vmatprep.subr.bf16.mxu0 0
        %6144 = vmatpush1.bf16.msra.mxu0 0
        %6145 = vmatprep.subr.bf16.mxu0 0
        %6146 = vmatpush1.bf16.msra.mxu0 0
        %6147 = vmatprep.subr.bf16.mxu0 0
        %6148 = vmatpush1.bf16.msra.mxu0 0
        %6149 = vmatprep.subr.bf16.mxu0 0
        %6150 = vmatpush1.bf16.msra.mxu0 0
        %6151 = vmatprep.subr.bf16.mxu0 0
        %6152 = vmatpush1.bf16.msra.mxu0 0
        %6153 = vmatprep.mubr.bf16.mxu0 0
        %6154 = vmatmul.mubr.bf16.gmra.mrb[0].mxu0 %v6032
        %v6155 = vpop.f32.mrb[0].mxu0
        %v6156 = vadd.f32 %v6071, %v6155
        %v6157 = vpop.f32.mrb[0].mxu0
        %v6158 = vpop.f32.mrb[0].mxu0
        %v6159 = vadd.f32 %v6071, %v6158
        %v6160 = vpop.f32.mrb[0].mxu0
        %6161 = vmatprep.mubr.bf16.mxu0 0
        %6162 = vmatmul.mubr.bf16.gmra.mrb[0].mxu0 %v6033
        %v6163 = vpop.f32.mrb[0].mxu0
        %v6164 = vadd.f32 %v6071, %v6163
        %v6165 = vpop.f32.mrb[0].mxu0
        %v6166 = vpop.f32.mrb[0].mxu0
        %v6167 = vadd.f32 %v6071, %v6166
        %v6168 = vpop.f32.mrb[0].mxu0
        %6169 = vmatprep.mubr.bf16.mxu0 0
        %6170 = vmatmul.mubr.bf16.gmra.mrb[0].mxu0 %v6034
        %v6171 = vpop.f32.mrb[0].mxu0
        %v6172 = vadd.f32 %v6071, %v6171
        %v6173 = vpop.f32.mrb[0].mxu0
        %v6174 = vpop.f32.mrb[0].mxu0
        %v6175 = vadd.f32 %v6071, %v6174
        %v6176 = vpop.f32.mrb[0].mxu0
        %6177 = vmatprep.mubr.bf16.mxu0 0
        %6178 = vmatmul.mubr.bf16.gmra.mrb[0].mxu0 %v6035
        %v6179 = vpop.f32.mrb[0].mxu0
        %v6180 = vadd.f32 %v6071, %v6179
        %v6181 = vpop.f32.mrb[0].mxu0
        %v6182 = vpop.f32.mrb[0].mxu0
        %v6183 = vadd.f32 %v6071, %v6182
        %v6184 = vpop.f32.mrb[0].mxu0
        %6185 = vmatprep.mubr.bf16.mxu0 0
        %6186 = vmatmul.mubr.bf16.gmra.mrb[0].mxu0 %v6036
        %v6187 = vpop.f32.mrb[0].mxu0
        %v6188 = vadd.f32 %v6071, %v6187
        %v6189 = vpop.f32.mrb[0].mxu0
        %v6190 = vpop.f32.mrb[0].mxu0
        %v6191 = vadd.f32 %v6071, %v6190
        %v6192 = vpop.f32.mrb[0].mxu0
        %6193 = vmatprep.mubr.bf16.mxu0 0
        %6194 = vmatmul.mubr.bf16.gmra.mrb[0].mxu0 %v6037
        %v6195 = vpop.f32.mrb[0].mxu0
        %v6196 = vadd.f32 %v6071, %v6195
        %v6197 = vpop.f32.mrb[0].mxu0
        %v6198 = vpop.f32.mrb[0].mxu0
        %v6199 = vadd.f32 %v6071, %v6198
        %v6200 = vpop.f32.mrb[0].mxu0
        %6201 = vmatprep.mubr.bf16.mxu0 0
        %6202 = vmatmul.mubr.bf16.gmra.mrb[0].mxu0 %v6038
        %v6203 = vpop.f32.mrb[0].mxu0
        %v6204 = vadd.f32 %v6071, %v6203
        %v6205 = vpop.f32.mrb[0].mxu0
        %v6206 = vpop.f32.mrb[0].mxu0
        %v6207 = vadd.f32 %v6071, %v6206
        %v6208 = vpop.f32.mrb[0].mxu0
        %6209 = vmatprep.mubr.bf16.mxu0 0
        %6210 = vmatmul.mubr.bf16.gmra.mrb[0].mxu0 %v6039
        %v6211 = vpop.f32.mrb[0].mxu0
        %v6212 = vadd.f32 %v6071, %v6211
        %v6213 = vpop.f32.mrb[0].mxu0
        %v6214 = vpop.f32.mrb[0].mxu0
        %v6215 = vadd.f32 %v6071, %v6214
        %v6216 = vpop.f32.mrb[0].mxu0
        %6217 = vmatprep.mubr.bf16.mxu0 0
        %6218 = vmatmul.mubr.bf16.gmra.mrb[0].mxu0 %v6040
        %v6219 = vpop.f32.mrb[0].mxu0
        %v6220 = vadd.f32 %v6071, %v6219
        %v6221 = vpop.f32.mrb[0].mxu0
        %v6222 = vpop.f32.mrb[0].mxu0
        %v6223 = vadd.f32 %v6071, %v6222
        %v6224 = vpop.f32.mrb[0].mxu0
        %6225 = vmatprep.mubr.bf16.mxu0 0
        %6226 = vmatmul.mubr.bf16.gmra.mrb[0].mxu0 %v6041
        %v6227 = vpop.f32.mrb[0].mxu0
        %v6228 = vadd.f32 %v6071, %v6227
        %v6229 = vpop.f32.mrb[0].mxu0
        %v6230 = vpop.f32.mrb[0].mxu0
        %v6231 = vadd.f32 %v6071, %v6230
        %v6232 = vpop.f32.mrb[0].mxu0
        %6233 = vmatprep.mubr.bf16.mxu0 0
        %6234 = vmatmul.mubr.bf16.gmra.mrb[0].mxu0 %v6042
        %v6235 = vpop.f32.mrb[0].mxu0
        %v6236 = vadd.f32 %v6071, %v6235
        %v6237 = vpop.f32.mrb[0].mxu0
        %v6238 = vpop.f32.mrb[0].mxu0
        %v6239 = vadd.f32 %v6071, %v6238
        %v6240 = vpop.f32.mrb[0].mxu0
        %6241 = vmatprep.mubr.bf16.mxu0 0
        %6242 = vmatmul.mubr.bf16.gmra.mrb[0].mxu0 %v6043
        %v6243 = vpop.f32.mrb[0].mxu0
        %v6244 = vadd.f32 %v6071, %v6243
        %v6245 = vpop.f32.mrb[0].mxu0
        %v6246 = vpop.f32.mrb[0].mxu0
        %v6247 = vadd.f32 %v6071, %v6246
        %v6248 = vpop.f32.mrb[0].mxu0
        %6249 = vmatprep.mubr.bf16.mxu0 0
        %6250 = vmatmul.mubr.bf16.gmra.mrb[0].mxu0 %v6044
        %v6251 = vpop.f32.mrb[0].mxu0
        %v6252 = vadd.f32 %v6071, %v6251
        %v6253 = vpop.f32.mrb[0].mxu0
        %v6254 = vpop.f32.mrb[0].mxu0
        %v6255 = vadd.f32 %v6071, %v6254
        %v6256 = vpop.f32.mrb[0].mxu0
        %6257 = vmatprep.mubr.bf16.mxu0 0
        %6258 = vmatmul.mubr.bf16.gmra.mrb[0].mxu0 %v6045
        %v6259 = vpop.f32.mrb[0].mxu0
        %v6260 = vadd.f32 %v6071, %v6259
        %v6261 = vpop.f32.mrb[0].mxu0
        %v6262 = vpop.f32.mrb[0].mxu0
        %v6263 = vadd.f32 %v6071, %v6262
        %v6264 = vpop.f32.mrb[0].mxu0
        %6265 = vmatprep.mubr.bf16.mxu0 0
        %6266 = vmatmul.mubr.bf16.gmra.mrb[0].mxu0 %v6046
        %v6267 = vpop.f32.mrb[0].mxu0
        %v6268 = vadd.f32 %v6071, %v6267
        %v6269 = vpop.f32.mrb[0].mxu0
        %v6270 = vpop.f32.mrb[0].mxu0
        %v6271 = vadd.f32 %v6071, %v6270
        %v6272 = vpop.f32.mrb[0].mxu0
        %6273 = vmatprep.mubr.bf16.mxu0 0
        %6274 = vmatmul.mubr.bf16.gmra.mrb[0].mxu0 %v6047
        %v6275 = vpop.f32.mrb[0].mxu0
        %v6276 = vadd.f32 %v6071, %v6275
        %v6277 = vpop.f32.mrb[0].mxu0
        %v6278 = vpop.f32.mrb[0].mxu0
        %v6279 = vadd.f32 %v6071, %v6278
        %v6280 = vpop.f32.mrb[0].mxu0
        %6281 = vdwg.mxu0
        %v6282 = vmul.f32 %v6156, 0.01
        %v6283 = vmul.f32 %v6159, 0.01
        %v6284 = vmul.f32 %v6164, 0.01
        %v6285 = vmul.f32 %v6167, 0.01
        %v6286 = vmul.f32 %v6172, 0.01
        %v6287 = vmul.f32 %v6175, 0.01
        %v6288 = vmul.f32 %v6180, 0.01
        %v6289 = vmul.f32 %v6183, 0.01
        %v6290 = vmul.f32 %v6188, 0.01
        %v6291 = vmul.f32 %v6191, 0.01
        %v6292 = vmul.f32 %v6196, 0.01
        %v6293 = vmul.f32 %v6199, 0.01
        %v6294 = vmul.f32 %v6204, 0.01
        %v6295 = vmul.f32 %v6207, 0.01
        %v6296 = vmul.f32 %v6212, 0.01
        %v6297 = vmul.f32 %v6215, 0.01
        %v6298 = vmul.f32 %v6220, 0.01
        %v6299 = vmul.f32 %v6223, 0.01
        %v6300 = vmul.f32 %v6228, 0.01
        %v6301 = vmul.f32 %v6231, 0.01
        %v6302 = vmul.f32 %v6236, 0.01
        %v6303 = vmul.f32 %v6239, 0.01
        %v6304 = vmul.f32 %v6244, 0.01
        %v6305 = vmul.f32 %v6247, 0.01
        %v6306 = vmul.f32 %v6252, 0.01
        %v6307 = vmul.f32 %v6255, 0.01
        %v6308 = vmul.f32 %v6260, 0.01
        %v6309 = vmul.f32 %v6263, 0.01
        %v6310 = vmul.f32 %v6268, 0.01
        %v6311 = vmul.f32 %v6271, 0.01
        %v6312 = vmul.f32 %v6276, 0.01
        %v6313 = vmul.f32 %v6279, 0.01
        %v6314 = vmax.f32 %v6156, %v6282
        %v6315 = vmax.f32 %v6159, %v6283
        %v6316 = vmax.f32 %v6164, %v6284
        %v6317 = vmax.f32 %v6167, %v6285
        %v6318 = vmax.f32 %v6172, %v6286
        %v6319 = vmax.f32 %v6175, %v6287
        %v6320 = vmax.f32 %v6180, %v6288
        %v6321 = vmax.f32 %v6183, %v6289
        %v6322 = vmax.f32 %v6188, %v6290
        %v6323 = vmax.f32 %v6191, %v6291
        %v6324 = vmax.f32 %v6196, %v6292
        %v6325 = vmax.f32 %v6199, %v6293
        %v6326 = vmax.f32 %v6204, %v6294
        %v6327 = vmax.f32 %v6207, %v6295
        %v6328 = vmax.f32 %v6212, %v6296
        %v6329 = vmax.f32 %v6215, %v6297
        %v6330 = vmax.f32 %v6220, %v6298
        %v6331 = vmax.f32 %v6223, %v6299
        %v6332 = vmax.f32 %v6228, %v6300
        %v6333 = vmax.f32 %v6231, %v6301
        %v6334 = vmax.f32 %v6236, %v6302
        %v6335 = vmax.f32 %v6239, %v6303
        %v6336 = vmax.f32 %v6244, %v6304
        %v6337 = vmax.f32 %v6247, %v6305
        %v6338 = vmax.f32 %v6252, %v6306
        %v6339 = vmax.f32 %v6255, %v6307
        %v6340 = vmax.f32 %v6260, %v6308
        %v6341 = vmax.f32 %v6263, %v6309
        %v6342 = vmax.f32 %v6268, %v6310
        %v6343 = vmax.f32 %v6271, %v6311
        %v6344 = vmax.f32 %v6276, %v6312
        %v6345 = vmax.f32 %v6279, %v6313
        %v6346 = vpack.c.bf16 %v6315, %v6314
        %v6347 = vpack.c.bf16 %v6317, %v6316
        %v6348 = vpack.c.bf16 %v6319, %v6318
        %v6349 = vpack.c.bf16 %v6321, %v6320
        %v6350 = vpack.c.bf16 %v6323, %v6322
        %v6351 = vpack.c.bf16 %v6325, %v6324
        %v6352 = vpack.c.bf16 %v6327, %v6326
        %v6353 = vpack.c.bf16 %v6329, %v6328
        %v6354 = vpack.c.bf16 %v6331, %v6330
        %v6355 = vpack.c.bf16 %v6333, %v6332
        %v6356 = vpack.c.bf16 %v6335, %v6334
        %v6357 = vpack.c.bf16 %v6337, %v6336
        %v6358 = vpack.c.bf16 %v6339, %v6338
        %v6359 = vpack.c.bf16 %v6341, %v6340
        %v6360 = vpack.c.bf16 %v6343, %v6342
        %v6361 = vpack.c.bf16 %v6345, %v6344
        %s6362 = scalar_lea.vmem %s8, 192
        %v6363 = vld [vmem:[%s6362] sm:$0xf]
        %v6364 = vld [vmem:[%s6362 + $0x4] sm:$0xf]
        %v6365 = vld [vmem:[%s6362 + $0x8] sm:$0xf]
        %v6366 = vld [vmem:[%s6362 + $0xc] sm:$0xf]
        %v6367 = vld [vmem:[%s6362 + $0x10] sm:$0xf]
        %v6368 = vld [vmem:[%s6362 + $0x14] sm:$0xf]
        %v6369 = vld [vmem:[%s6362 + $0x18] sm:$0xf]
        %v6370 = vld [vmem:[%s6362 + $0x1c] sm:$0xf]
        %v6371 = vld [vmem:[%s6362 + $0x20] sm:$0xf]
        %v6372 = vld [vmem:[%s6362 + $0x24] sm:$0xf]
        %v6373 = vld [vmem:[%s6362 + $0x28] sm:$0xf]
        %v6374 = vld [vmem:[%s6362 + $0x2c] sm:$0xf]
        %v6375 = vld [vmem:[%s6362 + $0x30] sm:$0xf]
        %v6376 = vld [vmem:[%s6362 + $0x34] sm:$0xf]
        %v6377 = vld [vmem:[%s6362 + $0x38] sm:$0xf]
        %v6378 = vld [vmem:[%s6362 + $0x3c] sm:$0xf]
        %s6379 = scalar_lea.vmem %s9, 3
        %v6380 = vld [vmem:[%s6379] sm:$0x1]
        %v6382 = vlaneseq
        %v6383 = vshrl.u32 %v6382, 7
        %v6384 = vsub.s32 0, %v6383
        %v6385 = vrot.slane %v6380, %v6384
        %v6403 = vunpack.c.l.b16 %v6363
        %v6404 = vunpack.c.l.b16 %v6364
        %v6405 = vunpack.c.l.b16 %v6365
        %v6406 = vunpack.c.l.b16 %v6366
        %v6407 = vunpack.c.l.b16 %v6367
        %v6408 = vunpack.c.l.b16 %v6368
        %v6409 = vunpack.c.l.b16 %v6369
        %v6410 = vunpack.c.l.b16 %v6370
        %v6411 = vunpack.c.l.b16 %v6371
        %v6412 = vunpack.c.l.b16 %v6372
        %v6413 = vunpack.c.l.b16 %v6373
        %v6414 = vunpack.c.l.b16 %v6374
        %v6415 = vunpack.c.l.b16 %v6375
        %v6416 = vunpack.c.l.b16 %v6376
        %v6417 = vunpack.c.l.b16 %v6377
        %v6418 = vunpack.c.l.b16 %v6378
        %v6419 = vpack.c.b16 %v6404, %v6403
        %v6420 = vpack.c.b16 %v6406, %v6405
        %v6421 = vpack.c.b16 %v6408, %v6407
        %v6422 = vpack.c.b16 %v6410, %v6409
        %v6423 = vpack.c.b16 %v6412, %v6411
        %v6424 = vpack.c.b16 %v6414, %v6413
        %v6425 = vpack.c.b16 %v6416, %v6415
        %v6426 = vpack.c.b16 %v6418, %v6417
        %6435 = vmatprep.subr.bf16.mxu0 0
        %6436 = vmatpush1.bf16.msra.mxu0 %v6419
        %6437 = vmatprep.subr.bf16.mxu0 0
        %6438 = vmatpush1.bf16.msra.mxu0 %v6420
        %6439 = vmatprep.subr.bf16.mxu0 0
        %6440 = vmatpush1.bf16.msra.mxu0 %v6421
        %6441 = vmatprep.subr.bf16.mxu0 0
        %6442 = vmatpush1.bf16.msra.mxu0 %v6422
        %6443 = vmatprep.subr.bf16.mxu0 0
        %6444 = vmatpush1.bf16.msra.mxu0 %v6423
        %6445 = vmatprep.subr.bf16.mxu0 0
        %6446 = vmatpush1.bf16.msra.mxu0 %v6424
        %6447 = vmatprep.subr.bf16.mxu0 0
        %6448 = vmatpush1.bf16.msra.mxu0 %v6425
        %6449 = vmatprep.subr.bf16.mxu0 0
        %6450 = vmatpush1.bf16.msra.mxu0 %v6426
        %6451 = vmatprep.subr.bf16.mxu0 0
        %6452 = vmatpush1.bf16.msra.mxu0 0
        %6453 = vmatprep.subr.bf16.mxu0 0
        %6454 = vmatpush1.bf16.msra.mxu0 0
        %6455 = vmatprep.subr.bf16.mxu0 0
        %6456 = vmatpush1.bf16.msra.mxu0 0
        %6457 = vmatprep.subr.bf16.mxu0 0
        %6458 = vmatpush1.bf16.msra.mxu0 0
        %6459 = vmatprep.subr.bf16.mxu0 0
        %6460 = vmatpush1.bf16.msra.mxu0 0
        %6461 = vmatprep.subr.bf16.mxu0 0
        %6462 = vmatpush1.bf16.msra.mxu0 0
        %6463 = vmatprep.subr.bf16.mxu0 0
        %6464 = vmatpush1.bf16.msra.mxu0 0
        %6465 = vmatprep.subr.bf16.mxu0 0
        %6466 = vmatpush1.bf16.msra.mxu0 0
        %6467 = vmatprep.mubr.bf16.mxu0 0
        %6468 = vmatmul.mubr.bf16.gmra.mrb[0].mxu0 %v6346
        %v6469 = vpop.f32.mrb[0].mxu0
        %v6470 = vadd.f32 %v6385, %v6469
        %v6471 = vpop.f32.mrb[0].mxu0
        %v6472 = vpop.f32.mrb[0].mxu0
        %v6473 = vadd.f32 %v6385, %v6472
        %v6474 = vpop.f32.mrb[0].mxu0
        %6475 = vmatprep.mubr.bf16.mxu0 0
        %6476 = vmatmul.mubr.bf16.gmra.mrb[0].mxu0 %v6347
        %v6477 = vpop.f32.mrb[0].mxu0
        %v6478 = vadd.f32 %v6385, %v6477
        %v6479 = vpop.f32.mrb[0].mxu0
        %v6480 = vpop.f32.mrb[0].mxu0
        %v6481 = vadd.f32 %v6385, %v6480
        %v6482 = vpop.f32.mrb[0].mxu0
        %6483 = vmatprep.mubr.bf16.mxu0 0
        %6484 = vmatmul.mubr.bf16.gmra.mrb[0].mxu0 %v6348
        %v6485 = vpop.f32.mrb[0].mxu0
        %v6486 = vadd.f32 %v6385, %v6485
        %v6487 = vpop.f32.mrb[0].mxu0
        %v6488 = vpop.f32.mrb[0].mxu0
        %v6489 = vadd.f32 %v6385, %v6488
        %v6490 = vpop.f32.mrb[0].mxu0
        %6491 = vmatprep.mubr.bf16.mxu0 0
        %6492 = vmatmul.mubr.bf16.gmra.mrb[0].mxu0 %v6349
        %v6493 = vpop.f32.mrb[0].mxu0
        %v6494 = vadd.f32 %v6385, %v6493
        %v6495 = vpop.f32.mrb[0].mxu0
        %v6496 = vpop.f32.mrb[0].mxu0
        %v6497 = vadd.f32 %v6385, %v6496
        %v6498 = vpop.f32.mrb[0].mxu0
        %6499 = vmatprep.mubr.bf16.mxu0 0
        %6500 = vmatmul.mubr.bf16.gmra.mrb[0].mxu0 %v6350
        %v6501 = vpop.f32.mrb[0].mxu0
        %v6502 = vadd.f32 %v6385, %v6501
        %v6503 = vpop.f32.mrb[0].mxu0
        %v6504 = vpop.f32.mrb[0].mxu0
        %v6505 = vadd.f32 %v6385, %v6504
        %v6506 = vpop.f32.mrb[0].mxu0
        %6507 = vmatprep.mubr.bf16.mxu0 0
        %6508 = vmatmul.mubr.bf16.gmra.mrb[0].mxu0 %v6351
        %v6509 = vpop.f32.mrb[0].mxu0
        %v6510 = vadd.f32 %v6385, %v6509
        %v6511 = vpop.f32.mrb[0].mxu0
        %v6512 = vpop.f32.mrb[0].mxu0
        %v6513 = vadd.f32 %v6385, %v6512
        %v6514 = vpop.f32.mrb[0].mxu0
        %6515 = vmatprep.mubr.bf16.mxu0 0
        %6516 = vmatmul.mubr.bf16.gmra.mrb[0].mxu0 %v6352
        %v6517 = vpop.f32.mrb[0].mxu0
        %v6518 = vadd.f32 %v6385, %v6517
        %v6519 = vpop.f32.mrb[0].mxu0
        %v6520 = vpop.f32.mrb[0].mxu0
        %v6521 = vadd.f32 %v6385, %v6520
        %v6522 = vpop.f32.mrb[0].mxu0
        %6523 = vmatprep.mubr.bf16.mxu0 0
        %6524 = vmatmul.mubr.bf16.gmra.mrb[0].mxu0 %v6353
        %v6525 = vpop.f32.mrb[0].mxu0
        %v6526 = vadd.f32 %v6385, %v6525
        %v6527 = vpop.f32.mrb[0].mxu0
        %v6528 = vpop.f32.mrb[0].mxu0
        %v6529 = vadd.f32 %v6385, %v6528
        %v6530 = vpop.f32.mrb[0].mxu0
        %6531 = vmatprep.mubr.bf16.mxu0 0
        %6532 = vmatmul.mubr.bf16.gmra.mrb[0].mxu0 %v6354
        %v6533 = vpop.f32.mrb[0].mxu0
        %v6534 = vadd.f32 %v6385, %v6533
        %v6535 = vpop.f32.mrb[0].mxu0
        %v6536 = vpop.f32.mrb[0].mxu0
        %v6537 = vadd.f32 %v6385, %v6536
        %v6538 = vpop.f32.mrb[0].mxu0
        %6539 = vmatprep.mubr.bf16.mxu0 0
        %6540 = vmatmul.mubr.bf16.gmra.mrb[0].mxu0 %v6355
        %v6541 = vpop.f32.mrb[0].mxu0
        %v6542 = vadd.f32 %v6385, %v6541
        %v6543 = vpop.f32.mrb[0].mxu0
        %v6544 = vpop.f32.mrb[0].mxu0
        %v6545 = vadd.f32 %v6385, %v6544
        %v6546 = vpop.f32.mrb[0].mxu0
        %6547 = vmatprep.mubr.bf16.mxu0 0
        %6548 = vmatmul.mubr.bf16.gmra.mrb[0].mxu0 %v6356
        %v6549 = vpop.f32.mrb[0].mxu0
        %v6550 = vadd.f32 %v6385, %v6549
        %v6551 = vpop.f32.mrb[0].mxu0
        %v6552 = vpop.f32.mrb[0].mxu0
        %v6553 = vadd.f32 %v6385, %v6552
        %v6554 = vpop.f32.mrb[0].mxu0
        %6555 = vmatprep.mubr.bf16.mxu0 0
        %6556 = vmatmul.mubr.bf16.gmra.mrb[0].mxu0 %v6357
        %v6557 = vpop.f32.mrb[0].mxu0
        %v6558 = vadd.f32 %v6385, %v6557
        %v6559 = vpop.f32.mrb[0].mxu0
        %v6560 = vpop.f32.mrb[0].mxu0
        %v6561 = vadd.f32 %v6385, %v6560
        %v6562 = vpop.f32.mrb[0].mxu0
        %6563 = vmatprep.mubr.bf16.mxu0 0
        %6564 = vmatmul.mubr.bf16.gmra.mrb[0].mxu0 %v6358
        %v6565 = vpop.f32.mrb[0].mxu0
        %v6566 = vadd.f32 %v6385, %v6565
        %v6567 = vpop.f32.mrb[0].mxu0
        %v6568 = vpop.f32.mrb[0].mxu0
        %v6569 = vadd.f32 %v6385, %v6568
        %v6570 = vpop.f32.mrb[0].mxu0
        %6571 = vmatprep.mubr.bf16.mxu0 0
        %6572 = vmatmul.mubr.bf16.gmra.mrb[0].mxu0 %v6359
        %v6573 = vpop.f32.mrb[0].mxu0
        %v6574 = vadd.f32 %v6385, %v6573
        %v6575 = vpop.f32.mrb[0].mxu0
        %v6576 = vpop.f32.mrb[0].mxu0
        %v6577 = vadd.f32 %v6385, %v6576
        %v6578 = vpop.f32.mrb[0].mxu0
        %6579 = vmatprep.mubr.bf16.mxu0 0
        %6580 = vmatmul.mubr.bf16.gmra.mrb[0].mxu0 %v6360
        %v6581 = vpop.f32.mrb[0].mxu0
        %v6582 = vadd.f32 %v6385, %v6581
        %v6583 = vpop.f32.mrb[0].mxu0
        %v6584 = vpop.f32.mrb[0].mxu0
        %v6585 = vadd.f32 %v6385, %v6584
        %v6586 = vpop.f32.mrb[0].mxu0
        %6587 = vmatprep.mubr.bf16.mxu0 0
        %6588 = vmatmul.mubr.bf16.gmra.mrb[0].mxu0 %v6361
        %v6589 = vpop.f32.mrb[0].mxu0
        %v6590 = vadd.f32 %v6385, %v6589
        %v6591 = vpop.f32.mrb[0].mxu0
        %v6592 = vpop.f32.mrb[0].mxu0
        %v6593 = vadd.f32 %v6385, %v6592
        %v6594 = vpop.f32.mrb[0].mxu0
        %6595 = vdwg.mxu0
        %v6596 = vadd.f32 %v6470, %v5154
        %v6597 = vadd.f32 %v6473, %v5158
        %v6598 = vadd.f32 %v6478, %v5164
        %v6599 = vadd.f32 %v6481, %v5168
        %v6600 = vadd.f32 %v6486, %v5174
        %v6601 = vadd.f32 %v6489, %v5178
        %v6602 = vadd.f32 %v6494, %v5184
        %v6603 = vadd.f32 %v6497, %v5188
        %v6604 = vadd.f32 %v6502, %v5194
        %v6605 = vadd.f32 %v6505, %v5198
        %v6606 = vadd.f32 %v6510, %v5204
        %v6607 = vadd.f32 %v6513, %v5208
        %v6608 = vadd.f32 %v6518, %v5214
        %v6609 = vadd.f32 %v6521, %v5218
        %v6610 = vadd.f32 %v6526, %v5224
        %v6611 = vadd.f32 %v6529, %v5228
        %v6612 = vadd.f32 %v6534, %v5234
        %v6613 = vadd.f32 %v6537, %v5238
        %v6614 = vadd.f32 %v6542, %v5244
        %v6615 = vadd.f32 %v6545, %v5248
        %v6616 = vadd.f32 %v6550, %v5254
        %v6617 = vadd.f32 %v6553, %v5258
        %v6618 = vadd.f32 %v6558, %v5264
        %v6619 = vadd.f32 %v6561, %v5268
        %v6620 = vadd.f32 %v6566, %v5274
        %v6621 = vadd.f32 %v6569, %v5278
        %v6622 = vadd.f32 %v6574, %v5284
        %v6623 = vadd.f32 %v6577, %v5288
        %v6624 = vadd.f32 %v6582, %v5294
        %v6625 = vadd.f32 %v6585, %v5298
        %v6626 = vadd.f32 %v6590, %v5304
        %v6627 = vadd.f32 %v6593, %v5308
        %v6628 = vmul.f32 %v6596, 0.01
        %v6629 = vmul.f32 %v6597, 0.01
        %v6630 = vmul.f32 %v6598, 0.01
        %v6631 = vmul.f32 %v6599, 0.01
        %v6632 = vmul.f32 %v6600, 0.01
        %v6633 = vmul.f32 %v6601, 0.01
        %v6634 = vmul.f32 %v6602, 0.01
        %v6635 = vmul.f32 %v6603, 0.01
        %v6636 = vmul.f32 %v6604, 0.01
        %v6637 = vmul.f32 %v6605, 0.01
        %v6638 = vmul.f32 %v6606, 0.01
        %v6639 = vmul.f32 %v6607, 0.01
        %v6640 = vmul.f32 %v6608, 0.01
        %v6641 = vmul.f32 %v6609, 0.01
        %v6642 = vmul.f32 %v6610, 0.01
        %v6643 = vmul.f32 %v6611, 0.01
        %v6644 = vmul.f32 %v6612, 0.01
        %v6645 = vmul.f32 %v6613, 0.01
        %v6646 = vmul.f32 %v6614, 0.01
        %v6647 = vmul.f32 %v6615, 0.01
        %v6648 = vmul.f32 %v6616, 0.01
        %v6649 = vmul.f32 %v6617, 0.01
        %v6650 = vmul.f32 %v6618, 0.01
        %v6651 = vmul.f32 %v6619, 0.01
        %v6652 = vmul.f32 %v6620, 0.01
        %v6653 = vmul.f32 %v6621, 0.01
        %v6654 = vmul.f32 %v6622, 0.01
        %v6655 = vmul.f32 %v6623, 0.01
        %v6656 = vmul.f32 %v6624, 0.01
        %v6657 = vmul.f32 %v6625, 0.01
        %v6658 = vmul.f32 %v6626, 0.01
        %v6659 = vmul.f32 %v6627, 0.01
        %v6660 = vmax.f32 %v6596, %v6628
        %v6661 = vmax.f32 %v6597, %v6629
        %v6662 = vmax.f32 %v6598, %v6630
        %v6663 = vmax.f32 %v6599, %v6631
        %v6664 = vmax.f32 %v6600, %v6632
        %v6665 = vmax.f32 %v6601, %v6633
        %v6666 = vmax.f32 %v6602, %v6634
        %v6667 = vmax.f32 %v6603, %v6635
        %v6668 = vmax.f32 %v6604, %v6636
        %v6669 = vmax.f32 %v6605, %v6637
        %v6670 = vmax.f32 %v6606, %v6638
        %v6671 = vmax.f32 %v6607, %v6639
        %v6672 = vmax.f32 %v6608, %v6640
        %v6673 = vmax.f32 %v6609, %v6641
        %v6674 = vmax.f32 %v6610, %v6642
        %v6675 = vmax.f32 %v6611, %v6643
        %v6676 = vmax.f32 %v6612, %v6644
        %v6677 = vmax.f32 %v6613, %v6645
        %v6678 = vmax.f32 %v6614, %v6646
        %v6679 = vmax.f32 %v6615, %v6647
        %v6680 = vmax.f32 %v6616, %v6648
        %v6681 = vmax.f32 %v6617, %v6649
        %v6682 = vmax.f32 %v6618, %v6650
        %v6683 = vmax.f32 %v6619, %v6651
        %v6684 = vmax.f32 %v6620, %v6652
        %v6685 = vmax.f32 %v6621, %v6653
        %v6686 = vmax.f32 %v6622, %v6654
        %v6687 = vmax.f32 %v6623, %v6655
        %v6688 = vmax.f32 %v6624, %v6656
        %v6689 = vmax.f32 %v6625, %v6657
        %v6690 = vmax.f32 %v6626, %v6658
        %v6691 = vmax.f32 %v6627, %v6659
        %v6692 = vpack.c.bf16 %v6661, %v6660
        %v6693 = vpack.c.bf16 %v6663, %v6662
        %v6694 = vpack.c.bf16 %v6665, %v6664
        %v6695 = vpack.c.bf16 %v6667, %v6666
        %v6696 = vpack.c.bf16 %v6669, %v6668
        %v6697 = vpack.c.bf16 %v6671, %v6670
        %v6698 = vpack.c.bf16 %v6673, %v6672
        %v6699 = vpack.c.bf16 %v6675, %v6674
        %v6700 = vpack.c.bf16 %v6677, %v6676
        %v6701 = vpack.c.bf16 %v6679, %v6678
        %v6702 = vpack.c.bf16 %v6681, %v6680
        %v6703 = vpack.c.bf16 %v6683, %v6682
        %v6704 = vpack.c.bf16 %v6685, %v6684
        %v6705 = vpack.c.bf16 %v6687, %v6686
        %v6706 = vpack.c.bf16 %v6689, %v6688
        %v6707 = vpack.c.bf16 %v6691, %v6690
        %s6708 = scalar_lea.vmem %s8, 256
        %v6709 = vld [vmem:[%s6708] sm:$0xf]
        %v6710 = vld [vmem:[%s6708 + $0x4] sm:$0xf]
        %v6711 = vld [vmem:[%s6708 + $0x8] sm:$0xf]
        %v6712 = vld [vmem:[%s6708 + $0xc] sm:$0xf]
        %v6713 = vld [vmem:[%s6708 + $0x10] sm:$0xf]
        %v6714 = vld [vmem:[%s6708 + $0x14] sm:$0xf]
        %v6715 = vld [vmem:[%s6708 + $0x18] sm:$0xf]
        %v6716 = vld [vmem:[%s6708 + $0x1c] sm:$0xf]
        %v6717 = vld [vmem:[%s6708 + $0x20] sm:$0xf]
        %v6718 = vld [vmem:[%s6708 + $0x24] sm:$0xf]
        %v6719 = vld [vmem:[%s6708 + $0x28] sm:$0xf]
        %v6720 = vld [vmem:[%s6708 + $0x2c] sm:$0xf]
        %v6721 = vld [vmem:[%s6708 + $0x30] sm:$0xf]
        %v6722 = vld [vmem:[%s6708 + $0x34] sm:$0xf]
        %v6723 = vld [vmem:[%s6708 + $0x38] sm:$0xf]
        %v6724 = vld [vmem:[%s6708 + $0x3c] sm:$0xf]
        %s6725 = scalar_lea.vmem %s9, 4
        %v6726 = vld [vmem:[%s6725] sm:$0x1]
        %v6728 = vlaneseq
        %v6729 = vshrl.u32 %v6728, 7
        %v6730 = vsub.s32 0, %v6729
        %v6731 = vrot.slane %v6726, %v6730
        %v6749 = vunpack.c.l.b16 %v6709
        %v6750 = vunpack.c.l.b16 %v6710
        %v6751 = vunpack.c.l.b16 %v6711
        %v6752 = vunpack.c.l.b16 %v6712
        %v6753 = vunpack.c.l.b16 %v6713
        %v6754 = vunpack.c.l.b16 %v6714
        %v6755 = vunpack.c.l.b16 %v6715
        %v6756 = vunpack.c.l.b16 %v6716
        %v6757 = vunpack.c.l.b16 %v6717
        %v6758 = vunpack.c.l.b16 %v6718
        %v6759 = vunpack.c.l.b16 %v6719
        %v6760 = vunpack.c.l.b16 %v6720
        %v6761 = vunpack.c.l.b16 %v6721
        %v6762 = vunpack.c.l.b16 %v6722
        %v6763 = vunpack.c.l.b16 %v6723
        %v6764 = vunpack.c.l.b16 %v6724
        %v6765 = vpack.c.b16 %v6750, %v6749
        %v6766 = vpack.c.b16 %v6752, %v6751
        %v6767 = vpack.c.b16 %v6754, %v6753
        %v6768 = vpack.c.b16 %v6756, %v6755
        %v6769 = vpack.c.b16 %v6758, %v6757
        %v6770 = vpack.c.b16 %v6760, %v6759
        %v6771 = vpack.c.b16 %v6762, %v6761
        %v6772 = vpack.c.b16 %v6764, %v6763
        %6781 = vmatprep.subr.bf16.mxu0 0
        %6782 = vmatpush1.bf16.msra.mxu0 %v6765
        %6783 = vmatprep.subr.bf16.mxu0 0
        %6784 = vmatpush1.bf16.msra.mxu0 %v6766
        %6785 = vmatprep.subr.bf16.mxu0 0
        %6786 = vmatpush1.bf16.msra.mxu0 %v6767
        %6787 = vmatprep.subr.bf16.mxu0 0
        %6788 = vmatpush1.bf16.msra.mxu0 %v6768
        %6789 = vmatprep.subr.bf16.mxu0 0
        %6790 = vmatpush1.bf16.msra.mxu0 %v6769
        %6791 = vmatprep.subr.bf16.mxu0 0
        %6792 = vmatpush1.bf16.msra.mxu0 %v6770
        %6793 = vmatprep.subr.bf16.mxu0 0
        %6794 = vmatpush1.bf16.msra.mxu0 %v6771
        %6795 = vmatprep.subr.bf16.mxu0 0
        %6796 = vmatpush1.bf16.msra.mxu0 %v6772
        %6797 = vmatprep.subr.bf16.mxu0 0
        %6798 = vmatpush1.bf16.msra.mxu0 0
        %6799 = vmatprep.subr.bf16.mxu0 0
        %6800 = vmatpush1.bf16.msra.mxu0 0
        %6801 = vmatprep.subr.bf16.mxu0 0
        %6802 = vmatpush1.bf16.msra.mxu0 0
        %6803 = vmatprep.subr.bf16.mxu0 0
        %6804 = vmatpush1.bf16.msra.mxu0 0
        %6805 = vmatprep.subr.bf16.mxu0 0
        %6806 = vmatpush1.bf16.msra.mxu0 0
        %6807 = vmatprep.subr.bf16.mxu0 0
        %6808 = vmatpush1.bf16.msra.mxu0 0
        %6809 = vmatprep.subr.bf16.mxu0 0
        %6810 = vmatpush1.bf16.msra.mxu0 0
        %6811 = vmatprep.subr.bf16.mxu0 0
        %6812 = vmatpush1.bf16.msra.mxu0 0
        %6813 = vmatprep.mubr.bf16.mxu0 0
        %6814 = vmatmul.mubr.bf16.gmra.mrb[0].mxu0 %v6692
        %v6815 = vpop.f32.mrb[0].mxu0
        %v6816 = vadd.f32 %v6731, %v6815
        %v6817 = vpop.f32.mrb[0].mxu0
        %v6818 = vpop.f32.mrb[0].mxu0
        %v6819 = vadd.f32 %v6731, %v6818
        %v6820 = vpop.f32.mrb[0].mxu0
        %6821 = vmatprep.mubr.bf16.mxu0 0
        %6822 = vmatmul.mubr.bf16.gmra.mrb[0].mxu0 %v6693
        %v6823 = vpop.f32.mrb[0].mxu0
        %v6824 = vadd.f32 %v6731, %v6823
        %v6825 = vpop.f32.mrb[0].mxu0
        %v6826 = vpop.f32.mrb[0].mxu0
        %v6827 = vadd.f32 %v6731, %v6826
        %v6828 = vpop.f32.mrb[0].mxu0
        %6829 = vmatprep.mubr.bf16.mxu0 0
        %6830 = vmatmul.mubr.bf16.gmra.mrb[0].mxu0 %v6694
        %v6831 = vpop.f32.mrb[0].mxu0
        %v6832 = vadd.f32 %v6731, %v6831
        %v6833 = vpop.f32.mrb[0].mxu0
        %v6834 = vpop.f32.mrb[0].mxu0
        %v6835 = vadd.f32 %v6731, %v6834
        %v6836 = vpop.f32.mrb[0].mxu0
        %6837 = vmatprep.mubr.bf16.mxu0 0
        %6838 = vmatmul.mubr.bf16.gmra.mrb[0].mxu0 %v6695
        %v6839 = vpop.f32.mrb[0].mxu0
        %v6840 = vadd.f32 %v6731, %v6839
        %v6841 = vpop.f32.mrb[0].mxu0
        %v6842 = vpop.f32.mrb[0].mxu0
        %v6843 = vadd.f32 %v6731, %v6842
        %v6844 = vpop.f32.mrb[0].mxu0
        %6845 = vmatprep.mubr.bf16.mxu0 0
        %6846 = vmatmul.mubr.bf16.gmra.mrb[0].mxu0 %v6696
        %v6847 = vpop.f32.mrb[0].mxu0
        %v6848 = vadd.f32 %v6731, %v6847
        %v6849 = vpop.f32.mrb[0].mxu0
        %v6850 = vpop.f32.mrb[0].mxu0
        %v6851 = vadd.f32 %v6731, %v6850
        %v6852 = vpop.f32.mrb[0].mxu0
        %6853 = vmatprep.mubr.bf16.mxu0 0
        %6854 = vmatmul.mubr.bf16.gmra.mrb[0].mxu0 %v6697
        %v6855 = vpop.f32.mrb[0].mxu0
        %v6856 = vadd.f32 %v6731, %v6855
        %v6857 = vpop.f32.mrb[0].mxu0
        %v6858 = vpop.f32.mrb[0].mxu0
        %v6859 = vadd.f32 %v6731, %v6858
        %v6860 = vpop.f32.mrb[0].mxu0
        %6861 = vmatprep.mubr.bf16.mxu0 0
        %6862 = vmatmul.mubr.bf16.gmra.mrb[0].mxu0 %v6698
        %v6863 = vpop.f32.mrb[0].mxu0
        %v6864 = vadd.f32 %v6731, %v6863
        %v6865 = vpop.f32.mrb[0].mxu0
        %v6866 = vpop.f32.mrb[0].mxu0
        %v6867 = vadd.f32 %v6731, %v6866
        %v6868 = vpop.f32.mrb[0].mxu0
        %6869 = vmatprep.mubr.bf16.mxu0 0
        %6870 = vmatmul.mubr.bf16.gmra.mrb[0].mxu0 %v6699
        %v6871 = vpop.f32.mrb[0].mxu0
        %v6872 = vadd.f32 %v6731, %v6871
        %v6873 = vpop.f32.mrb[0].mxu0
        %v6874 = vpop.f32.mrb[0].mxu0
        %v6875 = vadd.f32 %v6731, %v6874
        %v6876 = vpop.f32.mrb[0].mxu0
        %6877 = vmatprep.mubr.bf16.mxu0 0
        %6878 = vmatmul.mubr.bf16.gmra.mrb[0].mxu0 %v6700
        %v6879 = vpop.f32.mrb[0].mxu0
        %v6880 = vadd.f32 %v6731, %v6879
        %v6881 = vpop.f32.mrb[0].mxu0
        %v6882 = vpop.f32.mrb[0].mxu0
        %v6883 = vadd.f32 %v6731, %v6882
        %v6884 = vpop.f32.mrb[0].mxu0
        %6885 = vmatprep.mubr.bf16.mxu0 0
        %6886 = vmatmul.mubr.bf16.gmra.mrb[0].mxu0 %v6701
        %v6887 = vpop.f32.mrb[0].mxu0
        %v6888 = vadd.f32 %v6731, %v6887
        %v6889 = vpop.f32.mrb[0].mxu0
        %v6890 = vpop.f32.mrb[0].mxu0
        %v6891 = vadd.f32 %v6731, %v6890
        %v6892 = vpop.f32.mrb[0].mxu0
        %6893 = vmatprep.mubr.bf16.mxu0 0
        %6894 = vmatmul.mubr.bf16.gmra.mrb[0].mxu0 %v6702
        %v6895 = vpop.f32.mrb[0].mxu0
        %v6896 = vadd.f32 %v6731, %v6895
        %v6897 = vpop.f32.mrb[0].mxu0
        %v6898 = vpop.f32.mrb[0].mxu0
        %v6899 = vadd.f32 %v6731, %v6898
        %v6900 = vpop.f32.mrb[0].mxu0
        %6901 = vmatprep.mubr.bf16.mxu0 0
        %6902 = vmatmul.mubr.bf16.gmra.mrb[0].mxu0 %v6703
        %v6903 = vpop.f32.mrb[0].mxu0
        %v6904 = vadd.f32 %v6731, %v6903
        %v6905 = vpop.f32.mrb[0].mxu0
        %v6906 = vpop.f32.mrb[0].mxu0
        %v6907 = vadd.f32 %v6731, %v6906
        %v6908 = vpop.f32.mrb[0].mxu0
        %6909 = vmatprep.mubr.bf16.mxu0 0
        %6910 = vmatmul.mubr.bf16.gmra.mrb[0].mxu0 %v6704
        %v6911 = vpop.f32.mrb[0].mxu0
        %v6912 = vadd.f32 %v6731, %v6911
        %v6913 = vpop.f32.mrb[0].mxu0
        %v6914 = vpop.f32.mrb[0].mxu0
        %v6915 = vadd.f32 %v6731, %v6914
        %v6916 = vpop.f32.mrb[0].mxu0
        %6917 = vmatprep.mubr.bf16.mxu0 0
        %6918 = vmatmul.mubr.bf16.gmra.mrb[0].mxu0 %v6705
        %v6919 = vpop.f32.mrb[0].mxu0
        %v6920 = vadd.f32 %v6731, %v6919
        %v6921 = vpop.f32.mrb[0].mxu0
        %v6922 = vpop.f32.mrb[0].mxu0
        %v6923 = vadd.f32 %v6731, %v6922
        %v6924 = vpop.f32.mrb[0].mxu0
        %6925 = vmatprep.mubr.bf16.mxu0 0
        %6926 = vmatmul.mubr.bf16.gmra.mrb[0].mxu0 %v6706
        %v6927 = vpop.f32.mrb[0].mxu0
        %v6928 = vadd.f32 %v6731, %v6927
        %v6929 = vpop.f32.mrb[0].mxu0
        %v6930 = vpop.f32.mrb[0].mxu0
        %v6931 = vadd.f32 %v6731, %v6930
        %v6932 = vpop.f32.mrb[0].mxu0
        %6933 = vmatprep.mubr.bf16.mxu0 0
        %6934 = vmatmul.mubr.bf16.gmra.mrb[0].mxu0 %v6707
        %v6935 = vpop.f32.mrb[0].mxu0
        %v6936 = vadd.f32 %v6731, %v6935
        %v6937 = vpop.f32.mrb[0].mxu0
        %v6938 = vpop.f32.mrb[0].mxu0
        %v6939 = vadd.f32 %v6731, %v6938
        %v6940 = vpop.f32.mrb[0].mxu0
        %6941 = vdwg.mxu0
        %v6942 = vmul.f32 %v6816, 0.01
        %v6943 = vmul.f32 %v6819, 0.01
        %v6944 = vmul.f32 %v6824, 0.01
        %v6945 = vmul.f32 %v6827, 0.01
        %v6946 = vmul.f32 %v6832, 0.01
        %v6947 = vmul.f32 %v6835, 0.01
        %v6948 = vmul.f32 %v6840, 0.01
        %v6949 = vmul.f32 %v6843, 0.01
        %v6950 = vmul.f32 %v6848, 0.01
        %v6951 = vmul.f32 %v6851, 0.01
        %v6952 = vmul.f32 %v6856, 0.01
        %v6953 = vmul.f32 %v6859, 0.01
        %v6954 = vmul.f32 %v6864, 0.01
        %v6955 = vmul.f32 %v6867, 0.01
        %v6956 = vmul.f32 %v6872, 0.01
        %v6957 = vmul.f32 %v6875, 0.01
        %v6958 = vmul.f32 %v6880, 0.01
        %v6959 = vmul.f32 %v6883, 0.01
        %v6960 = vmul.f32 %v6888, 0.01
        %v6961 = vmul.f32 %v6891, 0.01
        %v6962 = vmul.f32 %v6896, 0.01
        %v6963 = vmul.f32 %v6899, 0.01
        %v6964 = vmul.f32 %v6904, 0.01
        %v6965 = vmul.f32 %v6907, 0.01
        %v6966 = vmul.f32 %v6912, 0.01
        %v6967 = vmul.f32 %v6915, 0.01
        %v6968 = vmul.f32 %v6920, 0.01
        %v6969 = vmul.f32 %v6923, 0.01
        %v6970 = vmul.f32 %v6928, 0.01
        %v6971 = vmul.f32 %v6931, 0.01
        %v6972 = vmul.f32 %v6936, 0.01
        %v6973 = vmul.f32 %v6939, 0.01
        %v6974 = vmax.f32 %v6816, %v6942
        %v6975 = vmax.f32 %v6819, %v6943
        %v6976 = vmax.f32 %v6824, %v6944
        %v6977 = vmax.f32 %v6827, %v6945
        %v6978 = vmax.f32 %v6832, %v6946
        %v6979 = vmax.f32 %v6835, %v6947
        %v6980 = vmax.f32 %v6840, %v6948
        %v6981 = vmax.f32 %v6843, %v6949
        %v6982 = vmax.f32 %v6848, %v6950
        %v6983 = vmax.f32 %v6851, %v6951
        %v6984 = vmax.f32 %v6856, %v6952
        %v6985 = vmax.f32 %v6859, %v6953
        %v6986 = vmax.f32 %v6864, %v6954
        %v6987 = vmax.f32 %v6867, %v6955
        %v6988 = vmax.f32 %v6872, %v6956
        %v6989 = vmax.f32 %v6875, %v6957
        %v6990 = vmax.f32 %v6880, %v6958
        %v6991 = vmax.f32 %v6883, %v6959
        %v6992 = vmax.f32 %v6888, %v6960
        %v6993 = vmax.f32 %v6891, %v6961
        %v6994 = vmax.f32 %v6896, %v6962
        %v6995 = vmax.f32 %v6899, %v6963
        %v6996 = vmax.f32 %v6904, %v6964
        %v6997 = vmax.f32 %v6907, %v6965
        %v6998 = vmax.f32 %v6912, %v6966
        %v6999 = vmax.f32 %v6915, %v6967
        %v7000 = vmax.f32 %v6920, %v6968
        %v7001 = vmax.f32 %v6923, %v6969
        %v7002 = vmax.f32 %v6928, %v6970
        %v7003 = vmax.f32 %v6931, %v6971
        %v7004 = vmax.f32 %v6936, %v6972
        %v7005 = vmax.f32 %v6939, %v6973
        %v7006 = vpack.c.bf16 %v6975, %v6974
        %v7007 = vpack.c.bf16 %v6977, %v6976
        %v7008 = vpack.c.bf16 %v6979, %v6978
        %v7009 = vpack.c.bf16 %v6981, %v6980
        %v7010 = vpack.c.bf16 %v6983, %v6982
        %v7011 = vpack.c.bf16 %v6985, %v6984
        %v7012 = vpack.c.bf16 %v6987, %v6986
        %v7013 = vpack.c.bf16 %v6989, %v6988
        %v7014 = vpack.c.bf16 %v6991, %v6990
        %v7015 = vpack.c.bf16 %v6993, %v6992
        %v7016 = vpack.c.bf16 %v6995, %v6994
        %v7017 = vpack.c.bf16 %v6997, %v6996
        %v7018 = vpack.c.bf16 %v6999, %v6998
        %v7019 = vpack.c.bf16 %v7001, %v7000
        %v7020 = vpack.c.bf16 %v7003, %v7002
        %v7021 = vpack.c.bf16 %v7005, %v7004
        %v7022 = vld [vmem:[%s10] sm:$0xf]
        %v7023 = vld [vmem:[%s10 + $0x4] sm:$0xf]
        %v7024 = vld [vmem:[%s10 + $0x8] sm:$0xf]
        %v7025 = vld [vmem:[%s10 + $0xc] sm:$0xf]
        %v7026 = vld [vmem:[%s10 + $0x10] sm:$0xf]
        %v7027 = vld [vmem:[%s10 + $0x14] sm:$0xf]
        %v7028 = vld [vmem:[%s10 + $0x18] sm:$0xf]
        %v7029 = vld [vmem:[%s10 + $0x1c] sm:$0xf]
        %v7030 = vld [vmem:[%s10 + $0x20] sm:$0xf]
        %v7031 = vld [vmem:[%s10 + $0x24] sm:$0xf]
        %v7032 = vld [vmem:[%s10 + $0x28] sm:$0xf]
        %v7033 = vld [vmem:[%s10 + $0x2c] sm:$0xf]
        %v7034 = vld [vmem:[%s10 + $0x30] sm:$0xf]
        %v7035 = vld [vmem:[%s10 + $0x34] sm:$0xf]
        %v7036 = vld [vmem:[%s10 + $0x38] sm:$0xf]
        %v7037 = vld [vmem:[%s10 + $0x3c] sm:$0xf]
        %v7038 = vld [vmem:[%s11] sm:$0x1]
        %v7040 = vlaneseq
        %v7041 = vshrl.u32 %v7040, 7
        %v7042 = vsub.s32 0, %v7041
        %v7043 = vrot.slane %v7038, %v7042
        %v7061 = vunpack.c.l.b16 %v7022
        %v7062 = vunpack.c.l.b16 %v7023
        %v7063 = vunpack.c.l.b16 %v7024
        %v7064 = vunpack.c.l.b16 %v7025
        %v7065 = vunpack.c.l.b16 %v7026
        %v7066 = vunpack.c.l.b16 %v7027
        %v7067 = vunpack.c.l.b16 %v7028
        %v7068 = vunpack.c.l.b16 %v7029
        %v7069 = vunpack.c.l.b16 %v7030
        %v7070 = vunpack.c.l.b16 %v7031
        %v7071 = vunpack.c.l.b16 %v7032
        %v7072 = vunpack.c.l.b16 %v7033
        %v7073 = vunpack.c.l.b16 %v7034
        %v7074 = vunpack.c.l.b16 %v7035
        %v7075 = vunpack.c.l.b16 %v7036
        %v7076 = vunpack.c.l.b16 %v7037
        %v7077 = vpack.c.b16 %v7062, %v7061
        %v7078 = vpack.c.b16 %v7064, %v7063
        %v7079 = vpack.c.b16 %v7066, %v7065
        %v7080 = vpack.c.b16 %v7068, %v7067
        %v7081 = vpack.c.b16 %v7070, %v7069
        %v7082 = vpack.c.b16 %v7072, %v7071
        %v7083 = vpack.c.b16 %v7074, %v7073
        %v7084 = vpack.c.b16 %v7076, %v7075
        %7093 = vmatprep.subr.bf16.mxu0 0
        %7094 = vmatpush1.bf16.msra.mxu0 %v7077
        %7095 = vmatprep.subr.bf16.mxu0 0
        %7096 = vmatpush1.bf16.msra.mxu0 %v7078
        %7097 = vmatprep.subr.bf16.mxu0 0
        %7098 = vmatpush1.bf16.msra.mxu0 %v7079
        %7099 = vmatprep.subr.bf16.mxu0 0
        %7100 = vmatpush1.bf16.msra.mxu0 %v7080
        %7101 = vmatprep.subr.bf16.mxu0 0
        %7102 = vmatpush1.bf16.msra.mxu0 %v7081
        %7103 = vmatprep.subr.bf16.mxu0 0
        %7104 = vmatpush1.bf16.msra.mxu0 %v7082
        %7105 = vmatprep.subr.bf16.mxu0 0
        %7106 = vmatpush1.bf16.msra.mxu0 %v7083
        %7107 = vmatprep.subr.bf16.mxu0 0
        %7108 = vmatpush1.bf16.msra.mxu0 %v7084
        %7109 = vmatprep.subr.bf16.mxu0 0
        %7110 = vmatpush1.bf16.msra.mxu0 0
        %7111 = vmatprep.subr.bf16.mxu0 0
        %7112 = vmatpush1.bf16.msra.mxu0 0
        %7113 = vmatprep.subr.bf16.mxu0 0
        %7114 = vmatpush1.bf16.msra.mxu0 0
        %7115 = vmatprep.subr.bf16.mxu0 0
        %7116 = vmatpush1.bf16.msra.mxu0 0
        %7117 = vmatprep.subr.bf16.mxu0 0
        %7118 = vmatpush1.bf16.msra.mxu0 0
        %7119 = vmatprep.subr.bf16.mxu0 0
        %7120 = vmatpush1.bf16.msra.mxu0 0
        %7121 = vmatprep.subr.bf16.mxu0 0
        %7122 = vmatpush1.bf16.msra.mxu0 0
        %7123 = vmatprep.subr.bf16.mxu0 0
        %7124 = vmatpush1.bf16.msra.mxu0 0
        %7125 = vmatprep.mubr.bf16.mxu0 0
        %7126 = vmatmul.mubr.bf16.gmra.mrb[0].mxu0 %v7006
        %v7127 = vpop.f32.mrb[0].mxu0
        %v7128 = vadd.f32 %v7043, %v7127
        %v7129 = vpop.f32.mrb[0].mxu0
        %v7130 = vpop.f32.mrb[0].mxu0
        %v7131 = vadd.f32 %v7043, %v7130
        %v7132 = vpop.f32.mrb[0].mxu0
        %7133 = vmatprep.mubr.bf16.mxu0 0
        %7134 = vmatmul.mubr.bf16.gmra.mrb[0].mxu0 %v7007
        %v7135 = vpop.f32.mrb[0].mxu0
        %v7136 = vadd.f32 %v7043, %v7135
        %v7137 = vpop.f32.mrb[0].mxu0
        %v7138 = vpop.f32.mrb[0].mxu0
        %v7139 = vadd.f32 %v7043, %v7138
        %v7140 = vpop.f32.mrb[0].mxu0
        %7141 = vmatprep.mubr.bf16.mxu0 0
        %7142 = vmatmul.mubr.bf16.gmra.mrb[0].mxu0 %v7008
        %v7143 = vpop.f32.mrb[0].mxu0
        %v7144 = vadd.f32 %v7043, %v7143
        %v7145 = vpop.f32.mrb[0].mxu0
        %v7146 = vpop.f32.mrb[0].mxu0
        %v7147 = vadd.f32 %v7043, %v7146
        %v7148 = vpop.f32.mrb[0].mxu0
        %7149 = vmatprep.mubr.bf16.mxu0 0
        %7150 = vmatmul.mubr.bf16.gmra.mrb[0].mxu0 %v7009
        %v7151 = vpop.f32.mrb[0].mxu0
        %v7152 = vadd.f32 %v7043, %v7151
        %v7153 = vpop.f32.mrb[0].mxu0
        %v7154 = vpop.f32.mrb[0].mxu0
        %v7155 = vadd.f32 %v7043, %v7154
        %v7156 = vpop.f32.mrb[0].mxu0
        %7157 = vmatprep.mubr.bf16.mxu0 0
        %7158 = vmatmul.mubr.bf16.gmra.mrb[0].mxu0 %v7010
        %v7159 = vpop.f32.mrb[0].mxu0
        %v7160 = vadd.f32 %v7043, %v7159
        %v7161 = vpop.f32.mrb[0].mxu0
        %v7162 = vpop.f32.mrb[0].mxu0
        %v7163 = vadd.f32 %v7043, %v7162
        %v7164 = vpop.f32.mrb[0].mxu0
        %7165 = vmatprep.mubr.bf16.mxu0 0
        %7166 = vmatmul.mubr.bf16.gmra.mrb[0].mxu0 %v7011
        %v7167 = vpop.f32.mrb[0].mxu0
        %v7168 = vadd.f32 %v7043, %v7167
        %v7169 = vpop.f32.mrb[0].mxu0
        %v7170 = vpop.f32.mrb[0].mxu0
        %v7171 = vadd.f32 %v7043, %v7170
        %v7172 = vpop.f32.mrb[0].mxu0
        %7173 = vmatprep.mubr.bf16.mxu0 0
        %7174 = vmatmul.mubr.bf16.gmra.mrb[0].mxu0 %v7012
        %v7175 = vpop.f32.mrb[0].mxu0
        %v7176 = vadd.f32 %v7043, %v7175
        %v7177 = vpop.f32.mrb[0].mxu0
        %v7178 = vpop.f32.mrb[0].mxu0
        %v7179 = vadd.f32 %v7043, %v7178
        %v7180 = vpop.f32.mrb[0].mxu0
        %7181 = vmatprep.mubr.bf16.mxu0 0
        %7182 = vmatmul.mubr.bf16.gmra.mrb[0].mxu0 %v7013
        %v7183 = vpop.f32.mrb[0].mxu0
        %v7184 = vadd.f32 %v7043, %v7183
        %v7185 = vpop.f32.mrb[0].mxu0
        %v7186 = vpop.f32.mrb[0].mxu0
        %v7187 = vadd.f32 %v7043, %v7186
        %v7188 = vpop.f32.mrb[0].mxu0
        %7189 = vmatprep.mubr.bf16.mxu0 0
        %7190 = vmatmul.mubr.bf16.gmra.mrb[0].mxu0 %v7014
        %v7191 = vpop.f32.mrb[0].mxu0
        %v7192 = vadd.f32 %v7043, %v7191
        %v7193 = vpop.f32.mrb[0].mxu0
        %v7194 = vpop.f32.mrb[0].mxu0
        %v7195 = vadd.f32 %v7043, %v7194
        %v7196 = vpop.f32.mrb[0].mxu0
        %7197 = vmatprep.mubr.bf16.mxu0 0
        %7198 = vmatmul.mubr.bf16.gmra.mrb[0].mxu0 %v7015
        %v7199 = vpop.f32.mrb[0].mxu0
        %v7200 = vadd.f32 %v7043, %v7199
        %v7201 = vpop.f32.mrb[0].mxu0
        %v7202 = vpop.f32.mrb[0].mxu0
        %v7203 = vadd.f32 %v7043, %v7202
        %v7204 = vpop.f32.mrb[0].mxu0
        %7205 = vmatprep.mubr.bf16.mxu0 0
        %7206 = vmatmul.mubr.bf16.gmra.mrb[0].mxu0 %v7016
        %v7207 = vpop.f32.mrb[0].mxu0
        %v7208 = vadd.f32 %v7043, %v7207
        %v7209 = vpop.f32.mrb[0].mxu0
        %v7210 = vpop.f32.mrb[0].mxu0
        %v7211 = vadd.f32 %v7043, %v7210
        %v7212 = vpop.f32.mrb[0].mxu0
        %7213 = vmatprep.mubr.bf16.mxu0 0
        %7214 = vmatmul.mubr.bf16.gmra.mrb[0].mxu0 %v7017
        %v7215 = vpop.f32.mrb[0].mxu0
        %v7216 = vadd.f32 %v7043, %v7215
        %v7217 = vpop.f32.mrb[0].mxu0
        %v7218 = vpop.f32.mrb[0].mxu0
        %v7219 = vadd.f32 %v7043, %v7218
        %v7220 = vpop.f32.mrb[0].mxu0
        %7221 = vmatprep.mubr.bf16.mxu0 0
        %7222 = vmatmul.mubr.bf16.gmra.mrb[0].mxu0 %v7018
        %v7223 = vpop.f32.mrb[0].mxu0
        %v7224 = vadd.f32 %v7043, %v7223
        %v7225 = vpop.f32.mrb[0].mxu0
        %v7226 = vpop.f32.mrb[0].mxu0
        %v7227 = vadd.f32 %v7043, %v7226
        %v7228 = vpop.f32.mrb[0].mxu0
        %7229 = vmatprep.mubr.bf16.mxu0 0
        %7230 = vmatmul.mubr.bf16.gmra.mrb[0].mxu0 %v7019
        %v7231 = vpop.f32.mrb[0].mxu0
        %v7232 = vadd.f32 %v7043, %v7231
        %v7233 = vpop.f32.mrb[0].mxu0
        %v7234 = vpop.f32.mrb[0].mxu0
        %v7235 = vadd.f32 %v7043, %v7234
        %v7236 = vpop.f32.mrb[0].mxu0
        %7237 = vmatprep.mubr.bf16.mxu0 0
        %7238 = vmatmul.mubr.bf16.gmra.mrb[0].mxu0 %v7020
        %v7239 = vpop.f32.mrb[0].mxu0
        %v7240 = vadd.f32 %v7043, %v7239
        %v7241 = vpop.f32.mrb[0].mxu0
        %v7242 = vpop.f32.mrb[0].mxu0
        %v7243 = vadd.f32 %v7043, %v7242
        %v7244 = vpop.f32.mrb[0].mxu0
        %7245 = vmatprep.mubr.bf16.mxu0 0
        %7246 = vmatmul.mubr.bf16.gmra.mrb[0].mxu0 %v7021
        %v7247 = vpop.f32.mrb[0].mxu0
        %v7248 = vadd.f32 %v7043, %v7247
        %v7249 = vpop.f32.mrb[0].mxu0
        %v7250 = vpop.f32.mrb[0].mxu0
        %v7251 = vadd.f32 %v7043, %v7250
        %v7252 = vpop.f32.mrb[0].mxu0
        %7253 = vdwg.mxu0
        %v7254 = vsub.f32 0.0, %v7128
        %v7255 = vsub.f32 0.0, %v7131
        %v7256 = vsub.f32 0.0, %v7136
        %v7257 = vsub.f32 0.0, %v7139
        %v7258 = vsub.f32 0.0, %v7144
        %v7259 = vsub.f32 0.0, %v7147
        %v7260 = vsub.f32 0.0, %v7152
        %v7261 = vsub.f32 0.0, %v7155
        %v7262 = vsub.f32 0.0, %v7160
        %v7263 = vsub.f32 0.0, %v7163
        %v7264 = vsub.f32 0.0, %v7168
        %v7265 = vsub.f32 0.0, %v7171
        %v7266 = vsub.f32 0.0, %v7176
        %v7267 = vsub.f32 0.0, %v7179
        %v7268 = vsub.f32 0.0, %v7184
        %v7269 = vsub.f32 0.0, %v7187
        %v7270 = vsub.f32 0.0, %v7192
        %v7271 = vsub.f32 0.0, %v7195
        %v7272 = vsub.f32 0.0, %v7200
        %v7273 = vsub.f32 0.0, %v7203
        %v7274 = vsub.f32 0.0, %v7208
        %v7275 = vsub.f32 0.0, %v7211
        %v7276 = vsub.f32 0.0, %v7216
        %v7277 = vsub.f32 0.0, %v7219
        %v7278 = vsub.f32 0.0, %v7224
        %v7279 = vsub.f32 0.0, %v7227
        %v7280 = vsub.f32 0.0, %v7232
        %v7281 = vsub.f32 0.0, %v7235
        %v7282 = vsub.f32 0.0, %v7240
        %v7283 = vsub.f32 0.0, %v7243
        %v7284 = vsub.f32 0.0, %v7248
        %v7285 = vsub.f32 0.0, %v7251
        %v7286 = vmul.f32 %v7254, 1.442695
        %v7287 = vpow.pop %v7286
        %v7288 = vmul.f32 %v7255, 1.442695
        %v7289 = vpow.pop %v7288
        %v7290 = vmul.f32 %v7256, 1.442695
        %v7291 = vpow.pop %v7290
        %v7292 = vmul.f32 %v7257, 1.442695
        %v7293 = vpow.pop %v7292
        %v7294 = vmul.f32 %v7258, 1.442695
        %v7295 = vpow.pop %v7294
        %v7296 = vmul.f32 %v7259, 1.442695
        %v7297 = vpow.pop %v7296
        %v7298 = vmul.f32 %v7260, 1.442695
        %v7299 = vpow.pop %v7298
        %v7300 = vmul.f32 %v7261, 1.442695
        %v7301 = vpow.pop %v7300
        %v7302 = vmul.f32 %v7262, 1.442695
        %v7303 = vpow.pop %v7302
        %v7304 = vmul.f32 %v7263, 1.442695
        %v7305 = vpow.pop %v7304
        %v7306 = vmul.f32 %v7264, 1.442695
        %v7307 = vpow.pop %v7306
        %v7308 = vmul.f32 %v7265, 1.442695
        %v7309 = vpow.pop %v7308
        %v7310 = vmul.f32 %v7266, 1.442695
        %v7311 = vpow.pop %v7310
        %v7312 = vmul.f32 %v7267, 1.442695
        %v7313 = vpow.pop %v7312
        %v7314 = vmul.f32 %v7268, 1.442695
        %v7315 = vpow.pop %v7314
        %v7316 = vmul.f32 %v7269, 1.442695
        %v7317 = vpow.pop %v7316
        %v7318 = vmul.f32 %v7270, 1.442695
        %v7319 = vpow.pop %v7318
        %v7320 = vmul.f32 %v7271, 1.442695
        %v7321 = vpow.pop %v7320
        %v7322 = vmul.f32 %v7272, 1.442695
        %v7323 = vpow.pop %v7322
        %v7324 = vmul.f32 %v7273, 1.442695
        %v7325 = vpow.pop %v7324
        %v7326 = vmul.f32 %v7274, 1.442695
        %v7327 = vpow.pop %v7326
        %v7328 = vmul.f32 %v7275, 1.442695
        %v7329 = vpow.pop %v7328
        %v7330 = vmul.f32 %v7276, 1.442695
        %v7331 = vpow.pop %v7330
        %v7332 = vmul.f32 %v7277, 1.442695
        %v7333 = vpow.pop %v7332
        %v7334 = vmul.f32 %v7278, 1.442695
        %v7335 = vpow.pop %v7334
        %v7336 = vmul.f32 %v7279, 1.442695
        %v7337 = vpow.pop %v7336
        %v7338 = vmul.f32 %v7280, 1.442695
        %v7339 = vpow.pop %v7338
        %v7340 = vmul.f32 %v7281, 1.442695
        %v7341 = vpow.pop %v7340
        %v7342 = vmul.f32 %v7282, 1.442695
        %v7343 = vpow.pop %v7342
        %v7344 = vmul.f32 %v7283, 1.442695
        %v7345 = vpow.pop %v7344
        %v7346 = vmul.f32 %v7284, 1.442695
        %v7347 = vpow.pop %v7346
        %v7348 = vmul.f32 %v7285, 1.442695
        %v7349 = vpow.pop %v7348
        %v7350 = vadd.f32 %v7287, 1.0
        %v7351 = vadd.f32 %v7289, 1.0
        %v7352 = vadd.f32 %v7291, 1.0
        %v7353 = vadd.f32 %v7293, 1.0
        %v7354 = vadd.f32 %v7295, 1.0
        %v7355 = vadd.f32 %v7297, 1.0
        %v7356 = vadd.f32 %v7299, 1.0
        %v7357 = vadd.f32 %v7301, 1.0
        %v7358 = vadd.f32 %v7303, 1.0
        %v7359 = vadd.f32 %v7305, 1.0
        %v7360 = vadd.f32 %v7307, 1.0
        %v7361 = vadd.f32 %v7309, 1.0
        %v7362 = vadd.f32 %v7311, 1.0
        %v7363 = vadd.f32 %v7313, 1.0
        %v7364 = vadd.f32 %v7315, 1.0
        %v7365 = vadd.f32 %v7317, 1.0
        %v7366 = vadd.f32 %v7319, 1.0
        %v7367 = vadd.f32 %v7321, 1.0
        %v7368 = vadd.f32 %v7323, 1.0
        %v7369 = vadd.f32 %v7325, 1.0
        %v7370 = vadd.f32 %v7327, 1.0
        %v7371 = vadd.f32 %v7329, 1.0
        %v7372 = vadd.f32 %v7331, 1.0
        %v7373 = vadd.f32 %v7333, 1.0
        %v7374 = vadd.f32 %v7335, 1.0
        %v7375 = vadd.f32 %v7337, 1.0
        %v7376 = vadd.f32 %v7339, 1.0
        %v7377 = vadd.f32 %v7341, 1.0
        %v7378 = vadd.f32 %v7343, 1.0
        %v7379 = vadd.f32 %v7345, 1.0
        %v7380 = vadd.f32 %v7347, 1.0
        %v7381 = vadd.f32 %v7349, 1.0
        %v7382 = vrcp.pop %v7350
        %v7383 = vmul.f32 0.98, %v7382
        %v7384 = vrcp.pop %v7351
        %v7385 = vmul.f32 0.98, %v7384
        %v7386 = vrcp.pop %v7352
        %v7387 = vmul.f32 0.98, %v7386
        %v7388 = vrcp.pop %v7353
        %v7389 = vmul.f32 0.98, %v7388
        %v7390 = vrcp.pop %v7354
        %v7391 = vmul.f32 0.98, %v7390
        %v7392 = vrcp.pop %v7355
        %v7393 = vmul.f32 0.98, %v7392
        %v7394 = vrcp.pop %v7356
        %v7395 = vmul.f32 0.98, %v7394
        %v7396 = vrcp.pop %v7357
        %v7397 = vmul.f32 0.98, %v7396
        %v7398 = vrcp.pop %v7358
        %v7399 = vmul.f32 0.98, %v7398
        %v7400 = vrcp.pop %v7359
        %v7401 = vmul.f32 0.98, %v7400
        %v7402 = vrcp.pop %v7360
        %v7403 = vmul.f32 0.98, %v7402
        %v7404 = vrcp.pop %v7361
        %v7405 = vmul.f32 0.98, %v7404
        %v7406 = vrcp.pop %v7362
        %v7407 = vmul.f32 0.98, %v7406
        %v7408 = vrcp.pop %v7363
        %v7409 = vmul.f32 0.98, %v7408
        %v7410 = vrcp.pop %v7364
        %v7411 = vmul.f32 0.98, %v7410
        %v7412 = vrcp.pop %v7365
        %v7413 = vmul.f32 0.98, %v7412
        %v7414 = vrcp.pop %v7366
        %v7415 = vmul.f32 0.98, %v7414
        %v7416 = vrcp.pop %v7367
        %v7417 = vmul.f32 0.98, %v7416
        %v7418 = vrcp.pop %v7368
        %v7419 = vmul.f32 0.98, %v7418
        %v7420 = vrcp.pop %v7369
        %v7421 = vmul.f32 0.98, %v7420
        %v7422 = vrcp.pop %v7370
        %v7423 = vmul.f32 0.98, %v7422
        %v7424 = vrcp.pop %v7371
        %v7425 = vmul.f32 0.98, %v7424
        %v7426 = vrcp.pop %v7372
        %v7427 = vmul.f32 0.98, %v7426
        %v7428 = vrcp.pop %v7373
        %v7429 = vmul.f32 0.98, %v7428
        %v7430 = vrcp.pop %v7374
        %v7431 = vmul.f32 0.98, %v7430
        %v7432 = vrcp.pop %v7375
        %v7433 = vmul.f32 0.98, %v7432
        %v7434 = vrcp.pop %v7376
        %v7435 = vmul.f32 0.98, %v7434
        %v7436 = vrcp.pop %v7377
        %v7437 = vmul.f32 0.98, %v7436
        %v7438 = vrcp.pop %v7378
        %v7439 = vmul.f32 0.98, %v7438
        %v7440 = vrcp.pop %v7379
        %v7441 = vmul.f32 0.98, %v7440
        %v7442 = vrcp.pop %v7380
        %v7443 = vmul.f32 0.98, %v7442
        %v7444 = vrcp.pop %v7381
        %v7445 = vmul.f32 0.98, %v7444
        %v7446 = vadd.f32 %v7383, 0.01
        %v7447 = vadd.f32 %v7385, 0.01
        %v7448 = vadd.f32 %v7387, 0.01
        %v7449 = vadd.f32 %v7389, 0.01
        %v7450 = vadd.f32 %v7391, 0.01
        %v7451 = vadd.f32 %v7393, 0.01
        %v7452 = vadd.f32 %v7395, 0.01
        %v7453 = vadd.f32 %v7397, 0.01
        %v7454 = vadd.f32 %v7399, 0.01
        %v7455 = vadd.f32 %v7401, 0.01
        %v7456 = vadd.f32 %v7403, 0.01
        %v7457 = vadd.f32 %v7405, 0.01
        %v7458 = vadd.f32 %v7407, 0.01
        %v7459 = vadd.f32 %v7409, 0.01
        %v7460 = vadd.f32 %v7411, 0.01
        %v7461 = vadd.f32 %v7413, 0.01
        %v7462 = vadd.f32 %v7415, 0.01
        %v7463 = vadd.f32 %v7417, 0.01
        %v7464 = vadd.f32 %v7419, 0.01
        %v7465 = vadd.f32 %v7421, 0.01
        %v7466 = vadd.f32 %v7423, 0.01
        %v7467 = vadd.f32 %v7425, 0.01
        %v7468 = vadd.f32 %v7427, 0.01
        %v7469 = vadd.f32 %v7429, 0.01
        %v7470 = vadd.f32 %v7431, 0.01
        %v7471 = vadd.f32 %v7433, 0.01
        %v7472 = vadd.f32 %v7435, 0.01
        %v7473 = vadd.f32 %v7437, 0.01
        %v7474 = vadd.f32 %v7439, 0.01
        %v7475 = vadd.f32 %v7441, 0.01
        %v7476 = vadd.f32 %v7443, 0.01
        %v7477 = vadd.f32 %v7445, 0.01
        %7478 = vst [vmem:[%s407] sm:$0xff] %v7446
        %7479 = vst [vmem:[%s407 + $0x8] sm:$0xff] %v7447
        %7480 = vst [vmem:[%s407 + $0x10] sm:$0xff] %v7448
        %7481 = vst [vmem:[%s407 + $0x18] sm:$0xff] %v7449
        %7482 = vst [vmem:[%s407 + $0x20] sm:$0xff] %v7450
        %7483 = vst [vmem:[%s407 + $0x28] sm:$0xff] %v7451
        %7484 = vst [vmem:[%s407 + $0x30] sm:$0xff] %v7452
        %7485 = vst [vmem:[%s407 + $0x38] sm:$0xff] %v7453
        %7486 = vst [vmem:[%s407 + $0x40] sm:$0xff] %v7454
        %7487 = vst [vmem:[%s407 + $0x48] sm:$0xff] %v7455
        %7488 = vst [vmem:[%s407 + $0x50] sm:$0xff] %v7456
        %7489 = vst [vmem:[%s407 + $0x58] sm:$0xff] %v7457
        %7490 = vst [vmem:[%s407 + $0x60] sm:$0xff] %v7458
        %7491 = vst [vmem:[%s407 + $0x68] sm:$0xff] %v7459
        %7492 = vst [vmem:[%s407 + $0x70] sm:$0xff] %v7460
        %7493 = vst [vmem:[%s407 + $0x78] sm:$0xff] %v7461
        %7494 = vst [vmem:[%s407 + $0x80] sm:$0xff] %v7462
        %7495 = vst [vmem:[%s407 + $0x88] sm:$0xff] %v7463
        %7496 = vst [vmem:[%s407 + $0x90] sm:$0xff] %v7464
        %7497 = vst [vmem:[%s407 + $0x98] sm:$0xff] %v7465
        %7498 = vst [vmem:[%s407 + $0xa0] sm:$0xff] %v7466
        %7499 = vst [vmem:[%s407 + $0xa8] sm:$0xff] %v7467
        %7500 = vst [vmem:[%s407 + $0xb0] sm:$0xff] %v7468
        %7501 = vst [vmem:[%s407 + $0xb8] sm:$0xff] %v7469
        %7502 = vst [vmem:[%s407 + $0xc0] sm:$0xff] %v7470
        %7503 = vst [vmem:[%s407 + $0xc8] sm:$0xff] %v7471
        %7504 = vst [vmem:[%s407 + $0xd0] sm:$0xff] %v7472
        %7505 = vst [vmem:[%s407 + $0xd8] sm:$0xff] %v7473
        %7506 = vst [vmem:[%s407 + $0xe0] sm:$0xff] %v7474
        %7507 = vst [vmem:[%s407 + $0xe8] sm:$0xff] %v7475
        %7508 = vst [vmem:[%s407 + $0xf0] sm:$0xff] %v7476
        %7509 = vst [vmem:[%s407 + $0xf8] sm:$0xff] %v7477
        %s7510 = sand.u32 %s291, 1
        %s7511 = scalar_lea.sflag [#allocation3], %s7510
        %s7512 = sand.u32 %s291, 1
        %s7513 = smul.addr %s7512, 256
        %s7514 = scalar_lea.vmem [#allocation2], %s7513
        // Predicated region
        $region69: #{tpu_custom_call.1} parent=67 // pred_check
          %p7515 = pneg %p301
        $region70: #{tpu_custom_call.1} parent=67 // pred_check_branch
          %7517 = sbr.rel (%p7515) target = $region72
        $region71: #{tpu_custom_call.1} parent=67 // pred_region
          %s7518 = smul.u32 32, %s26
          %s7520 = ssub.s32 4096, 4096
          %7521 = vsyncadd %s7511, %s7520
          %s7522 = smul.addr %s7518, 128
          %s7523 = scalar_lea.hbm %s12, %s7522
          %s7524 = sshll.u32 %s7514, 4
          %s7525 = int_to_ptr.vmem [resolvable:$true] %s7524
          %7530 = dma.vmem_to_hbm [thread:$0]  %s7525, 4096, %s7523, %s7511, 128, 128, 8
        $region72: #{tpu_custom_call.1} parent=67 // pred_fallthru
          _
      $region68: #{tpu_custom_call.1} parent=5 // pred_fallthru
        _
      %p7531 = scmp.le.s32.totalorder 2, %s21
      // Predicated region
      $region73: #{tpu_custom_call.1} parent=5 // pred_check
        %p7532 = pneg %p7531
      $region74: #{tpu_custom_call.1} parent=5 // pred_check_branch
        %7534 = sbr.rel (%p7532) target = $region76
      $region75: #{tpu_custom_call.1} parent=5 // pred_region
        %s7535 = ssub.s32 %s21, 2
        // Predicated region
        $region77: #{tpu_custom_call.1} parent=75 // pred_check
          %p7536 = pneg %p307
        $region78: #{tpu_custom_call.1} parent=75 // pred_check_branch
          %7538 = sbr.rel (%p7536) target = $region80
        $region79: #{tpu_custom_call.1} parent=75 // pred_region
          %s7539 = sand.u32 %s292, 1
          %s7540 = scalar_lea.sflag [#allocation3], %s7539
          %s7541 = sand.u32 %s292, 1
          %s7542 = smul.addr %s7541, 256
          %s7543 = scalar_lea.vmem [#allocation2], %s7542
          %7544 = dma.done %s7540, 4096
        $region80: #{tpu_custom_call.1} parent=75 // pred_fallthru
          _
      $region76: #{tpu_custom_call.1} parent=5 // pred_fallthru
        _
    $region6: #{tpu_custom_call.1} parent=1 // loop_footer
      %s25 = sadd.s32 1, %s21
    $region7: #{tpu_custom_call.1} parent=1 // loop_footer_branch
      %20 = sbr.rel target = $region3
    $region8: #{tpu_custom_call.1} parent=1 // loop_exit
      _
    %7545 = vsyncpa [#allocation3], 1
    %s7546 = scalar_lea.sflag [#allocation3], 1
    %7547 = vsyncpa %s7546, 1

</llo_original>
